<compile_context>
chip_gen: v7x
topology: tpu7x:2x2x1
jax: 0.10.0
libtpu: 0.0.40
codegen_flags: <defaults>
</compile_context>

<pallas_src>
import math

import jax
import jax.numpy as jnp
from jax import lax
from jax.experimental import pallas as pl
from jax.experimental.pallas import tpu as pltpu

# ---------------- config (small shapes consistent with module __init__) -----
B = 2            # args.batch_size
HIST = 8         # history length
TGT = 8          # args.tgt_len
D = 32           # args.transformer_dim
HEADS = 2        # args.transformer_heads
FF = 64          # args.dim_feedforward
NENC = 2         # args.num_encoder_layers
NDEC = 2         # args.num_decoder_layers
C = 4            # num_classes
NSTEPS = 100     # args.diffusion_steps
LN_EPS = 1e-5

BH = B * HIST    # batch-folded history rows  (16)
BL = B * TGT     # batch-folded target rows   (16)
HD = D // HEADS  # head dim (16)
SK = BH          # keys per fused-head segment (all attention blocks use 16 keys)
assert BH == BL == SK

# packed bias-vector row layout (each row zero-padded to 128 lanes)
_E_VROWS = 8     # bqkv, bo, g1, b1, bf1, bf2, g2, b2
_D_VROWS = 13    # bqkv, bo_s, g1, b1, bq_c, bkv_c, bo_c, g2, b2, bf1, bf2, g3, b3
_HEAD_BASE = NENC * _E_VROWS + 2 * NDEC * _D_VROWS    # 68: b_type, w_time, b_time
_N_VROWS = _HEAD_BASE + 3


# ---------------------------- fused Pallas kernel -----------------------------
def _fused_kernel(data_ref, bias_ref, vecs_ref, e_mat_ref, e_wf2_ref,
                  d_mat_ref, d_wf2_ref, w_type_ref, out_ref):
    f32 = jnp.float32
    bf16 = jnp.bfloat16
    scale = 1.0 / math.sqrt(HD)

    # bf16 MXU operands (weights are pre-cast host-side), f32 accumulation.
    def mm(a, b):
        return jnp.dot(a.astype(bf16), b.astype(bf16), preferred_element_type=f32)

    def mm_t(a, b):  # a @ b.T (contract last dim with last dim)
        return lax.dot_general(a.astype(bf16), b.astype(bf16),
                               (((1,), (1,)), ((), ())), preferred_element_type=f32)

    def vrow(i, w):  # one packed bias/gain row, static slice -> (1, w)
        return vecs_ref[i:i + 1, 0:w]

    def ln(x, g, b):
        mu = jnp.mean(x, axis=-1, keepdims=True)
        xc = x - mu
        var = jnp.mean(xc * xc, axis=-1, keepdims=True)
        return xc * lax.rsqrt(var + LN_EPS) * g + b

    # Constants for the fused 2-head attention (built once, reused by all 6 blocks).
    row2 = lax.broadcasted_iota(jnp.int32, (2 * SK, D), 0)
    lane2 = lax.broadcasted_iota(jnp.int32, (2 * SK, D), 1)
    seg_mask = ((row2 < SK) == (lane2 < HD)).astype(f32)          # head-h rows keep head-h lanes
    col_lt = lax.broadcasted_iota(jnp.int32, (1, 2 * SK), 1) < SK
    lane_lt = lax.broadcasted_iota(jnp.int32, (1, D), 1) < HD

    def attn(q, k, v, bias):
        # Both heads in TWO matmuls: head-masked K/V stacked along sublanes.
        k2 = jnp.concatenate([k, k], axis=0) * seg_mask            # (2*SK, D)
        v2 = jnp.concatenate([v, v], axis=0) * seg_mask
        s = mm_t(q, k2) * scale + bias                             # (R, 2*SK)
        # row-global max is a valid per-segment stabilizer (softmax shift-invariance)
        p = jnp.exp(s - jnp.max(s, axis=-1, keepdims=True))
        l0 = jnp.sum(jnp.where(col_lt, p, 0.0), axis=-1, keepdims=True)
        l1 = jnp.sum(p, axis=-1, keepdims=True) - l0
        o = mm(p, v2)                                              # un-normalized head concat
        r0 = pl.reciprocal(l0, approx=True)                        # EUP slot
        r1 = pl.reciprocal(l1, approx=True)
        return o * jnp.where(lane_lt, r0, r1)                      # per-head normalization

    def enc_layer(x, l):
        base = l * _E_VROWS
        qkv = mm(x, e_mat_ref[l, :, 0:3 * D]) + vrow(base + 0, 3 * D)
        q = qkv[:, 0:D]; k = qkv[:, D:2 * D]; v = qkv[:, 2 * D:3 * D]
        a = mm(attn(q, k, v, bias_ref[0]), e_mat_ref[l, :, 3 * D:4 * D]) + vrow(base + 1, D)
        x = ln(x + a, vrow(base + 2, D), vrow(base + 3, D))
        h = jnp.maximum(mm(x, e_mat_ref[l, :, 4 * D:4 * D + FF]) + vrow(base + 4, FF), 0.0)
        h = mm(h, e_wf2_ref[l]) + vrow(base + 5, D)
        return ln(x + h, vrow(base + 6, D), vrow(base + 7, D))

    def dec_layer(x, mem_bf, d):
        base = NENC * _E_VROWS + d * _D_VROWS
        # self-attention over targets
        qkv = mm(x, d_mat_ref[d, :, 0:3 * D]) + vrow(base + 0, 3 * D)
        q = qkv[:, 0:D]; k = qkv[:, D:2 * D]; v = qkv[:, 2 * D:3 * D]
        a = mm(attn(q, k, v, bias_ref[1]), d_mat_ref[d, :, 3 * D:4 * D]) + vrow(base + 1, D)
        x = ln(x + a, vrow(base + 2, D), vrow(base + 3, D))
        # cross-attention over history memory (fused K/V projection)
        qc = mm(x, d_mat_ref[d, :, 4 * D:5 * D]) + vrow(base + 4, D)
        kvc = mm(mem_bf, d_mat_ref[d, :, 5 * D:7 * D]) + vrow(base + 5, 2 * D)
        kc = kvc[:, 0:D]; vc = kvc[:, D:2 * D]
        a = mm(attn(qc, kc, vc, bias_ref[2]), d_mat_ref[d, :, 7 * D:8 * D]) + vrow(base + 6, D)
        x = ln(x + a, vrow(base + 7, D), vrow(base + 8, D))
        # feed-forward
        h = jnp.maximum(mm(x, d_mat_ref[d, :, 8 * D:8 * D + FF]) + vrow(base + 9, FF), 0.0)
        h = mm(h, d_wf2_ref[d]) + vrow(base + 10, D)
        return ln(x + h, vrow(base + 11, D), vrow(base + 12, D))

    # unpack the single consolidated data block
    enc_in = data_ref[:, 0:D]
    type_in = data_ref[:, D:2 * D]
    time_in = data_ref[:, 2 * D:3 * D]
    onehot = data_ref[:, 3 * D:3 * D + C]
    eps = data_ref[:, 3 * D + C:3 * D + C + 1]

    # ---------------- HistoryEncoder stack --------------------------------------
    h = enc_in
    for l in range(NENC):
        h = enc_layer(h, l)
    mem_bf = h.astype(bf16)       # cast once; reused by all 4 cross-attention blocks

    # ---------------- TypeDenoisingModule decoder stack -------------------------
    ht = type_in
    for d in range(NDEC):
        ht = dec_layer(ht, mem_bf, d)

    # ---------------- TimeDenoisingModule decoder stack -------------------------
    hx = time_in
    for d in range(NDEC):
        hx = dec_layer(hx, mem_bf, NDEC + d)

    # ---------------- output heads + losses --------------------------------------
    logits = mm(ht, w_type_ref[...]) + vrow(_HEAD_BASE + 0, C)     # (BL, C)
    mx = jnp.max(logits, axis=-1, keepdims=True)
    lse = mx + jnp.log(jnp.sum(jnp.exp(logits - mx), axis=-1, keepdims=True))
    type_l = lse - jnp.sum(logits * onehot, axis=-1, keepdims=True)   # CE, (BL,1)

    # time head: VPU broadcast-multiply + lane reduce (no (D,1) MXU matmul)
    w_time = vrow(_HEAD_BASE + 1, D)
    b_time = vrow(_HEAD_BASE + 2, 1)
    eps_pred = jnp.sum(hx * w_time, axis=-1, keepdims=True) + b_time
    diff = eps_pred - eps
    dt_l = diff * diff                                                # MSE, (BL,1)

    # TabDiffEventSeqModel.forward reductions: sum over seq, mean over batch.
    inv_b = 1.0 / B
    type_s = jnp.sum(type_l, keepdims=True) * inv_b                   # (1,1)
    dt_s = jnp.sum(dt_l, keepdims=True) * inv_b                       # (1,1)
    out_ref[...] = jnp.concatenate([type_s + dt_s, dt_s, type_s], axis=1)   # (1,3)


# ---------------------------- parameter init ----------------------------------
def _dense(key, shape, scale=0.02):
    return scale * jax.random.normal(key, shape, dtype=jnp.float32)


def init_params(key):
    ks = jax.random.split(key, 13)
    z = lambda n: jnp.zeros((n,), jnp.float32)
    o = lambda n: jnp.ones((n,), jnp.float32)

    def enc_layer(k):
        k0, k1, k2, k3 = jax.random.split(k, 4)
        return dict(wqkv=_dense(k0, (D, 3 * D)), bqkv=z(3 * D),
                    wo=_dense(k1, (D, D)), bo=z(D), g1=o(D), b1=z(D),
                    wf1=_dense(k2, (D, FF)), bf1=z(FF),
                    wf2=_dense(k3, (FF, D)), bf2=z(D), g2=o(D), b2=z(D))

    def dec_layer(k):
        k0, k1, k2, k3, k4, k5, k6 = jax.random.split(k, 7)
        return dict(wqkv=_dense(k0, (D, 3 * D)), bqkv=z(3 * D),
                    wo_s=_dense(k1, (D, D)), bo_s=z(D), g1=o(D), b1=z(D),
                    wq_c=_dense(k2, (D, D)), bq_c=z(D),
                    wkv_c=_dense(k3, (D, 2 * D)), bkv_c=z(2 * D),
                    wo_c=_dense(k4, (D, D)), bo_c=z(D), g2=o(D), b2=z(D),
                    wf1=_dense(k5, (D, FF)), bf1=z(FF),
                    wf2=_dense(k6, (FF, D)), bf2=z(D), g3=o(D), b3=z(D))

    return dict(
        type_emb=_dense(ks[0], (C, D)),
        w_dt=_dense(ks[1], (1, D)), b_dt=jnp.zeros((1, D), jnp.float32),
        w_ts=_dense(ks[2], (1, D)),
        pos_emb_enc=_dense(ks[3], (HIST, D)),
        pos_emb_dec=_dense(ks[4], (TGT, D)),
        t_emb=_dense(ks[5], (NSTEPS, D)),
        type_in_emb=_dense(ks[6], (C, D)),
        w_x_in=_dense(ks[7], (1, D)), b_x_in=jnp.zeros((1, D), jnp.float32),
        w_type_out=_dense(ks[8], (D, C)), b_type_out=z(C),
        w_time_out=_dense(ks[9], (D,)), b_time_out=z(1),
        enc=[enc_layer(k) for k in jax.random.split(ks[10], NENC)],
        dec=([dec_layer(k) for k in jax.random.split(ks[11], NDEC)]       # type branch
             + [dec_layer(k) for k in jax.random.split(ks[12], NDEC)]),   # time branch
    )


# ---------------------------- host-side packing (done ONCE) -------------------
def _row128(a):
    a = jnp.asarray(a, jnp.float32).reshape(1, -1)
    return jnp.pad(a, ((0, 0), (0, 128 - a.shape[1])))


def _block_bias(nr, per_r, nk, per_k):
    # exact integer block-diagonal (per-batch) attention bias, tiled for the 2 head segments
    r = (jnp.arange(nr) // per_r)[:, None]
    c = (jnp.arange(nk) // per_k)[None, :]
    m = jnp.where(r == c, 0.0, -1e30).astype(jnp.float32)
    return jnp.concatenate([m, m], axis=1)


def pack_inputs(p):
    bf16 = jnp.bfloat16
    rows = []
    for el in p['enc']:
        rows += [_row128(el[k]) for k in ('bqkv', 'bo', 'g1', 'b1', 'bf1', 'bf2', 'g2', 'b2')]
    for dl in p['dec']:
        rows += [_row128(dl[k]) for k in ('bqkv', 'bo_s', 'g1', 'b1', 'bq_c', 'bkv_c', 'bo_c',
                                          'g2', 'b2', 'bf1', 'bf2', 'g3', 'b3')]
    rows += [_row128(p['b_type_out']), _row128(p['w_time_out']), _row128(p['b_time_out'])]
    vecs = jnp.concatenate(rows, axis=0)                                    # (_N_VROWS, 128)
    assert vecs.shape[0] == _N_VROWS

    e_mat = jnp.stack([jnp.concatenate([el['wqkv'], el['wo'], el['wf1']], axis=1)
                       for el in p['enc']]).astype(bf16)                    # (NENC, D, 6D)
    e_wf2 = jnp.stack([el['wf2'] for el in p['enc']]).astype(bf16)          # (NENC, FF, D)
    d_mat = jnp.stack([jnp.concatenate([dl['wqkv'], dl['wo_s'], dl['wq_c'], dl['wkv_c'],
                                        dl['wo_c'], dl['wf1']], axis=1)
                       for dl in p['dec']]).astype(bf16)                    # (4, D, 10D)
    d_wf2 = jnp.stack([dl['wf2'] for dl in p['dec']]).astype(bf16)          # (4, FF, D)
    w_type = p['w_type_out'].astype(bf16)                                   # (D, C)

    bias_pack = jnp.stack([_block_bias(BH, HIST, BH, HIST),   # encoder self-attn
                           _block_bias(BL, TGT, BL, TGT),     # decoder self-attn
                           _block_bias(BL, TGT, BH, HIST)])   # decoder cross-attn

    glue = {k: p[k] for k in ('type_emb', 'w_dt', 'b_dt', 'w_ts', 'pos_emb_enc',
                              'pos_emb_dec', 't_emb', 'type_in_emb', 'w_x_in', 'b_x_in')}
    return dict(glue=glue, vecs=vecs, bias_pack=bias_pack, e_mat=e_mat, e_wf2=e_wf2,
                d_mat=d_mat, d_wf2=d_wf2, w_type=w_type)


# ---------------------------- forward (compute_loss path) ---------------------
@jax.jit
def forward(packed, hist_x, hist_e, tgt_x, tgt_e, hist_time_stamps, key):
    g = packed['glue']
    k_t, k_eps = jax.random.split(key, 2)

    # diffusion schedule + random timestep per batch element (kept in JAX wrapper)
    betas = jnp.linspace(1e-4, 0.02, NSTEPS, dtype=jnp.float32)
    alpha_bar = jnp.cumprod(1.0 - betas)
    t = jax.random.randint(k_t, (B,), 0, NSTEPS)
    ab = jnp.repeat(alpha_bar[t], TGT)[:, None]                       # (BL, 1)
    eps = jax.random.normal(k_eps, (BL, 1), dtype=jnp.float32)

    # HistoryEncoder embedding glue (gathers hoisted out of the kernel)
    he = hist_e.reshape(-1)
    enc_in = (g['type_emb'][he]
              + hist_x.reshape(-1, 1) * g['w_dt'] + g['b_dt']
              + hist_time_stamps.reshape(-1, 1) * g['w_ts']
              + jnp.tile(g['pos_emb_enc'], (B, 1)))                   # (BH, D)

    # forward diffusion + decoder input embeddings
    te = tgt_e.reshape(-1)
    onehot = jax.nn.one_hot(te, C, dtype=jnp.float32)                 # (BL, C)
    x_t = jnp.sqrt(ab) * tgt_x.reshape(-1, 1) + jnp.sqrt(1.0 - ab) * eps
    t_row = g['t_emb'][jnp.repeat(t, TGT)]                            # (BL, D)
    pos_d = jnp.tile(g['pos_emb_dec'], (B, 1))                        # (BL, D)
    # e_probs @ type_in_emb computed analytically (smoothed one-hot gather)
    type_in_sum = jnp.sum(g['type_in_emb'], axis=0, keepdims=True)
    type_dec_in = ab * g['type_in_emb'][te] + (1.0 - ab) * (1.0 / C) * type_in_sum + t_row + pos_d
    time_dec_in = x_t * g['w_x_in'] + g['b_x_in'] + t_row + pos_d

    # one consolidated data block: [enc_in | type_dec_in | time_dec_in | onehot | eps]
    data = jnp.concatenate([enc_in, type_dec_in, time_dec_in, onehot, eps], axis=1)  # (16,101)

    out = pl.pallas_call(
        _fused_kernel,
        out_shape=jax.ShapeDtypeStruct((1, 3), jnp.float32),
        in_specs=[pl.BlockSpec(memory_space=pltpu.MemorySpace.VMEM)] * 8,
        out_specs=pl.BlockSpec(memory_space=pltpu.MemorySpace.VMEM),
    )(data, packed['bias_pack'], packed['vecs'], packed['e_mat'], packed['e_wf2'],
      packed['d_mat'], packed['d_wf2'], packed['w_type'])

    return out[0, 0], out[0, 1], out[0, 2]


if __name__ == "__main__":
    key = jax.random.PRNGKey(0)
    kp, kd, k1, k2, k3, k4 = jax.random.split(key, 6)
    params = init_params(kp)
    packed = pack_inputs(params)     # packed once, outside the jitted step

    hist_e = jax.random.randint(k1, (B, HIST), 0, C)
    hist_x = jax.random.uniform(k2, (B, HIST), dtype=jnp.float32)
    hist_time_stamps = jnp.cumsum(hist_x, axis=-1)
    tgt_e = jax.random.randint(k3, (B, TGT), 0, C)
    tgt_x = jax.random.uniform(k4, (B, TGT), dtype=jnp.float32)

    out = forward(packed, hist_x, hist_e, tgt_x, tgt_e, hist_time_stamps, kd)
    jax.block_until_ready(out)
    loss, dt_loss, type_loss = out
    assert loss.shape == () and dt_loss.shape == () and type_loss.shape == ()
    assert bool(jnp.isfinite(loss)) and bool(jnp.isfinite(dt_loss)) and bool(jnp.isfinite(type_loss))
    print("KERNEL_OK")
</pallas_src>

<mosaic_0001>
module attributes {stable_mosaic.version = 11 : i64} {
  func.func @_fused_kernel(%arg0: memref<16x101xf32, #tpu.memory_space<vmem>>, %arg1: memref<3x16x32xf32, #tpu.memory_space<vmem>>, %arg2: memref<71x128xf32, #tpu.memory_space<vmem>>, %arg3: memref<2x32x192xbf16, #tpu.memory_space<vmem>>, %arg4: memref<2x64x32xbf16, #tpu.memory_space<vmem>>, %arg5: memref<4x32x320xbf16, #tpu.memory_space<vmem>>, %arg6: memref<4x64x32xbf16, #tpu.memory_space<vmem>>, %arg7: memref<32x4xbf16, #tpu.memory_space<vmem>>, %arg8: memref<1x3xf32, #tpu.memory_space<vmem>>) attributes {dimension_semantics = [], scalar_prefetch = 0 : i64, scratch_operands = 0 : i64, tpu.core_type = #tpu.core_type<tc>} {
    %0 = tpu.iota {dimensions = array<i32: 0>} : vector<32x32xi32>
    %1 = tpu.iota {dimensions = array<i32: 1>} : vector<32x32xi32>
    %c16_i32 = arith.constant 16 : i32
    %2 = vector.broadcast %c16_i32 : i32 to vector<32x32xi32>
    %3 = arith.cmpi slt, %0, %2 : vector<32x32xi32>
    %c16_i32_0 = arith.constant 16 : i32
    %4 = vector.broadcast %c16_i32_0 : i32 to vector<32x32xi32>
    %5 = arith.cmpi slt, %1, %4 : vector<32x32xi32>
    %6 = arith.xori %3, %5 : vector<32x32xi1>
    %cst = arith.constant dense<true> : vector<32x32xi1>
    %7 = arith.xori %6, %cst : vector<32x32xi1>
    %8 = arith.extui %7 : vector<32x32xi1> to vector<32x32xi32>
    %9 = arith.sitofp %8 : vector<32x32xi32> to vector<32x32xf32>
    %10 = tpu.iota {dimensions = array<i32: 1>} : vector<1x32xi32>
    %c16_i32_1 = arith.constant 16 : i32
    %11 = vector.broadcast %c16_i32_1 : i32 to vector<1x32xi32>
    %12 = arith.cmpi slt, %10, %11 : vector<1x32xi32>
    %13 = tpu.iota {dimensions = array<i32: 1>} : vector<1x32xi32>
    %c16_i32_2 = arith.constant 16 : i32
    %14 = vector.broadcast %c16_i32_2 : i32 to vector<1x32xi32>
    %15 = arith.cmpi slt, %13, %14 : vector<1x32xi32>
    %c0 = arith.constant 0 : index
    %c0_3 = arith.constant 0 : index
    %16 = vector.load %arg0[%c0, %c0_3] : memref<16x101xf32, #tpu.memory_space<vmem>>, vector<16x32xf32>
    %c0_4 = arith.constant 0 : index
    %c32 = arith.constant 32 : index
    %17 = vector.load %arg0[%c0_4, %c32] : memref<16x101xf32, #tpu.memory_space<vmem>>, vector<16x32xf32>
    %c0_5 = arith.constant 0 : index
    %c64 = arith.constant 64 : index
    %18 = vector.load %arg0[%c0_5, %c64] : memref<16x101xf32, #tpu.memory_space<vmem>>, vector<16x32xf32>
    %c0_6 = arith.constant 0 : index
    %c96 = arith.constant 96 : index
    %19 = vector.load %arg0[%c0_6, %c96] : memref<16x101xf32, #tpu.memory_space<vmem>>, vector<16x4xf32>
    %c0_7 = arith.constant 0 : index
    %c100 = arith.constant 100 : index
    %20 = vector.load %arg0[%c0_7, %c100] : memref<16x101xf32, #tpu.memory_space<vmem>>, vector<16x1xf32>
    %c0_8 = arith.constant 0 : index
    %c0_9 = arith.constant 0 : index
    %c0_10 = arith.constant 0 : index
    %21 = vector.load %arg3[%c0_8, %c0_9, %c0_10] : memref<2x32x192xbf16, #tpu.memory_space<vmem>>, vector<1x32x96xbf16>
    %22 = vector.shape_cast %21 : vector<1x32x96xbf16> to vector<32x96xbf16>
    %23 = arith.truncf %16 : vector<16x32xf32> to vector<16x32xbf16>
    %cst_11 = arith.constant dense<0.000000e+00> : vector<16x96xf32>
    %24 = tpu.matmul %23, %22, %cst_11 {dimension_numbers = #tpu.dot_dimension_numbers<[1], [0], [0], [1], [0, 0, 1, 1], [], []>} : vector<16x32xbf16>, vector<32x96xbf16>, vector<16x96xf32> -> vector<16x96xf32>
    %c0_12 = arith.constant 0 : index
    %c0_13 = arith.constant 0 : index
    %25 = vector.load %arg2[%c0_12, %c0_13] : memref<71x128xf32, #tpu.memory_space<vmem>>, vector<1x96xf32>
    %26 = vector.broadcast %25 : vector<1x96xf32> to vector<16x96xf32>
    %27 = arith.addf %24, %26 : vector<16x96xf32>
    %28 = vector.extract_strided_slice %27 {offsets = [0, 0], sizes = [16, 32], strides = [1, 1]} : vector<16x96xf32> to vector<16x32xf32>
    %29 = vector.extract_strided_slice %27 {offsets = [0, 32], sizes = [16, 32], strides = [1, 1]} : vector<16x96xf32> to vector<16x32xf32>
    %30 = vector.extract_strided_slice %27 {offsets = [0, 64], sizes = [16, 32], strides = [1, 1]} : vector<16x96xf32> to vector<16x32xf32>
    %c0_14 = arith.constant 0 : index
    %c0_15 = arith.constant 0 : index
    %c0_16 = arith.constant 0 : index
    %31 = vector.load %arg1[%c0_14, %c0_15, %c0_16] : memref<3x16x32xf32, #tpu.memory_space<vmem>>, vector<1x16x32xf32>
    %32 = vector.shape_cast %31 : vector<1x16x32xf32> to vector<16x32xf32>
    %33 = tpu.concatenate %29, %29 in 0 : vector<16x32xf32>, vector<16x32xf32> -> vector<32x32xf32>
    %34 = arith.mulf %33, %9 : vector<32x32xf32>
    %35 = tpu.concatenate %30, %30 in 0 : vector<16x32xf32>, vector<16x32xf32> -> vector<32x32xf32>
    %36 = arith.mulf %35, %9 : vector<32x32xf32>
    %37 = arith.truncf %28 : vector<16x32xf32> to vector<16x32xbf16>
    %38 = arith.truncf %34 : vector<32x32xf32> to vector<32x32xbf16>
    %cst_17 = arith.constant dense<0.000000e+00> : vector<16x32xf32>
    %39 = tpu.matmul %37, %38, %cst_17 {dimension_numbers = #tpu.dot_dimension_numbers<[1], [1], [0], [0], [0, 0, 1, 0], [], []>} : vector<16x32xbf16>, vector<32x32xbf16>, vector<16x32xf32> -> vector<16x32xf32>
    %cst_18 = arith.constant 2.500000e-01 : f32
    %40 = vector.broadcast %cst_18 : f32 to vector<16x32xf32>
    %41 = arith.mulf %39, %40 : vector<16x32xf32>
    %42 = arith.addf %41, %32 : vector<16x32xf32>
    %cst_19 = arith.constant dense<0xFF800000> : vector<16xf32>
    %43 = vector.multi_reduction <maximumf>, %42, %cst_19 [1] : vector<16x32xf32> to vector<16xf32>
    %44 = vector.shape_cast %43 : vector<16xf32> to vector<16x1xf32>
    %45 = vector.broadcast %44 : vector<16x1xf32> to vector<16x32xf32>
    %46 = arith.subf %42, %45 : vector<16x32xf32>
    %47 = math.exp %46 : vector<16x32xf32>
    %cst_20 = arith.constant 0.000000e+00 : f32
    %48 = vector.shape_cast %12 : vector<1x32xi1> to vector<1x32xi1>
    %49 = vector.broadcast %48 : vector<1x32xi1> to vector<16x32xi1>
    %50 = vector.broadcast %cst_20 : f32 to vector<16x32xf32>
    %51 = arith.select %49, %47, %50 : vector<16x32xi1>, vector<16x32xf32>
    %cst_21 = arith.constant dense<0.000000e+00> : vector<16xf32>
    %52 = vector.multi_reduction <add>, %51, %cst_21 [1] : vector<16x32xf32> to vector<16xf32>
    %53 = vector.shape_cast %52 : vector<16xf32> to vector<16x1xf32>
    %cst_22 = arith.constant dense<0.000000e+00> : vector<16xf32>
    %54 = vector.multi_reduction <add>, %47, %cst_22 [1] : vector<16x32xf32> to vector<16xf32>
    %55 = vector.shape_cast %54 : vector<16xf32> to vector<16x1xf32>
    %56 = arith.subf %55, %53 : vector<16x1xf32>
    %57 = arith.truncf %47 : vector<16x32xf32> to vector<16x32xbf16>
    %58 = arith.truncf %36 : vector<32x32xf32> to vector<32x32xbf16>
    %cst_23 = arith.constant dense<0.000000e+00> : vector<16x32xf32>
    %59 = tpu.matmul %57, %58, %cst_23 {dimension_numbers = #tpu.dot_dimension_numbers<[1], [0], [0], [1], [0, 0, 1, 1], [], []>} : vector<16x32xbf16>, vector<32x32xbf16>, vector<16x32xf32> -> vector<16x32xf32>
    %60 = tpu.reciprocal %53 {approx = true} : vector<16x1xf32> -> vector<16x1xf32>
    %61 = tpu.reciprocal %56 {approx = true} : vector<16x1xf32> -> vector<16x1xf32>
    %62 = vector.shape_cast %15 : vector<1x32xi1> to vector<1x32xi1>
    %63 = vector.broadcast %62 : vector<1x32xi1> to vector<16x32xi1>
    %64 = vector.shape_cast %60 : vector<16x1xf32> to vector<16x1xf32>
    %65 = vector.broadcast %64 : vector<16x1xf32> to vector<16x32xf32>
    %66 = vector.shape_cast %61 : vector<16x1xf32> to vector<16x1xf32>
    %67 = vector.broadcast %66 : vector<16x1xf32> to vector<16x32xf32>
    %68 = arith.select %63, %65, %67 : vector<16x32xi1>, vector<16x32xf32>
    %69 = arith.mulf %59, %68 : vector<16x32xf32>
    %c0_24 = arith.constant 0 : index
    %c0_25 = arith.constant 0 : index
    %c96_26 = arith.constant 96 : index
    %70 = vector.load %arg3[%c0_24, %c0_25, %c96_26] : memref<2x32x192xbf16, #tpu.memory_space<vmem>>, vector<1x32x32xbf16>
    %71 = vector.shape_cast %70 : vector<1x32x32xbf16> to vector<32x32xbf16>
    %72 = arith.truncf %69 : vector<16x32xf32> to vector<16x32xbf16>
    %cst_27 = arith.constant dense<0.000000e+00> : vector<16x32xf32>
    %73 = tpu.matmul %72, %71, %cst_27 {dimension_numbers = #tpu.dot_dimension_numbers<[1], [0], [0], [1], [0, 0, 1, 1], [], []>} : vector<16x32xbf16>, vector<32x32xbf16>, vector<16x32xf32> -> vector<16x32xf32>
    %c1 = arith.constant 1 : index
    %c0_28 = arith.constant 0 : index
    %74 = vector.load %arg2[%c1, %c0_28] : memref<71x128xf32, #tpu.memory_space<vmem>>, vector<1x32xf32>
    %75 = vector.broadcast %74 : vector<1x32xf32> to vector<16x32xf32>
    %76 = arith.addf %73, %75 : vector<16x32xf32>
    %77 = arith.addf %16, %76 : vector<16x32xf32>
    %c2 = arith.constant 2 : index
    %c0_29 = arith.constant 0 : index
    %78 = vector.load %arg2[%c2, %c0_29] : memref<71x128xf32, #tpu.memory_space<vmem>>, vector<1x32xf32>
    %c3 = arith.constant 3 : index
    %c0_30 = arith.constant 0 : index
    %79 = vector.load %arg2[%c3, %c0_30] : memref<71x128xf32, #tpu.memory_space<vmem>>, vector<1x32xf32>
    %cst_31 = arith.constant dense<0.000000e+00> : vector<16xf32>
    %80 = vector.multi_reduction <add>, %77, %cst_31 [1] : vector<16x32xf32> to vector<16xf32>
    %81 = vector.shape_cast %80 : vector<16xf32> to vector<16x1xf32>
    %cst_32 = arith.constant 3.200000e+01 : f32
    %82 = vector.broadcast %cst_32 : f32 to vector<16x1xf32>
    %83 = arith.divf %81, %82 : vector<16x1xf32>
    %84 = vector.broadcast %83 : vector<16x1xf32> to vector<16x32xf32>
    %85 = arith.subf %77, %84 : vector<16x32xf32>
    %86 = arith.mulf %85, %85 : vector<16x32xf32>
    %cst_33 = arith.constant dense<0.000000e+00> : vector<16xf32>
    %87 = vector.multi_reduction <add>, %86, %cst_33 [1] : vector<16x32xf32> to vector<16xf32>
    %88 = vector.shape_cast %87 : vector<16xf32> to vector<16x1xf32>
    %cst_34 = arith.constant 3.200000e+01 : f32
    %89 = vector.broadcast %cst_34 : f32 to vector<16x1xf32>
    %90 = arith.divf %88, %89 : vector<16x1xf32>
    %cst_35 = arith.constant 9.99999974E-6 : f32
    %91 = vector.broadcast %cst_35 : f32 to vector<16x1xf32>
    %92 = arith.addf %90, %91 : vector<16x1xf32>
    %93 = math.rsqrt %92 : vector<16x1xf32>
    %94 = vector.broadcast %93 : vector<16x1xf32> to vector<16x32xf32>
    %95 = arith.mulf %85, %94 : vector<16x32xf32>
    %96 = vector.broadcast %78 : vector<1x32xf32> to vector<16x32xf32>
    %97 = arith.mulf %95, %96 : vector<16x32xf32>
    %98 = vector.broadcast %79 : vector<1x32xf32> to vector<16x32xf32>
    %99 = arith.addf %97, %98 : vector<16x32xf32>
    %c0_36 = arith.constant 0 : index
    %c0_37 = arith.constant 0 : index
    %c128 = arith.constant 128 : index
    %100 = vector.load %arg3[%c0_36, %c0_37, %c128] : memref<2x32x192xbf16, #tpu.memory_space<vmem>>, vector<1x32x64xbf16>
    %101 = vector.shape_cast %100 : vector<1x32x64xbf16> to vector<32x64xbf16>
    %102 = arith.truncf %99 : vector<16x32xf32> to vector<16x32xbf16>
    %cst_38 = arith.constant dense<0.000000e+00> : vector<16x64xf32>
    %103 = tpu.matmul %102, %101, %cst_38 {dimension_numbers = #tpu.dot_dimension_numbers<[1], [0], [0], [1], [0, 0, 1, 1], [], []>} : vector<16x32xbf16>, vector<32x64xbf16>, vector<16x64xf32> -> vector<16x64xf32>
    %c4 = arith.constant 4 : index
    %c0_39 = arith.constant 0 : index
    %104 = vector.load %arg2[%c4, %c0_39] : memref<71x128xf32, #tpu.memory_space<vmem>>, vector<1x64xf32>
    %105 = vector.broadcast %104 : vector<1x64xf32> to vector<16x64xf32>
    %106 = arith.addf %103, %105 : vector<16x64xf32>
    %cst_40 = arith.constant 0.000000e+00 : f32
    %107 = vector.broadcast %cst_40 : f32 to vector<16x64xf32>
    %108 = arith.maximumf %106, %107 : vector<16x64xf32>
    %c0_41 = arith.constant 0 : index
    %c0_42 = arith.constant 0 : index
    %c0_43 = arith.constant 0 : index
    %109 = vector.load %arg4[%c0_41, %c0_42, %c0_43] : memref<2x64x32xbf16, #tpu.memory_space<vmem>>, vector<1x64x32xbf16>
    %110 = vector.shape_cast %109 : vector<1x64x32xbf16> to vector<64x32xbf16>
    %111 = arith.truncf %108 : vector<16x64xf32> to vector<16x64xbf16>
    %cst_44 = arith.constant dense<0.000000e+00> : vector<16x32xf32>
    %112 = tpu.matmul %111, %110, %cst_44 {dimension_numbers = #tpu.dot_dimension_numbers<[1], [0], [0], [1], [0, 0, 1, 1], [], []>} : vector<16x64xbf16>, vector<64x32xbf16>, vector<16x32xf32> -> vector<16x32xf32>
    %c5 = arith.constant 5 : index
    %c0_45 = arith.constant 0 : index
    %113 = vector.load %arg2[%c5, %c0_45] : memref<71x128xf32, #tpu.memory_space<vmem>>, vector<1x32xf32>
    %114 = vector.broadcast %113 : vector<1x32xf32> to vector<16x32xf32>
    %115 = arith.addf %112, %114 : vector<16x32xf32>
    %116 = arith.addf %99, %115 : vector<16x32xf32>
    %c6 = arith.constant 6 : index
    %c0_46 = arith.constant 0 : index
    %117 = vector.load %arg2[%c6, %c0_46] : memref<71x128xf32, #tpu.memory_space<vmem>>, vector<1x32xf32>
    %c7 = arith.constant 7 : index
    %c0_47 = arith.constant 0 : index
    %118 = vector.load %arg2[%c7, %c0_47] : memref<71x128xf32, #tpu.memory_space<vmem>>, vector<1x32xf32>
    %cst_48 = arith.constant dense<0.000000e+00> : vector<16xf32>
    %119 = vector.multi_reduction <add>, %116, %cst_48 [1] : vector<16x32xf32> to vector<16xf32>
    %120 = vector.shape_cast %119 : vector<16xf32> to vector<16x1xf32>
    %cst_49 = arith.constant 3.200000e+01 : f32
    %121 = vector.broadcast %cst_49 : f32 to vector<16x1xf32>
    %122 = arith.divf %120, %121 : vector<16x1xf32>
    %123 = vector.broadcast %122 : vector<16x1xf32> to vector<16x32xf32>
    %124 = arith.subf %116, %123 : vector<16x32xf32>
    %125 = arith.mulf %124, %124 : vector<16x32xf32>
    %cst_50 = arith.constant dense<0.000000e+00> : vector<16xf32>
    %126 = vector.multi_reduction <add>, %125, %cst_50 [1] : vector<16x32xf32> to vector<16xf32>
    %127 = vector.shape_cast %126 : vector<16xf32> to vector<16x1xf32>
    %cst_51 = arith.constant 3.200000e+01 : f32
    %128 = vector.broadcast %cst_51 : f32 to vector<16x1xf32>
    %129 = arith.divf %127, %128 : vector<16x1xf32>
    %cst_52 = arith.constant 9.99999974E-6 : f32
    %130 = vector.broadcast %cst_52 : f32 to vector<16x1xf32>
    %131 = arith.addf %129, %130 : vector<16x1xf32>
    %132 = math.rsqrt %131 : vector<16x1xf32>
    %133 = vector.broadcast %132 : vector<16x1xf32> to vector<16x32xf32>
    %134 = arith.mulf %124, %133 : vector<16x32xf32>
    %135 = vector.broadcast %117 : vector<1x32xf32> to vector<16x32xf32>
    %136 = arith.mulf %134, %135 : vector<16x32xf32>
    %137 = vector.broadcast %118 : vector<1x32xf32> to vector<16x32xf32>
    %138 = arith.addf %136, %137 : vector<16x32xf32>
    %c1_53 = arith.constant 1 : index
    %c0_54 = arith.constant 0 : index
    %c0_55 = arith.constant 0 : index
    %139 = vector.load %arg3[%c1_53, %c0_54, %c0_55] : memref<2x32x192xbf16, #tpu.memory_space<vmem>>, vector<1x32x96xbf16>
    %140 = vector.shape_cast %139 : vector<1x32x96xbf16> to vector<32x96xbf16>
    %141 = arith.truncf %138 : vector<16x32xf32> to vector<16x32xbf16>
    %cst_56 = arith.constant dense<0.000000e+00> : vector<16x96xf32>
    %142 = tpu.matmul %141, %140, %cst_56 {dimension_numbers = #tpu.dot_dimension_numbers<[1], [0], [0], [1], [0, 0, 1, 1], [], []>} : vector<16x32xbf16>, vector<32x96xbf16>, vector<16x96xf32> -> vector<16x96xf32>
    %c8 = arith.constant 8 : index
    %c0_57 = arith.constant 0 : index
    %143 = vector.load %arg2[%c8, %c0_57] : memref<71x128xf32, #tpu.memory_space<vmem>>, vector<1x96xf32>
    %144 = vector.broadcast %143 : vector<1x96xf32> to vector<16x96xf32>
    %145 = arith.addf %142, %144 : vector<16x96xf32>
    %146 = vector.extract_strided_slice %145 {offsets = [0, 0], sizes = [16, 32], strides = [1, 1]} : vector<16x96xf32> to vector<16x32xf32>
    %147 = vector.extract_strided_slice %145 {offsets = [0, 32], sizes = [16, 32], strides = [1, 1]} : vector<16x96xf32> to vector<16x32xf32>
    %148 = vector.extract_strided_slice %145 {offsets = [0, 64], sizes = [16, 32], strides = [1, 1]} : vector<16x96xf32> to vector<16x32xf32>
    %c0_58 = arith.constant 0 : index
    %c0_59 = arith.constant 0 : index
    %c0_60 = arith.constant 0 : index
    %149 = vector.load %arg1[%c0_58, %c0_59, %c0_60] : memref<3x16x32xf32, #tpu.memory_space<vmem>>, vector<1x16x32xf32>
    %150 = vector.shape_cast %149 : vector<1x16x32xf32> to vector<16x32xf32>
    %151 = tpu.concatenate %147, %147 in 0 : vector<16x32xf32>, vector<16x32xf32> -> vector<32x32xf32>
    %152 = arith.mulf %151, %9 : vector<32x32xf32>
    %153 = tpu.concatenate %148, %148 in 0 : vector<16x32xf32>, vector<16x32xf32> -> vector<32x32xf32>
    %154 = arith.mulf %153, %9 : vector<32x32xf32>
    %155 = arith.truncf %146 : vector<16x32xf32> to vector<16x32xbf16>
    %156 = arith.truncf %152 : vector<32x32xf32> to vector<32x32xbf16>
    %cst_61 = arith.constant dense<0.000000e+00> : vector<16x32xf32>
    %157 = tpu.matmul %155, %156, %cst_61 {dimension_numbers = #tpu.dot_dimension_numbers<[1], [1], [0], [0], [0, 0, 1, 0], [], []>} : vector<16x32xbf16>, vector<32x32xbf16>, vector<16x32xf32> -> vector<16x32xf32>
    %cst_62 = arith.constant 2.500000e-01 : f32
    %158 = vector.broadcast %cst_62 : f32 to vector<16x32xf32>
    %159 = arith.mulf %157, %158 : vector<16x32xf32>
    %160 = arith.addf %159, %150 : vector<16x32xf32>
    %cst_63 = arith.constant dense<0xFF800000> : vector<16xf32>
    %161 = vector.multi_reduction <maximumf>, %160, %cst_63 [1] : vector<16x32xf32> to vector<16xf32>
    %162 = vector.shape_cast %161 : vector<16xf32> to vector<16x1xf32>
    %163 = vector.broadcast %162 : vector<16x1xf32> to vector<16x32xf32>
    %164 = arith.subf %160, %163 : vector<16x32xf32>
    %165 = math.exp %164 : vector<16x32xf32>
    %cst_64 = arith.constant 0.000000e+00 : f32
    %166 = vector.shape_cast %12 : vector<1x32xi1> to vector<1x32xi1>
    %167 = vector.broadcast %166 : vector<1x32xi1> to vector<16x32xi1>
    %168 = vector.broadcast %cst_64 : f32 to vector<16x32xf32>
    %169 = arith.select %167, %165, %168 : vector<16x32xi1>, vector<16x32xf32>
    %cst_65 = arith.constant dense<0.000000e+00> : vector<16xf32>
    %170 = vector.multi_reduction <add>, %169, %cst_65 [1] : vector<16x32xf32> to vector<16xf32>
    %171 = vector.shape_cast %170 : vector<16xf32> to vector<16x1xf32>
    %cst_66 = arith.constant dense<0.000000e+00> : vector<16xf32>
    %172 = vector.multi_reduction <add>, %165, %cst_66 [1] : vector<16x32xf32> to vector<16xf32>
    %173 = vector.shape_cast %172 : vector<16xf32> to vector<16x1xf32>
    %174 = arith.subf %173, %171 : vector<16x1xf32>
    %175 = arith.truncf %165 : vector<16x32xf32> to vector<16x32xbf16>
    %176 = arith.truncf %154 : vector<32x32xf32> to vector<32x32xbf16>
    %cst_67 = arith.constant dense<0.000000e+00> : vector<16x32xf32>
    %177 = tpu.matmul %175, %176, %cst_67 {dimension_numbers = #tpu.dot_dimension_numbers<[1], [0], [0], [1], [0, 0, 1, 1], [], []>} : vector<16x32xbf16>, vector<32x32xbf16>, vector<16x32xf32> -> vector<16x32xf32>
    %178 = tpu.reciprocal %171 {approx = true} : vector<16x1xf32> -> vector<16x1xf32>
    %179 = tpu.reciprocal %174 {approx = true} : vector<16x1xf32> -> vector<16x1xf32>
    %180 = vector.shape_cast %15 : vector<1x32xi1> to vector<1x32xi1>
    %181 = vector.broadcast %180 : vector<1x32xi1> to vector<16x32xi1>
    %182 = vector.shape_cast %178 : vector<16x1xf32> to vector<16x1xf32>
    %183 = vector.broadcast %182 : vector<16x1xf32> to vector<16x32xf32>
    %184 = vector.shape_cast %179 : vector<16x1xf32> to vector<16x1xf32>
    %185 = vector.broadcast %184 : vector<16x1xf32> to vector<16x32xf32>
    %186 = arith.select %181, %183, %185 : vector<16x32xi1>, vector<16x32xf32>
    %187 = arith.mulf %177, %186 : vector<16x32xf32>
    %c1_68 = arith.constant 1 : index
    %c0_69 = arith.constant 0 : index
    %c96_70 = arith.constant 96 : index
    %188 = vector.load %arg3[%c1_68, %c0_69, %c96_70] : memref<2x32x192xbf16, #tpu.memory_space<vmem>>, vector<1x32x32xbf16>
    %189 = vector.shape_cast %188 : vector<1x32x32xbf16> to vector<32x32xbf16>
    %190 = arith.truncf %187 : vector<16x32xf32> to vector<16x32xbf16>
    %cst_71 = arith.constant dense<0.000000e+00> : vector<16x32xf32>
    %191 = tpu.matmul %190, %189, %cst_71 {dimension_numbers = #tpu.dot_dimension_numbers<[1], [0], [0], [1], [0, 0, 1, 1], [], []>} : vector<16x32xbf16>, vector<32x32xbf16>, vector<16x32xf32> -> vector<16x32xf32>
    %c9 = arith.constant 9 : index
    %c0_72 = arith.constant 0 : index
    %192 = vector.load %arg2[%c9, %c0_72] : memref<71x128xf32, #tpu.memory_space<vmem>>, vector<1x32xf32>
    %193 = vector.broadcast %192 : vector<1x32xf32> to vector<16x32xf32>
    %194 = arith.addf %191, %193 : vector<16x32xf32>
    %195 = arith.addf %138, %194 : vector<16x32xf32>
    %c10 = arith.constant 10 : index
    %c0_73 = arith.constant 0 : index
    %196 = vector.load %arg2[%c10, %c0_73] : memref<71x128xf32, #tpu.memory_space<vmem>>, vector<1x32xf32>
    %c11 = arith.constant 11 : index
    %c0_74 = arith.constant 0 : index
    %197 = vector.load %arg2[%c11, %c0_74] : memref<71x128xf32, #tpu.memory_space<vmem>>, vector<1x32xf32>
    %cst_75 = arith.constant dense<0.000000e+00> : vector<16xf32>
    %198 = vector.multi_reduction <add>, %195, %cst_75 [1] : vector<16x32xf32> to vector<16xf32>
    %199 = vector.shape_cast %198 : vector<16xf32> to vector<16x1xf32>
    %cst_76 = arith.constant 3.200000e+01 : f32
    %200 = vector.broadcast %cst_76 : f32 to vector<16x1xf32>
    %201 = arith.divf %199, %200 : vector<16x1xf32>
    %202 = vector.broadcast %201 : vector<16x1xf32> to vector<16x32xf32>
    %203 = arith.subf %195, %202 : vector<16x32xf32>
    %204 = arith.mulf %203, %203 : vector<16x32xf32>
    %cst_77 = arith.constant dense<0.000000e+00> : vector<16xf32>
    %205 = vector.multi_reduction <add>, %204, %cst_77 [1] : vector<16x32xf32> to vector<16xf32>
    %206 = vector.shape_cast %205 : vector<16xf32> to vector<16x1xf32>
    %cst_78 = arith.constant 3.200000e+01 : f32
    %207 = vector.broadcast %cst_78 : f32 to vector<16x1xf32>
    %208 = arith.divf %206, %207 : vector<16x1xf32>
    %cst_79 = arith.constant 9.99999974E-6 : f32
    %209 = vector.broadcast %cst_79 : f32 to vector<16x1xf32>
    %210 = arith.addf %208, %209 : vector<16x1xf32>
    %211 = math.rsqrt %210 : vector<16x1xf32>
    %212 = vector.broadcast %211 : vector<16x1xf32> to vector<16x32xf32>
    %213 = arith.mulf %203, %212 : vector<16x32xf32>
    %214 = vector.broadcast %196 : vector<1x32xf32> to vector<16x32xf32>
    %215 = arith.mulf %213, %214 : vector<16x32xf32>
    %216 = vector.broadcast %197 : vector<1x32xf32> to vector<16x32xf32>
    %217 = arith.addf %215, %216 : vector<16x32xf32>
    %c1_80 = arith.constant 1 : index
    %c0_81 = arith.constant 0 : index
    %c128_82 = arith.constant 128 : index
    %218 = vector.load %arg3[%c1_80, %c0_81, %c128_82] : memref<2x32x192xbf16, #tpu.memory_space<vmem>>, vector<1x32x64xbf16>
    %219 = vector.shape_cast %218 : vector<1x32x64xbf16> to vector<32x64xbf16>
    %220 = arith.truncf %217 : vector<16x32xf32> to vector<16x32xbf16>
    %cst_83 = arith.constant dense<0.000000e+00> : vector<16x64xf32>
    %221 = tpu.matmul %220, %219, %cst_83 {dimension_numbers = #tpu.dot_dimension_numbers<[1], [0], [0], [1], [0, 0, 1, 1], [], []>} : vector<16x32xbf16>, vector<32x64xbf16>, vector<16x64xf32> -> vector<16x64xf32>
    %c12 = arith.constant 12 : index
    %c0_84 = arith.constant 0 : index
    %222 = vector.load %arg2[%c12, %c0_84] : memref<71x128xf32, #tpu.memory_space<vmem>>, vector<1x64xf32>
    %223 = vector.broadcast %222 : vector<1x64xf32> to vector<16x64xf32>
    %224 = arith.addf %221, %223 : vector<16x64xf32>
    %cst_85 = arith.constant 0.000000e+00 : f32
    %225 = vector.broadcast %cst_85 : f32 to vector<16x64xf32>
    %226 = arith.maximumf %224, %225 : vector<16x64xf32>
    %c1_86 = arith.constant 1 : index
    %c0_87 = arith.constant 0 : index
    %c0_88 = arith.constant 0 : index
    %227 = vector.load %arg4[%c1_86, %c0_87, %c0_88] : memref<2x64x32xbf16, #tpu.memory_space<vmem>>, vector<1x64x32xbf16>
    %228 = vector.shape_cast %227 : vector<1x64x32xbf16> to vector<64x32xbf16>
    %229 = arith.truncf %226 : vector<16x64xf32> to vector<16x64xbf16>
    %cst_89 = arith.constant dense<0.000000e+00> : vector<16x32xf32>
    %230 = tpu.matmul %229, %228, %cst_89 {dimension_numbers = #tpu.dot_dimension_numbers<[1], [0], [0], [1], [0, 0, 1, 1], [], []>} : vector<16x64xbf16>, vector<64x32xbf16>, vector<16x32xf32> -> vector<16x32xf32>
    %c13 = arith.constant 13 : index
    %c0_90 = arith.constant 0 : index
    %231 = vector.load %arg2[%c13, %c0_90] : memref<71x128xf32, #tpu.memory_space<vmem>>, vector<1x32xf32>
    %232 = vector.broadcast %231 : vector<1x32xf32> to vector<16x32xf32>
    %233 = arith.addf %230, %232 : vector<16x32xf32>
    %234 = arith.addf %217, %233 : vector<16x32xf32>
    %c14 = arith.constant 14 : index
    %c0_91 = arith.constant 0 : index
    %235 = vector.load %arg2[%c14, %c0_91] : memref<71x128xf32, #tpu.memory_space<vmem>>, vector<1x32xf32>
    %c15 = arith.constant 15 : index
    %c0_92 = arith.constant 0 : index
    %236 = vector.load %arg2[%c15, %c0_92] : memref<71x128xf32, #tpu.memory_space<vmem>>, vector<1x32xf32>
    %cst_93 = arith.constant dense<0.000000e+00> : vector<16xf32>
    %237 = vector.multi_reduction <add>, %234, %cst_93 [1] : vector<16x32xf32> to vector<16xf32>
    %238 = vector.shape_cast %237 : vector<16xf32> to vector<16x1xf32>
    %cst_94 = arith.constant 3.200000e+01 : f32
    %239 = vector.broadcast %cst_94 : f32 to vector<16x1xf32>
    %240 = arith.divf %238, %239 : vector<16x1xf32>
    %241 = vector.broadcast %240 : vector<16x1xf32> to vector<16x32xf32>
    %242 = arith.subf %234, %241 : vector<16x32xf32>
    %243 = arith.mulf %242, %242 : vector<16x32xf32>
    %cst_95 = arith.constant dense<0.000000e+00> : vector<16xf32>
    %244 = vector.multi_reduction <add>, %243, %cst_95 [1] : vector<16x32xf32> to vector<16xf32>
    %245 = vector.shape_cast %244 : vector<16xf32> to vector<16x1xf32>
    %cst_96 = arith.constant 3.200000e+01 : f32
    %246 = vector.broadcast %cst_96 : f32 to vector<16x1xf32>
    %247 = arith.divf %245, %246 : vector<16x1xf32>
    %cst_97 = arith.constant 9.99999974E-6 : f32
    %248 = vector.broadcast %cst_97 : f32 to vector<16x1xf32>
    %249 = arith.addf %247, %248 : vector<16x1xf32>
    %250 = math.rsqrt %249 : vector<16x1xf32>
    %251 = vector.broadcast %250 : vector<16x1xf32> to vector<16x32xf32>
    %252 = arith.mulf %242, %251 : vector<16x32xf32>
    %253 = vector.broadcast %235 : vector<1x32xf32> to vector<16x32xf32>
    %254 = arith.mulf %252, %253 : vector<16x32xf32>
    %255 = vector.broadcast %236 : vector<1x32xf32> to vector<16x32xf32>
    %256 = arith.addf %254, %255 : vector<16x32xf32>
    %257 = arith.truncf %256 : vector<16x32xf32> to vector<16x32xbf16>
    %c0_98 = arith.constant 0 : index
    %c0_99 = arith.constant 0 : index
    %c0_100 = arith.constant 0 : index
    %258 = vector.load %arg5[%c0_98, %c0_99, %c0_100] : memref<4x32x320xbf16, #tpu.memory_space<vmem>>, vector<1x32x96xbf16>
    %259 = vector.shape_cast %258 : vector<1x32x96xbf16> to vector<32x96xbf16>
    %260 = arith.truncf %17 : vector<16x32xf32> to vector<16x32xbf16>
    %cst_101 = arith.constant dense<0.000000e+00> : vector<16x96xf32>
    %261 = tpu.matmul %260, %259, %cst_101 {dimension_numbers = #tpu.dot_dimension_numbers<[1], [0], [0], [1], [0, 0, 1, 1], [], []>} : vector<16x32xbf16>, vector<32x96xbf16>, vector<16x96xf32> -> vector<16x96xf32>
    %c16 = arith.constant 16 : index
    %c0_102 = arith.constant 0 : index
    %262 = vector.load %arg2[%c16, %c0_102] : memref<71x128xf32, #tpu.memory_space<vmem>>, vector<1x96xf32>
    %263 = vector.broadcast %262 : vector<1x96xf32> to vector<16x96xf32>
    %264 = arith.addf %261, %263 : vector<16x96xf32>
    %265 = vector.extract_strided_slice %264 {offsets = [0, 0], sizes = [16, 32], strides = [1, 1]} : vector<16x96xf32> to vector<16x32xf32>
    %266 = vector.extract_strided_slice %264 {offsets = [0, 32], sizes = [16, 32], strides = [1, 1]} : vector<16x96xf32> to vector<16x32xf32>
    %267 = vector.extract_strided_slice %264 {offsets = [0, 64], sizes = [16, 32], strides = [1, 1]} : vector<16x96xf32> to vector<16x32xf32>
    %c1_103 = arith.constant 1 : index
    %c0_104 = arith.constant 0 : index
    %c0_105 = arith.constant 0 : index
    %268 = vector.load %arg1[%c1_103, %c0_104, %c0_105] : memref<3x16x32xf32, #tpu.memory_space<vmem>>, vector<1x16x32xf32>
    %269 = vector.shape_cast %268 : vector<1x16x32xf32> to vector<16x32xf32>
    %270 = tpu.concatenate %266, %266 in 0 : vector<16x32xf32>, vector<16x32xf32> -> vector<32x32xf32>
    %271 = arith.mulf %270, %9 : vector<32x32xf32>
    %272 = tpu.concatenate %267, %267 in 0 : vector<16x32xf32>, vector<16x32xf32> -> vector<32x32xf32>
    %273 = arith.mulf %272, %9 : vector<32x32xf32>
    %274 = arith.truncf %265 : vector<16x32xf32> to vector<16x32xbf16>
    %275 = arith.truncf %271 : vector<32x32xf32> to vector<32x32xbf16>
    %cst_106 = arith.constant dense<0.000000e+00> : vector<16x32xf32>
    %276 = tpu.matmul %274, %275, %cst_106 {dimension_numbers = #tpu.dot_dimension_numbers<[1], [1], [0], [0], [0, 0, 1, 0], [], []>} : vector<16x32xbf16>, vector<32x32xbf16>, vector<16x32xf32> -> vector<16x32xf32>
    %cst_107 = arith.constant 2.500000e-01 : f32
    %277 = vector.broadcast %cst_107 : f32 to vector<16x32xf32>
    %278 = arith.mulf %276, %277 : vector<16x32xf32>
    %279 = arith.addf %278, %269 : vector<16x32xf32>
    %cst_108 = arith.constant dense<0xFF800000> : vector<16xf32>
    %280 = vector.multi_reduction <maximumf>, %279, %cst_108 [1] : vector<16x32xf32> to vector<16xf32>
    %281 = vector.shape_cast %280 : vector<16xf32> to vector<16x1xf32>
    %282 = vector.broadcast %281 : vector<16x1xf32> to vector<16x32xf32>
    %283 = arith.subf %279, %282 : vector<16x32xf32>
    %284 = math.exp %283 : vector<16x32xf32>
    %cst_109 = arith.constant 0.000000e+00 : f32
    %285 = vector.shape_cast %12 : vector<1x32xi1> to vector<1x32xi1>
    %286 = vector.broadcast %285 : vector<1x32xi1> to vector<16x32xi1>
    %287 = vector.broadcast %cst_109 : f32 to vector<16x32xf32>
    %288 = arith.select %286, %284, %287 : vector<16x32xi1>, vector<16x32xf32>
    %cst_110 = arith.constant dense<0.000000e+00> : vector<16xf32>
    %289 = vector.multi_reduction <add>, %288, %cst_110 [1] : vector<16x32xf32> to vector<16xf32>
    %290 = vector.shape_cast %289 : vector<16xf32> to vector<16x1xf32>
    %cst_111 = arith.constant dense<0.000000e+00> : vector<16xf32>
    %291 = vector.multi_reduction <add>, %284, %cst_111 [1] : vector<16x32xf32> to vector<16xf32>
    %292 = vector.shape_cast %291 : vector<16xf32> to vector<16x1xf32>
    %293 = arith.subf %292, %290 : vector<16x1xf32>
    %294 = arith.truncf %284 : vector<16x32xf32> to vector<16x32xbf16>
    %295 = arith.truncf %273 : vector<32x32xf32> to vector<32x32xbf16>
    %cst_112 = arith.constant dense<0.000000e+00> : vector<16x32xf32>
    %296 = tpu.matmul %294, %295, %cst_112 {dimension_numbers = #tpu.dot_dimension_numbers<[1], [0], [0], [1], [0, 0, 1, 1], [], []>} : vector<16x32xbf16>, vector<32x32xbf16>, vector<16x32xf32> -> vector<16x32xf32>
    %297 = tpu.reciprocal %290 {approx = true} : vector<16x1xf32> -> vector<16x1xf32>
    %298 = tpu.reciprocal %293 {approx = true} : vector<16x1xf32> -> vector<16x1xf32>
    %299 = vector.shape_cast %15 : vector<1x32xi1> to vector<1x32xi1>
    %300 = vector.broadcast %299 : vector<1x32xi1> to vector<16x32xi1>
    %301 = vector.shape_cast %297 : vector<16x1xf32> to vector<16x1xf32>
    %302 = vector.broadcast %301 : vector<16x1xf32> to vector<16x32xf32>
    %303 = vector.shape_cast %298 : vector<16x1xf32> to vector<16x1xf32>
    %304 = vector.broadcast %303 : vector<16x1xf32> to vector<16x32xf32>
    %305 = arith.select %300, %302, %304 : vector<16x32xi1>, vector<16x32xf32>
    %306 = arith.mulf %296, %305 : vector<16x32xf32>
    %c0_113 = arith.constant 0 : index
    %c0_114 = arith.constant 0 : index
    %c96_115 = arith.constant 96 : index
    %307 = vector.load %arg5[%c0_113, %c0_114, %c96_115] : memref<4x32x320xbf16, #tpu.memory_space<vmem>>, vector<1x32x32xbf16>
    %308 = vector.shape_cast %307 : vector<1x32x32xbf16> to vector<32x32xbf16>
    %309 = arith.truncf %306 : vector<16x32xf32> to vector<16x32xbf16>
    %cst_116 = arith.constant dense<0.000000e+00> : vector<16x32xf32>
    %310 = tpu.matmul %309, %308, %cst_116 {dimension_numbers = #tpu.dot_dimension_numbers<[1], [0], [0], [1], [0, 0, 1, 1], [], []>} : vector<16x32xbf16>, vector<32x32xbf16>, vector<16x32xf32> -> vector<16x32xf32>
    %c17 = arith.constant 17 : index
    %c0_117 = arith.constant 0 : index
    %311 = vector.load %arg2[%c17, %c0_117] : memref<71x128xf32, #tpu.memory_space<vmem>>, vector<1x32xf32>
    %312 = vector.broadcast %311 : vector<1x32xf32> to vector<16x32xf32>
    %313 = arith.addf %310, %312 : vector<16x32xf32>
    %314 = arith.addf %17, %313 : vector<16x32xf32>
    %c18 = arith.constant 18 : index
    %c0_118 = arith.constant 0 : index
    %315 = vector.load %arg2[%c18, %c0_118] : memref<71x128xf32, #tpu.memory_space<vmem>>, vector<1x32xf32>
    %c19 = arith.constant 19 : index
    %c0_119 = arith.constant 0 : index
    %316 = vector.load %arg2[%c19, %c0_119] : memref<71x128xf32, #tpu.memory_space<vmem>>, vector<1x32xf32>
    %cst_120 = arith.constant dense<0.000000e+00> : vector<16xf32>
    %317 = vector.multi_reduction <add>, %314, %cst_120 [1] : vector<16x32xf32> to vector<16xf32>
    %318 = vector.shape_cast %317 : vector<16xf32> to vector<16x1xf32>
    %cst_121 = arith.constant 3.200000e+01 : f32
    %319 = vector.broadcast %cst_121 : f32 to vector<16x1xf32>
    %320 = arith.divf %318, %319 : vector<16x1xf32>
    %321 = vector.broadcast %320 : vector<16x1xf32> to vector<16x32xf32>
    %322 = arith.subf %314, %321 : vector<16x32xf32>
    %323 = arith.mulf %322, %322 : vector<16x32xf32>
    %cst_122 = arith.constant dense<0.000000e+00> : vector<16xf32>
    %324 = vector.multi_reduction <add>, %323, %cst_122 [1] : vector<16x32xf32> to vector<16xf32>
    %325 = vector.shape_cast %324 : vector<16xf32> to vector<16x1xf32>
    %cst_123 = arith.constant 3.200000e+01 : f32
    %326 = vector.broadcast %cst_123 : f32 to vector<16x1xf32>
    %327 = arith.divf %325, %326 : vector<16x1xf32>
    %cst_124 = arith.constant 9.99999974E-6 : f32
    %328 = vector.broadcast %cst_124 : f32 to vector<16x1xf32>
    %329 = arith.addf %327, %328 : vector<16x1xf32>
    %330 = math.rsqrt %329 : vector<16x1xf32>
    %331 = vector.broadcast %330 : vector<16x1xf32> to vector<16x32xf32>
    %332 = arith.mulf %322, %331 : vector<16x32xf32>
    %333 = vector.broadcast %315 : vector<1x32xf32> to vector<16x32xf32>
    %334 = arith.mulf %332, %333 : vector<16x32xf32>
    %335 = vector.broadcast %316 : vector<1x32xf32> to vector<16x32xf32>
    %336 = arith.addf %334, %335 : vector<16x32xf32>
    %c0_125 = arith.constant 0 : index
    %c0_126 = arith.constant 0 : index
    %c128_127 = arith.constant 128 : index
    %337 = vector.load %arg5[%c0_125, %c0_126, %c128_127] : memref<4x32x320xbf16, #tpu.memory_space<vmem>>, vector<1x32x32xbf16>
    %338 = vector.shape_cast %337 : vector<1x32x32xbf16> to vector<32x32xbf16>
    %339 = arith.truncf %336 : vector<16x32xf32> to vector<16x32xbf16>
    %cst_128 = arith.constant dense<0.000000e+00> : vector<16x32xf32>
    %340 = tpu.matmul %339, %338, %cst_128 {dimension_numbers = #tpu.dot_dimension_numbers<[1], [0], [0], [1], [0, 0, 1, 1], [], []>} : vector<16x32xbf16>, vector<32x32xbf16>, vector<16x32xf32> -> vector<16x32xf32>
    %c20 = arith.constant 20 : index
    %c0_129 = arith.constant 0 : index
    %341 = vector.load %arg2[%c20, %c0_129] : memref<71x128xf32, #tpu.memory_space<vmem>>, vector<1x32xf32>
    %342 = vector.broadcast %341 : vector<1x32xf32> to vector<16x32xf32>
    %343 = arith.addf %340, %342 : vector<16x32xf32>
    %c0_130 = arith.constant 0 : index
    %c0_131 = arith.constant 0 : index
    %c160 = arith.constant 160 : index
    %344 = vector.load %arg5[%c0_130, %c0_131, %c160] : memref<4x32x320xbf16, #tpu.memory_space<vmem>>, vector<1x32x64xbf16>
    %345 = vector.shape_cast %344 : vector<1x32x64xbf16> to vector<32x64xbf16>
    %cst_132 = arith.constant dense<0.000000e+00> : vector<16x64xf32>
    %346 = tpu.matmul %257, %345, %cst_132 {dimension_numbers = #tpu.dot_dimension_numbers<[1], [0], [0], [1], [0, 0, 1, 1], [], []>} : vector<16x32xbf16>, vector<32x64xbf16>, vector<16x64xf32> -> vector<16x64xf32>
    %c21 = arith.constant 21 : index
    %c0_133 = arith.constant 0 : index
    %347 = vector.load %arg2[%c21, %c0_133] : memref<71x128xf32, #tpu.memory_space<vmem>>, vector<1x64xf32>
    %348 = vector.broadcast %347 : vector<1x64xf32> to vector<16x64xf32>
    %349 = arith.addf %346, %348 : vector<16x64xf32>
    %350 = vector.extract_strided_slice %349 {offsets = [0, 0], sizes = [16, 32], strides = [1, 1]} : vector<16x64xf32> to vector<16x32xf32>
    %351 = vector.extract_strided_slice %349 {offsets = [0, 32], sizes = [16, 32], strides = [1, 1]} : vector<16x64xf32> to vector<16x32xf32>
    %c2_134 = arith.constant 2 : index
    %c0_135 = arith.constant 0 : index
    %c0_136 = arith.constant 0 : index
    %352 = vector.load %arg1[%c2_134, %c0_135, %c0_136] : memref<3x16x32xf32, #tpu.memory_space<vmem>>, vector<1x16x32xf32>
    %353 = vector.shape_cast %352 : vector<1x16x32xf32> to vector<16x32xf32>
    %354 = tpu.concatenate %350, %350 in 0 : vector<16x32xf32>, vector<16x32xf32> -> vector<32x32xf32>
    %355 = arith.mulf %354, %9 : vector<32x32xf32>
    %356 = tpu.concatenate %351, %351 in 0 : vector<16x32xf32>, vector<16x32xf32> -> vector<32x32xf32>
    %357 = arith.mulf %356, %9 : vector<32x32xf32>
    %358 = arith.truncf %343 : vector<16x32xf32> to vector<16x32xbf16>
    %359 = arith.truncf %355 : vector<32x32xf32> to vector<32x32xbf16>
    %cst_137 = arith.constant dense<0.000000e+00> : vector<16x32xf32>
    %360 = tpu.matmul %358, %359, %cst_137 {dimension_numbers = #tpu.dot_dimension_numbers<[1], [1], [0], [0], [0, 0, 1, 0], [], []>} : vector<16x32xbf16>, vector<32x32xbf16>, vector<16x32xf32> -> vector<16x32xf32>
    %cst_138 = arith.constant 2.500000e-01 : f32
    %361 = vector.broadcast %cst_138 : f32 to vector<16x32xf32>
    %362 = arith.mulf %360, %361 : vector<16x32xf32>
    %363 = arith.addf %362, %353 : vector<16x32xf32>
    %cst_139 = arith.constant dense<0xFF800000> : vector<16xf32>
    %364 = vector.multi_reduction <maximumf>, %363, %cst_139 [1] : vector<16x32xf32> to vector<16xf32>
    %365 = vector.shape_cast %364 : vector<16xf32> to vector<16x1xf32>
    %366 = vector.broadcast %365 : vector<16x1xf32> to vector<16x32xf32>
    %367 = arith.subf %363, %366 : vector<16x32xf32>
    %368 = math.exp %367 : vector<16x32xf32>
    %cst_140 = arith.constant 0.000000e+00 : f32
    %369 = vector.shape_cast %12 : vector<1x32xi1> to vector<1x32xi1>
    %370 = vector.broadcast %369 : vector<1x32xi1> to vector<16x32xi1>
    %371 = vector.broadcast %cst_140 : f32 to vector<16x32xf32>
    %372 = arith.select %370, %368, %371 : vector<16x32xi1>, vector<16x32xf32>
    %cst_141 = arith.constant dense<0.000000e+00> : vector<16xf32>
    %373 = vector.multi_reduction <add>, %372, %cst_141 [1] : vector<16x32xf32> to vector<16xf32>
    %374 = vector.shape_cast %373 : vector<16xf32> to vector<16x1xf32>
    %cst_142 = arith.constant dense<0.000000e+00> : vector<16xf32>
    %375 = vector.multi_reduction <add>, %368, %cst_142 [1] : vector<16x32xf32> to vector<16xf32>
    %376 = vector.shape_cast %375 : vector<16xf32> to vector<16x1xf32>
    %377 = arith.subf %376, %374 : vector<16x1xf32>
    %378 = arith.truncf %368 : vector<16x32xf32> to vector<16x32xbf16>
    %379 = arith.truncf %357 : vector<32x32xf32> to vector<32x32xbf16>
    %cst_143 = arith.constant dense<0.000000e+00> : vector<16x32xf32>
    %380 = tpu.matmul %378, %379, %cst_143 {dimension_numbers = #tpu.dot_dimension_numbers<[1], [0], [0], [1], [0, 0, 1, 1], [], []>} : vector<16x32xbf16>, vector<32x32xbf16>, vector<16x32xf32> -> vector<16x32xf32>
    %381 = tpu.reciprocal %374 {approx = true} : vector<16x1xf32> -> vector<16x1xf32>
    %382 = tpu.reciprocal %377 {approx = true} : vector<16x1xf32> -> vector<16x1xf32>
    %383 = vector.shape_cast %15 : vector<1x32xi1> to vector<1x32xi1>
    %384 = vector.broadcast %383 : vector<1x32xi1> to vector<16x32xi1>
    %385 = vector.shape_cast %381 : vector<16x1xf32> to vector<16x1xf32>
    %386 = vector.broadcast %385 : vector<16x1xf32> to vector<16x32xf32>
    %387 = vector.shape_cast %382 : vector<16x1xf32> to vector<16x1xf32>
    %388 = vector.broadcast %387 : vector<16x1xf32> to vector<16x32xf32>
    %389 = arith.select %384, %386, %388 : vector<16x32xi1>, vector<16x32xf32>
    %390 = arith.mulf %380, %389 : vector<16x32xf32>
    %c0_144 = arith.constant 0 : index
    %c0_145 = arith.constant 0 : index
    %c224 = arith.constant 224 : index
    %391 = vector.load %arg5[%c0_144, %c0_145, %c224] : memref<4x32x320xbf16, #tpu.memory_space<vmem>>, vector<1x32x32xbf16>
    %392 = vector.shape_cast %391 : vector<1x32x32xbf16> to vector<32x32xbf16>
    %393 = arith.truncf %390 : vector<16x32xf32> to vector<16x32xbf16>
    %cst_146 = arith.constant dense<0.000000e+00> : vector<16x32xf32>
    %394 = tpu.matmul %393, %392, %cst_146 {dimension_numbers = #tpu.dot_dimension_numbers<[1], [0], [0], [1], [0, 0, 1, 1], [], []>} : vector<16x32xbf16>, vector<32x32xbf16>, vector<16x32xf32> -> vector<16x32xf32>
    %c22 = arith.constant 22 : index
    %c0_147 = arith.constant 0 : index
    %395 = vector.load %arg2[%c22, %c0_147] : memref<71x128xf32, #tpu.memory_space<vmem>>, vector<1x32xf32>
    %396 = vector.broadcast %395 : vector<1x32xf32> to vector<16x32xf32>
    %397 = arith.addf %394, %396 : vector<16x32xf32>
    %398 = arith.addf %336, %397 : vector<16x32xf32>
    %c23 = arith.constant 23 : index
    %c0_148 = arith.constant 0 : index
    %399 = vector.load %arg2[%c23, %c0_148] : memref<71x128xf32, #tpu.memory_space<vmem>>, vector<1x32xf32>
    %c24 = arith.constant 24 : index
    %c0_149 = arith.constant 0 : index
    %400 = vector.load %arg2[%c24, %c0_149] : memref<71x128xf32, #tpu.memory_space<vmem>>, vector<1x32xf32>
    %cst_150 = arith.constant dense<0.000000e+00> : vector<16xf32>
    %401 = vector.multi_reduction <add>, %398, %cst_150 [1] : vector<16x32xf32> to vector<16xf32>
    %402 = vector.shape_cast %401 : vector<16xf32> to vector<16x1xf32>
    %cst_151 = arith.constant 3.200000e+01 : f32
    %403 = vector.broadcast %cst_151 : f32 to vector<16x1xf32>
    %404 = arith.divf %402, %403 : vector<16x1xf32>
    %405 = vector.broadcast %404 : vector<16x1xf32> to vector<16x32xf32>
    %406 = arith.subf %398, %405 : vector<16x32xf32>
    %407 = arith.mulf %406, %406 : vector<16x32xf32>
    %cst_152 = arith.constant dense<0.000000e+00> : vector<16xf32>
    %408 = vector.multi_reduction <add>, %407, %cst_152 [1] : vector<16x32xf32> to vector<16xf32>
    %409 = vector.shape_cast %408 : vector<16xf32> to vector<16x1xf32>
    %cst_153 = arith.constant 3.200000e+01 : f32
    %410 = vector.broadcast %cst_153 : f32 to vector<16x1xf32>
    %411 = arith.divf %409, %410 : vector<16x1xf32>
    %cst_154 = arith.constant 9.99999974E-6 : f32
    %412 = vector.broadcast %cst_154 : f32 to vector<16x1xf32>
    %413 = arith.addf %411, %412 : vector<16x1xf32>
    %414 = math.rsqrt %413 : vector<16x1xf32>
    %415 = vector.broadcast %414 : vector<16x1xf32> to vector<16x32xf32>
    %416 = arith.mulf %406, %415 : vector<16x32xf32>
    %417 = vector.broadcast %399 : vector<1x32xf32> to vector<16x32xf32>
    %418 = arith.mulf %416, %417 : vector<16x32xf32>
    %419 = vector.broadcast %400 : vector<1x32xf32> to vector<16x32xf32>
    %420 = arith.addf %418, %419 : vector<16x32xf32>
    %c0_155 = arith.constant 0 : index
    %c0_156 = arith.constant 0 : index
    %c256 = arith.constant 256 : index
    %421 = vector.load %arg5[%c0_155, %c0_156, %c256] : memref<4x32x320xbf16, #tpu.memory_space<vmem>>, vector<1x32x64xbf16>
    %422 = vector.shape_cast %421 : vector<1x32x64xbf16> to vector<32x64xbf16>
    %423 = arith.truncf %420 : vector<16x32xf32> to vector<16x32xbf16>
    %cst_157 = arith.constant dense<0.000000e+00> : vector<16x64xf32>
    %424 = tpu.matmul %423, %422, %cst_157 {dimension_numbers = #tpu.dot_dimension_numbers<[1], [0], [0], [1], [0, 0, 1, 1], [], []>} : vector<16x32xbf16>, vector<32x64xbf16>, vector<16x64xf32> -> vector<16x64xf32>
    %c25 = arith.constant 25 : index
    %c0_158 = arith.constant 0 : index
    %425 = vector.load %arg2[%c25, %c0_158] : memref<71x128xf32, #tpu.memory_space<vmem>>, vector<1x64xf32>
    %426 = vector.broadcast %425 : vector<1x64xf32> to vector<16x64xf32>
    %427 = arith.addf %424, %426 : vector<16x64xf32>
    %cst_159 = arith.constant 0.000000e+00 : f32
    %428 = vector.broadcast %cst_159 : f32 to vector<16x64xf32>
    %429 = arith.maximumf %427, %428 : vector<16x64xf32>
    %c0_160 = arith.constant 0 : index
    %c0_161 = arith.constant 0 : index
    %c0_162 = arith.constant 0 : index
    %430 = vector.load %arg6[%c0_160, %c0_161, %c0_162] : memref<4x64x32xbf16, #tpu.memory_space<vmem>>, vector<1x64x32xbf16>
    %431 = vector.shape_cast %430 : vector<1x64x32xbf16> to vector<64x32xbf16>
    %432 = arith.truncf %429 : vector<16x64xf32> to vector<16x64xbf16>
    %cst_163 = arith.constant dense<0.000000e+00> : vector<16x32xf32>
    %433 = tpu.matmul %432, %431, %cst_163 {dimension_numbers = #tpu.dot_dimension_numbers<[1], [0], [0], [1], [0, 0, 1, 1], [], []>} : vector<16x64xbf16>, vector<64x32xbf16>, vector<16x32xf32> -> vector<16x32xf32>
    %c26 = arith.constant 26 : index
    %c0_164 = arith.constant 0 : index
    %434 = vector.load %arg2[%c26, %c0_164] : memref<71x128xf32, #tpu.memory_space<vmem>>, vector<1x32xf32>
    %435 = vector.broadcast %434 : vector<1x32xf32> to vector<16x32xf32>
    %436 = arith.addf %433, %435 : vector<16x32xf32>
    %437 = arith.addf %420, %436 : vector<16x32xf32>
    %c27 = arith.constant 27 : index
    %c0_165 = arith.constant 0 : index
    %438 = vector.load %arg2[%c27, %c0_165] : memref<71x128xf32, #tpu.memory_space<vmem>>, vector<1x32xf32>
    %c28 = arith.constant 28 : index
    %c0_166 = arith.constant 0 : index
    %439 = vector.load %arg2[%c28, %c0_166] : memref<71x128xf32, #tpu.memory_space<vmem>>, vector<1x32xf32>
    %cst_167 = arith.constant dense<0.000000e+00> : vector<16xf32>
    %440 = vector.multi_reduction <add>, %437, %cst_167 [1] : vector<16x32xf32> to vector<16xf32>
    %441 = vector.shape_cast %440 : vector<16xf32> to vector<16x1xf32>
    %cst_168 = arith.constant 3.200000e+01 : f32
    %442 = vector.broadcast %cst_168 : f32 to vector<16x1xf32>
    %443 = arith.divf %441, %442 : vector<16x1xf32>
    %444 = vector.broadcast %443 : vector<16x1xf32> to vector<16x32xf32>
    %445 = arith.subf %437, %444 : vector<16x32xf32>
    %446 = arith.mulf %445, %445 : vector<16x32xf32>
    %cst_169 = arith.constant dense<0.000000e+00> : vector<16xf32>
    %447 = vector.multi_reduction <add>, %446, %cst_169 [1] : vector<16x32xf32> to vector<16xf32>
    %448 = vector.shape_cast %447 : vector<16xf32> to vector<16x1xf32>
    %cst_170 = arith.constant 3.200000e+01 : f32
    %449 = vector.broadcast %cst_170 : f32 to vector<16x1xf32>
    %450 = arith.divf %448, %449 : vector<16x1xf32>
    %cst_171 = arith.constant 9.99999974E-6 : f32
    %451 = vector.broadcast %cst_171 : f32 to vector<16x1xf32>
    %452 = arith.addf %450, %451 : vector<16x1xf32>
    %453 = math.rsqrt %452 : vector<16x1xf32>
    %454 = vector.broadcast %453 : vector<16x1xf32> to vector<16x32xf32>
    %455 = arith.mulf %445, %454 : vector<16x32xf32>
    %456 = vector.broadcast %438 : vector<1x32xf32> to vector<16x32xf32>
    %457 = arith.mulf %455, %456 : vector<16x32xf32>
    %458 = vector.broadcast %439 : vector<1x32xf32> to vector<16x32xf32>
    %459 = arith.addf %457, %458 : vector<16x32xf32>
    %c1_172 = arith.constant 1 : index
    %c0_173 = arith.constant 0 : index
    %c0_174 = arith.constant 0 : index
    %460 = vector.load %arg5[%c1_172, %c0_173, %c0_174] : memref<4x32x320xbf16, #tpu.memory_space<vmem>>, vector<1x32x96xbf16>
    %461 = vector.shape_cast %460 : vector<1x32x96xbf16> to vector<32x96xbf16>
    %462 = arith.truncf %459 : vector<16x32xf32> to vector<16x32xbf16>
    %cst_175 = arith.constant dense<0.000000e+00> : vector<16x96xf32>
    %463 = tpu.matmul %462, %461, %cst_175 {dimension_numbers = #tpu.dot_dimension_numbers<[1], [0], [0], [1], [0, 0, 1, 1], [], []>} : vector<16x32xbf16>, vector<32x96xbf16>, vector<16x96xf32> -> vector<16x96xf32>
    %c29 = arith.constant 29 : index
    %c0_176 = arith.constant 0 : index
    %464 = vector.load %arg2[%c29, %c0_176] : memref<71x128xf32, #tpu.memory_space<vmem>>, vector<1x96xf32>
    %465 = vector.broadcast %464 : vector<1x96xf32> to vector<16x96xf32>
    %466 = arith.addf %463, %465 : vector<16x96xf32>
    %467 = vector.extract_strided_slice %466 {offsets = [0, 0], sizes = [16, 32], strides = [1, 1]} : vector<16x96xf32> to vector<16x32xf32>
    %468 = vector.extract_strided_slice %466 {offsets = [0, 32], sizes = [16, 32], strides = [1, 1]} : vector<16x96xf32> to vector<16x32xf32>
    %469 = vector.extract_strided_slice %466 {offsets = [0, 64], sizes = [16, 32], strides = [1, 1]} : vector<16x96xf32> to vector<16x32xf32>
    %c1_177 = arith.constant 1 : index
    %c0_178 = arith.constant 0 : index
    %c0_179 = arith.constant 0 : index
    %470 = vector.load %arg1[%c1_177, %c0_178, %c0_179] : memref<3x16x32xf32, #tpu.memory_space<vmem>>, vector<1x16x32xf32>
    %471 = vector.shape_cast %470 : vector<1x16x32xf32> to vector<16x32xf32>
    %472 = tpu.concatenate %468, %468 in 0 : vector<16x32xf32>, vector<16x32xf32> -> vector<32x32xf32>
    %473 = arith.mulf %472, %9 : vector<32x32xf32>
    %474 = tpu.concatenate %469, %469 in 0 : vector<16x32xf32>, vector<16x32xf32> -> vector<32x32xf32>
    %475 = arith.mulf %474, %9 : vector<32x32xf32>
    %476 = arith.truncf %467 : vector<16x32xf32> to vector<16x32xbf16>
    %477 = arith.truncf %473 : vector<32x32xf32> to vector<32x32xbf16>
    %cst_180 = arith.constant dense<0.000000e+00> : vector<16x32xf32>
    %478 = tpu.matmul %476, %477, %cst_180 {dimension_numbers = #tpu.dot_dimension_numbers<[1], [1], [0], [0], [0, 0, 1, 0], [], []>} : vector<16x32xbf16>, vector<32x32xbf16>, vector<16x32xf32> -> vector<16x32xf32>
    %cst_181 = arith.constant 2.500000e-01 : f32
    %479 = vector.broadcast %cst_181 : f32 to vector<16x32xf32>
    %480 = arith.mulf %478, %479 : vector<16x32xf32>
    %481 = arith.addf %480, %471 : vector<16x32xf32>
    %cst_182 = arith.constant dense<0xFF800000> : vector<16xf32>
    %482 = vector.multi_reduction <maximumf>, %481, %cst_182 [1] : vector<16x32xf32> to vector<16xf32>
    %483 = vector.shape_cast %482 : vector<16xf32> to vector<16x1xf32>
    %484 = vector.broadcast %483 : vector<16x1xf32> to vector<16x32xf32>
    %485 = arith.subf %481, %484 : vector<16x32xf32>
    %486 = math.exp %485 : vector<16x32xf32>
    %cst_183 = arith.constant 0.000000e+00 : f32
    %487 = vector.shape_cast %12 : vector<1x32xi1> to vector<1x32xi1>
    %488 = vector.broadcast %487 : vector<1x32xi1> to vector<16x32xi1>
    %489 = vector.broadcast %cst_183 : f32 to vector<16x32xf32>
    %490 = arith.select %488, %486, %489 : vector<16x32xi1>, vector<16x32xf32>
    %cst_184 = arith.constant dense<0.000000e+00> : vector<16xf32>
    %491 = vector.multi_reduction <add>, %490, %cst_184 [1] : vector<16x32xf32> to vector<16xf32>
    %492 = vector.shape_cast %491 : vector<16xf32> to vector<16x1xf32>
    %cst_185 = arith.constant dense<0.000000e+00> : vector<16xf32>
    %493 = vector.multi_reduction <add>, %486, %cst_185 [1] : vector<16x32xf32> to vector<16xf32>
    %494 = vector.shape_cast %493 : vector<16xf32> to vector<16x1xf32>
    %495 = arith.subf %494, %492 : vector<16x1xf32>
    %496 = arith.truncf %486 : vector<16x32xf32> to vector<16x32xbf16>
    %497 = arith.truncf %475 : vector<32x32xf32> to vector<32x32xbf16>
    %cst_186 = arith.constant dense<0.000000e+00> : vector<16x32xf32>
    %498 = tpu.matmul %496, %497, %cst_186 {dimension_numbers = #tpu.dot_dimension_numbers<[1], [0], [0], [1], [0, 0, 1, 1], [], []>} : vector<16x32xbf16>, vector<32x32xbf16>, vector<16x32xf32> -> vector<16x32xf32>
    %499 = tpu.reciprocal %492 {approx = true} : vector<16x1xf32> -> vector<16x1xf32>
    %500 = tpu.reciprocal %495 {approx = true} : vector<16x1xf32> -> vector<16x1xf32>
    %501 = vector.shape_cast %15 : vector<1x32xi1> to vector<1x32xi1>
    %502 = vector.broadcast %501 : vector<1x32xi1> to vector<16x32xi1>
    %503 = vector.shape_cast %499 : vector<16x1xf32> to vector<16x1xf32>
    %504 = vector.broadcast %503 : vector<16x1xf32> to vector<16x32xf32>
    %505 = vector.shape_cast %500 : vector<16x1xf32> to vector<16x1xf32>
    %506 = vector.broadcast %505 : vector<16x1xf32> to vector<16x32xf32>
    %507 = arith.select %502, %504, %506 : vector<16x32xi1>, vector<16x32xf32>
    %508 = arith.mulf %498, %507 : vector<16x32xf32>
    %c1_187 = arith.constant 1 : index
    %c0_188 = arith.constant 0 : index
    %c96_189 = arith.constant 96 : index
    %509 = vector.load %arg5[%c1_187, %c0_188, %c96_189] : memref<4x32x320xbf16, #tpu.memory_space<vmem>>, vector<1x32x32xbf16>
    %510 = vector.shape_cast %509 : vector<1x32x32xbf16> to vector<32x32xbf16>
    %511 = arith.truncf %508 : vector<16x32xf32> to vector<16x32xbf16>
    %cst_190 = arith.constant dense<0.000000e+00> : vector<16x32xf32>
    %512 = tpu.matmul %511, %510, %cst_190 {dimension_numbers = #tpu.dot_dimension_numbers<[1], [0], [0], [1], [0, 0, 1, 1], [], []>} : vector<16x32xbf16>, vector<32x32xbf16>, vector<16x32xf32> -> vector<16x32xf32>
    %c30 = arith.constant 30 : index
    %c0_191 = arith.constant 0 : index
    %513 = vector.load %arg2[%c30, %c0_191] : memref<71x128xf32, #tpu.memory_space<vmem>>, vector<1x32xf32>
    %514 = vector.broadcast %513 : vector<1x32xf32> to vector<16x32xf32>
    %515 = arith.addf %512, %514 : vector<16x32xf32>
    %516 = arith.addf %459, %515 : vector<16x32xf32>
    %c31 = arith.constant 31 : index
    %c0_192 = arith.constant 0 : index
    %517 = vector.load %arg2[%c31, %c0_192] : memref<71x128xf32, #tpu.memory_space<vmem>>, vector<1x32xf32>
    %c32_193 = arith.constant 32 : index
    %c0_194 = arith.constant 0 : index
    %518 = vector.load %arg2[%c32_193, %c0_194] : memref<71x128xf32, #tpu.memory_space<vmem>>, vector<1x32xf32>
    %cst_195 = arith.constant dense<0.000000e+00> : vector<16xf32>
    %519 = vector.multi_reduction <add>, %516, %cst_195 [1] : vector<16x32xf32> to vector<16xf32>
    %520 = vector.shape_cast %519 : vector<16xf32> to vector<16x1xf32>
    %cst_196 = arith.constant 3.200000e+01 : f32
    %521 = vector.broadcast %cst_196 : f32 to vector<16x1xf32>
    %522 = arith.divf %520, %521 : vector<16x1xf32>
    %523 = vector.broadcast %522 : vector<16x1xf32> to vector<16x32xf32>
    %524 = arith.subf %516, %523 : vector<16x32xf32>
    %525 = arith.mulf %524, %524 : vector<16x32xf32>
    %cst_197 = arith.constant dense<0.000000e+00> : vector<16xf32>
    %526 = vector.multi_reduction <add>, %525, %cst_197 [1] : vector<16x32xf32> to vector<16xf32>
    %527 = vector.shape_cast %526 : vector<16xf32> to vector<16x1xf32>
    %cst_198 = arith.constant 3.200000e+01 : f32
    %528 = vector.broadcast %cst_198 : f32 to vector<16x1xf32>
    %529 = arith.divf %527, %528 : vector<16x1xf32>
    %cst_199 = arith.constant 9.99999974E-6 : f32
    %530 = vector.broadcast %cst_199 : f32 to vector<16x1xf32>
    %531 = arith.addf %529, %530 : vector<16x1xf32>
    %532 = math.rsqrt %531 : vector<16x1xf32>
    %533 = vector.broadcast %532 : vector<16x1xf32> to vector<16x32xf32>
    %534 = arith.mulf %524, %533 : vector<16x32xf32>
    %535 = vector.broadcast %517 : vector<1x32xf32> to vector<16x32xf32>
    %536 = arith.mulf %534, %535 : vector<16x32xf32>
    %537 = vector.broadcast %518 : vector<1x32xf32> to vector<16x32xf32>
    %538 = arith.addf %536, %537 : vector<16x32xf32>
    %c1_200 = arith.constant 1 : index
    %c0_201 = arith.constant 0 : index
    %c128_202 = arith.constant 128 : index
    %539 = vector.load %arg5[%c1_200, %c0_201, %c128_202] : memref<4x32x320xbf16, #tpu.memory_space<vmem>>, vector<1x32x32xbf16>
    %540 = vector.shape_cast %539 : vector<1x32x32xbf16> to vector<32x32xbf16>
    %541 = arith.truncf %538 : vector<16x32xf32> to vector<16x32xbf16>
    %cst_203 = arith.constant dense<0.000000e+00> : vector<16x32xf32>
    %542 = tpu.matmul %541, %540, %cst_203 {dimension_numbers = #tpu.dot_dimension_numbers<[1], [0], [0], [1], [0, 0, 1, 1], [], []>} : vector<16x32xbf16>, vector<32x32xbf16>, vector<16x32xf32> -> vector<16x32xf32>
    %c33 = arith.constant 33 : index
    %c0_204 = arith.constant 0 : index
    %543 = vector.load %arg2[%c33, %c0_204] : memref<71x128xf32, #tpu.memory_space<vmem>>, vector<1x32xf32>
    %544 = vector.broadcast %543 : vector<1x32xf32> to vector<16x32xf32>
    %545 = arith.addf %542, %544 : vector<16x32xf32>
    %c1_205 = arith.constant 1 : index
    %c0_206 = arith.constant 0 : index
    %c160_207 = arith.constant 160 : index
    %546 = vector.load %arg5[%c1_205, %c0_206, %c160_207] : memref<4x32x320xbf16, #tpu.memory_space<vmem>>, vector<1x32x64xbf16>
    %547 = vector.shape_cast %546 : vector<1x32x64xbf16> to vector<32x64xbf16>
    %cst_208 = arith.constant dense<0.000000e+00> : vector<16x64xf32>
    %548 = tpu.matmul %257, %547, %cst_208 {dimension_numbers = #tpu.dot_dimension_numbers<[1], [0], [0], [1], [0, 0, 1, 1], [], []>} : vector<16x32xbf16>, vector<32x64xbf16>, vector<16x64xf32> -> vector<16x64xf32>
    %c34 = arith.constant 34 : index
    %c0_209 = arith.constant 0 : index
    %549 = vector.load %arg2[%c34, %c0_209] : memref<71x128xf32, #tpu.memory_space<vmem>>, vector<1x64xf32>
    %550 = vector.broadcast %549 : vector<1x64xf32> to vector<16x64xf32>
    %551 = arith.addf %548, %550 : vector<16x64xf32>
    %552 = vector.extract_strided_slice %551 {offsets = [0, 0], sizes = [16, 32], strides = [1, 1]} : vector<16x64xf32> to vector<16x32xf32>
    %553 = vector.extract_strided_slice %551 {offsets = [0, 32], sizes = [16, 32], strides = [1, 1]} : vector<16x64xf32> to vector<16x32xf32>
    %c2_210 = arith.constant 2 : index
    %c0_211 = arith.constant 0 : index
    %c0_212 = arith.constant 0 : index
    %554 = vector.load %arg1[%c2_210, %c0_211, %c0_212] : memref<3x16x32xf32, #tpu.memory_space<vmem>>, vector<1x16x32xf32>
    %555 = vector.shape_cast %554 : vector<1x16x32xf32> to vector<16x32xf32>
    %556 = tpu.concatenate %552, %552 in 0 : vector<16x32xf32>, vector<16x32xf32> -> vector<32x32xf32>
    %557 = arith.mulf %556, %9 : vector<32x32xf32>
    %558 = tpu.concatenate %553, %553 in 0 : vector<16x32xf32>, vector<16x32xf32> -> vector<32x32xf32>
    %559 = arith.mulf %558, %9 : vector<32x32xf32>
    %560 = arith.truncf %545 : vector<16x32xf32> to vector<16x32xbf16>
    %561 = arith.truncf %557 : vector<32x32xf32> to vector<32x32xbf16>
    %cst_213 = arith.constant dense<0.000000e+00> : vector<16x32xf32>
    %562 = tpu.matmul %560, %561, %cst_213 {dimension_numbers = #tpu.dot_dimension_numbers<[1], [1], [0], [0], [0, 0, 1, 0], [], []>} : vector<16x32xbf16>, vector<32x32xbf16>, vector<16x32xf32> -> vector<16x32xf32>
    %cst_214 = arith.constant 2.500000e-01 : f32
    %563 = vector.broadcast %cst_214 : f32 to vector<16x32xf32>
    %564 = arith.mulf %562, %563 : vector<16x32xf32>
    %565 = arith.addf %564, %555 : vector<16x32xf32>
    %cst_215 = arith.constant dense<0xFF800000> : vector<16xf32>
    %566 = vector.multi_reduction <maximumf>, %565, %cst_215 [1] : vector<16x32xf32> to vector<16xf32>
    %567 = vector.shape_cast %566 : vector<16xf32> to vector<16x1xf32>
    %568 = vector.broadcast %567 : vector<16x1xf32> to vector<16x32xf32>
    %569 = arith.subf %565, %568 : vector<16x32xf32>
    %570 = math.exp %569 : vector<16x32xf32>
    %cst_216 = arith.constant 0.000000e+00 : f32
    %571 = vector.shape_cast %12 : vector<1x32xi1> to vector<1x32xi1>
    %572 = vector.broadcast %571 : vector<1x32xi1> to vector<16x32xi1>
    %573 = vector.broadcast %cst_216 : f32 to vector<16x32xf32>
    %574 = arith.select %572, %570, %573 : vector<16x32xi1>, vector<16x32xf32>
    %cst_217 = arith.constant dense<0.000000e+00> : vector<16xf32>
    %575 = vector.multi_reduction <add>, %574, %cst_217 [1] : vector<16x32xf32> to vector<16xf32>
    %576 = vector.shape_cast %575 : vector<16xf32> to vector<16x1xf32>
    %cst_218 = arith.constant dense<0.000000e+00> : vector<16xf32>
    %577 = vector.multi_reduction <add>, %570, %cst_218 [1] : vector<16x32xf32> to vector<16xf32>
    %578 = vector.shape_cast %577 : vector<16xf32> to vector<16x1xf32>
    %579 = arith.subf %578, %576 : vector<16x1xf32>
    %580 = arith.truncf %570 : vector<16x32xf32> to vector<16x32xbf16>
    %581 = arith.truncf %559 : vector<32x32xf32> to vector<32x32xbf16>
    %cst_219 = arith.constant dense<0.000000e+00> : vector<16x32xf32>
    %582 = tpu.matmul %580, %581, %cst_219 {dimension_numbers = #tpu.dot_dimension_numbers<[1], [0], [0], [1], [0, 0, 1, 1], [], []>} : vector<16x32xbf16>, vector<32x32xbf16>, vector<16x32xf32> -> vector<16x32xf32>
    %583 = tpu.reciprocal %576 {approx = true} : vector<16x1xf32> -> vector<16x1xf32>
    %584 = tpu.reciprocal %579 {approx = true} : vector<16x1xf32> -> vector<16x1xf32>
    %585 = vector.shape_cast %15 : vector<1x32xi1> to vector<1x32xi1>
    %586 = vector.broadcast %585 : vector<1x32xi1> to vector<16x32xi1>
    %587 = vector.shape_cast %583 : vector<16x1xf32> to vector<16x1xf32>
    %588 = vector.broadcast %587 : vector<16x1xf32> to vector<16x32xf32>
    %589 = vector.shape_cast %584 : vector<16x1xf32> to vector<16x1xf32>
    %590 = vector.broadcast %589 : vector<16x1xf32> to vector<16x32xf32>
    %591 = arith.select %586, %588, %590 : vector<16x32xi1>, vector<16x32xf32>
    %592 = arith.mulf %582, %591 : vector<16x32xf32>
    %c1_220 = arith.constant 1 : index
    %c0_221 = arith.constant 0 : index
    %c224_222 = arith.constant 224 : index
    %593 = vector.load %arg5[%c1_220, %c0_221, %c224_222] : memref<4x32x320xbf16, #tpu.memory_space<vmem>>, vector<1x32x32xbf16>
    %594 = vector.shape_cast %593 : vector<1x32x32xbf16> to vector<32x32xbf16>
    %595 = arith.truncf %592 : vector<16x32xf32> to vector<16x32xbf16>
    %cst_223 = arith.constant dense<0.000000e+00> : vector<16x32xf32>
    %596 = tpu.matmul %595, %594, %cst_223 {dimension_numbers = #tpu.dot_dimension_numbers<[1], [0], [0], [1], [0, 0, 1, 1], [], []>} : vector<16x32xbf16>, vector<32x32xbf16>, vector<16x32xf32> -> vector<16x32xf32>
    %c35 = arith.constant 35 : index
    %c0_224 = arith.constant 0 : index
    %597 = vector.load %arg2[%c35, %c0_224] : memref<71x128xf32, #tpu.memory_space<vmem>>, vector<1x32xf32>
    %598 = vector.broadcast %597 : vector<1x32xf32> to vector<16x32xf32>
    %599 = arith.addf %596, %598 : vector<16x32xf32>
    %600 = arith.addf %538, %599 : vector<16x32xf32>
    %c36 = arith.constant 36 : index
    %c0_225 = arith.constant 0 : index
    %601 = vector.load %arg2[%c36, %c0_225] : memref<71x128xf32, #tpu.memory_space<vmem>>, vector<1x32xf32>
    %c37 = arith.constant 37 : index
    %c0_226 = arith.constant 0 : index
    %602 = vector.load %arg2[%c37, %c0_226] : memref<71x128xf32, #tpu.memory_space<vmem>>, vector<1x32xf32>
    %cst_227 = arith.constant dense<0.000000e+00> : vector<16xf32>
    %603 = vector.multi_reduction <add>, %600, %cst_227 [1] : vector<16x32xf32> to vector<16xf32>
    %604 = vector.shape_cast %603 : vector<16xf32> to vector<16x1xf32>
    %cst_228 = arith.constant 3.200000e+01 : f32
    %605 = vector.broadcast %cst_228 : f32 to vector<16x1xf32>
    %606 = arith.divf %604, %605 : vector<16x1xf32>
    %607 = vector.broadcast %606 : vector<16x1xf32> to vector<16x32xf32>
    %608 = arith.subf %600, %607 : vector<16x32xf32>
    %609 = arith.mulf %608, %608 : vector<16x32xf32>
    %cst_229 = arith.constant dense<0.000000e+00> : vector<16xf32>
    %610 = vector.multi_reduction <add>, %609, %cst_229 [1] : vector<16x32xf32> to vector<16xf32>
    %611 = vector.shape_cast %610 : vector<16xf32> to vector<16x1xf32>
    %cst_230 = arith.constant 3.200000e+01 : f32
    %612 = vector.broadcast %cst_230 : f32 to vector<16x1xf32>
    %613 = arith.divf %611, %612 : vector<16x1xf32>
    %cst_231 = arith.constant 9.99999974E-6 : f32
    %614 = vector.broadcast %cst_231 : f32 to vector<16x1xf32>
    %615 = arith.addf %613, %614 : vector<16x1xf32>
    %616 = math.rsqrt %615 : vector<16x1xf32>
    %617 = vector.broadcast %616 : vector<16x1xf32> to vector<16x32xf32>
    %618 = arith.mulf %608, %617 : vector<16x32xf32>
    %619 = vector.broadcast %601 : vector<1x32xf32> to vector<16x32xf32>
    %620 = arith.mulf %618, %619 : vector<16x32xf32>
    %621 = vector.broadcast %602 : vector<1x32xf32> to vector<16x32xf32>
    %622 = arith.addf %620, %621 : vector<16x32xf32>
    %c1_232 = arith.constant 1 : index
    %c0_233 = arith.constant 0 : index
    %c256_234 = arith.constant 256 : index
    %623 = vector.load %arg5[%c1_232, %c0_233, %c256_234] : memref<4x32x320xbf16, #tpu.memory_space<vmem>>, vector<1x32x64xbf16>
    %624 = vector.shape_cast %623 : vector<1x32x64xbf16> to vector<32x64xbf16>
    %625 = arith.truncf %622 : vector<16x32xf32> to vector<16x32xbf16>
    %cst_235 = arith.constant dense<0.000000e+00> : vector<16x64xf32>
    %626 = tpu.matmul %625, %624, %cst_235 {dimension_numbers = #tpu.dot_dimension_numbers<[1], [0], [0], [1], [0, 0, 1, 1], [], []>} : vector<16x32xbf16>, vector<32x64xbf16>, vector<16x64xf32> -> vector<16x64xf32>
    %c38 = arith.constant 38 : index
    %c0_236 = arith.constant 0 : index
    %627 = vector.load %arg2[%c38, %c0_236] : memref<71x128xf32, #tpu.memory_space<vmem>>, vector<1x64xf32>
    %628 = vector.broadcast %627 : vector<1x64xf32> to vector<16x64xf32>
    %629 = arith.addf %626, %628 : vector<16x64xf32>
    %cst_237 = arith.constant 0.000000e+00 : f32
    %630 = vector.broadcast %cst_237 : f32 to vector<16x64xf32>
    %631 = arith.maximumf %629, %630 : vector<16x64xf32>
    %c1_238 = arith.constant 1 : index
    %c0_239 = arith.constant 0 : index
    %c0_240 = arith.constant 0 : index
    %632 = vector.load %arg6[%c1_238, %c0_239, %c0_240] : memref<4x64x32xbf16, #tpu.memory_space<vmem>>, vector<1x64x32xbf16>
    %633 = vector.shape_cast %632 : vector<1x64x32xbf16> to vector<64x32xbf16>
    %634 = arith.truncf %631 : vector<16x64xf32> to vector<16x64xbf16>
    %cst_241 = arith.constant dense<0.000000e+00> : vector<16x32xf32>
    %635 = tpu.matmul %634, %633, %cst_241 {dimension_numbers = #tpu.dot_dimension_numbers<[1], [0], [0], [1], [0, 0, 1, 1], [], []>} : vector<16x64xbf16>, vector<64x32xbf16>, vector<16x32xf32> -> vector<16x32xf32>
    %c39 = arith.constant 39 : index
    %c0_242 = arith.constant 0 : index
    %636 = vector.load %arg2[%c39, %c0_242] : memref<71x128xf32, #tpu.memory_space<vmem>>, vector<1x32xf32>
    %637 = vector.broadcast %636 : vector<1x32xf32> to vector<16x32xf32>
    %638 = arith.addf %635, %637 : vector<16x32xf32>
    %639 = arith.addf %622, %638 : vector<16x32xf32>
    %c40 = arith.constant 40 : index
    %c0_243 = arith.constant 0 : index
    %640 = vector.load %arg2[%c40, %c0_243] : memref<71x128xf32, #tpu.memory_space<vmem>>, vector<1x32xf32>
    %c41 = arith.constant 41 : index
    %c0_244 = arith.constant 0 : index
    %641 = vector.load %arg2[%c41, %c0_244] : memref<71x128xf32, #tpu.memory_space<vmem>>, vector<1x32xf32>
    %cst_245 = arith.constant dense<0.000000e+00> : vector<16xf32>
    %642 = vector.multi_reduction <add>, %639, %cst_245 [1] : vector<16x32xf32> to vector<16xf32>
    %643 = vector.shape_cast %642 : vector<16xf32> to vector<16x1xf32>
    %cst_246 = arith.constant 3.200000e+01 : f32
    %644 = vector.broadcast %cst_246 : f32 to vector<16x1xf32>
    %645 = arith.divf %643, %644 : vector<16x1xf32>
    %646 = vector.broadcast %645 : vector<16x1xf32> to vector<16x32xf32>
    %647 = arith.subf %639, %646 : vector<16x32xf32>
    %648 = arith.mulf %647, %647 : vector<16x32xf32>
    %cst_247 = arith.constant dense<0.000000e+00> : vector<16xf32>
    %649 = vector.multi_reduction <add>, %648, %cst_247 [1] : vector<16x32xf32> to vector<16xf32>
    %650 = vector.shape_cast %649 : vector<16xf32> to vector<16x1xf32>
    %cst_248 = arith.constant 3.200000e+01 : f32
    %651 = vector.broadcast %cst_248 : f32 to vector<16x1xf32>
    %652 = arith.divf %650, %651 : vector<16x1xf32>
    %cst_249 = arith.constant 9.99999974E-6 : f32
    %653 = vector.broadcast %cst_249 : f32 to vector<16x1xf32>
    %654 = arith.addf %652, %653 : vector<16x1xf32>
    %655 = math.rsqrt %654 : vector<16x1xf32>
    %656 = vector.broadcast %655 : vector<16x1xf32> to vector<16x32xf32>
    %657 = arith.mulf %647, %656 : vector<16x32xf32>
    %658 = vector.broadcast %640 : vector<1x32xf32> to vector<16x32xf32>
    %659 = arith.mulf %657, %658 : vector<16x32xf32>
    %660 = vector.broadcast %641 : vector<1x32xf32> to vector<16x32xf32>
    %661 = arith.addf %659, %660 : vector<16x32xf32>
    %c2_250 = arith.constant 2 : index
    %c0_251 = arith.constant 0 : index
    %c0_252 = arith.constant 0 : index
    %662 = vector.load %arg5[%c2_250, %c0_251, %c0_252] : memref<4x32x320xbf16, #tpu.memory_space<vmem>>, vector<1x32x96xbf16>
    %663 = vector.shape_cast %662 : vector<1x32x96xbf16> to vector<32x96xbf16>
    %664 = arith.truncf %18 : vector<16x32xf32> to vector<16x32xbf16>
    %cst_253 = arith.constant dense<0.000000e+00> : vector<16x96xf32>
    %665 = tpu.matmul %664, %663, %cst_253 {dimension_numbers = #tpu.dot_dimension_numbers<[1], [0], [0], [1], [0, 0, 1, 1], [], []>} : vector<16x32xbf16>, vector<32x96xbf16>, vector<16x96xf32> -> vector<16x96xf32>
    %c42 = arith.constant 42 : index
    %c0_254 = arith.constant 0 : index
    %666 = vector.load %arg2[%c42, %c0_254] : memref<71x128xf32, #tpu.memory_space<vmem>>, vector<1x96xf32>
    %667 = vector.broadcast %666 : vector<1x96xf32> to vector<16x96xf32>
    %668 = arith.addf %665, %667 : vector<16x96xf32>
    %669 = vector.extract_strided_slice %668 {offsets = [0, 0], sizes = [16, 32], strides = [1, 1]} : vector<16x96xf32> to vector<16x32xf32>
    %670 = vector.extract_strided_slice %668 {offsets = [0, 32], sizes = [16, 32], strides = [1, 1]} : vector<16x96xf32> to vector<16x32xf32>
    %671 = vector.extract_strided_slice %668 {offsets = [0, 64], sizes = [16, 32], strides = [1, 1]} : vector<16x96xf32> to vector<16x32xf32>
    %c1_255 = arith.constant 1 : index
    %c0_256 = arith.constant 0 : index
    %c0_257 = arith.constant 0 : index
    %672 = vector.load %arg1[%c1_255, %c0_256, %c0_257] : memref<3x16x32xf32, #tpu.memory_space<vmem>>, vector<1x16x32xf32>
    %673 = vector.shape_cast %672 : vector<1x16x32xf32> to vector<16x32xf32>
    %674 = tpu.concatenate %670, %670 in 0 : vector<16x32xf32>, vector<16x32xf32> -> vector<32x32xf32>
    %675 = arith.mulf %674, %9 : vector<32x32xf32>
    %676 = tpu.concatenate %671, %671 in 0 : vector<16x32xf32>, vector<16x32xf32> -> vector<32x32xf32>
    %677 = arith.mulf %676, %9 : vector<32x32xf32>
    %678 = arith.truncf %669 : vector<16x32xf32> to vector<16x32xbf16>
    %679 = arith.truncf %675 : vector<32x32xf32> to vector<32x32xbf16>
    %cst_258 = arith.constant dense<0.000000e+00> : vector<16x32xf32>
    %680 = tpu.matmul %678, %679, %cst_258 {dimension_numbers = #tpu.dot_dimension_numbers<[1], [1], [0], [0], [0, 0, 1, 0], [], []>} : vector<16x32xbf16>, vector<32x32xbf16>, vector<16x32xf32> -> vector<16x32xf32>
    %cst_259 = arith.constant 2.500000e-01 : f32
    %681 = vector.broadcast %cst_259 : f32 to vector<16x32xf32>
    %682 = arith.mulf %680, %681 : vector<16x32xf32>
    %683 = arith.addf %682, %673 : vector<16x32xf32>
    %cst_260 = arith.constant dense<0xFF800000> : vector<16xf32>
    %684 = vector.multi_reduction <maximumf>, %683, %cst_260 [1] : vector<16x32xf32> to vector<16xf32>
    %685 = vector.shape_cast %684 : vector<16xf32> to vector<16x1xf32>
    %686 = vector.broadcast %685 : vector<16x1xf32> to vector<16x32xf32>
    %687 = arith.subf %683, %686 : vector<16x32xf32>
    %688 = math.exp %687 : vector<16x32xf32>
    %cst_261 = arith.constant 0.000000e+00 : f32
    %689 = vector.shape_cast %12 : vector<1x32xi1> to vector<1x32xi1>
    %690 = vector.broadcast %689 : vector<1x32xi1> to vector<16x32xi1>
    %691 = vector.broadcast %cst_261 : f32 to vector<16x32xf32>
    %692 = arith.select %690, %688, %691 : vector<16x32xi1>, vector<16x32xf32>
    %cst_262 = arith.constant dense<0.000000e+00> : vector<16xf32>
    %693 = vector.multi_reduction <add>, %692, %cst_262 [1] : vector<16x32xf32> to vector<16xf32>
    %694 = vector.shape_cast %693 : vector<16xf32> to vector<16x1xf32>
    %cst_263 = arith.constant dense<0.000000e+00> : vector<16xf32>
    %695 = vector.multi_reduction <add>, %688, %cst_263 [1] : vector<16x32xf32> to vector<16xf32>
    %696 = vector.shape_cast %695 : vector<16xf32> to vector<16x1xf32>
    %697 = arith.subf %696, %694 : vector<16x1xf32>
    %698 = arith.truncf %688 : vector<16x32xf32> to vector<16x32xbf16>
    %699 = arith.truncf %677 : vector<32x32xf32> to vector<32x32xbf16>
    %cst_264 = arith.constant dense<0.000000e+00> : vector<16x32xf32>
    %700 = tpu.matmul %698, %699, %cst_264 {dimension_numbers = #tpu.dot_dimension_numbers<[1], [0], [0], [1], [0, 0, 1, 1], [], []>} : vector<16x32xbf16>, vector<32x32xbf16>, vector<16x32xf32> -> vector<16x32xf32>
    %701 = tpu.reciprocal %694 {approx = true} : vector<16x1xf32> -> vector<16x1xf32>
    %702 = tpu.reciprocal %697 {approx = true} : vector<16x1xf32> -> vector<16x1xf32>
    %703 = vector.shape_cast %15 : vector<1x32xi1> to vector<1x32xi1>
    %704 = vector.broadcast %703 : vector<1x32xi1> to vector<16x32xi1>
    %705 = vector.shape_cast %701 : vector<16x1xf32> to vector<16x1xf32>
    %706 = vector.broadcast %705 : vector<16x1xf32> to vector<16x32xf32>
    %707 = vector.shape_cast %702 : vector<16x1xf32> to vector<16x1xf32>
    %708 = vector.broadcast %707 : vector<16x1xf32> to vector<16x32xf32>
    %709 = arith.select %704, %706, %708 : vector<16x32xi1>, vector<16x32xf32>
    %710 = arith.mulf %700, %709 : vector<16x32xf32>
    %c2_265 = arith.constant 2 : index
    %c0_266 = arith.constant 0 : index
    %c96_267 = arith.constant 96 : index
    %711 = vector.load %arg5[%c2_265, %c0_266, %c96_267] : memref<4x32x320xbf16, #tpu.memory_space<vmem>>, vector<1x32x32xbf16>
    %712 = vector.shape_cast %711 : vector<1x32x32xbf16> to vector<32x32xbf16>
    %713 = arith.truncf %710 : vector<16x32xf32> to vector<16x32xbf16>
    %cst_268 = arith.constant dense<0.000000e+00> : vector<16x32xf32>
    %714 = tpu.matmul %713, %712, %cst_268 {dimension_numbers = #tpu.dot_dimension_numbers<[1], [0], [0], [1], [0, 0, 1, 1], [], []>} : vector<16x32xbf16>, vector<32x32xbf16>, vector<16x32xf32> -> vector<16x32xf32>
    %c43 = arith.constant 43 : index
    %c0_269 = arith.constant 0 : index
    %715 = vector.load %arg2[%c43, %c0_269] : memref<71x128xf32, #tpu.memory_space<vmem>>, vector<1x32xf32>
    %716 = vector.broadcast %715 : vector<1x32xf32> to vector<16x32xf32>
    %717 = arith.addf %714, %716 : vector<16x32xf32>
    %718 = arith.addf %18, %717 : vector<16x32xf32>
    %c44 = arith.constant 44 : index
    %c0_270 = arith.constant 0 : index
    %719 = vector.load %arg2[%c44, %c0_270] : memref<71x128xf32, #tpu.memory_space<vmem>>, vector<1x32xf32>
    %c45 = arith.constant 45 : index
    %c0_271 = arith.constant 0 : index
    %720 = vector.load %arg2[%c45, %c0_271] : memref<71x128xf32, #tpu.memory_space<vmem>>, vector<1x32xf32>
    %cst_272 = arith.constant dense<0.000000e+00> : vector<16xf32>
    %721 = vector.multi_reduction <add>, %718, %cst_272 [1] : vector<16x32xf32> to vector<16xf32>
    %722 = vector.shape_cast %721 : vector<16xf32> to vector<16x1xf32>
    %cst_273 = arith.constant 3.200000e+01 : f32
    %723 = vector.broadcast %cst_273 : f32 to vector<16x1xf32>
    %724 = arith.divf %722, %723 : vector<16x1xf32>
    %725 = vector.broadcast %724 : vector<16x1xf32> to vector<16x32xf32>
    %726 = arith.subf %718, %725 : vector<16x32xf32>
    %727 = arith.mulf %726, %726 : vector<16x32xf32>
    %cst_274 = arith.constant dense<0.000000e+00> : vector<16xf32>
    %728 = vector.multi_reduction <add>, %727, %cst_274 [1] : vector<16x32xf32> to vector<16xf32>
    %729 = vector.shape_cast %728 : vector<16xf32> to vector<16x1xf32>
    %cst_275 = arith.constant 3.200000e+01 : f32
    %730 = vector.broadcast %cst_275 : f32 to vector<16x1xf32>
    %731 = arith.divf %729, %730 : vector<16x1xf32>
    %cst_276 = arith.constant 9.99999974E-6 : f32
    %732 = vector.broadcast %cst_276 : f32 to vector<16x1xf32>
    %733 = arith.addf %731, %732 : vector<16x1xf32>
    %734 = math.rsqrt %733 : vector<16x1xf32>
    %735 = vector.broadcast %734 : vector<16x1xf32> to vector<16x32xf32>
    %736 = arith.mulf %726, %735 : vector<16x32xf32>
    %737 = vector.broadcast %719 : vector<1x32xf32> to vector<16x32xf32>
    %738 = arith.mulf %736, %737 : vector<16x32xf32>
    %739 = vector.broadcast %720 : vector<1x32xf32> to vector<16x32xf32>
    %740 = arith.addf %738, %739 : vector<16x32xf32>
    %c2_277 = arith.constant 2 : index
    %c0_278 = arith.constant 0 : index
    %c128_279 = arith.constant 128 : index
    %741 = vector.load %arg5[%c2_277, %c0_278, %c128_279] : memref<4x32x320xbf16, #tpu.memory_space<vmem>>, vector<1x32x32xbf16>
    %742 = vector.shape_cast %741 : vector<1x32x32xbf16> to vector<32x32xbf16>
    %743 = arith.truncf %740 : vector<16x32xf32> to vector<16x32xbf16>
    %cst_280 = arith.constant dense<0.000000e+00> : vector<16x32xf32>
    %744 = tpu.matmul %743, %742, %cst_280 {dimension_numbers = #tpu.dot_dimension_numbers<[1], [0], [0], [1], [0, 0, 1, 1], [], []>} : vector<16x32xbf16>, vector<32x32xbf16>, vector<16x32xf32> -> vector<16x32xf32>
    %c46 = arith.constant 46 : index
    %c0_281 = arith.constant 0 : index
    %745 = vector.load %arg2[%c46, %c0_281] : memref<71x128xf32, #tpu.memory_space<vmem>>, vector<1x32xf32>
    %746 = vector.broadcast %745 : vector<1x32xf32> to vector<16x32xf32>
    %747 = arith.addf %744, %746 : vector<16x32xf32>
    %c2_282 = arith.constant 2 : index
    %c0_283 = arith.constant 0 : index
    %c160_284 = arith.constant 160 : index
    %748 = vector.load %arg5[%c2_282, %c0_283, %c160_284] : memref<4x32x320xbf16, #tpu.memory_space<vmem>>, vector<1x32x64xbf16>
    %749 = vector.shape_cast %748 : vector<1x32x64xbf16> to vector<32x64xbf16>
    %cst_285 = arith.constant dense<0.000000e+00> : vector<16x64xf32>
    %750 = tpu.matmul %257, %749, %cst_285 {dimension_numbers = #tpu.dot_dimension_numbers<[1], [0], [0], [1], [0, 0, 1, 1], [], []>} : vector<16x32xbf16>, vector<32x64xbf16>, vector<16x64xf32> -> vector<16x64xf32>
    %c47 = arith.constant 47 : index
    %c0_286 = arith.constant 0 : index
    %751 = vector.load %arg2[%c47, %c0_286] : memref<71x128xf32, #tpu.memory_space<vmem>>, vector<1x64xf32>
    %752 = vector.broadcast %751 : vector<1x64xf32> to vector<16x64xf32>
    %753 = arith.addf %750, %752 : vector<16x64xf32>
    %754 = vector.extract_strided_slice %753 {offsets = [0, 0], sizes = [16, 32], strides = [1, 1]} : vector<16x64xf32> to vector<16x32xf32>
    %755 = vector.extract_strided_slice %753 {offsets = [0, 32], sizes = [16, 32], strides = [1, 1]} : vector<16x64xf32> to vector<16x32xf32>
    %c2_287 = arith.constant 2 : index
    %c0_288 = arith.constant 0 : index
    %c0_289 = arith.constant 0 : index
    %756 = vector.load %arg1[%c2_287, %c0_288, %c0_289] : memref<3x16x32xf32, #tpu.memory_space<vmem>>, vector<1x16x32xf32>
    %757 = vector.shape_cast %756 : vector<1x16x32xf32> to vector<16x32xf32>
    %758 = tpu.concatenate %754, %754 in 0 : vector<16x32xf32>, vector<16x32xf32> -> vector<32x32xf32>
    %759 = arith.mulf %758, %9 : vector<32x32xf32>
    %760 = tpu.concatenate %755, %755 in 0 : vector<16x32xf32>, vector<16x32xf32> -> vector<32x32xf32>
    %761 = arith.mulf %760, %9 : vector<32x32xf32>
    %762 = arith.truncf %747 : vector<16x32xf32> to vector<16x32xbf16>
    %763 = arith.truncf %759 : vector<32x32xf32> to vector<32x32xbf16>
    %cst_290 = arith.constant dense<0.000000e+00> : vector<16x32xf32>
    %764 = tpu.matmul %762, %763, %cst_290 {dimension_numbers = #tpu.dot_dimension_numbers<[1], [1], [0], [0], [0, 0, 1, 0], [], []>} : vector<16x32xbf16>, vector<32x32xbf16>, vector<16x32xf32> -> vector<16x32xf32>
    %cst_291 = arith.constant 2.500000e-01 : f32
    %765 = vector.broadcast %cst_291 : f32 to vector<16x32xf32>
    %766 = arith.mulf %764, %765 : vector<16x32xf32>
    %767 = arith.addf %766, %757 : vector<16x32xf32>
    %cst_292 = arith.constant dense<0xFF800000> : vector<16xf32>
    %768 = vector.multi_reduction <maximumf>, %767, %cst_292 [1] : vector<16x32xf32> to vector<16xf32>
    %769 = vector.shape_cast %768 : vector<16xf32> to vector<16x1xf32>
    %770 = vector.broadcast %769 : vector<16x1xf32> to vector<16x32xf32>
    %771 = arith.subf %767, %770 : vector<16x32xf32>
    %772 = math.exp %771 : vector<16x32xf32>
    %cst_293 = arith.constant 0.000000e+00 : f32
    %773 = vector.shape_cast %12 : vector<1x32xi1> to vector<1x32xi1>
    %774 = vector.broadcast %773 : vector<1x32xi1> to vector<16x32xi1>
    %775 = vector.broadcast %cst_293 : f32 to vector<16x32xf32>
    %776 = arith.select %774, %772, %775 : vector<16x32xi1>, vector<16x32xf32>
    %cst_294 = arith.constant dense<0.000000e+00> : vector<16xf32>
    %777 = vector.multi_reduction <add>, %776, %cst_294 [1] : vector<16x32xf32> to vector<16xf32>
    %778 = vector.shape_cast %777 : vector<16xf32> to vector<16x1xf32>
    %cst_295 = arith.constant dense<0.000000e+00> : vector<16xf32>
    %779 = vector.multi_reduction <add>, %772, %cst_295 [1] : vector<16x32xf32> to vector<16xf32>
    %780 = vector.shape_cast %779 : vector<16xf32> to vector<16x1xf32>
    %781 = arith.subf %780, %778 : vector<16x1xf32>
    %782 = arith.truncf %772 : vector<16x32xf32> to vector<16x32xbf16>
    %783 = arith.truncf %761 : vector<32x32xf32> to vector<32x32xbf16>
    %cst_296 = arith.constant dense<0.000000e+00> : vector<16x32xf32>
    %784 = tpu.matmul %782, %783, %cst_296 {dimension_numbers = #tpu.dot_dimension_numbers<[1], [0], [0], [1], [0, 0, 1, 1], [], []>} : vector<16x32xbf16>, vector<32x32xbf16>, vector<16x32xf32> -> vector<16x32xf32>
    %785 = tpu.reciprocal %778 {approx = true} : vector<16x1xf32> -> vector<16x1xf32>
    %786 = tpu.reciprocal %781 {approx = true} : vector<16x1xf32> -> vector<16x1xf32>
    %787 = vector.shape_cast %15 : vector<1x32xi1> to vector<1x32xi1>
    %788 = vector.broadcast %787 : vector<1x32xi1> to vector<16x32xi1>
    %789 = vector.shape_cast %785 : vector<16x1xf32> to vector<16x1xf32>
    %790 = vector.broadcast %789 : vector<16x1xf32> to vector<16x32xf32>
    %791 = vector.shape_cast %786 : vector<16x1xf32> to vector<16x1xf32>
    %792 = vector.broadcast %791 : vector<16x1xf32> to vector<16x32xf32>
    %793 = arith.select %788, %790, %792 : vector<16x32xi1>, vector<16x32xf32>
    %794 = arith.mulf %784, %793 : vector<16x32xf32>
    %c2_297 = arith.constant 2 : index
    %c0_298 = arith.constant 0 : index
    %c224_299 = arith.constant 224 : index
    %795 = vector.load %arg5[%c2_297, %c0_298, %c224_299] : memref<4x32x320xbf16, #tpu.memory_space<vmem>>, vector<1x32x32xbf16>
    %796 = vector.shape_cast %795 : vector<1x32x32xbf16> to vector<32x32xbf16>
    %797 = arith.truncf %794 : vector<16x32xf32> to vector<16x32xbf16>
    %cst_300 = arith.constant dense<0.000000e+00> : vector<16x32xf32>
    %798 = tpu.matmul %797, %796, %cst_300 {dimension_numbers = #tpu.dot_dimension_numbers<[1], [0], [0], [1], [0, 0, 1, 1], [], []>} : vector<16x32xbf16>, vector<32x32xbf16>, vector<16x32xf32> -> vector<16x32xf32>
    %c48 = arith.constant 48 : index
    %c0_301 = arith.constant 0 : index
    %799 = vector.load %arg2[%c48, %c0_301] : memref<71x128xf32, #tpu.memory_space<vmem>>, vector<1x32xf32>
    %800 = vector.broadcast %799 : vector<1x32xf32> to vector<16x32xf32>
    %801 = arith.addf %798, %800 : vector<16x32xf32>
    %802 = arith.addf %740, %801 : vector<16x32xf32>
    %c49 = arith.constant 49 : index
    %c0_302 = arith.constant 0 : index
    %803 = vector.load %arg2[%c49, %c0_302] : memref<71x128xf32, #tpu.memory_space<vmem>>, vector<1x32xf32>
    %c50 = arith.constant 50 : index
    %c0_303 = arith.constant 0 : index
    %804 = vector.load %arg2[%c50, %c0_303] : memref<71x128xf32, #tpu.memory_space<vmem>>, vector<1x32xf32>
    %cst_304 = arith.constant dense<0.000000e+00> : vector<16xf32>
    %805 = vector.multi_reduction <add>, %802, %cst_304 [1] : vector<16x32xf32> to vector<16xf32>
    %806 = vector.shape_cast %805 : vector<16xf32> to vector<16x1xf32>
    %cst_305 = arith.constant 3.200000e+01 : f32
    %807 = vector.broadcast %cst_305 : f32 to vector<16x1xf32>
    %808 = arith.divf %806, %807 : vector<16x1xf32>
    %809 = vector.broadcast %808 : vector<16x1xf32> to vector<16x32xf32>
    %810 = arith.subf %802, %809 : vector<16x32xf32>
    %811 = arith.mulf %810, %810 : vector<16x32xf32>
    %cst_306 = arith.constant dense<0.000000e+00> : vector<16xf32>
    %812 = vector.multi_reduction <add>, %811, %cst_306 [1] : vector<16x32xf32> to vector<16xf32>
    %813 = vector.shape_cast %812 : vector<16xf32> to vector<16x1xf32>
    %cst_307 = arith.constant 3.200000e+01 : f32
    %814 = vector.broadcast %cst_307 : f32 to vector<16x1xf32>
    %815 = arith.divf %813, %814 : vector<16x1xf32>
    %cst_308 = arith.constant 9.99999974E-6 : f32
    %816 = vector.broadcast %cst_308 : f32 to vector<16x1xf32>
    %817 = arith.addf %815, %816 : vector<16x1xf32>
    %818 = math.rsqrt %817 : vector<16x1xf32>
    %819 = vector.broadcast %818 : vector<16x1xf32> to vector<16x32xf32>
    %820 = arith.mulf %810, %819 : vector<16x32xf32>
    %821 = vector.broadcast %803 : vector<1x32xf32> to vector<16x32xf32>
    %822 = arith.mulf %820, %821 : vector<16x32xf32>
    %823 = vector.broadcast %804 : vector<1x32xf32> to vector<16x32xf32>
    %824 = arith.addf %822, %823 : vector<16x32xf32>
    %c2_309 = arith.constant 2 : index
    %c0_310 = arith.constant 0 : index
    %c256_311 = arith.constant 256 : index
    %825 = vector.load %arg5[%c2_309, %c0_310, %c256_311] : memref<4x32x320xbf16, #tpu.memory_space<vmem>>, vector<1x32x64xbf16>
    %826 = vector.shape_cast %825 : vector<1x32x64xbf16> to vector<32x64xbf16>
    %827 = arith.truncf %824 : vector<16x32xf32> to vector<16x32xbf16>
    %cst_312 = arith.constant dense<0.000000e+00> : vector<16x64xf32>
    %828 = tpu.matmul %827, %826, %cst_312 {dimension_numbers = #tpu.dot_dimension_numbers<[1], [0], [0], [1], [0, 0, 1, 1], [], []>} : vector<16x32xbf16>, vector<32x64xbf16>, vector<16x64xf32> -> vector<16x64xf32>
    %c51 = arith.constant 51 : index
    %c0_313 = arith.constant 0 : index
    %829 = vector.load %arg2[%c51, %c0_313] : memref<71x128xf32, #tpu.memory_space<vmem>>, vector<1x64xf32>
    %830 = vector.broadcast %829 : vector<1x64xf32> to vector<16x64xf32>
    %831 = arith.addf %828, %830 : vector<16x64xf32>
    %cst_314 = arith.constant 0.000000e+00 : f32
    %832 = vector.broadcast %cst_314 : f32 to vector<16x64xf32>
    %833 = arith.maximumf %831, %832 : vector<16x64xf32>
    %c2_315 = arith.constant 2 : index
    %c0_316 = arith.constant 0 : index
    %c0_317 = arith.constant 0 : index
    %834 = vector.load %arg6[%c2_315, %c0_316, %c0_317] : memref<4x64x32xbf16, #tpu.memory_space<vmem>>, vector<1x64x32xbf16>
    %835 = vector.shape_cast %834 : vector<1x64x32xbf16> to vector<64x32xbf16>
    %836 = arith.truncf %833 : vector<16x64xf32> to vector<16x64xbf16>
    %cst_318 = arith.constant dense<0.000000e+00> : vector<16x32xf32>
    %837 = tpu.matmul %836, %835, %cst_318 {dimension_numbers = #tpu.dot_dimension_numbers<[1], [0], [0], [1], [0, 0, 1, 1], [], []>} : vector<16x64xbf16>, vector<64x32xbf16>, vector<16x32xf32> -> vector<16x32xf32>
    %c52 = arith.constant 52 : index
    %c0_319 = arith.constant 0 : index
    %838 = vector.load %arg2[%c52, %c0_319] : memref<71x128xf32, #tpu.memory_space<vmem>>, vector<1x32xf32>
    %839 = vector.broadcast %838 : vector<1x32xf32> to vector<16x32xf32>
    %840 = arith.addf %837, %839 : vector<16x32xf32>
    %841 = arith.addf %824, %840 : vector<16x32xf32>
    %c53 = arith.constant 53 : index
    %c0_320 = arith.constant 0 : index
    %842 = vector.load %arg2[%c53, %c0_320] : memref<71x128xf32, #tpu.memory_space<vmem>>, vector<1x32xf32>
    %c54 = arith.constant 54 : index
    %c0_321 = arith.constant 0 : index
    %843 = vector.load %arg2[%c54, %c0_321] : memref<71x128xf32, #tpu.memory_space<vmem>>, vector<1x32xf32>
    %cst_322 = arith.constant dense<0.000000e+00> : vector<16xf32>
    %844 = vector.multi_reduction <add>, %841, %cst_322 [1] : vector<16x32xf32> to vector<16xf32>
    %845 = vector.shape_cast %844 : vector<16xf32> to vector<16x1xf32>
    %cst_323 = arith.constant 3.200000e+01 : f32
    %846 = vector.broadcast %cst_323 : f32 to vector<16x1xf32>
    %847 = arith.divf %845, %846 : vector<16x1xf32>
    %848 = vector.broadcast %847 : vector<16x1xf32> to vector<16x32xf32>
    %849 = arith.subf %841, %848 : vector<16x32xf32>
    %850 = arith.mulf %849, %849 : vector<16x32xf32>
    %cst_324 = arith.constant dense<0.000000e+00> : vector<16xf32>
    %851 = vector.multi_reduction <add>, %850, %cst_324 [1] : vector<16x32xf32> to vector<16xf32>
    %852 = vector.shape_cast %851 : vector<16xf32> to vector<16x1xf32>
    %cst_325 = arith.constant 3.200000e+01 : f32
    %853 = vector.broadcast %cst_325 : f32 to vector<16x1xf32>
    %854 = arith.divf %852, %853 : vector<16x1xf32>
    %cst_326 = arith.constant 9.99999974E-6 : f32
    %855 = vector.broadcast %cst_326 : f32 to vector<16x1xf32>
    %856 = arith.addf %854, %855 : vector<16x1xf32>
    %857 = math.rsqrt %856 : vector<16x1xf32>
    %858 = vector.broadcast %857 : vector<16x1xf32> to vector<16x32xf32>
    %859 = arith.mulf %849, %858 : vector<16x32xf32>
    %860 = vector.broadcast %842 : vector<1x32xf32> to vector<16x32xf32>
    %861 = arith.mulf %859, %860 : vector<16x32xf32>
    %862 = vector.broadcast %843 : vector<1x32xf32> to vector<16x32xf32>
    %863 = arith.addf %861, %862 : vector<16x32xf32>
    %c3_327 = arith.constant 3 : index
    %c0_328 = arith.constant 0 : index
    %c0_329 = arith.constant 0 : index
    %864 = vector.load %arg5[%c3_327, %c0_328, %c0_329] : memref<4x32x320xbf16, #tpu.memory_space<vmem>>, vector<1x32x96xbf16>
    %865 = vector.shape_cast %864 : vector<1x32x96xbf16> to vector<32x96xbf16>
    %866 = arith.truncf %863 : vector<16x32xf32> to vector<16x32xbf16>
    %cst_330 = arith.constant dense<0.000000e+00> : vector<16x96xf32>
    %867 = tpu.matmul %866, %865, %cst_330 {dimension_numbers = #tpu.dot_dimension_numbers<[1], [0], [0], [1], [0, 0, 1, 1], [], []>} : vector<16x32xbf16>, vector<32x96xbf16>, vector<16x96xf32> -> vector<16x96xf32>
    %c55 = arith.constant 55 : index
    %c0_331 = arith.constant 0 : index
    %868 = vector.load %arg2[%c55, %c0_331] : memref<71x128xf32, #tpu.memory_space<vmem>>, vector<1x96xf32>
    %869 = vector.broadcast %868 : vector<1x96xf32> to vector<16x96xf32>
    %870 = arith.addf %867, %869 : vector<16x96xf32>
    %871 = vector.extract_strided_slice %870 {offsets = [0, 0], sizes = [16, 32], strides = [1, 1]} : vector<16x96xf32> to vector<16x32xf32>
    %872 = vector.extract_strided_slice %870 {offsets = [0, 32], sizes = [16, 32], strides = [1, 1]} : vector<16x96xf32> to vector<16x32xf32>
    %873 = vector.extract_strided_slice %870 {offsets = [0, 64], sizes = [16, 32], strides = [1, 1]} : vector<16x96xf32> to vector<16x32xf32>
    %c1_332 = arith.constant 1 : index
    %c0_333 = arith.constant 0 : index
    %c0_334 = arith.constant 0 : index
    %874 = vector.load %arg1[%c1_332, %c0_333, %c0_334] : memref<3x16x32xf32, #tpu.memory_space<vmem>>, vector<1x16x32xf32>
    %875 = vector.shape_cast %874 : vector<1x16x32xf32> to vector<16x32xf32>
    %876 = tpu.concatenate %872, %872 in 0 : vector<16x32xf32>, vector<16x32xf32> -> vector<32x32xf32>
    %877 = arith.mulf %876, %9 : vector<32x32xf32>
    %878 = tpu.concatenate %873, %873 in 0 : vector<16x32xf32>, vector<16x32xf32> -> vector<32x32xf32>
    %879 = arith.mulf %878, %9 : vector<32x32xf32>
    %880 = arith.truncf %871 : vector<16x32xf32> to vector<16x32xbf16>
    %881 = arith.truncf %877 : vector<32x32xf32> to vector<32x32xbf16>
    %cst_335 = arith.constant dense<0.000000e+00> : vector<16x32xf32>
    %882 = tpu.matmul %880, %881, %cst_335 {dimension_numbers = #tpu.dot_dimension_numbers<[1], [1], [0], [0], [0, 0, 1, 0], [], []>} : vector<16x32xbf16>, vector<32x32xbf16>, vector<16x32xf32> -> vector<16x32xf32>
    %cst_336 = arith.constant 2.500000e-01 : f32
    %883 = vector.broadcast %cst_336 : f32 to vector<16x32xf32>
    %884 = arith.mulf %882, %883 : vector<16x32xf32>
    %885 = arith.addf %884, %875 : vector<16x32xf32>
    %cst_337 = arith.constant dense<0xFF800000> : vector<16xf32>
    %886 = vector.multi_reduction <maximumf>, %885, %cst_337 [1] : vector<16x32xf32> to vector<16xf32>
    %887 = vector.shape_cast %886 : vector<16xf32> to vector<16x1xf32>
    %888 = vector.broadcast %887 : vector<16x1xf32> to vector<16x32xf32>
    %889 = arith.subf %885, %888 : vector<16x32xf32>
    %890 = math.exp %889 : vector<16x32xf32>
    %cst_338 = arith.constant 0.000000e+00 : f32
    %891 = vector.shape_cast %12 : vector<1x32xi1> to vector<1x32xi1>
    %892 = vector.broadcast %891 : vector<1x32xi1> to vector<16x32xi1>
    %893 = vector.broadcast %cst_338 : f32 to vector<16x32xf32>
    %894 = arith.select %892, %890, %893 : vector<16x32xi1>, vector<16x32xf32>
    %cst_339 = arith.constant dense<0.000000e+00> : vector<16xf32>
    %895 = vector.multi_reduction <add>, %894, %cst_339 [1] : vector<16x32xf32> to vector<16xf32>
    %896 = vector.shape_cast %895 : vector<16xf32> to vector<16x1xf32>
    %cst_340 = arith.constant dense<0.000000e+00> : vector<16xf32>
    %897 = vector.multi_reduction <add>, %890, %cst_340 [1] : vector<16x32xf32> to vector<16xf32>
    %898 = vector.shape_cast %897 : vector<16xf32> to vector<16x1xf32>
    %899 = arith.subf %898, %896 : vector<16x1xf32>
    %900 = arith.truncf %890 : vector<16x32xf32> to vector<16x32xbf16>
    %901 = arith.truncf %879 : vector<32x32xf32> to vector<32x32xbf16>
    %cst_341 = arith.constant dense<0.000000e+00> : vector<16x32xf32>
    %902 = tpu.matmul %900, %901, %cst_341 {dimension_numbers = #tpu.dot_dimension_numbers<[1], [0], [0], [1], [0, 0, 1, 1], [], []>} : vector<16x32xbf16>, vector<32x32xbf16>, vector<16x32xf32> -> vector<16x32xf32>
    %903 = tpu.reciprocal %896 {approx = true} : vector<16x1xf32> -> vector<16x1xf32>
    %904 = tpu.reciprocal %899 {approx = true} : vector<16x1xf32> -> vector<16x1xf32>
    %905 = vector.shape_cast %15 : vector<1x32xi1> to vector<1x32xi1>
    %906 = vector.broadcast %905 : vector<1x32xi1> to vector<16x32xi1>
    %907 = vector.shape_cast %903 : vector<16x1xf32> to vector<16x1xf32>
    %908 = vector.broadcast %907 : vector<16x1xf32> to vector<16x32xf32>
    %909 = vector.shape_cast %904 : vector<16x1xf32> to vector<16x1xf32>
    %910 = vector.broadcast %909 : vector<16x1xf32> to vector<16x32xf32>
    %911 = arith.select %906, %908, %910 : vector<16x32xi1>, vector<16x32xf32>
    %912 = arith.mulf %902, %911 : vector<16x32xf32>
    %c3_342 = arith.constant 3 : index
    %c0_343 = arith.constant 0 : index
    %c96_344 = arith.constant 96 : index
    %913 = vector.load %arg5[%c3_342, %c0_343, %c96_344] : memref<4x32x320xbf16, #tpu.memory_space<vmem>>, vector<1x32x32xbf16>
    %914 = vector.shape_cast %913 : vector<1x32x32xbf16> to vector<32x32xbf16>
    %915 = arith.truncf %912 : vector<16x32xf32> to vector<16x32xbf16>
    %cst_345 = arith.constant dense<0.000000e+00> : vector<16x32xf32>
    %916 = tpu.matmul %915, %914, %cst_345 {dimension_numbers = #tpu.dot_dimension_numbers<[1], [0], [0], [1], [0, 0, 1, 1], [], []>} : vector<16x32xbf16>, vector<32x32xbf16>, vector<16x32xf32> -> vector<16x32xf32>
    %c56 = arith.constant 56 : index
    %c0_346 = arith.constant 0 : index
    %917 = vector.load %arg2[%c56, %c0_346] : memref<71x128xf32, #tpu.memory_space<vmem>>, vector<1x32xf32>
    %918 = vector.broadcast %917 : vector<1x32xf32> to vector<16x32xf32>
    %919 = arith.addf %916, %918 : vector<16x32xf32>
    %920 = arith.addf %863, %919 : vector<16x32xf32>
    %c57 = arith.constant 57 : index
    %c0_347 = arith.constant 0 : index
    %921 = vector.load %arg2[%c57, %c0_347] : memref<71x128xf32, #tpu.memory_space<vmem>>, vector<1x32xf32>
    %c58 = arith.constant 58 : index
    %c0_348 = arith.constant 0 : index
    %922 = vector.load %arg2[%c58, %c0_348] : memref<71x128xf32, #tpu.memory_space<vmem>>, vector<1x32xf32>
    %cst_349 = arith.constant dense<0.000000e+00> : vector<16xf32>
    %923 = vector.multi_reduction <add>, %920, %cst_349 [1] : vector<16x32xf32> to vector<16xf32>
    %924 = vector.shape_cast %923 : vector<16xf32> to vector<16x1xf32>
    %cst_350 = arith.constant 3.200000e+01 : f32
    %925 = vector.broadcast %cst_350 : f32 to vector<16x1xf32>
    %926 = arith.divf %924, %925 : vector<16x1xf32>
    %927 = vector.broadcast %926 : vector<16x1xf32> to vector<16x32xf32>
    %928 = arith.subf %920, %927 : vector<16x32xf32>
    %929 = arith.mulf %928, %928 : vector<16x32xf32>
    %cst_351 = arith.constant dense<0.000000e+00> : vector<16xf32>
    %930 = vector.multi_reduction <add>, %929, %cst_351 [1] : vector<16x32xf32> to vector<16xf32>
    %931 = vector.shape_cast %930 : vector<16xf32> to vector<16x1xf32>
    %cst_352 = arith.constant 3.200000e+01 : f32
    %932 = vector.broadcast %cst_352 : f32 to vector<16x1xf32>
    %933 = arith.divf %931, %932 : vector<16x1xf32>
    %cst_353 = arith.constant 9.99999974E-6 : f32
    %934 = vector.broadcast %cst_353 : f32 to vector<16x1xf32>
    %935 = arith.addf %933, %934 : vector<16x1xf32>
    %936 = math.rsqrt %935 : vector<16x1xf32>
    %937 = vector.broadcast %936 : vector<16x1xf32> to vector<16x32xf32>
    %938 = arith.mulf %928, %937 : vector<16x32xf32>
    %939 = vector.broadcast %921 : vector<1x32xf32> to vector<16x32xf32>
    %940 = arith.mulf %938, %939 : vector<16x32xf32>
    %941 = vector.broadcast %922 : vector<1x32xf32> to vector<16x32xf32>
    %942 = arith.addf %940, %941 : vector<16x32xf32>
    %c3_354 = arith.constant 3 : index
    %c0_355 = arith.constant 0 : index
    %c128_356 = arith.constant 128 : index
    %943 = vector.load %arg5[%c3_354, %c0_355, %c128_356] : memref<4x32x320xbf16, #tpu.memory_space<vmem>>, vector<1x32x32xbf16>
    %944 = vector.shape_cast %943 : vector<1x32x32xbf16> to vector<32x32xbf16>
    %945 = arith.truncf %942 : vector<16x32xf32> to vector<16x32xbf16>
    %cst_357 = arith.constant dense<0.000000e+00> : vector<16x32xf32>
    %946 = tpu.matmul %945, %944, %cst_357 {dimension_numbers = #tpu.dot_dimension_numbers<[1], [0], [0], [1], [0, 0, 1, 1], [], []>} : vector<16x32xbf16>, vector<32x32xbf16>, vector<16x32xf32> -> vector<16x32xf32>
    %c59 = arith.constant 59 : index
    %c0_358 = arith.constant 0 : index
    %947 = vector.load %arg2[%c59, %c0_358] : memref<71x128xf32, #tpu.memory_space<vmem>>, vector<1x32xf32>
    %948 = vector.broadcast %947 : vector<1x32xf32> to vector<16x32xf32>
    %949 = arith.addf %946, %948 : vector<16x32xf32>
    %c3_359 = arith.constant 3 : index
    %c0_360 = arith.constant 0 : index
    %c160_361 = arith.constant 160 : index
    %950 = vector.load %arg5[%c3_359, %c0_360, %c160_361] : memref<4x32x320xbf16, #tpu.memory_space<vmem>>, vector<1x32x64xbf16>
    %951 = vector.shape_cast %950 : vector<1x32x64xbf16> to vector<32x64xbf16>
    %cst_362 = arith.constant dense<0.000000e+00> : vector<16x64xf32>
    %952 = tpu.matmul %257, %951, %cst_362 {dimension_numbers = #tpu.dot_dimension_numbers<[1], [0], [0], [1], [0, 0, 1, 1], [], []>} : vector<16x32xbf16>, vector<32x64xbf16>, vector<16x64xf32> -> vector<16x64xf32>
    %c60 = arith.constant 60 : index
    %c0_363 = arith.constant 0 : index
    %953 = vector.load %arg2[%c60, %c0_363] : memref<71x128xf32, #tpu.memory_space<vmem>>, vector<1x64xf32>
    %954 = vector.broadcast %953 : vector<1x64xf32> to vector<16x64xf32>
    %955 = arith.addf %952, %954 : vector<16x64xf32>
    %956 = vector.extract_strided_slice %955 {offsets = [0, 0], sizes = [16, 32], strides = [1, 1]} : vector<16x64xf32> to vector<16x32xf32>
    %957 = vector.extract_strided_slice %955 {offsets = [0, 32], sizes = [16, 32], strides = [1, 1]} : vector<16x64xf32> to vector<16x32xf32>
    %c2_364 = arith.constant 2 : index
    %c0_365 = arith.constant 0 : index
    %c0_366 = arith.constant 0 : index
    %958 = vector.load %arg1[%c2_364, %c0_365, %c0_366] : memref<3x16x32xf32, #tpu.memory_space<vmem>>, vector<1x16x32xf32>
    %959 = vector.shape_cast %958 : vector<1x16x32xf32> to vector<16x32xf32>
    %960 = tpu.concatenate %956, %956 in 0 : vector<16x32xf32>, vector<16x32xf32> -> vector<32x32xf32>
    %961 = arith.mulf %960, %9 : vector<32x32xf32>
    %962 = tpu.concatenate %957, %957 in 0 : vector<16x32xf32>, vector<16x32xf32> -> vector<32x32xf32>
    %963 = arith.mulf %962, %9 : vector<32x32xf32>
    %964 = arith.truncf %949 : vector<16x32xf32> to vector<16x32xbf16>
    %965 = arith.truncf %961 : vector<32x32xf32> to vector<32x32xbf16>
    %cst_367 = arith.constant dense<0.000000e+00> : vector<16x32xf32>
    %966 = tpu.matmul %964, %965, %cst_367 {dimension_numbers = #tpu.dot_dimension_numbers<[1], [1], [0], [0], [0, 0, 1, 0], [], []>} : vector<16x32xbf16>, vector<32x32xbf16>, vector<16x32xf32> -> vector<16x32xf32>
    %cst_368 = arith.constant 2.500000e-01 : f32
    %967 = vector.broadcast %cst_368 : f32 to vector<16x32xf32>
    %968 = arith.mulf %966, %967 : vector<16x32xf32>
    %969 = arith.addf %968, %959 : vector<16x32xf32>
    %cst_369 = arith.constant dense<0xFF800000> : vector<16xf32>
    %970 = vector.multi_reduction <maximumf>, %969, %cst_369 [1] : vector<16x32xf32> to vector<16xf32>
    %971 = vector.shape_cast %970 : vector<16xf32> to vector<16x1xf32>
    %972 = vector.broadcast %971 : vector<16x1xf32> to vector<16x32xf32>
    %973 = arith.subf %969, %972 : vector<16x32xf32>
    %974 = math.exp %973 : vector<16x32xf32>
    %cst_370 = arith.constant 0.000000e+00 : f32
    %975 = vector.shape_cast %12 : vector<1x32xi1> to vector<1x32xi1>
    %976 = vector.broadcast %975 : vector<1x32xi1> to vector<16x32xi1>
    %977 = vector.broadcast %cst_370 : f32 to vector<16x32xf32>
    %978 = arith.select %976, %974, %977 : vector<16x32xi1>, vector<16x32xf32>
    %cst_371 = arith.constant dense<0.000000e+00> : vector<16xf32>
    %979 = vector.multi_reduction <add>, %978, %cst_371 [1] : vector<16x32xf32> to vector<16xf32>
    %980 = vector.shape_cast %979 : vector<16xf32> to vector<16x1xf32>
    %cst_372 = arith.constant dense<0.000000e+00> : vector<16xf32>
    %981 = vector.multi_reduction <add>, %974, %cst_372 [1] : vector<16x32xf32> to vector<16xf32>
    %982 = vector.shape_cast %981 : vector<16xf32> to vector<16x1xf32>
    %983 = arith.subf %982, %980 : vector<16x1xf32>
    %984 = arith.truncf %974 : vector<16x32xf32> to vector<16x32xbf16>
    %985 = arith.truncf %963 : vector<32x32xf32> to vector<32x32xbf16>
    %cst_373 = arith.constant dense<0.000000e+00> : vector<16x32xf32>
    %986 = tpu.matmul %984, %985, %cst_373 {dimension_numbers = #tpu.dot_dimension_numbers<[1], [0], [0], [1], [0, 0, 1, 1], [], []>} : vector<16x32xbf16>, vector<32x32xbf16>, vector<16x32xf32> -> vector<16x32xf32>
    %987 = tpu.reciprocal %980 {approx = true} : vector<16x1xf32> -> vector<16x1xf32>
    %988 = tpu.reciprocal %983 {approx = true} : vector<16x1xf32> -> vector<16x1xf32>
    %989 = vector.shape_cast %15 : vector<1x32xi1> to vector<1x32xi1>
    %990 = vector.broadcast %989 : vector<1x32xi1> to vector<16x32xi1>
    %991 = vector.shape_cast %987 : vector<16x1xf32> to vector<16x1xf32>
    %992 = vector.broadcast %991 : vector<16x1xf32> to vector<16x32xf32>
    %993 = vector.shape_cast %988 : vector<16x1xf32> to vector<16x1xf32>
    %994 = vector.broadcast %993 : vector<16x1xf32> to vector<16x32xf32>
    %995 = arith.select %990, %992, %994 : vector<16x32xi1>, vector<16x32xf32>
    %996 = arith.mulf %986, %995 : vector<16x32xf32>
    %c3_374 = arith.constant 3 : index
    %c0_375 = arith.constant 0 : index
    %c224_376 = arith.constant 224 : index
    %997 = vector.load %arg5[%c3_374, %c0_375, %c224_376] : memref<4x32x320xbf16, #tpu.memory_space<vmem>>, vector<1x32x32xbf16>
    %998 = vector.shape_cast %997 : vector<1x32x32xbf16> to vector<32x32xbf16>
    %999 = arith.truncf %996 : vector<16x32xf32> to vector<16x32xbf16>
    %cst_377 = arith.constant dense<0.000000e+00> : vector<16x32xf32>
    %1000 = tpu.matmul %999, %998, %cst_377 {dimension_numbers = #tpu.dot_dimension_numbers<[1], [0], [0], [1], [0, 0, 1, 1], [], []>} : vector<16x32xbf16>, vector<32x32xbf16>, vector<16x32xf32> -> vector<16x32xf32>
    %c61 = arith.constant 61 : index
    %c0_378 = arith.constant 0 : index
    %1001 = vector.load %arg2[%c61, %c0_378] : memref<71x128xf32, #tpu.memory_space<vmem>>, vector<1x32xf32>
    %1002 = vector.broadcast %1001 : vector<1x32xf32> to vector<16x32xf32>
    %1003 = arith.addf %1000, %1002 : vector<16x32xf32>
    %1004 = arith.addf %942, %1003 : vector<16x32xf32>
    %c62 = arith.constant 62 : index
    %c0_379 = arith.constant 0 : index
    %1005 = vector.load %arg2[%c62, %c0_379] : memref<71x128xf32, #tpu.memory_space<vmem>>, vector<1x32xf32>
    %c63 = arith.constant 63 : index
    %c0_380 = arith.constant 0 : index
    %1006 = vector.load %arg2[%c63, %c0_380] : memref<71x128xf32, #tpu.memory_space<vmem>>, vector<1x32xf32>
    %cst_381 = arith.constant dense<0.000000e+00> : vector<16xf32>
    %1007 = vector.multi_reduction <add>, %1004, %cst_381 [1] : vector<16x32xf32> to vector<16xf32>
    %1008 = vector.shape_cast %1007 : vector<16xf32> to vector<16x1xf32>
    %cst_382 = arith.constant 3.200000e+01 : f32
    %1009 = vector.broadcast %cst_382 : f32 to vector<16x1xf32>
    %1010 = arith.divf %1008, %1009 : vector<16x1xf32>
    %1011 = vector.broadcast %1010 : vector<16x1xf32> to vector<16x32xf32>
    %1012 = arith.subf %1004, %1011 : vector<16x32xf32>
    %1013 = arith.mulf %1012, %1012 : vector<16x32xf32>
    %cst_383 = arith.constant dense<0.000000e+00> : vector<16xf32>
    %1014 = vector.multi_reduction <add>, %1013, %cst_383 [1] : vector<16x32xf32> to vector<16xf32>
    %1015 = vector.shape_cast %1014 : vector<16xf32> to vector<16x1xf32>
    %cst_384 = arith.constant 3.200000e+01 : f32
    %1016 = vector.broadcast %cst_384 : f32 to vector<16x1xf32>
    %1017 = arith.divf %1015, %1016 : vector<16x1xf32>
    %cst_385 = arith.constant 9.99999974E-6 : f32
    %1018 = vector.broadcast %cst_385 : f32 to vector<16x1xf32>
    %1019 = arith.addf %1017, %1018 : vector<16x1xf32>
    %1020 = math.rsqrt %1019 : vector<16x1xf32>
    %1021 = vector.broadcast %1020 : vector<16x1xf32> to vector<16x32xf32>
    %1022 = arith.mulf %1012, %1021 : vector<16x32xf32>
    %1023 = vector.broadcast %1005 : vector<1x32xf32> to vector<16x32xf32>
    %1024 = arith.mulf %1022, %1023 : vector<16x32xf32>
    %1025 = vector.broadcast %1006 : vector<1x32xf32> to vector<16x32xf32>
    %1026 = arith.addf %1024, %1025 : vector<16x32xf32>
    %c3_386 = arith.constant 3 : index
    %c0_387 = arith.constant 0 : index
    %c256_388 = arith.constant 256 : index
    %1027 = vector.load %arg5[%c3_386, %c0_387, %c256_388] : memref<4x32x320xbf16, #tpu.memory_space<vmem>>, vector<1x32x64xbf16>
    %1028 = vector.shape_cast %1027 : vector<1x32x64xbf16> to vector<32x64xbf16>
    %1029 = arith.truncf %1026 : vector<16x32xf32> to vector<16x32xbf16>
    %cst_389 = arith.constant dense<0.000000e+00> : vector<16x64xf32>
    %1030 = tpu.matmul %1029, %1028, %cst_389 {dimension_numbers = #tpu.dot_dimension_numbers<[1], [0], [0], [1], [0, 0, 1, 1], [], []>} : vector<16x32xbf16>, vector<32x64xbf16>, vector<16x64xf32> -> vector<16x64xf32>
    %c64_390 = arith.constant 64 : index
    %c0_391 = arith.constant 0 : index
    %1031 = vector.load %arg2[%c64_390, %c0_391] : memref<71x128xf32, #tpu.memory_space<vmem>>, vector<1x64xf32>
    %1032 = vector.broadcast %1031 : vector<1x64xf32> to vector<16x64xf32>
    %1033 = arith.addf %1030, %1032 : vector<16x64xf32>
    %cst_392 = arith.constant 0.000000e+00 : f32
    %1034 = vector.broadcast %cst_392 : f32 to vector<16x64xf32>
    %1035 = arith.maximumf %1033, %1034 : vector<16x64xf32>
    %c3_393 = arith.constant 3 : index
    %c0_394 = arith.constant 0 : index
    %c0_395 = arith.constant 0 : index
    %1036 = vector.load %arg6[%c3_393, %c0_394, %c0_395] : memref<4x64x32xbf16, #tpu.memory_space<vmem>>, vector<1x64x32xbf16>
    %1037 = vector.shape_cast %1036 : vector<1x64x32xbf16> to vector<64x32xbf16>
    %1038 = arith.truncf %1035 : vector<16x64xf32> to vector<16x64xbf16>
    %cst_396 = arith.constant dense<0.000000e+00> : vector<16x32xf32>
    %1039 = tpu.matmul %1038, %1037, %cst_396 {dimension_numbers = #tpu.dot_dimension_numbers<[1], [0], [0], [1], [0, 0, 1, 1], [], []>} : vector<16x64xbf16>, vector<64x32xbf16>, vector<16x32xf32> -> vector<16x32xf32>
    %c65 = arith.constant 65 : index
    %c0_397 = arith.constant 0 : index
    %1040 = vector.load %arg2[%c65, %c0_397] : memref<71x128xf32, #tpu.memory_space<vmem>>, vector<1x32xf32>
    %1041 = vector.broadcast %1040 : vector<1x32xf32> to vector<16x32xf32>
    %1042 = arith.addf %1039, %1041 : vector<16x32xf32>
    %1043 = arith.addf %1026, %1042 : vector<16x32xf32>
    %c66 = arith.constant 66 : index
    %c0_398 = arith.constant 0 : index
    %1044 = vector.load %arg2[%c66, %c0_398] : memref<71x128xf32, #tpu.memory_space<vmem>>, vector<1x32xf32>
    %c67 = arith.constant 67 : index
    %c0_399 = arith.constant 0 : index
    %1045 = vector.load %arg2[%c67, %c0_399] : memref<71x128xf32, #tpu.memory_space<vmem>>, vector<1x32xf32>
    %cst_400 = arith.constant dense<0.000000e+00> : vector<16xf32>
    %1046 = vector.multi_reduction <add>, %1043, %cst_400 [1] : vector<16x32xf32> to vector<16xf32>
    %1047 = vector.shape_cast %1046 : vector<16xf32> to vector<16x1xf32>
    %cst_401 = arith.constant 3.200000e+01 : f32
    %1048 = vector.broadcast %cst_401 : f32 to vector<16x1xf32>
    %1049 = arith.divf %1047, %1048 : vector<16x1xf32>
    %1050 = vector.broadcast %1049 : vector<16x1xf32> to vector<16x32xf32>
    %1051 = arith.subf %1043, %1050 : vector<16x32xf32>
    %1052 = arith.mulf %1051, %1051 : vector<16x32xf32>
    %cst_402 = arith.constant dense<0.000000e+00> : vector<16xf32>
    %1053 = vector.multi_reduction <add>, %1052, %cst_402 [1] : vector<16x32xf32> to vector<16xf32>
    %1054 = vector.shape_cast %1053 : vector<16xf32> to vector<16x1xf32>
    %cst_403 = arith.constant 3.200000e+01 : f32
    %1055 = vector.broadcast %cst_403 : f32 to vector<16x1xf32>
    %1056 = arith.divf %1054, %1055 : vector<16x1xf32>
    %cst_404 = arith.constant 9.99999974E-6 : f32
    %1057 = vector.broadcast %cst_404 : f32 to vector<16x1xf32>
    %1058 = arith.addf %1056, %1057 : vector<16x1xf32>
    %1059 = math.rsqrt %1058 : vector<16x1xf32>
    %1060 = vector.broadcast %1059 : vector<16x1xf32> to vector<16x32xf32>
    %1061 = arith.mulf %1051, %1060 : vector<16x32xf32>
    %1062 = vector.broadcast %1044 : vector<1x32xf32> to vector<16x32xf32>
    %1063 = arith.mulf %1061, %1062 : vector<16x32xf32>
    %1064 = vector.broadcast %1045 : vector<1x32xf32> to vector<16x32xf32>
    %1065 = arith.addf %1063, %1064 : vector<16x32xf32>
    %c0_405 = arith.constant 0 : index
    %c0_406 = arith.constant 0 : index
    %1066 = vector.load %arg7[%c0_405, %c0_406] : memref<32x4xbf16, #tpu.memory_space<vmem>>, vector<32x4xbf16>
    %1067 = arith.truncf %661 : vector<16x32xf32> to vector<16x32xbf16>
    %cst_407 = arith.constant dense<0.000000e+00> : vector<16x4xf32>
    %1068 = tpu.matmul %1067, %1066, %cst_407 {dimension_numbers = #tpu.dot_dimension_numbers<[1], [0], [0], [1], [0, 0, 1, 1], [], []>} : vector<16x32xbf16>, vector<32x4xbf16>, vector<16x4xf32> -> vector<16x4xf32>
    %c68 = arith.constant 68 : index
    %c0_408 = arith.constant 0 : index
    %1069 = vector.load %arg2[%c68, %c0_408] : memref<71x128xf32, #tpu.memory_space<vmem>>, vector<1x4xf32>
    %1070 = vector.broadcast %1069 : vector<1x4xf32> to vector<16x4xf32>
    %1071 = arith.addf %1068, %1070 : vector<16x4xf32>
    %cst_409 = arith.constant dense<0xFF800000> : vector<16xf32>
    %1072 = vector.multi_reduction <maximumf>, %1071, %cst_409 [1] : vector<16x4xf32> to vector<16xf32>
    %1073 = vector.shape_cast %1072 : vector<16xf32> to vector<16x1xf32>
    %1074 = vector.broadcast %1073 : vector<16x1xf32> to vector<16x4xf32>
    %1075 = arith.subf %1071, %1074 : vector<16x4xf32>
    %1076 = math.exp %1075 : vector<16x4xf32>
    %cst_410 = arith.constant dense<0.000000e+00> : vector<16xf32>
    %1077 = vector.multi_reduction <add>, %1076, %cst_410 [1] : vector<16x4xf32> to vector<16xf32>
    %1078 = vector.shape_cast %1077 : vector<16xf32> to vector<16x1xf32>
    %1079 = math.log %1078 : vector<16x1xf32>
    %1080 = arith.addf %1073, %1079 : vector<16x1xf32>
    %1081 = arith.mulf %1071, %19 : vector<16x4xf32>
    %cst_411 = arith.constant dense<0.000000e+00> : vector<16xf32>
    %1082 = vector.multi_reduction <add>, %1081, %cst_411 [1] : vector<16x4xf32> to vector<16xf32>
    %1083 = vector.shape_cast %1082 : vector<16xf32> to vector<16x1xf32>
    %1084 = arith.subf %1080, %1083 : vector<16x1xf32>
    %c69 = arith.constant 69 : index
    %c0_412 = arith.constant 0 : index
    %1085 = vector.load %arg2[%c69, %c0_412] : memref<71x128xf32, #tpu.memory_space<vmem>>, vector<1x32xf32>
    %c70 = arith.constant 70 : index
    %c0_413 = arith.constant 0 : index
    %1086 = vector.load %arg2[%c70, %c0_413] : memref<71x128xf32, #tpu.memory_space<vmem>>, vector<1x1xf32>
    %1087 = vector.broadcast %1085 : vector<1x32xf32> to vector<16x32xf32>
    %1088 = arith.mulf %1065, %1087 : vector<16x32xf32>
    %cst_414 = arith.constant dense<0.000000e+00> : vector<16xf32>
    %1089 = vector.multi_reduction <add>, %1088, %cst_414 [1] : vector<16x32xf32> to vector<16xf32>
    %1090 = vector.shape_cast %1089 : vector<16xf32> to vector<16x1xf32>
    %1091 = vector.broadcast %1086 : vector<1x1xf32> to vector<16x1xf32>
    %1092 = arith.addf %1090, %1091 : vector<16x1xf32>
    %1093 = arith.subf %1092, %20 : vector<16x1xf32>
    %1094 = arith.mulf %1093, %1093 : vector<16x1xf32>
    %1095 = vector.shape_cast %1084 : vector<16x1xf32> to vector<1x16x1xf32>
    %cst_415 = arith.constant dense<0.000000e+00> : vector<1xf32>
    %1096 = vector.multi_reduction <add>, %1095, %cst_415 [1, 2] : vector<1x16x1xf32> to vector<1xf32>
    %1097 = vector.shape_cast %1096 : vector<1xf32> to vector<1x1x1xf32>
    %1098 = vector.extract %1097[0, 0, 0] : f32 from vector<1x1x1xf32>
    %1099 = vector.broadcast %1098 : f32 to vector<1x1xf32>
    %cst_416 = arith.constant 5.000000e-01 : f32
    %1100 = vector.broadcast %cst_416 : f32 to vector<1x1xf32>
    %1101 = arith.mulf %1099, %1100 : vector<1x1xf32>
    %1102 = vector.shape_cast %1094 : vector<16x1xf32> to vector<1x16x1xf32>
    %cst_417 = arith.constant dense<0.000000e+00> : vector<1xf32>
    %1103 = vector.multi_reduction <add>, %1102, %cst_417 [1, 2] : vector<1x16x1xf32> to vector<1xf32>
    %1104 = vector.shape_cast %1103 : vector<1xf32> to vector<1x1x1xf32>
    %1105 = vector.extract %1104[0, 0, 0] : f32 from vector<1x1x1xf32>
    %1106 = vector.broadcast %1105 : f32 to vector<1x1xf32>
    %cst_418 = arith.constant 5.000000e-01 : f32
    %1107 = vector.broadcast %cst_418 : f32 to vector<1x1xf32>
    %1108 = arith.mulf %1106, %1107 : vector<1x1xf32>
    %1109 = arith.addf %1101, %1108 : vector<1x1xf32>
    %1110 = tpu.concatenate %1109, %1108, %1101 in 1 : vector<1x1xf32>, vector<1x1xf32>, vector<1x1xf32> -> vector<1x3xf32>
    %c0_419 = arith.constant 0 : index
    %c0_420 = arith.constant 0 : index
    %1111 = vector.load %arg8[%c0_419, %c0_420] : memref<1x3xf32, #tpu.memory_space<vmem>>, vector<1x3xf32>
    tpu.vector_store %arg8[%c0_419, %c0_420], %1110 {strides = array<i32>} : memref<1x3xf32, #tpu.memory_space<vmem>>, vector<1x3xf32>,
    return
  }
}

</mosaic_0001>

<llo_original>
// kernel: mul.90
$region0: #{mul.90}
  %s0 = inlined_call_operand.vmem [shape: f32[2,8], index: 0, kind: input, shape index: {}]
  %s1 = inlined_call_operand.vmem [shape: f32[16], index: 1, kind: output, shape index: {}]
  $region1: #{mul.90} parent=0
    #allocation0 [shape = 'u8[4096]{0}', space=vmem, size = 0x1000, scoped, tag = 'scoped mem for output reshape']
    #allocation1 [shape = 'u8[4096]{0}', space=vmem, size = 0x1000, scoped, tag = 'scoped mem for input reshape']
    %s3 = sshllo.u32 0, 2
    %v4 = vld [vmem:[%s0] sm:%s3]
    %5 = vst [vmem:[#allocation1] sm:%s3] %v4
    %v6 = vld [vmem:[#allocation1] sm:$0x1]
    %vm7 = vcmask 64512
    %8 = vst.msk [vmem:[#allocation0] sm:$0x1] %vm7, %v6
    %s9 = scalar_lea.vmem [#allocation1], 1
    %v10 = vld [vmem:[%s9] sm:$0x1]
    %11 = vrot.lane.b32.xlu0 %v10, 8
    %v12 = vpop.permute.xlu0 %11
    %vm13 = vcmask 130112
    %14 = vst.msk [vmem:[#allocation0] sm:$0x1] %vm13, %v12
    %s16 = sshllo.u32 0, 1
    %v18 = vld [vmem:[#allocation0] sm:%s16]
    %s19 = sshllo.u32 0, 1
    %20 = vst [vmem:[%s1] sm:%s19] %v18

// kernel: eq.1
$region0: #{eq.1}
  %s0 = inlined_call_operand.vmem [shape: s32[2,8], index: 0, kind: input, shape index: {}]
  %s1 = inlined_call_operand.vmem [shape: s32[16], index: 1, kind: output, shape index: {}]
  $region1: #{eq.1} parent=0
    #allocation0 [shape = 'u8[4096]{0}', space=vmem, size = 0x1000, scoped, tag = 'scoped mem for output reshape']
    #allocation1 [shape = 'u8[4096]{0}', space=vmem, size = 0x1000, scoped, tag = 'scoped mem for input reshape']
    %s3 = sshllo.u32 0, 2
    %v4 = vld [vmem:[%s0] sm:%s3]
    %5 = vst [vmem:[#allocation1] sm:%s3] %v4
    %v6 = vld [vmem:[#allocation1] sm:$0x1]
    %vm7 = vcmask 64512
    %8 = vst.msk [vmem:[#allocation0] sm:$0x1] %vm7, %v6
    %s9 = scalar_lea.vmem [#allocation1], 1
    %v10 = vld [vmem:[%s9] sm:$0x1]
    %11 = vrot.lane.b32.xlu0 %v10, 8
    %v12 = vpop.permute.xlu0 %11
    %vm13 = vcmask 130112
    %14 = vst.msk [vmem:[#allocation0] sm:$0x1] %vm13, %v12
    %s16 = sshllo.u32 0, 1
    %v18 = vld [vmem:[#allocation0] sm:%s16]
    %s19 = sshllo.u32 0, 1
    %20 = vst [vmem:[%s1] sm:%s19] %v18

// kernel: forward.1
$region0: #{forward.1}
  #allocation0 [shape = 'u32[]', space=smem, size = 0x4, offset = 0x4, fixed_abs, tag = 'smem constant byte address 0x4 - core index']
  #allocation1 [shape = 'u32[144,128]{1,0:T(1,128)}', space=vmem, size = 0x12000, scoped, tag = 'internal scratch']
  %s0 = inlined_call_operand.vmem [shape: f32[16,101], index: 0, kind: input, shape index: {}]
  %s1 = inlined_call_operand.vmem [shape: f32[3,16,32], index: 1, kind: input, shape index: {}]
  %s2 = inlined_call_operand.vmem [shape: f32[71,128], index: 2, kind: input, shape index: {}]
  %s3 = inlined_call_operand.vmem [shape: bf16[2,32,192], index: 3, kind: input, shape index: {}]
  %s4 = inlined_call_operand.vmem [shape: bf16[2,64,32], index: 4, kind: input, shape index: {}]
  %s5 = inlined_call_operand.vmem [shape: bf16[4,32,320], index: 5, kind: input, shape index: {}]
  %s6 = inlined_call_operand.vmem [shape: bf16[4,64,32], index: 6, kind: input, shape index: {}]
  %s7 = inlined_call_operand.vmem [shape: bf16[32,4], index: 7, kind: input, shape index: {}]
  %s8 = inlined_call_operand.vmem [shape: f32[1,3], index: 8, kind: output, shape index: {}]
  %s9 = sld [smem:[#allocation0]]
  $region42: #{forward.1} parent=0
    _
  %s11 = ssub.s32 1, %s9
  %s12 = scalar_select 0, %s11, %s9
  // Predicated region
  $region2: #{forward.1} parent=0 // pred_check
    _
  $region3: #{forward.1} parent=0 // pred_check_branch
    %14 = sbr.rel (0) target = $region5
  $region4: #{forward.1} parent=0 // pred_region
    _
  $region5: #{forward.1} parent=0 // pred_fallthru
    _
  // Predicated region
  $region6: #{forward.1} parent=0 // pred_check
    _
  $region7: #{forward.1} parent=0 // pred_check_branch
    %16 = sbr.rel (0) target = $region9
  $region8: #{forward.1} parent=0 // pred_region
    _
  $region9: #{forward.1} parent=0 // pred_fallthru
    _
  // Predicated region
  $region10: #{forward.1} parent=0 // pred_check
    _
  $region11: #{forward.1} parent=0 // pred_check_branch
    %18 = sbr.rel (0) target = $region13
  $region12: #{forward.1} parent=0 // pred_region
    _
  $region13: #{forward.1} parent=0 // pred_fallthru
    _
  // Predicated region
  $region14: #{forward.1} parent=0 // pred_check
    _
  $region15: #{forward.1} parent=0 // pred_check_branch
    %20 = sbr.rel (0) target = $region17
  $region16: #{forward.1} parent=0 // pred_region
    _
  $region17: #{forward.1} parent=0 // pred_fallthru
    _
  // Predicated region
  $region18: #{forward.1} parent=0 // pred_check
    _
  $region19: #{forward.1} parent=0 // pred_check_branch
    %22 = sbr.rel (0) target = $region21
  $region20: #{forward.1} parent=0 // pred_region
    _
  $region21: #{forward.1} parent=0 // pred_fallthru
    _
  // Predicated region
  $region22: #{forward.1} parent=0 // pred_check
    _
  $region23: #{forward.1} parent=0 // pred_check_branch
    %24 = sbr.rel (0) target = $region25
  $region24: #{forward.1} parent=0 // pred_region
    _
  $region25: #{forward.1} parent=0 // pred_fallthru
    _
  // Predicated region
  $region26: #{forward.1} parent=0 // pred_check
    _
  $region27: #{forward.1} parent=0 // pred_check_branch
    %26 = sbr.rel (0) target = $region29
  $region28: #{forward.1} parent=0 // pred_region
    _
  $region29: #{forward.1} parent=0 // pred_fallthru
    _
  // Predicated region
  $region30: #{forward.1} parent=0 // pred_check
    _
  $region31: #{forward.1} parent=0 // pred_check_branch
    %28 = sbr.rel (0) target = $region33
  $region32: #{forward.1} parent=0 // pred_region
    _
  $region33: #{forward.1} parent=0 // pred_fallthru
    _
  %v30 = vlaneseq
  %v31 = vshrl.u32 %v30, 7
  %v32 = vadd.s32 %v31, 8
  %v33 = vadd.s32 %v31, 16
  %v34 = vadd.s32 %v31, 24
  %v35 = vlaneseq
  %v36 = vand.u32 %v35, 127
  %vm37 = vcmp.lt.s32.totalorder %v31, 16
  %vm38 = vcmp.lt.s32.totalorder %v32, 16
  %vm39 = vcmp.lt.s32.totalorder %v33, 16
  %vm40 = vcmp.lt.s32.totalorder %v34, 16
  %vm41 = vcmp.lt.s32.totalorder %v36, 16
  %vm42 = vmxor %vm37, %vm41
  %vm43 = vmxor %vm38, %vm41
  %vm44 = vmxor %vm39, %vm41
  %vm45 = vmxor %vm40, %vm41
  %vm46 = vmxor %vm42, 1
  %vm47 = vmxor %vm43, 1
  %vm48 = vmxor %vm44, 1
  %vm49 = vmxor %vm45, 1
  %v50 = vsel %vm46, 1, 0
  %v51 = vsel %vm47, 1, 0
  %v52 = vsel %vm48, 1, 0
  %v53 = vsel %vm49, 1, 0
  %v54 = vcvt.s32.f32 %v50
  %v55 = vcvt.s32.f32 %v51
  %v56 = vcvt.s32.f32 %v52
  %v57 = vcvt.s32.f32 %v53
  %v58 = vld [vmem:[%s0] sm:$0xff]
  %v59 = vld [vmem:[%s0 + $0x8] sm:$0xff]
  %v60 = vld [vmem:[%s3] sm:$0xf]
  %v61 = vld [vmem:[%s3 + $0x8] sm:$0xf]
  %v62 = vld [vmem:[%s3 + $0x10] sm:$0xf]
  %v63 = vld [vmem:[%s3 + $0x18] sm:$0xf]
  %v64 = vpack.c.bf16 %v59, %v58
  %v65 = vld [vmem:[%s2] sm:$0x1]
  %v66 = vlaneseq
  %v67 = vshrl.u32 %v66, 7
  %v68 = vsub.s32 0, %v67
  %v69 = vrot.slane %v65, %v68
  %v74 = vunpack.c.l.b16 %v60
  %v75 = vunpack.c.l.b16 %v61
  %v76 = vunpack.c.l.b16 %v62
  %v77 = vunpack.c.l.b16 %v63
  %v78 = vpack.c.b16 %v75, %v74
  %v79 = vpack.c.b16 %v77, %v76
  %vm82 = vcmask 261120
  %v84 = vsel %vm82, %v64, 0
  %86 = vmatprep.subr.bf16.mxu0 0
  %87 = vmatpush1.bf16.msra.mxu0 %v78
  %88 = vmatprep.subr.bf16.mxu0 0
  %89 = vmatpush1.bf16.msra.mxu0 %v79
  %90 = vmatprep.subr.bf16.mxu0 0
  %91 = vmatpush1.bf16.msra.mxu0 0
  %92 = vmatprep.subr.bf16.mxu0 0
  %93 = vmatpush1.bf16.msra.mxu0 0
  %94 = vmatprep.subr.bf16.mxu0 0
  %95 = vmatpush1.bf16.msra.mxu0 0
  %96 = vmatprep.subr.bf16.mxu0 0
  %97 = vmatpush1.bf16.msra.mxu0 0
  %98 = vmatprep.subr.bf16.mxu0 0
  %99 = vmatpush1.bf16.msra.mxu0 0
  %100 = vmatprep.subr.bf16.mxu0 0
  %101 = vmatpush1.bf16.msra.mxu0 0
  %102 = vmatprep.subr.bf16.mxu0 0
  %103 = vmatpush1.bf16.msra.mxu0 0
  %104 = vmatprep.subr.bf16.mxu0 0
  %105 = vmatpush1.bf16.msra.mxu0 0
  %106 = vmatprep.subr.bf16.mxu0 0
  %107 = vmatpush1.bf16.msra.mxu0 0
  %108 = vmatprep.subr.bf16.mxu0 0
  %109 = vmatpush1.bf16.msra.mxu0 0
  %110 = vmatprep.subr.bf16.mxu0 0
  %111 = vmatpush1.bf16.msra.mxu0 0
  %112 = vmatprep.subr.bf16.mxu0 0
  %113 = vmatpush1.bf16.msra.mxu0 0
  %114 = vmatprep.subr.bf16.mxu0 0
  %115 = vmatpush1.bf16.msra.mxu0 0
  %116 = vmatprep.subr.bf16.mxu0 0
  %117 = vmatpush1.bf16.msra.mxu0 0
  %118 = vmatprep.mubr.bf16.mxu0 0
  %119 = vmatmul.mubr.bf16.gmra.mrb[0].mxu0 %v84
  %v120 = vpop.f32.mrb[0].mxu0
  %v121 = vadd.f32 %v69, %v120
  %v122 = vpop.f32.mrb[0].mxu0
  %v123 = vpop.f32.mrb[0].mxu0
  %v124 = vadd.f32 %v69, %v123
  %v125 = vpop.f32.mrb[0].mxu0
  %126 = vdwg.mxu0
  %v127 = vld [vmem:[%s1] sm:$0xff]
  %v128 = vld [vmem:[%s1 + $0x8] sm:$0xff]
  %133 = vrot.lane.b32.xlu0 %v54, 32
  %v134 = vpop.permute.xlu0 %133
  %135 = vrot.lane.b32.xlu0 %v55, 32
  %v136 = vpop.permute.xlu0 %135
  %137 = vrot.lane.b32.xlu0 %v56, 32
  %v138 = vpop.permute.xlu0 %137
  %139 = vrot.lane.b32.xlu0 %v57, 32
  %v140 = vpop.permute.xlu0 %139
  %v145 = vmul.f32 %v121, %v134
  %v146 = vmul.f32 %v124, %v136
  %v147 = vmul.f32 %v121, %v138
  %v148 = vmul.f32 %v124, %v140
  %149 = vrot.lane.b32.xlu0 %v54, 64
  %v150 = vpop.permute.xlu0 %149
  %151 = vrot.lane.b32.xlu0 %v55, 64
  %v152 = vpop.permute.xlu0 %151
  %153 = vrot.lane.b32.xlu0 %v56, 64
  %v154 = vpop.permute.xlu0 %153
  %155 = vrot.lane.b32.xlu0 %v57, 64
  %v156 = vpop.permute.xlu0 %155
  %v161 = vmul.f32 %v121, %v150
  %v162 = vmul.f32 %v124, %v152
  %v163 = vmul.f32 %v121, %v154
  %v164 = vmul.f32 %v124, %v156
  %v165 = vpack.c.bf16 %v124, %v121
  %v166 = vpack.c.bf16 %v146, %v145
  %v167 = vpack.c.bf16 %v148, %v147
  %170 = vrot.lane.b32.xlu0 %v166, 96
  %v171 = vpop.permute.xlu0 %170
  %172 = vrot.lane.b32.xlu0 %v167, 96
  %v173 = vpop.permute.xlu0 %172
  %v175 = vsel %vm82, %v165, 0
  %v178 = vsel %vm82, %v171, 0
  %v181 = vsel %vm82, %v173, 0
  %183 = vmatprep.subr.bf16.mxu0 0
  %184 = vmatpush1.bf16.xpose.msra.mxu0 %v178
  %185 = vmatprep.subr.bf16.mxu0 0
  %186 = vmatpush1.bf16.xpose.msra.mxu0 %v181
  %187 = vmatprep.subr.bf16.mxu0 0
  %188 = vmatpush1.bf16.xpose.msra.mxu0 0
  %189 = vmatprep.subr.bf16.mxu0 0
  %190 = vmatpush1.bf16.xpose.msra.mxu0 0
  %191 = vmatprep.subr.bf16.mxu0 0
  %192 = vmatpush1.bf16.xpose.msra.mxu0 0
  %193 = vmatprep.subr.bf16.mxu0 0
  %194 = vmatpush1.bf16.xpose.msra.mxu0 0
  %195 = vmatprep.subr.bf16.mxu0 0
  %196 = vmatpush1.bf16.xpose.msra.mxu0 0
  %197 = vmatprep.subr.bf16.mxu0 0
  %198 = vmatpush1.bf16.xpose.msra.mxu0 0
  %199 = vmatprep.subr.bf16.mxu0 0
  %200 = vmatpush1.bf16.xpose.msra.mxu0 0
  %201 = vmatprep.subr.bf16.mxu0 0
  %202 = vmatpush1.bf16.xpose.msra.mxu0 0
  %203 = vmatprep.subr.bf16.mxu0 0
  %204 = vmatpush1.bf16.xpose.msra.mxu0 0
  %205 = vmatprep.subr.bf16.mxu0 0
  %206 = vmatpush1.bf16.xpose.msra.mxu0 0
  %207 = vmatprep.subr.bf16.mxu0 0
  %208 = vmatpush1.bf16.xpose.msra.mxu0 0
  %209 = vmatprep.subr.bf16.mxu0 0
  %210 = vmatpush1.bf16.xpose.msra.mxu0 0
  %211 = vmatprep.subr.bf16.mxu0 0
  %212 = vmatpush1.bf16.xpose.msra.mxu0 0
  %213 = vmatprep.subr.bf16.mxu0 0
  %214 = vmatpush1.bf16.xpose.msra.mxu0 0
  %215 = vmatprep.mubr.bf16.mxu0 0
  %216 = vmatmul.mubr.bf16.gmra.mrb[0].mxu0 %v175
  %v217 = vpop.f32.mrb[0].mxu0
  %v218 = vadd.f32 0.0, %v217
  %v219 = vpop.f32.mrb[0].mxu0
  %v220 = vpop.f32.mrb[0].mxu0
  %v221 = vadd.f32 0.0, %v220
  %v222 = vpop.f32.mrb[0].mxu0
  %223 = vdwg.mxu0
  %v224 = vmul.f32 %v218, 0.25
  %v225 = vmul.f32 %v221, 0.25
  %v226 = vadd.f32 %v224, %v127
  %v227 = vadd.f32 %v225, %v128
  %v228 = vsel %vm82, %v226, -inf
  %229 = vmax.xlane.f32.xlu0 %v228
  %v230 = vpop.xlane.xlu0 %229
  %v231 = vsel %vm82, %v227, -inf
  %232 = vmax.xlane.f32.xlu0 %v231
  %v233 = vpop.xlane.xlu0 %232
  %v234 = vsub.f32 %v226, %v230
  %v235 = vsub.f32 %v227, %v233
  %v236 = vmul.f32 %v234, 1.442695
  %v237 = vpow.pop %v236
  %v238 = vmul.f32 %v235, 1.442695
  %v239 = vpow.pop %v238
  %v240 = vsel %vm41, 1, 0
  %vm241 = vcmp.eq.s32.totalorder %v240, 1
  %v242 = vsel %vm241, %v237, 0.0
  %v243 = vsel %vm241, %v239, 0.0
  %v244 = vsel %vm82, %v242, 0.0
  %245 = vadd.xlane.f32.xlu0 %v244
  %v246 = vpop.xlane.xlu0 %245
  %v247 = vsel %vm82, %v243, 0.0
  %248 = vadd.xlane.f32.xlu0 %v247
  %v249 = vpop.xlane.xlu0 %248
  %v250 = vsel %vm82, %v237, 0.0
  %251 = vadd.xlane.f32.xlu0 %v250
  %v252 = vpop.xlane.xlu0 %251
  %v253 = vsel %vm82, %v239, 0.0
  %254 = vadd.xlane.f32.xlu0 %v253
  %v255 = vpop.xlane.xlu0 %254
  %v256 = vsub.f32 %v252, %v246
  %v257 = vsub.f32 %v255, %v249
  %v258 = vpack.c.bf16 %v239, %v237
  %v259 = vpack.c.bf16 %v162, %v161
  %v260 = vpack.c.bf16 %v164, %v163
  %263 = vrot.lane.b32.xlu0 %v259, 64
  %v264 = vpop.permute.xlu0 %263
  %265 = vrot.lane.b32.xlu0 %v260, 64
  %v266 = vpop.permute.xlu0 %265
  %v270 = vsel %vm82, %v258, 0
  %272 = vmatprep.subr.bf16.mxu0 0
  %273 = vmatpush1.bf16.msra.mxu0 %v264
  %274 = vmatprep.subr.bf16.mxu0 0
  %275 = vmatpush1.bf16.msra.mxu0 %v266
  %276 = vmatprep.subr.bf16.mxu0 0
  %277 = vmatpush1.bf16.msra.mxu0 0
  %278 = vmatprep.subr.bf16.mxu0 0
  %279 = vmatpush1.bf16.msra.mxu0 0
  %280 = vmatprep.subr.bf16.mxu0 0
  %281 = vmatpush1.bf16.msra.mxu0 0
  %282 = vmatprep.subr.bf16.mxu0 0
  %283 = vmatpush1.bf16.msra.mxu0 0
  %284 = vmatprep.subr.bf16.mxu0 0
  %285 = vmatpush1.bf16.msra.mxu0 0
  %286 = vmatprep.subr.bf16.mxu0 0
  %287 = vmatpush1.bf16.msra.mxu0 0
  %288 = vmatprep.subr.bf16.mxu0 0
  %289 = vmatpush1.bf16.msra.mxu0 0
  %290 = vmatprep.subr.bf16.mxu0 0
  %291 = vmatpush1.bf16.msra.mxu0 0
  %292 = vmatprep.subr.bf16.mxu0 0
  %293 = vmatpush1.bf16.msra.mxu0 0
  %294 = vmatprep.subr.bf16.mxu0 0
  %295 = vmatpush1.bf16.msra.mxu0 0
  %296 = vmatprep.subr.bf16.mxu0 0
  %297 = vmatpush1.bf16.msra.mxu0 0
  %298 = vmatprep.subr.bf16.mxu0 0
  %299 = vmatpush1.bf16.msra.mxu0 0
  %300 = vmatprep.subr.bf16.mxu0 0
  %301 = vmatpush1.bf16.msra.mxu0 0
  %302 = vmatprep.subr.bf16.mxu0 0
  %303 = vmatpush1.bf16.msra.mxu0 0
  %304 = vmatprep.mubr.bf16.mxu0 0
  %305 = vmatmul.mubr.bf16.gmra.mrb[0].mxu0 %v270
  %v306 = vpop.f32.mrb[0].mxu0
  %v307 = vadd.f32 0.0, %v306
  %v308 = vpop.f32.mrb[0].mxu0
  %v309 = vpop.f32.mrb[0].mxu0
  %v310 = vadd.f32 0.0, %v309
  %v311 = vpop.f32.mrb[0].mxu0
  %312 = vdwg.mxu0
  %v313 = vrcp.pop %v246
  %v314 = vrcp.pop %v249
  %v315 = vrcp.pop %v256
  %v316 = vrcp.pop %v257
  %v317 = vsel %vm241, %v313, %v315
  %v318 = vsel %vm241, %v314, %v316
  %v319 = vmul.f32 %v307, %v317
  %v320 = vmul.f32 %v310, %v318
  %v321 = vpack.c.bf16 %v320, %v319
  %v322 = vld [vmem:[%s2 + $0x1] sm:$0x1]
  %v323 = vlaneseq
  %v324 = vshrl.u32 %v323, 7
  %v325 = vsub.s32 0, %v324
  %v326 = vrot.slane %v322, %v325
  %327 = vrot.lane.b32.xlu0 %v78, 32
  %v328 = vpop.permute.xlu0 %327
  %329 = vrot.lane.b32.xlu0 %v79, 32
  %v330 = vpop.permute.xlu0 %329
  %v334 = vsel %vm82, %v321, 0
  %336 = vmatprep.subr.bf16.mxu0 0
  %337 = vmatpush1.bf16.msra.mxu0 %v328
  %338 = vmatprep.subr.bf16.mxu0 0
  %339 = vmatpush1.bf16.msra.mxu0 %v330
  %340 = vmatprep.subr.bf16.mxu0 0
  %341 = vmatpush1.bf16.msra.mxu0 0
  %342 = vmatprep.subr.bf16.mxu0 0
  %343 = vmatpush1.bf16.msra.mxu0 0
  %344 = vmatprep.subr.bf16.mxu0 0
  %345 = vmatpush1.bf16.msra.mxu0 0
  %346 = vmatprep.subr.bf16.mxu0 0
  %347 = vmatpush1.bf16.msra.mxu0 0
  %348 = vmatprep.subr.bf16.mxu0 0
  %349 = vmatpush1.bf16.msra.mxu0 0
  %350 = vmatprep.subr.bf16.mxu0 0
  %351 = vmatpush1.bf16.msra.mxu0 0
  %352 = vmatprep.subr.bf16.mxu0 0
  %353 = vmatpush1.bf16.msra.mxu0 0
  %354 = vmatprep.subr.bf16.mxu0 0
  %355 = vmatpush1.bf16.msra.mxu0 0
  %356 = vmatprep.subr.bf16.mxu0 0
  %357 = vmatpush1.bf16.msra.mxu0 0
  %358 = vmatprep.subr.bf16.mxu0 0
  %359 = vmatpush1.bf16.msra.mxu0 0
  %360 = vmatprep.subr.bf16.mxu0 0
  %361 = vmatpush1.bf16.msra.mxu0 0
  %362 = vmatprep.subr.bf16.mxu0 0
  %363 = vmatpush1.bf16.msra.mxu0 0
  %364 = vmatprep.subr.bf16.mxu0 0
  %365 = vmatpush1.bf16.msra.mxu0 0
  %366 = vmatprep.subr.bf16.mxu0 0
  %367 = vmatpush1.bf16.msra.mxu0 0
  %368 = vmatprep.mubr.bf16.mxu0 0
  %369 = vmatmul.mubr.bf16.gmra.mrb[0].mxu0 %v334
  %v370 = vpop.f32.mrb[0].mxu0
  %v371 = vadd.f32 %v326, %v370
  %v372 = vpop.f32.mrb[0].mxu0
  %v373 = vpop.f32.mrb[0].mxu0
  %v374 = vadd.f32 %v326, %v373
  %v375 = vpop.f32.mrb[0].mxu0
  %376 = vdwg.mxu0
  %v377 = vadd.f32 %v58, %v371
  %v378 = vadd.f32 %v59, %v374
  %v379 = vld [vmem:[%s2 + $0x2] sm:$0x1]
  %v380 = vld [vmem:[%s2 + $0x3] sm:$0x1]
  %v381 = vsel %vm82, %v377, 0.0
  %382 = vadd.xlane.f32.xlu0 %v381
  %v383 = vpop.xlane.xlu0 %382
  %v384 = vsel %vm82, %v378, 0.0
  %385 = vadd.xlane.f32.xlu0 %v384
  %v386 = vpop.xlane.xlu0 %385
  %v387 = vrcp.pop 32.0
  %v388 = vmul.f32 %v383, %v387
  %v389 = vmul.f32 %v386, %v387
  %v390 = vsub.f32 %v377, %v388
  %v391 = vsub.f32 %v378, %v389
  %v392 = vmul.f32 %v390, %v390
  %v393 = vmul.f32 %v391, %v391
  %v394 = vsel %vm82, %v392, 0.0
  %395 = vadd.xlane.f32.xlu0 %v394
  %v396 = vpop.xlane.xlu0 %395
  %v397 = vsel %vm82, %v393, 0.0
  %398 = vadd.xlane.f32.xlu0 %v397
  %v399 = vpop.xlane.xlu0 %398
  %v400 = vmul.f32 %v396, %v387
  %v401 = vmul.f32 %v399, %v387
  %v402 = vadd.f32 %v400, 1e-05
  %v403 = vadd.f32 %v401, 1e-05
  %v404 = vrsqrt.pop %v402
  %v405 = vrsqrt.pop %v403
  %v406 = vmul.f32 %v390, %v404
  %v407 = vmul.f32 %v391, %v405
  %v408 = vlaneseq
  %v409 = vshrl.u32 %v408, 7
  %v410 = vsub.s32 0, %v409
  %v411 = vrot.slane %v379, %v410
  %v412 = vmul.f32 %v406, %v411
  %v413 = vmul.f32 %v407, %v411
  %v414 = vlaneseq
  %v415 = vshrl.u32 %v414, 7
  %v416 = vsub.s32 0, %v415
  %v417 = vrot.slane %v380, %v416
  %v418 = vadd.f32 %v412, %v417
  %v419 = vadd.f32 %v413, %v417
  %v420 = vld [vmem:[%s3 + $0x4] sm:$0xf]
  %v421 = vld [vmem:[%s3 + $0xc] sm:$0xf]
  %v422 = vld [vmem:[%s3 + $0x14] sm:$0xf]
  %v423 = vld [vmem:[%s3 + $0x1c] sm:$0xf]
  %v424 = vpack.c.bf16 %v419, %v418
  %v425 = vld [vmem:[%s2 + $0x4] sm:$0x1]
  %v426 = vlaneseq
  %v427 = vshrl.u32 %v426, 7
  %v428 = vsub.s32 0, %v427
  %v429 = vrot.slane %v425, %v428
  %v434 = vunpack.c.l.b16 %v420
  %v435 = vunpack.c.l.b16 %v421
  %v436 = vunpack.c.l.b16 %v422
  %v437 = vunpack.c.l.b16 %v423
  %v438 = vpack.c.b16 %v435, %v434
  %v439 = vpack.c.b16 %v437, %v436
  %v443 = vsel %vm82, %v424, 0
  %445 = vmatprep.subr.bf16.mxu0 0
  %446 = vmatpush1.bf16.msra.mxu0 %v438
  %447 = vmatprep.subr.bf16.mxu0 0
  %448 = vmatpush1.bf16.msra.mxu0 %v439
  %449 = vmatprep.subr.bf16.mxu0 0
  %450 = vmatpush1.bf16.msra.mxu0 0
  %451 = vmatprep.subr.bf16.mxu0 0
  %452 = vmatpush1.bf16.msra.mxu0 0
  %453 = vmatprep.subr.bf16.mxu0 0
  %454 = vmatpush1.bf16.msra.mxu0 0
  %455 = vmatprep.subr.bf16.mxu0 0
  %456 = vmatpush1.bf16.msra.mxu0 0
  %457 = vmatprep.subr.bf16.mxu0 0
  %458 = vmatpush1.bf16.msra.mxu0 0
  %459 = vmatprep.subr.bf16.mxu0 0
  %460 = vmatpush1.bf16.msra.mxu0 0
  %461 = vmatprep.subr.bf16.mxu0 0
  %462 = vmatpush1.bf16.msra.mxu0 0
  %463 = vmatprep.subr.bf16.mxu0 0
  %464 = vmatpush1.bf16.msra.mxu0 0
  %465 = vmatprep.subr.bf16.mxu0 0
  %466 = vmatpush1.bf16.msra.mxu0 0
  %467 = vmatprep.subr.bf16.mxu0 0
  %468 = vmatpush1.bf16.msra.mxu0 0
  %469 = vmatprep.subr.bf16.mxu0 0
  %470 = vmatpush1.bf16.msra.mxu0 0
  %471 = vmatprep.subr.bf16.mxu0 0
  %472 = vmatpush1.bf16.msra.mxu0 0
  %473 = vmatprep.subr.bf16.mxu0 0
  %474 = vmatpush1.bf16.msra.mxu0 0
  %475 = vmatprep.subr.bf16.mxu0 0
  %476 = vmatpush1.bf16.msra.mxu0 0
  %477 = vmatprep.mubr.bf16.mxu0 0
  %478 = vmatmul.mubr.bf16.gmra.mrb[0].mxu0 %v443
  %v479 = vpop.f32.mrb[0].mxu0
  %v480 = vadd.f32 %v429, %v479
  %v481 = vpop.f32.mrb[0].mxu0
  %v482 = vpop.f32.mrb[0].mxu0
  %v483 = vadd.f32 %v429, %v482
  %v484 = vpop.f32.mrb[0].mxu0
  %485 = vdwg.mxu0
  %v486 = vmax.f32 %v480, 0.0
  %v487 = vmax.f32 %v483, 0.0
  %v488 = vld [vmem:[%s4] sm:$0xf]
  %v489 = vld [vmem:[%s4 + $0x4] sm:$0xf]
  %v490 = vld [vmem:[%s4 + $0x8] sm:$0xf]
  %v491 = vld [vmem:[%s4 + $0xc] sm:$0xf]
  %v492 = vld [vmem:[%s4 + $0x10] sm:$0xf]
  %v493 = vld [vmem:[%s4 + $0x14] sm:$0xf]
  %v494 = vld [vmem:[%s4 + $0x18] sm:$0xf]
  %v495 = vld [vmem:[%s4 + $0x1c] sm:$0xf]
  %v496 = vpack.c.bf16 %v487, %v486
  %v497 = vld [vmem:[%s2 + $0x5] sm:$0x1]
  %v498 = vlaneseq
  %v499 = vshrl.u32 %v498, 7
  %v500 = vsub.s32 0, %v499
  %v501 = vrot.slane %v497, %v500
  %v510 = vunpack.c.l.b16 %v488
  %v511 = vunpack.c.l.b16 %v489
  %v512 = vunpack.c.l.b16 %v490
  %v513 = vunpack.c.l.b16 %v491
  %v514 = vunpack.c.l.b16 %v492
  %v515 = vunpack.c.l.b16 %v493
  %v516 = vunpack.c.l.b16 %v494
  %v517 = vunpack.c.l.b16 %v495
  %v518 = vpack.c.b16 %v511, %v510
  %v519 = vpack.c.b16 %v513, %v512
  %v520 = vpack.c.b16 %v515, %v514
  %v521 = vpack.c.b16 %v517, %v516
  %vm526 = vcmask 523264
  %v528 = vsel %vm526, %v496, 0
  %530 = vmatprep.subr.bf16.mxu0 0
  %531 = vmatpush1.bf16.msra.mxu0 %v518
  %532 = vmatprep.subr.bf16.mxu0 0
  %533 = vmatpush1.bf16.msra.mxu0 %v519
  %534 = vmatprep.subr.bf16.mxu0 0
  %535 = vmatpush1.bf16.msra.mxu0 %v520
  %536 = vmatprep.subr.bf16.mxu0 0
  %537 = vmatpush1.bf16.msra.mxu0 %v521
  %538 = vmatprep.subr.bf16.mxu0 0
  %539 = vmatpush1.bf16.msra.mxu0 0
  %540 = vmatprep.subr.bf16.mxu0 0
  %541 = vmatpush1.bf16.msra.mxu0 0
  %542 = vmatprep.subr.bf16.mxu0 0
  %543 = vmatpush1.bf16.msra.mxu0 0
  %544 = vmatprep.subr.bf16.mxu0 0
  %545 = vmatpush1.bf16.msra.mxu0 0
  %546 = vmatprep.subr.bf16.mxu0 0
  %547 = vmatpush1.bf16.msra.mxu0 0
  %548 = vmatprep.subr.bf16.mxu0 0
  %549 = vmatpush1.bf16.msra.mxu0 0
  %550 = vmatprep.subr.bf16.mxu0 0
  %551 = vmatpush1.bf16.msra.mxu0 0
  %552 = vmatprep.subr.bf16.mxu0 0
  %553 = vmatpush1.bf16.msra.mxu0 0
  %554 = vmatprep.subr.bf16.mxu0 0
  %555 = vmatpush1.bf16.msra.mxu0 0
  %556 = vmatprep.subr.bf16.mxu0 0
  %557 = vmatpush1.bf16.msra.mxu0 0
  %558 = vmatprep.subr.bf16.mxu0 0
  %559 = vmatpush1.bf16.msra.mxu0 0
  %560 = vmatprep.subr.bf16.mxu0 0
  %561 = vmatpush1.bf16.msra.mxu0 0
  %562 = vmatprep.mubr.bf16.mxu0 0
  %563 = vmatmul.mubr.bf16.gmra.mrb[0].mxu0 %v528
  %v564 = vpop.f32.mrb[0].mxu0
  %v565 = vadd.f32 %v501, %v564
  %v566 = vpop.f32.mrb[0].mxu0
  %v567 = vpop.f32.mrb[0].mxu0
  %v568 = vadd.f32 %v501, %v567
  %v569 = vpop.f32.mrb[0].mxu0
  %570 = vdwg.mxu0
  %v571 = vadd.f32 %v418, %v565
  %v572 = vadd.f32 %v419, %v568
  %v573 = vld [vmem:[%s2 + $0x6] sm:$0x1]
  %v574 = vld [vmem:[%s2 + $0x7] sm:$0x1]
  %v575 = vsel %vm82, %v571, 0.0
  %576 = vadd.xlane.f32.xlu0 %v575
  %v577 = vpop.xlane.xlu0 %576
  %v578 = vsel %vm82, %v572, 0.0
  %579 = vadd.xlane.f32.xlu0 %v578
  %v580 = vpop.xlane.xlu0 %579
  %v581 = vmul.f32 %v577, %v387
  %v582 = vmul.f32 %v580, %v387
  %v583 = vsub.f32 %v571, %v581
  %v584 = vsub.f32 %v572, %v582
  %v585 = vmul.f32 %v583, %v583
  %v586 = vmul.f32 %v584, %v584
  %v587 = vsel %vm82, %v585, 0.0
  %588 = vadd.xlane.f32.xlu0 %v587
  %v589 = vpop.xlane.xlu0 %588
  %v590 = vsel %vm82, %v586, 0.0
  %591 = vadd.xlane.f32.xlu0 %v590
  %v592 = vpop.xlane.xlu0 %591
  %v593 = vmul.f32 %v589, %v387
  %v594 = vmul.f32 %v592, %v387
  %v595 = vadd.f32 %v593, 1e-05
  %v596 = vadd.f32 %v594, 1e-05
  %v597 = vrsqrt.pop %v595
  %v598 = vrsqrt.pop %v596
  %v599 = vmul.f32 %v583, %v597
  %v600 = vmul.f32 %v584, %v598
  %v601 = vlaneseq
  %v602 = vshrl.u32 %v601, 7
  %v603 = vsub.s32 0, %v602
  %v604 = vrot.slane %v573, %v603
  %v605 = vmul.f32 %v599, %v604
  %v606 = vmul.f32 %v600, %v604
  %v607 = vlaneseq
  %v608 = vshrl.u32 %v607, 7
  %v609 = vsub.s32 0, %v608
  %v610 = vrot.slane %v574, %v609
  %v611 = vadd.f32 %v605, %v610
  %v612 = vadd.f32 %v606, %v610
  %s613 = scalar_lea.vmem %s3, 32
  %v614 = vld [vmem:[%s613] sm:$0xf]
  %v615 = vld [vmem:[%s613 + $0x8] sm:$0xf]
  %v616 = vld [vmem:[%s613 + $0x10] sm:$0xf]
  %v617 = vld [vmem:[%s613 + $0x18] sm:$0xf]
  %v618 = vpack.c.bf16 %v612, %v611
  %v619 = vld [vmem:[%s2 + $0x8] sm:$0x1]
  %v620 = vlaneseq
  %v621 = vshrl.u32 %v620, 7
  %v622 = vsub.s32 0, %v621
  %v623 = vrot.slane %v619, %v622
  %v628 = vunpack.c.l.b16 %v614
  %v629 = vunpack.c.l.b16 %v615
  %v630 = vunpack.c.l.b16 %v616
  %v631 = vunpack.c.l.b16 %v617
  %v632 = vpack.c.b16 %v629, %v628
  %v633 = vpack.c.b16 %v631, %v630
  %v637 = vsel %vm82, %v618, 0
  %639 = vmatprep.subr.bf16.mxu0 0
  %640 = vmatpush1.bf16.msra.mxu0 %v632
  %641 = vmatprep.subr.bf16.mxu0 0
  %642 = vmatpush1.bf16.msra.mxu0 %v633
  %643 = vmatprep.subr.bf16.mxu0 0
  %644 = vmatpush1.bf16.msra.mxu0 0
  %645 = vmatprep.subr.bf16.mxu0 0
  %646 = vmatpush1.bf16.msra.mxu0 0
  %647 = vmatprep.subr.bf16.mxu0 0
  %648 = vmatpush1.bf16.msra.mxu0 0
  %649 = vmatprep.subr.bf16.mxu0 0
  %650 = vmatpush1.bf16.msra.mxu0 0
  %651 = vmatprep.subr.bf16.mxu0 0
  %652 = vmatpush1.bf16.msra.mxu0 0
  %653 = vmatprep.subr.bf16.mxu0 0
  %654 = vmatpush1.bf16.msra.mxu0 0
  %655 = vmatprep.subr.bf16.mxu0 0
  %656 = vmatpush1.bf16.msra.mxu0 0
  %657 = vmatprep.subr.bf16.mxu0 0
  %658 = vmatpush1.bf16.msra.mxu0 0
  %659 = vmatprep.subr.bf16.mxu0 0
  %660 = vmatpush1.bf16.msra.mxu0 0
  %661 = vmatprep.subr.bf16.mxu0 0
  %662 = vmatpush1.bf16.msra.mxu0 0
  %663 = vmatprep.subr.bf16.mxu0 0
  %664 = vmatpush1.bf16.msra.mxu0 0
  %665 = vmatprep.subr.bf16.mxu0 0
  %666 = vmatpush1.bf16.msra.mxu0 0
  %667 = vmatprep.subr.bf16.mxu0 0
  %668 = vmatpush1.bf16.msra.mxu0 0
  %669 = vmatprep.subr.bf16.mxu0 0
  %670 = vmatpush1.bf16.msra.mxu0 0
  %671 = vmatprep.mubr.bf16.mxu0 0
  %672 = vmatmul.mubr.bf16.gmra.mrb[0].mxu0 %v637
  %v673 = vpop.f32.mrb[0].mxu0
  %v674 = vadd.f32 %v623, %v673
  %v675 = vpop.f32.mrb[0].mxu0
  %v676 = vpop.f32.mrb[0].mxu0
  %v677 = vadd.f32 %v623, %v676
  %v678 = vpop.f32.mrb[0].mxu0
  %679 = vdwg.mxu0
  %v680 = vmul.f32 %v674, %v134
  %v681 = vmul.f32 %v677, %v136
  %v682 = vmul.f32 %v674, %v138
  %v683 = vmul.f32 %v677, %v140
  %v684 = vmul.f32 %v674, %v150
  %v685 = vmul.f32 %v677, %v152
  %v686 = vmul.f32 %v674, %v154
  %v687 = vmul.f32 %v677, %v156
  %v688 = vpack.c.bf16 %v677, %v674
  %v689 = vpack.c.bf16 %v681, %v680
  %v690 = vpack.c.bf16 %v683, %v682
  %693 = vrot.lane.b32.xlu0 %v689, 96
  %v694 = vpop.permute.xlu0 %693
  %695 = vrot.lane.b32.xlu0 %v690, 96
  %v696 = vpop.permute.xlu0 %695
  %v698 = vsel %vm82, %v688, 0
  %v701 = vsel %vm82, %v694, 0
  %v704 = vsel %vm82, %v696, 0
  %706 = vmatprep.subr.bf16.mxu0 0
  %707 = vmatpush1.bf16.xpose.msra.mxu0 %v701
  %708 = vmatprep.subr.bf16.mxu0 0
  %709 = vmatpush1.bf16.xpose.msra.mxu0 %v704
  %710 = vmatprep.subr.bf16.mxu0 0
  %711 = vmatpush1.bf16.xpose.msra.mxu0 0
  %712 = vmatprep.subr.bf16.mxu0 0
  %713 = vmatpush1.bf16.xpose.msra.mxu0 0
  %714 = vmatprep.subr.bf16.mxu0 0
  %715 = vmatpush1.bf16.xpose.msra.mxu0 0
  %716 = vmatprep.subr.bf16.mxu0 0
  %717 = vmatpush1.bf16.xpose.msra.mxu0 0
  %718 = vmatprep.subr.bf16.mxu0 0
  %719 = vmatpush1.bf16.xpose.msra.mxu0 0
  %720 = vmatprep.subr.bf16.mxu0 0
  %721 = vmatpush1.bf16.xpose.msra.mxu0 0
  %722 = vmatprep.subr.bf16.mxu0 0
  %723 = vmatpush1.bf16.xpose.msra.mxu0 0
  %724 = vmatprep.subr.bf16.mxu0 0
  %725 = vmatpush1.bf16.xpose.msra.mxu0 0
  %726 = vmatprep.subr.bf16.mxu0 0
  %727 = vmatpush1.bf16.xpose.msra.mxu0 0
  %728 = vmatprep.subr.bf16.mxu0 0
  %729 = vmatpush1.bf16.xpose.msra.mxu0 0
  %730 = vmatprep.subr.bf16.mxu0 0
  %731 = vmatpush1.bf16.xpose.msra.mxu0 0
  %732 = vmatprep.subr.bf16.mxu0 0
  %733 = vmatpush1.bf16.xpose.msra.mxu0 0
  %734 = vmatprep.subr.bf16.mxu0 0
  %735 = vmatpush1.bf16.xpose.msra.mxu0 0
  %736 = vmatprep.subr.bf16.mxu0 0
  %737 = vmatpush1.bf16.xpose.msra.mxu0 0
  %738 = vmatprep.mubr.bf16.mxu0 0
  %739 = vmatmul.mubr.bf16.gmra.mrb[0].mxu0 %v698
  %v740 = vpop.f32.mrb[0].mxu0
  %v741 = vadd.f32 0.0, %v740
  %v742 = vpop.f32.mrb[0].mxu0
  %v743 = vpop.f32.mrb[0].mxu0
  %v744 = vadd.f32 0.0, %v743
  %v745 = vpop.f32.mrb[0].mxu0
  %746 = vdwg.mxu0
  %v747 = vmul.f32 %v741, 0.25
  %v748 = vmul.f32 %v744, 0.25
  %v749 = vadd.f32 %v747, %v127
  %v750 = vadd.f32 %v748, %v128
  %v751 = vsel %vm82, %v749, -inf
  %752 = vmax.xlane.f32.xlu0 %v751
  %v753 = vpop.xlane.xlu0 %752
  %v754 = vsel %vm82, %v750, -inf
  %755 = vmax.xlane.f32.xlu0 %v754
  %v756 = vpop.xlane.xlu0 %755
  %v757 = vsub.f32 %v749, %v753
  %v758 = vsub.f32 %v750, %v756
  %v759 = vmul.f32 %v757, 1.442695
  %v760 = vpow.pop %v759
  %v761 = vmul.f32 %v758, 1.442695
  %v762 = vpow.pop %v761
  %v763 = vsel %vm241, %v760, 0.0
  %v764 = vsel %vm241, %v762, 0.0
  %v765 = vsel %vm82, %v763, 0.0
  %766 = vadd.xlane.f32.xlu0 %v765
  %v767 = vpop.xlane.xlu0 %766
  %v768 = vsel %vm82, %v764, 0.0
  %769 = vadd.xlane.f32.xlu0 %v768
  %v770 = vpop.xlane.xlu0 %769
  %v771 = vsel %vm82, %v760, 0.0
  %772 = vadd.xlane.f32.xlu0 %v771
  %v773 = vpop.xlane.xlu0 %772
  %v774 = vsel %vm82, %v762, 0.0
  %775 = vadd.xlane.f32.xlu0 %v774
  %v776 = vpop.xlane.xlu0 %775
  %v777 = vsub.f32 %v773, %v767
  %v778 = vsub.f32 %v776, %v770
  %v779 = vpack.c.bf16 %v762, %v760
  %v780 = vpack.c.bf16 %v685, %v684
  %v781 = vpack.c.bf16 %v687, %v686
  %784 = vrot.lane.b32.xlu0 %v780, 64
  %v785 = vpop.permute.xlu0 %784
  %786 = vrot.lane.b32.xlu0 %v781, 64
  %v787 = vpop.permute.xlu0 %786
  %v791 = vsel %vm82, %v779, 0
  %793 = vmatprep.subr.bf16.mxu0 0
  %794 = vmatpush1.bf16.msra.mxu0 %v785
  %795 = vmatprep.subr.bf16.mxu0 0
  %796 = vmatpush1.bf16.msra.mxu0 %v787
  %797 = vmatprep.subr.bf16.mxu0 0
  %798 = vmatpush1.bf16.msra.mxu0 0
  %799 = vmatprep.subr.bf16.mxu0 0
  %800 = vmatpush1.bf16.msra.mxu0 0
  %801 = vmatprep.subr.bf16.mxu0 0
  %802 = vmatpush1.bf16.msra.mxu0 0
  %803 = vmatprep.subr.bf16.mxu0 0
  %804 = vmatpush1.bf16.msra.mxu0 0
  %805 = vmatprep.subr.bf16.mxu0 0
  %806 = vmatpush1.bf16.msra.mxu0 0
  %807 = vmatprep.subr.bf16.mxu0 0
  %808 = vmatpush1.bf16.msra.mxu0 0
  %809 = vmatprep.subr.bf16.mxu0 0
  %810 = vmatpush1.bf16.msra.mxu0 0
  %811 = vmatprep.subr.bf16.mxu0 0
  %812 = vmatpush1.bf16.msra.mxu0 0
  %813 = vmatprep.subr.bf16.mxu0 0
  %814 = vmatpush1.bf16.msra.mxu0 0
  %815 = vmatprep.subr.bf16.mxu0 0
  %816 = vmatpush1.bf16.msra.mxu0 0
  %817 = vmatprep.subr.bf16.mxu0 0
  %818 = vmatpush1.bf16.msra.mxu0 0
  %819 = vmatprep.subr.bf16.mxu0 0
  %820 = vmatpush1.bf16.msra.mxu0 0
  %821 = vmatprep.subr.bf16.mxu0 0
  %822 = vmatpush1.bf16.msra.mxu0 0
  %823 = vmatprep.subr.bf16.mxu0 0
  %824 = vmatpush1.bf16.msra.mxu0 0
  %825 = vmatprep.mubr.bf16.mxu0 0
  %826 = vmatmul.mubr.bf16.gmra.mrb[0].mxu0 %v791
  %v827 = vpop.f32.mrb[0].mxu0
  %v828 = vadd.f32 0.0, %v827
  %v829 = vpop.f32.mrb[0].mxu0
  %v830 = vpop.f32.mrb[0].mxu0
  %v831 = vadd.f32 0.0, %v830
  %v832 = vpop.f32.mrb[0].mxu0
  %833 = vdwg.mxu0
  %v834 = vrcp.pop %v767
  %v835 = vrcp.pop %v770
  %v836 = vrcp.pop %v777
  %v837 = vrcp.pop %v778
  %v838 = vsel %vm241, %v834, %v836
  %v839 = vsel %vm241, %v835, %v837
  %v840 = vmul.f32 %v828, %v838
  %v841 = vmul.f32 %v831, %v839
  %v842 = vpack.c.bf16 %v841, %v840
  %v843 = vld [vmem:[%s2 + $0x9] sm:$0x1]
  %v844 = vlaneseq
  %v845 = vshrl.u32 %v844, 7
  %v846 = vsub.s32 0, %v845
  %v847 = vrot.slane %v843, %v846
  %848 = vrot.lane.b32.xlu0 %v632, 32
  %v849 = vpop.permute.xlu0 %848
  %850 = vrot.lane.b32.xlu0 %v633, 32
  %v851 = vpop.permute.xlu0 %850
  %v855 = vsel %vm82, %v842, 0
  %857 = vmatprep.subr.bf16.mxu0 0
  %858 = vmatpush1.bf16.msra.mxu0 %v849
  %859 = vmatprep.subr.bf16.mxu0 0
  %860 = vmatpush1.bf16.msra.mxu0 %v851
  %861 = vmatprep.subr.bf16.mxu0 0
  %862 = vmatpush1.bf16.msra.mxu0 0
  %863 = vmatprep.subr.bf16.mxu0 0
  %864 = vmatpush1.bf16.msra.mxu0 0
  %865 = vmatprep.subr.bf16.mxu0 0
  %866 = vmatpush1.bf16.msra.mxu0 0
  %867 = vmatprep.subr.bf16.mxu0 0
  %868 = vmatpush1.bf16.msra.mxu0 0
  %869 = vmatprep.subr.bf16.mxu0 0
  %870 = vmatpush1.bf16.msra.mxu0 0
  %871 = vmatprep.subr.bf16.mxu0 0
  %872 = vmatpush1.bf16.msra.mxu0 0
  %873 = vmatprep.subr.bf16.mxu0 0
  %874 = vmatpush1.bf16.msra.mxu0 0
  %875 = vmatprep.subr.bf16.mxu0 0
  %876 = vmatpush1.bf16.msra.mxu0 0
  %877 = vmatprep.subr.bf16.mxu0 0
  %878 = vmatpush1.bf16.msra.mxu0 0
  %879 = vmatprep.subr.bf16.mxu0 0
  %880 = vmatpush1.bf16.msra.mxu0 0
  %881 = vmatprep.subr.bf16.mxu0 0
  %882 = vmatpush1.bf16.msra.mxu0 0
  %883 = vmatprep.subr.bf16.mxu0 0
  %884 = vmatpush1.bf16.msra.mxu0 0
  %885 = vmatprep.subr.bf16.mxu0 0
  %886 = vmatpush1.bf16.msra.mxu0 0
  %887 = vmatprep.subr.bf16.mxu0 0
  %888 = vmatpush1.bf16.msra.mxu0 0
  %889 = vmatprep.mubr.bf16.mxu0 0
  %890 = vmatmul.mubr.bf16.gmra.mrb[0].mxu0 %v855
  %v891 = vpop.f32.mrb[0].mxu0
  %v892 = vadd.f32 %v847, %v891
  %v893 = vpop.f32.mrb[0].mxu0
  %v894 = vpop.f32.mrb[0].mxu0
  %v895 = vadd.f32 %v847, %v894
  %v896 = vpop.f32.mrb[0].mxu0
  %897 = vdwg.mxu0
  %v898 = vadd.f32 %v611, %v892
  %v899 = vadd.f32 %v612, %v895
  %v900 = vld [vmem:[%s2 + $0xa] sm:$0x1]
  %v901 = vld [vmem:[%s2 + $0xb] sm:$0x1]
  %v902 = vsel %vm82, %v898, 0.0
  %903 = vadd.xlane.f32.xlu0 %v902
  %v904 = vpop.xlane.xlu0 %903
  %v905 = vsel %vm82, %v899, 0.0
  %906 = vadd.xlane.f32.xlu0 %v905
  %v907 = vpop.xlane.xlu0 %906
  %v908 = vmul.f32 %v904, %v387
  %v909 = vmul.f32 %v907, %v387
  %v910 = vsub.f32 %v898, %v908
  %v911 = vsub.f32 %v899, %v909
  %v912 = vmul.f32 %v910, %v910
  %v913 = vmul.f32 %v911, %v911
  %v914 = vsel %vm82, %v912, 0.0
  %915 = vadd.xlane.f32.xlu0 %v914
  %v916 = vpop.xlane.xlu0 %915
  %v917 = vsel %vm82, %v913, 0.0
  %918 = vadd.xlane.f32.xlu0 %v917
  %v919 = vpop.xlane.xlu0 %918
  %v920 = vmul.f32 %v916, %v387
  %v921 = vmul.f32 %v919, %v387
  %v922 = vadd.f32 %v920, 1e-05
  %v923 = vadd.f32 %v921, 1e-05
  %v924 = vrsqrt.pop %v922
  %v925 = vrsqrt.pop %v923
  %v926 = vmul.f32 %v910, %v924
  %v927 = vmul.f32 %v911, %v925
  %v928 = vlaneseq
  %v929 = vshrl.u32 %v928, 7
  %v930 = vsub.s32 0, %v929
  %v931 = vrot.slane %v900, %v930
  %v932 = vmul.f32 %v926, %v931
  %v933 = vmul.f32 %v927, %v931
  %v934 = vlaneseq
  %v935 = vshrl.u32 %v934, 7
  %v936 = vsub.s32 0, %v935
  %v937 = vrot.slane %v901, %v936
  %v938 = vadd.f32 %v932, %v937
  %v939 = vadd.f32 %v933, %v937
  %v940 = vld [vmem:[%s613 + $0x4] sm:$0xf]
  %v941 = vld [vmem:[%s613 + $0xc] sm:$0xf]
  %v942 = vld [vmem:[%s613 + $0x14] sm:$0xf]
  %v943 = vld [vmem:[%s613 + $0x1c] sm:$0xf]
  %v944 = vpack.c.bf16 %v939, %v938
  %v945 = vld [vmem:[%s2 + $0xc] sm:$0x1]
  %v946 = vlaneseq
  %v947 = vshrl.u32 %v946, 7
  %v948 = vsub.s32 0, %v947
  %v949 = vrot.slane %v945, %v948
  %v954 = vunpack.c.l.b16 %v940
  %v955 = vunpack.c.l.b16 %v941
  %v956 = vunpack.c.l.b16 %v942
  %v957 = vunpack.c.l.b16 %v943
  %v958 = vpack.c.b16 %v955, %v954
  %v959 = vpack.c.b16 %v957, %v956
  %v963 = vsel %vm82, %v944, 0
  %965 = vmatprep.subr.bf16.mxu0 0
  %966 = vmatpush1.bf16.msra.mxu0 %v958
  %967 = vmatprep.subr.bf16.mxu0 0
  %968 = vmatpush1.bf16.msra.mxu0 %v959
  %969 = vmatprep.subr.bf16.mxu0 0
  %970 = vmatpush1.bf16.msra.mxu0 0
  %971 = vmatprep.subr.bf16.mxu0 0
  %972 = vmatpush1.bf16.msra.mxu0 0
  %973 = vmatprep.subr.bf16.mxu0 0
  %974 = vmatpush1.bf16.msra.mxu0 0
  %975 = vmatprep.subr.bf16.mxu0 0
  %976 = vmatpush1.bf16.msra.mxu0 0
  %977 = vmatprep.subr.bf16.mxu0 0
  %978 = vmatpush1.bf16.msra.mxu0 0
  %979 = vmatprep.subr.bf16.mxu0 0
  %980 = vmatpush1.bf16.msra.mxu0 0
  %981 = vmatprep.subr.bf16.mxu0 0
  %982 = vmatpush1.bf16.msra.mxu0 0
  %983 = vmatprep.subr.bf16.mxu0 0
  %984 = vmatpush1.bf16.msra.mxu0 0
  %985 = vmatprep.subr.bf16.mxu0 0
  %986 = vmatpush1.bf16.msra.mxu0 0
  %987 = vmatprep.subr.bf16.mxu0 0
  %988 = vmatpush1.bf16.msra.mxu0 0
  %989 = vmatprep.subr.bf16.mxu0 0
  %990 = vmatpush1.bf16.msra.mxu0 0
  %991 = vmatprep.subr.bf16.mxu0 0
  %992 = vmatpush1.bf16.msra.mxu0 0
  %993 = vmatprep.subr.bf16.mxu0 0
  %994 = vmatpush1.bf16.msra.mxu0 0
  %995 = vmatprep.subr.bf16.mxu0 0
  %996 = vmatpush1.bf16.msra.mxu0 0
  %997 = vmatprep.mubr.bf16.mxu0 0
  %998 = vmatmul.mubr.bf16.gmra.mrb[0].mxu0 %v963
  %v999 = vpop.f32.mrb[0].mxu0
  %v1000 = vadd.f32 %v949, %v999
  %v1001 = vpop.f32.mrb[0].mxu0
  %v1002 = vpop.f32.mrb[0].mxu0
  %v1003 = vadd.f32 %v949, %v1002
  %v1004 = vpop.f32.mrb[0].mxu0
  %1005 = vdwg.mxu0
  %v1006 = vmax.f32 %v1000, 0.0
  %v1007 = vmax.f32 %v1003, 0.0
  %s1008 = scalar_lea.vmem %s4, 32
  %v1009 = vld [vmem:[%s1008] sm:$0xf]
  %v1010 = vld [vmem:[%s1008 + $0x4] sm:$0xf]
  %v1011 = vld [vmem:[%s1008 + $0x8] sm:$0xf]
  %v1012 = vld [vmem:[%s1008 + $0xc] sm:$0xf]
  %v1013 = vld [vmem:[%s1008 + $0x10] sm:$0xf]
  %v1014 = vld [vmem:[%s1008 + $0x14] sm:$0xf]
  %v1015 = vld [vmem:[%s1008 + $0x18] sm:$0xf]
  %v1016 = vld [vmem:[%s1008 + $0x1c] sm:$0xf]
  %v1017 = vpack.c.bf16 %v1007, %v1006
  %v1018 = vld [vmem:[%s2 + $0xd] sm:$0x1]
  %v1019 = vlaneseq
  %v1020 = vshrl.u32 %v1019, 7
  %v1021 = vsub.s32 0, %v1020
  %v1022 = vrot.slane %v1018, %v1021
  %v1031 = vunpack.c.l.b16 %v1009
  %v1032 = vunpack.c.l.b16 %v1010
  %v1033 = vunpack.c.l.b16 %v1011
  %v1034 = vunpack.c.l.b16 %v1012
  %v1035 = vunpack.c.l.b16 %v1013
  %v1036 = vunpack.c.l.b16 %v1014
  %v1037 = vunpack.c.l.b16 %v1015
  %v1038 = vunpack.c.l.b16 %v1016
  %v1039 = vpack.c.b16 %v1032, %v1031
  %v1040 = vpack.c.b16 %v1034, %v1033
  %v1041 = vpack.c.b16 %v1036, %v1035
  %v1042 = vpack.c.b16 %v1038, %v1037
  %v1048 = vsel %vm526, %v1017, 0
  %1050 = vmatprep.subr.bf16.mxu0 0
  %1051 = vmatpush1.bf16.msra.mxu0 %v1039
  %1052 = vmatprep.subr.bf16.mxu0 0
  %1053 = vmatpush1.bf16.msra.mxu0 %v1040
  %1054 = vmatprep.subr.bf16.mxu0 0
  %1055 = vmatpush1.bf16.msra.mxu0 %v1041
  %1056 = vmatprep.subr.bf16.mxu0 0
  %1057 = vmatpush1.bf16.msra.mxu0 %v1042
  %1058 = vmatprep.subr.bf16.mxu0 0
  %1059 = vmatpush1.bf16.msra.mxu0 0
  %1060 = vmatprep.subr.bf16.mxu0 0
  %1061 = vmatpush1.bf16.msra.mxu0 0
  %1062 = vmatprep.subr.bf16.mxu0 0
  %1063 = vmatpush1.bf16.msra.mxu0 0
  %1064 = vmatprep.subr.bf16.mxu0 0
  %1065 = vmatpush1.bf16.msra.mxu0 0
  %1066 = vmatprep.subr.bf16.mxu0 0
  %1067 = vmatpush1.bf16.msra.mxu0 0
  %1068 = vmatprep.subr.bf16.mxu0 0
  %1069 = vmatpush1.bf16.msra.mxu0 0
  %1070 = vmatprep.subr.bf16.mxu0 0
  %1071 = vmatpush1.bf16.msra.mxu0 0
  %1072 = vmatprep.subr.bf16.mxu0 0
  %1073 = vmatpush1.bf16.msra.mxu0 0
  %1074 = vmatprep.subr.bf16.mxu0 0
  %1075 = vmatpush1.bf16.msra.mxu0 0
  %1076 = vmatprep.subr.bf16.mxu0 0
  %1077 = vmatpush1.bf16.msra.mxu0 0
  %1078 = vmatprep.subr.bf16.mxu0 0
  %1079 = vmatpush1.bf16.msra.mxu0 0
  %1080 = vmatprep.subr.bf16.mxu0 0
  %1081 = vmatpush1.bf16.msra.mxu0 0
  %1082 = vmatprep.mubr.bf16.mxu0 0
  %1083 = vmatmul.mubr.bf16.gmra.mrb[0].mxu0 %v1048
  %v1084 = vpop.f32.mrb[0].mxu0
  %v1085 = vadd.f32 %v1022, %v1084
  %v1086 = vpop.f32.mrb[0].mxu0
  %v1087 = vpop.f32.mrb[0].mxu0
  %v1088 = vadd.f32 %v1022, %v1087
  %v1089 = vpop.f32.mrb[0].mxu0
  %1090 = vdwg.mxu0
  %v1091 = vadd.f32 %v938, %v1085
  %v1092 = vadd.f32 %v939, %v1088
  %v1093 = vld [vmem:[%s2 + $0xe] sm:$0x1]
  %v1094 = vld [vmem:[%s2 + $0xf] sm:$0x1]
  %v1095 = vsel %vm82, %v1091, 0.0
  %1096 = vadd.xlane.f32.xlu0 %v1095
  %v1097 = vpop.xlane.xlu0 %1096
  %v1098 = vsel %vm82, %v1092, 0.0
  %1099 = vadd.xlane.f32.xlu0 %v1098
  %v1100 = vpop.xlane.xlu0 %1099
  %v1101 = vmul.f32 %v1097, %v387
  %v1102 = vmul.f32 %v1100, %v387
  %v1103 = vsub.f32 %v1091, %v1101
  %v1104 = vsub.f32 %v1092, %v1102
  %v1105 = vmul.f32 %v1103, %v1103
  %v1106 = vmul.f32 %v1104, %v1104
  %v1107 = vsel %vm82, %v1105, 0.0
  %1108 = vadd.xlane.f32.xlu0 %v1107
  %v1109 = vpop.xlane.xlu0 %1108
  %v1110 = vsel %vm82, %v1106, 0.0
  %1111 = vadd.xlane.f32.xlu0 %v1110
  %v1112 = vpop.xlane.xlu0 %1111
  %v1113 = vmul.f32 %v1109, %v387
  %v1114 = vmul.f32 %v1112, %v387
  %v1115 = vadd.f32 %v1113, 1e-05
  %v1116 = vadd.f32 %v1114, 1e-05
  %v1117 = vrsqrt.pop %v1115
  %v1118 = vrsqrt.pop %v1116
  %v1119 = vmul.f32 %v1103, %v1117
  %v1120 = vmul.f32 %v1104, %v1118
  %v1121 = vlaneseq
  %v1122 = vshrl.u32 %v1121, 7
  %v1123 = vsub.s32 0, %v1122
  %v1124 = vrot.slane %v1093, %v1123
  %v1125 = vmul.f32 %v1119, %v1124
  %v1126 = vmul.f32 %v1120, %v1124
  %v1127 = vlaneseq
  %v1128 = vshrl.u32 %v1127, 7
  %v1129 = vsub.s32 0, %v1128
  %v1130 = vrot.slane %v1094, %v1129
  %v1131 = vadd.f32 %v1125, %v1130
  %v1132 = vadd.f32 %v1126, %v1130
  %v1133 = vpack.c.bf16 %v1132, %v1131
  %v1134 = vld [vmem:[%s5] sm:$0xf]
  %v1135 = vld [vmem:[%s5 + $0xc] sm:$0xf]
  %v1136 = vld [vmem:[%s5 + $0x18] sm:$0xf]
  %v1137 = vld [vmem:[%s5 + $0x24] sm:$0xf]
  %v1138 = vld [vmem:[%s2 + $0x10] sm:$0x1]
  %v1139 = vlaneseq
  %v1140 = vshrl.u32 %v1139, 7
  %v1141 = vsub.s32 0, %v1140
  %v1142 = vrot.slane %v1138, %v1141
  %1144 = vrot.lane.b32.xlu0 %v64, 96
  %v1145 = vpop.permute.xlu0 %1144
  %v1150 = vunpack.c.l.b16 %v1134
  %v1151 = vunpack.c.l.b16 %v1135
  %v1152 = vunpack.c.l.b16 %v1136
  %v1153 = vunpack.c.l.b16 %v1137
  %v1154 = vpack.c.b16 %v1151, %v1150
  %v1155 = vpack.c.b16 %v1153, %v1152
  %v1159 = vsel %vm82, %v1145, 0
  %1161 = vmatprep.subr.bf16.mxu0 0
  %1162 = vmatpush1.bf16.msra.mxu0 %v1154
  %1163 = vmatprep.subr.bf16.mxu0 0
  %1164 = vmatpush1.bf16.msra.mxu0 %v1155
  %1165 = vmatprep.subr.bf16.mxu0 0
  %1166 = vmatpush1.bf16.msra.mxu0 0
  %1167 = vmatprep.subr.bf16.mxu0 0
  %1168 = vmatpush1.bf16.msra.mxu0 0
  %1169 = vmatprep.subr.bf16.mxu0 0
  %1170 = vmatpush1.bf16.msra.mxu0 0
  %1171 = vmatprep.subr.bf16.mxu0 0
  %1172 = vmatpush1.bf16.msra.mxu0 0
  %1173 = vmatprep.subr.bf16.mxu0 0
  %1174 = vmatpush1.bf16.msra.mxu0 0
  %1175 = vmatprep.subr.bf16.mxu0 0
  %1176 = vmatpush1.bf16.msra.mxu0 0
  %1177 = vmatprep.subr.bf16.mxu0 0
  %1178 = vmatpush1.bf16.msra.mxu0 0
  %1179 = vmatprep.subr.bf16.mxu0 0
  %1180 = vmatpush1.bf16.msra.mxu0 0
  %1181 = vmatprep.subr.bf16.mxu0 0
  %1182 = vmatpush1.bf16.msra.mxu0 0
  %1183 = vmatprep.subr.bf16.mxu0 0
  %1184 = vmatpush1.bf16.msra.mxu0 0
  %1185 = vmatprep.subr.bf16.mxu0 0
  %1186 = vmatpush1.bf16.msra.mxu0 0
  %1187 = vmatprep.subr.bf16.mxu0 0
  %1188 = vmatpush1.bf16.msra.mxu0 0
  %1189 = vmatprep.subr.bf16.mxu0 0
  %1190 = vmatpush1.bf16.msra.mxu0 0
  %1191 = vmatprep.subr.bf16.mxu0 0
  %1192 = vmatpush1.bf16.msra.mxu0 0
  %1193 = vmatprep.mubr.bf16.mxu0 0
  %1194 = vmatmul.mubr.bf16.gmra.mrb[0].mxu0 %v1159
  %v1195 = vpop.f32.mrb[0].mxu0
  %v1196 = vadd.f32 %v1142, %v1195
  %v1197 = vpop.f32.mrb[0].mxu0
  %v1198 = vpop.f32.mrb[0].mxu0
  %v1199 = vadd.f32 %v1142, %v1198
  %v1200 = vpop.f32.mrb[0].mxu0
  %1201 = vdwg.mxu0
  %s1202 = scalar_lea.vmem %s1, 16
  %v1203 = vld [vmem:[%s1202] sm:$0xff]
  %v1204 = vld [vmem:[%s1202 + $0x8] sm:$0xff]
  %v1205 = vmul.f32 %v1196, %v134
  %v1206 = vmul.f32 %v1199, %v136
  %v1207 = vmul.f32 %v1196, %v138
  %v1208 = vmul.f32 %v1199, %v140
  %v1209 = vmul.f32 %v1196, %v150
  %v1210 = vmul.f32 %v1199, %v152
  %v1211 = vmul.f32 %v1196, %v154
  %v1212 = vmul.f32 %v1199, %v156
  %v1213 = vpack.c.bf16 %v1199, %v1196
  %v1214 = vpack.c.bf16 %v1206, %v1205
  %v1215 = vpack.c.bf16 %v1208, %v1207
  %1218 = vrot.lane.b32.xlu0 %v1214, 96
  %v1219 = vpop.permute.xlu0 %1218
  %1220 = vrot.lane.b32.xlu0 %v1215, 96
  %v1221 = vpop.permute.xlu0 %1220
  %v1223 = vsel %vm82, %v1213, 0
  %v1226 = vsel %vm82, %v1219, 0
  %v1229 = vsel %vm82, %v1221, 0
  %1231 = vmatprep.subr.bf16.mxu0 0
  %1232 = vmatpush1.bf16.xpose.msra.mxu0 %v1226
  %1233 = vmatprep.subr.bf16.mxu0 0
  %1234 = vmatpush1.bf16.xpose.msra.mxu0 %v1229
  %1235 = vmatprep.subr.bf16.mxu0 0
  %1236 = vmatpush1.bf16.xpose.msra.mxu0 0
  %1237 = vmatprep.subr.bf16.mxu0 0
  %1238 = vmatpush1.bf16.xpose.msra.mxu0 0
  %1239 = vmatprep.subr.bf16.mxu0 0
  %1240 = vmatpush1.bf16.xpose.msra.mxu0 0
  %1241 = vmatprep.subr.bf16.mxu0 0
  %1242 = vmatpush1.bf16.xpose.msra.mxu0 0
  %1243 = vmatprep.subr.bf16.mxu0 0
  %1244 = vmatpush1.bf16.xpose.msra.mxu0 0
  %1245 = vmatprep.subr.bf16.mxu0 0
  %1246 = vmatpush1.bf16.xpose.msra.mxu0 0
  %1247 = vmatprep.subr.bf16.mxu0 0
  %1248 = vmatpush1.bf16.xpose.msra.mxu0 0
  %1249 = vmatprep.subr.bf16.mxu0 0
  %1250 = vmatpush1.bf16.xpose.msra.mxu0 0
  %1251 = vmatprep.subr.bf16.mxu0 0
  %1252 = vmatpush1.bf16.xpose.msra.mxu0 0
  %1253 = vmatprep.subr.bf16.mxu0 0
  %1254 = vmatpush1.bf16.xpose.msra.mxu0 0
  %1255 = vmatprep.subr.bf16.mxu0 0
  %1256 = vmatpush1.bf16.xpose.msra.mxu0 0
  %1257 = vmatprep.subr.bf16.mxu0 0
  %1258 = vmatpush1.bf16.xpose.msra.mxu0 0
  %1259 = vmatprep.subr.bf16.mxu0 0
  %1260 = vmatpush1.bf16.xpose.msra.mxu0 0
  %1261 = vmatprep.subr.bf16.mxu0 0
  %1262 = vmatpush1.bf16.xpose.msra.mxu0 0
  %1263 = vmatprep.mubr.bf16.mxu0 0
  %1264 = vmatmul.mubr.bf16.gmra.mrb[0].mxu0 %v1223
  %v1265 = vpop.f32.mrb[0].mxu0
  %v1266 = vadd.f32 0.0, %v1265
  %v1267 = vpop.f32.mrb[0].mxu0
  %v1268 = vpop.f32.mrb[0].mxu0
  %v1269 = vadd.f32 0.0, %v1268
  %v1270 = vpop.f32.mrb[0].mxu0
  %1271 = vdwg.mxu0
  %v1272 = vmul.f32 %v1266, 0.25
  %v1273 = vmul.f32 %v1269, 0.25
  %v1274 = vadd.f32 %v1272, %v1203
  %v1275 = vadd.f32 %v1273, %v1204
  %v1276 = vsel %vm82, %v1274, -inf
  %1277 = vmax.xlane.f32.xlu0 %v1276
  %v1278 = vpop.xlane.xlu0 %1277
  %v1279 = vsel %vm82, %v1275, -inf
  %1280 = vmax.xlane.f32.xlu0 %v1279
  %v1281 = vpop.xlane.xlu0 %1280
  %v1282 = vsub.f32 %v1274, %v1278
  %v1283 = vsub.f32 %v1275, %v1281
  %v1284 = vmul.f32 %v1282, 1.442695
  %v1285 = vpow.pop %v1284
  %v1286 = vmul.f32 %v1283, 1.442695
  %v1287 = vpow.pop %v1286
  %v1288 = vsel %vm241, %v1285, 0.0
  %v1289 = vsel %vm241, %v1287, 0.0
  %v1290 = vsel %vm82, %v1288, 0.0
  %1291 = vadd.xlane.f32.xlu0 %v1290
  %v1292 = vpop.xlane.xlu0 %1291
  %v1293 = vsel %vm82, %v1289, 0.0
  %1294 = vadd.xlane.f32.xlu0 %v1293
  %v1295 = vpop.xlane.xlu0 %1294
  %v1296 = vsel %vm82, %v1285, 0.0
  %1297 = vadd.xlane.f32.xlu0 %v1296
  %v1298 = vpop.xlane.xlu0 %1297
  %v1299 = vsel %vm82, %v1287, 0.0
  %1300 = vadd.xlane.f32.xlu0 %v1299
  %v1301 = vpop.xlane.xlu0 %1300
  %v1302 = vsub.f32 %v1298, %v1292
  %v1303 = vsub.f32 %v1301, %v1295
  %v1304 = vpack.c.bf16 %v1287, %v1285
  %v1305 = vpack.c.bf16 %v1210, %v1209
  %v1306 = vpack.c.bf16 %v1212, %v1211
  %1309 = vrot.lane.b32.xlu0 %v1305, 64
  %v1310 = vpop.permute.xlu0 %1309
  %1311 = vrot.lane.b32.xlu0 %v1306, 64
  %v1312 = vpop.permute.xlu0 %1311
  %v1316 = vsel %vm82, %v1304, 0
  %1318 = vmatprep.subr.bf16.mxu0 0
  %1319 = vmatpush1.bf16.msra.mxu0 %v1310
  %1320 = vmatprep.subr.bf16.mxu0 0
  %1321 = vmatpush1.bf16.msra.mxu0 %v1312
  %1322 = vmatprep.subr.bf16.mxu0 0
  %1323 = vmatpush1.bf16.msra.mxu0 0
  %1324 = vmatprep.subr.bf16.mxu0 0
  %1325 = vmatpush1.bf16.msra.mxu0 0
  %1326 = vmatprep.subr.bf16.mxu0 0
  %1327 = vmatpush1.bf16.msra.mxu0 0
  %1328 = vmatprep.subr.bf16.mxu0 0
  %1329 = vmatpush1.bf16.msra.mxu0 0
  %1330 = vmatprep.subr.bf16.mxu0 0
  %1331 = vmatpush1.bf16.msra.mxu0 0
  %1332 = vmatprep.subr.bf16.mxu0 0
  %1333 = vmatpush1.bf16.msra.mxu0 0
  %1334 = vmatprep.subr.bf16.mxu0 0
  %1335 = vmatpush1.bf16.msra.mxu0 0
  %1336 = vmatprep.subr.bf16.mxu0 0
  %1337 = vmatpush1.bf16.msra.mxu0 0
  %1338 = vmatprep.subr.bf16.mxu0 0
  %1339 = vmatpush1.bf16.msra.mxu0 0
  %1340 = vmatprep.subr.bf16.mxu0 0
  %1341 = vmatpush1.bf16.msra.mxu0 0
  %1342 = vmatprep.subr.bf16.mxu0 0
  %1343 = vmatpush1.bf16.msra.mxu0 0
  %1344 = vmatprep.subr.bf16.mxu0 0
  %1345 = vmatpush1.bf16.msra.mxu0 0
  %1346 = vmatprep.subr.bf16.mxu0 0
  %1347 = vmatpush1.bf16.msra.mxu0 0
  %1348 = vmatprep.subr.bf16.mxu0 0
  %1349 = vmatpush1.bf16.msra.mxu0 0
  %1350 = vmatprep.mubr.bf16.mxu0 0
  %1351 = vmatmul.mubr.bf16.gmra.mrb[0].mxu0 %v1316
  %v1352 = vpop.f32.mrb[0].mxu0
  %v1353 = vadd.f32 0.0, %v1352
  %v1354 = vpop.f32.mrb[0].mxu0
  %v1355 = vpop.f32.mrb[0].mxu0
  %v1356 = vadd.f32 0.0, %v1355
  %v1357 = vpop.f32.mrb[0].mxu0
  %1358 = vdwg.mxu0
  %v1359 = vrcp.pop %v1292
  %v1360 = vrcp.pop %v1295
  %v1361 = vrcp.pop %v1302
  %v1362 = vrcp.pop %v1303
  %v1363 = vsel %vm241, %v1359, %v1361
  %v1364 = vsel %vm241, %v1360, %v1362
  %v1365 = vmul.f32 %v1353, %v1363
  %v1366 = vmul.f32 %v1356, %v1364
  %v1367 = vpack.c.bf16 %v1366, %v1365
  %v1368 = vld [vmem:[%s2 + $0x11] sm:$0x1]
  %v1369 = vlaneseq
  %v1370 = vshrl.u32 %v1369, 7
  %v1371 = vsub.s32 0, %v1370
  %v1372 = vrot.slane %v1368, %v1371
  %1373 = vrot.lane.b32.xlu0 %v1154, 32
  %v1374 = vpop.permute.xlu0 %1373
  %1375 = vrot.lane.b32.xlu0 %v1155, 32
  %v1376 = vpop.permute.xlu0 %1375
  %v1380 = vsel %vm82, %v1367, 0
  %1382 = vmatprep.subr.bf16.mxu0 0
  %1383 = vmatpush1.bf16.msra.mxu0 %v1374
  %1384 = vmatprep.subr.bf16.mxu0 0
  %1385 = vmatpush1.bf16.msra.mxu0 %v1376
  %1386 = vmatprep.subr.bf16.mxu0 0
  %1387 = vmatpush1.bf16.msra.mxu0 0
  %1388 = vmatprep.subr.bf16.mxu0 0
  %1389 = vmatpush1.bf16.msra.mxu0 0
  %1390 = vmatprep.subr.bf16.mxu0 0
  %1391 = vmatpush1.bf16.msra.mxu0 0
  %1392 = vmatprep.subr.bf16.mxu0 0
  %1393 = vmatpush1.bf16.msra.mxu0 0
  %1394 = vmatprep.subr.bf16.mxu0 0
  %1395 = vmatpush1.bf16.msra.mxu0 0
  %1396 = vmatprep.subr.bf16.mxu0 0
  %1397 = vmatpush1.bf16.msra.mxu0 0
  %1398 = vmatprep.subr.bf16.mxu0 0
  %1399 = vmatpush1.bf16.msra.mxu0 0
  %1400 = vmatprep.subr.bf16.mxu0 0
  %1401 = vmatpush1.bf16.msra.mxu0 0
  %1402 = vmatprep.subr.bf16.mxu0 0
  %1403 = vmatpush1.bf16.msra.mxu0 0
  %1404 = vmatprep.subr.bf16.mxu0 0
  %1405 = vmatpush1.bf16.msra.mxu0 0
  %1406 = vmatprep.subr.bf16.mxu0 0
  %1407 = vmatpush1.bf16.msra.mxu0 0
  %1408 = vmatprep.subr.bf16.mxu0 0
  %1409 = vmatpush1.bf16.msra.mxu0 0
  %1410 = vmatprep.subr.bf16.mxu0 0
  %1411 = vmatpush1.bf16.msra.mxu0 0
  %1412 = vmatprep.subr.bf16.mxu0 0
  %1413 = vmatpush1.bf16.msra.mxu0 0
  %1414 = vmatprep.mubr.bf16.mxu0 0
  %1415 = vmatmul.mubr.bf16.gmra.mrb[0].mxu0 %v1380
  %v1416 = vpop.f32.mrb[0].mxu0
  %v1417 = vadd.f32 %v1372, %v1416
  %v1418 = vpop.f32.mrb[0].mxu0
  %v1419 = vpop.f32.mrb[0].mxu0
  %v1420 = vadd.f32 %v1372, %v1419
  %v1421 = vpop.f32.mrb[0].mxu0
  %1422 = vdwg.mxu0
  %1425 = vrot.lane.b32.xlu0 %v1417, 32
  %v1426 = vpop.permute.xlu0 %1425
  %1427 = vrot.lane.b32.xlu0 %v1420, 32
  %v1428 = vpop.permute.xlu0 %1427
  %v1431 = vadd.f32 %v58, %v1426
  %v1432 = vadd.f32 %v59, %v1428
  %v1433 = vld [vmem:[%s2 + $0x12] sm:$0x1]
  %v1434 = vld [vmem:[%s2 + $0x13] sm:$0x1]
  %1437 = vrot.lane.b32.xlu0 %v1431, 96
  %v1438 = vpop.permute.xlu0 %1437
  %1439 = vrot.lane.b32.xlu0 %v1432, 96
  %v1440 = vpop.permute.xlu0 %1439
  %v1443 = vsel %vm82, %v1438, 0.0
  %1444 = vadd.xlane.f32.xlu0 %v1443
  %v1445 = vpop.xlane.xlu0 %1444
  %v1446 = vsel %vm82, %v1440, 0.0
  %1447 = vadd.xlane.f32.xlu0 %v1446
  %v1448 = vpop.xlane.xlu0 %1447
  %v1449 = vmul.f32 %v1445, %v387
  %v1450 = vmul.f32 %v1448, %v387
  %v1451 = vsub.f32 %v1431, %v1449
  %v1452 = vsub.f32 %v1432, %v1450
  %v1453 = vmul.f32 %v1451, %v1451
  %v1454 = vmul.f32 %v1452, %v1452
  %1457 = vrot.lane.b32.xlu0 %v1453, 96
  %v1458 = vpop.permute.xlu0 %1457
  %1459 = vrot.lane.b32.xlu0 %v1454, 96
  %v1460 = vpop.permute.xlu0 %1459
  %v1463 = vsel %vm82, %v1458, 0.0
  %1464 = vadd.xlane.f32.xlu0 %v1463
  %v1465 = vpop.xlane.xlu0 %1464
  %v1466 = vsel %vm82, %v1460, 0.0
  %1467 = vadd.xlane.f32.xlu0 %v1466
  %v1468 = vpop.xlane.xlu0 %1467
  %v1469 = vmul.f32 %v1465, %v387
  %v1470 = vmul.f32 %v1468, %v387
  %v1471 = vadd.f32 %v1469, 1e-05
  %v1472 = vadd.f32 %v1470, 1e-05
  %v1473 = vrsqrt.pop %v1471
  %v1474 = vrsqrt.pop %v1472
  %v1475 = vmul.f32 %v1451, %v1473
  %v1476 = vmul.f32 %v1452, %v1474
  %v1477 = vlaneseq
  %v1478 = vshrl.u32 %v1477, 7
  %v1479 = vsub.s32 0, %v1478
  %v1480 = vrot.slane %v1433, %v1479
  %1482 = vrot.lane.b32.xlu0 %v1480, 32
  %v1483 = vpop.permute.xlu0 %1482
  %v1485 = vmul.f32 %v1475, %v1483
  %v1486 = vmul.f32 %v1476, %v1483
  %v1487 = vlaneseq
  %v1488 = vshrl.u32 %v1487, 7
  %v1489 = vsub.s32 0, %v1488
  %v1490 = vrot.slane %v1434, %v1489
  %1492 = vrot.lane.b32.xlu0 %v1490, 32
  %v1493 = vpop.permute.xlu0 %1492
  %v1495 = vadd.f32 %v1485, %v1493
  %v1496 = vadd.f32 %v1486, %v1493
  %v1497 = vld [vmem:[%s5 + $0x4] sm:$0xf]
  %v1498 = vld [vmem:[%s5 + $0x10] sm:$0xf]
  %v1499 = vld [vmem:[%s5 + $0x1c] sm:$0xf]
  %v1500 = vld [vmem:[%s5 + $0x28] sm:$0xf]
  %v1501 = vpack.c.bf16 %v1496, %v1495
  %v1502 = vld [vmem:[%s2 + $0x14] sm:$0x1]
  %v1503 = vlaneseq
  %v1504 = vshrl.u32 %v1503, 7
  %v1505 = vsub.s32 0, %v1504
  %v1506 = vrot.slane %v1502, %v1505
  %1508 = vrot.lane.b32.xlu0 %v1501, 96
  %v1509 = vpop.permute.xlu0 %1508
  %v1514 = vunpack.c.l.b16 %v1497
  %v1515 = vunpack.c.l.b16 %v1498
  %v1516 = vunpack.c.l.b16 %v1499
  %v1517 = vunpack.c.l.b16 %v1500
  %v1518 = vpack.c.b16 %v1515, %v1514
  %v1519 = vpack.c.b16 %v1517, %v1516
  %v1523 = vsel %vm82, %v1509, 0
  %1525 = vmatprep.subr.bf16.mxu0 0
  %1526 = vmatpush1.bf16.msra.mxu0 %v1518
  %1527 = vmatprep.subr.bf16.mxu0 0
  %1528 = vmatpush1.bf16.msra.mxu0 %v1519
  %1529 = vmatprep.subr.bf16.mxu0 0
  %1530 = vmatpush1.bf16.msra.mxu0 0
  %1531 = vmatprep.subr.bf16.mxu0 0
  %1532 = vmatpush1.bf16.msra.mxu0 0
  %1533 = vmatprep.subr.bf16.mxu0 0
  %1534 = vmatpush1.bf16.msra.mxu0 0
  %1535 = vmatprep.subr.bf16.mxu0 0
  %1536 = vmatpush1.bf16.msra.mxu0 0
  %1537 = vmatprep.subr.bf16.mxu0 0
  %1538 = vmatpush1.bf16.msra.mxu0 0
  %1539 = vmatprep.subr.bf16.mxu0 0
  %1540 = vmatpush1.bf16.msra.mxu0 0
  %1541 = vmatprep.subr.bf16.mxu0 0
  %1542 = vmatpush1.bf16.msra.mxu0 0
  %1543 = vmatprep.subr.bf16.mxu0 0
  %1544 = vmatpush1.bf16.msra.mxu0 0
  %1545 = vmatprep.subr.bf16.mxu0 0
  %1546 = vmatpush1.bf16.msra.mxu0 0
  %1547 = vmatprep.subr.bf16.mxu0 0
  %1548 = vmatpush1.bf16.msra.mxu0 0
  %1549 = vmatprep.subr.bf16.mxu0 0
  %1550 = vmatpush1.bf16.msra.mxu0 0
  %1551 = vmatprep.subr.bf16.mxu0 0
  %1552 = vmatpush1.bf16.msra.mxu0 0
  %1553 = vmatprep.subr.bf16.mxu0 0
  %1554 = vmatpush1.bf16.msra.mxu0 0
  %1555 = vmatprep.subr.bf16.mxu0 0
  %1556 = vmatpush1.bf16.msra.mxu0 0
  %1557 = vmatprep.mubr.bf16.mxu0 0
  %1558 = vmatmul.mubr.bf16.gmra.mrb[0].mxu0 %v1523
  %v1559 = vpop.f32.mrb[0].mxu0
  %v1560 = vadd.f32 %v1506, %v1559
  %v1561 = vpop.f32.mrb[0].mxu0
  %v1562 = vpop.f32.mrb[0].mxu0
  %v1563 = vadd.f32 %v1506, %v1562
  %v1564 = vpop.f32.mrb[0].mxu0
  %1565 = vdwg.mxu0
  %v1566 = vld [vmem:[%s2 + $0x15] sm:$0x1]
  %v1567 = vlaneseq
  %v1568 = vshrl.u32 %v1567, 7
  %v1569 = vsub.s32 0, %v1568
  %v1570 = vrot.slane %v1566, %v1569
  %1571 = vrot.lane.b32.xlu0 %v1518, 96
  %v1572 = vpop.permute.xlu0 %1571
  %1573 = vrot.lane.b32.xlu0 %v1519, 96
  %v1574 = vpop.permute.xlu0 %1573
  %v1578 = vsel %vm82, %v1133, 0
  %1580 = vmatprep.subr.bf16.mxu0 0
  %1581 = vmatpush1.bf16.msra.mxu0 %v1572
  %1582 = vmatprep.subr.bf16.mxu0 0
  %1583 = vmatpush1.bf16.msra.mxu0 %v1574
  %1584 = vmatprep.subr.bf16.mxu0 0
  %1585 = vmatpush1.bf16.msra.mxu0 0
  %1586 = vmatprep.subr.bf16.mxu0 0
  %1587 = vmatpush1.bf16.msra.mxu0 0
  %1588 = vmatprep.subr.bf16.mxu0 0
  %1589 = vmatpush1.bf16.msra.mxu0 0
  %1590 = vmatprep.subr.bf16.mxu0 0
  %1591 = vmatpush1.bf16.msra.mxu0 0
  %1592 = vmatprep.subr.bf16.mxu0 0
  %1593 = vmatpush1.bf16.msra.mxu0 0
  %1594 = vmatprep.subr.bf16.mxu0 0
  %1595 = vmatpush1.bf16.msra.mxu0 0
  %1596 = vmatprep.subr.bf16.mxu0 0
  %1597 = vmatpush1.bf16.msra.mxu0 0
  %1598 = vmatprep.subr.bf16.mxu0 0
  %1599 = vmatpush1.bf16.msra.mxu0 0
  %1600 = vmatprep.subr.bf16.mxu0 0
  %1601 = vmatpush1.bf16.msra.mxu0 0
  %1602 = vmatprep.subr.bf16.mxu0 0
  %1603 = vmatpush1.bf16.msra.mxu0 0
  %1604 = vmatprep.subr.bf16.mxu0 0
  %1605 = vmatpush1.bf16.msra.mxu0 0
  %1606 = vmatprep.subr.bf16.mxu0 0
  %1607 = vmatpush1.bf16.msra.mxu0 0
  %1608 = vmatprep.subr.bf16.mxu0 0
  %1609 = vmatpush1.bf16.msra.mxu0 0
  %1610 = vmatprep.subr.bf16.mxu0 0
  %1611 = vmatpush1.bf16.msra.mxu0 0
  %1612 = vmatprep.mubr.bf16.mxu0 0
  %1613 = vmatmul.mubr.bf16.gmra.mrb[0].mxu0 %v1578
  %v1614 = vpop.f32.mrb[0].mxu0
  %v1615 = vadd.f32 %v1570, %v1614
  %v1616 = vpop.f32.mrb[0].mxu0
  %v1617 = vpop.f32.mrb[0].mxu0
  %v1618 = vadd.f32 %v1570, %v1617
  %v1619 = vpop.f32.mrb[0].mxu0
  %1620 = vdwg.mxu0
  %s1621 = scalar_lea.vmem %s1, 32
  %v1622 = vld [vmem:[%s1621] sm:$0xff]
  %v1623 = vld [vmem:[%s1621 + $0x8] sm:$0xff]
  %v1624 = vmul.f32 %v1615, %v54
  %v1625 = vmul.f32 %v1618, %v55
  %v1626 = vmul.f32 %v1615, %v56
  %v1627 = vmul.f32 %v1618, %v57
  %v1628 = vmul.f32 %v1615, %v134
  %v1629 = vmul.f32 %v1618, %v136
  %v1630 = vmul.f32 %v1615, %v138
  %v1631 = vmul.f32 %v1618, %v140
  %v1632 = vpack.c.bf16 %v1563, %v1560
  %v1633 = vpack.c.bf16 %v1625, %v1624
  %v1634 = vpack.c.bf16 %v1627, %v1626
  %v1636 = vsel %vm82, %v1632, 0
  %v1639 = vsel %vm82, %v1633, 0
  %v1642 = vsel %vm82, %v1634, 0
  %1644 = vmatprep.subr.bf16.mxu0 0
  %1645 = vmatpush1.bf16.xpose.msra.mxu0 %v1639
  %1646 = vmatprep.subr.bf16.mxu0 0
  %1647 = vmatpush1.bf16.xpose.msra.mxu0 %v1642
  %1648 = vmatprep.subr.bf16.mxu0 0
  %1649 = vmatpush1.bf16.xpose.msra.mxu0 0
  %1650 = vmatprep.subr.bf16.mxu0 0
  %1651 = vmatpush1.bf16.xpose.msra.mxu0 0
  %1652 = vmatprep.subr.bf16.mxu0 0
  %1653 = vmatpush1.bf16.xpose.msra.mxu0 0
  %1654 = vmatprep.subr.bf16.mxu0 0
  %1655 = vmatpush1.bf16.xpose.msra.mxu0 0
  %1656 = vmatprep.subr.bf16.mxu0 0
  %1657 = vmatpush1.bf16.xpose.msra.mxu0 0
  %1658 = vmatprep.subr.bf16.mxu0 0
  %1659 = vmatpush1.bf16.xpose.msra.mxu0 0
  %1660 = vmatprep.subr.bf16.mxu0 0
  %1661 = vmatpush1.bf16.xpose.msra.mxu0 0
  %1662 = vmatprep.subr.bf16.mxu0 0
  %1663 = vmatpush1.bf16.xpose.msra.mxu0 0
  %1664 = vmatprep.subr.bf16.mxu0 0
  %1665 = vmatpush1.bf16.xpose.msra.mxu0 0
  %1666 = vmatprep.subr.bf16.mxu0 0
  %1667 = vmatpush1.bf16.xpose.msra.mxu0 0
  %1668 = vmatprep.subr.bf16.mxu0 0
  %1669 = vmatpush1.bf16.xpose.msra.mxu0 0
  %1670 = vmatprep.subr.bf16.mxu0 0
  %1671 = vmatpush1.bf16.xpose.msra.mxu0 0
  %1672 = vmatprep.subr.bf16.mxu0 0
  %1673 = vmatpush1.bf16.xpose.msra.mxu0 0
  %1674 = vmatprep.subr.bf16.mxu0 0
  %1675 = vmatpush1.bf16.xpose.msra.mxu0 0
  %1676 = vmatprep.mubr.bf16.mxu0 0
  %1677 = vmatmul.mubr.bf16.gmra.mrb[0].mxu0 %v1636
  %v1678 = vpop.f32.mrb[0].mxu0
  %v1679 = vadd.f32 0.0, %v1678
  %v1680 = vpop.f32.mrb[0].mxu0
  %v1681 = vpop.f32.mrb[0].mxu0
  %v1682 = vadd.f32 0.0, %v1681
  %v1683 = vpop.f32.mrb[0].mxu0
  %1684 = vdwg.mxu0
  %v1685 = vmul.f32 %v1679, 0.25
  %v1686 = vmul.f32 %v1682, 0.25
  %v1687 = vadd.f32 %v1685, %v1622
  %v1688 = vadd.f32 %v1686, %v1623
  %v1689 = vsel %vm82, %v1687, -inf
  %1690 = vmax.xlane.f32.xlu0 %v1689
  %v1691 = vpop.xlane.xlu0 %1690
  %v1692 = vsel %vm82, %v1688, -inf
  %1693 = vmax.xlane.f32.xlu0 %v1692
  %v1694 = vpop.xlane.xlu0 %1693
  %v1695 = vsub.f32 %v1687, %v1691
  %v1696 = vsub.f32 %v1688, %v1694
  %v1697 = vmul.f32 %v1695, 1.442695
  %v1698 = vpow.pop %v1697
  %v1699 = vmul.f32 %v1696, 1.442695
  %v1700 = vpow.pop %v1699
  %v1701 = vsel %vm241, %v1698, 0.0
  %v1702 = vsel %vm241, %v1700, 0.0
  %v1703 = vsel %vm82, %v1701, 0.0
  %1704 = vadd.xlane.f32.xlu0 %v1703
  %v1705 = vpop.xlane.xlu0 %1704
  %v1706 = vsel %vm82, %v1702, 0.0
  %1707 = vadd.xlane.f32.xlu0 %v1706
  %v1708 = vpop.xlane.xlu0 %1707
  %v1709 = vsel %vm82, %v1698, 0.0
  %1710 = vadd.xlane.f32.xlu0 %v1709
  %v1711 = vpop.xlane.xlu0 %1710
  %v1712 = vsel %vm82, %v1700, 0.0
  %1713 = vadd.xlane.f32.xlu0 %v1712
  %v1714 = vpop.xlane.xlu0 %1713
  %v1715 = vsub.f32 %v1711, %v1705
  %v1716 = vsub.f32 %v1714, %v1708
  %v1717 = vpack.c.bf16 %v1700, %v1698
  %v1718 = vpack.c.bf16 %v1629, %v1628
  %v1719 = vpack.c.bf16 %v1631, %v1630
  %1722 = vrot.lane.b32.xlu0 %v1718, 96
  %v1723 = vpop.permute.xlu0 %1722
  %1724 = vrot.lane.b32.xlu0 %v1719, 96
  %v1725 = vpop.permute.xlu0 %1724
  %v1729 = vsel %vm82, %v1717, 0
  %1731 = vmatprep.subr.bf16.mxu0 0
  %1732 = vmatpush1.bf16.msra.mxu0 %v1723
  %1733 = vmatprep.subr.bf16.mxu0 0
  %1734 = vmatpush1.bf16.msra.mxu0 %v1725
  %1735 = vmatprep.subr.bf16.mxu0 0
  %1736 = vmatpush1.bf16.msra.mxu0 0
  %1737 = vmatprep.subr.bf16.mxu0 0
  %1738 = vmatpush1.bf16.msra.mxu0 0
  %1739 = vmatprep.subr.bf16.mxu0 0
  %1740 = vmatpush1.bf16.msra.mxu0 0
  %1741 = vmatprep.subr.bf16.mxu0 0
  %1742 = vmatpush1.bf16.msra.mxu0 0
  %1743 = vmatprep.subr.bf16.mxu0 0
  %1744 = vmatpush1.bf16.msra.mxu0 0
  %1745 = vmatprep.subr.bf16.mxu0 0
  %1746 = vmatpush1.bf16.msra.mxu0 0
  %1747 = vmatprep.subr.bf16.mxu0 0
  %1748 = vmatpush1.bf16.msra.mxu0 0
  %1749 = vmatprep.subr.bf16.mxu0 0
  %1750 = vmatpush1.bf16.msra.mxu0 0
  %1751 = vmatprep.subr.bf16.mxu0 0
  %1752 = vmatpush1.bf16.msra.mxu0 0
  %1753 = vmatprep.subr.bf16.mxu0 0
  %1754 = vmatpush1.bf16.msra.mxu0 0
  %1755 = vmatprep.subr.bf16.mxu0 0
  %1756 = vmatpush1.bf16.msra.mxu0 0
  %1757 = vmatprep.subr.bf16.mxu0 0
  %1758 = vmatpush1.bf16.msra.mxu0 0
  %1759 = vmatprep.subr.bf16.mxu0 0
  %1760 = vmatpush1.bf16.msra.mxu0 0
  %1761 = vmatprep.subr.bf16.mxu0 0
  %1762 = vmatpush1.bf16.msra.mxu0 0
  %1763 = vmatprep.mubr.bf16.mxu0 0
  %1764 = vmatmul.mubr.bf16.gmra.mrb[0].mxu0 %v1729
  %v1765 = vpop.f32.mrb[0].mxu0
  %v1766 = vadd.f32 0.0, %v1765
  %v1767 = vpop.f32.mrb[0].mxu0
  %v1768 = vpop.f32.mrb[0].mxu0
  %v1769 = vadd.f32 0.0, %v1768
  %v1770 = vpop.f32.mrb[0].mxu0
  %1771 = vdwg.mxu0
  %v1772 = vrcp.pop %v1705
  %v1773 = vrcp.pop %v1708
  %v1774 = vrcp.pop %v1715
  %v1775 = vrcp.pop %v1716
  %v1776 = vsel %vm241, %v1772, %v1774
  %v1777 = vsel %vm241, %v1773, %v1775
  %v1778 = vmul.f32 %v1766, %v1776
  %v1779 = vmul.f32 %v1769, %v1777
  %v1780 = vpack.c.bf16 %v1779, %v1778
  %v1781 = vld [vmem:[%s2 + $0x16] sm:$0x1]
  %v1782 = vlaneseq
  %v1783 = vshrl.u32 %v1782, 7
  %v1784 = vsub.s32 0, %v1783
  %v1785 = vrot.slane %v1781, %v1784
  %1786 = vrot.lane.b32.xlu0 %v1518, 32
  %v1787 = vpop.permute.xlu0 %1786
  %1788 = vrot.lane.b32.xlu0 %v1519, 32
  %v1789 = vpop.permute.xlu0 %1788
  %v1793 = vsel %vm82, %v1780, 0
  %1795 = vmatprep.subr.bf16.mxu0 0
  %1796 = vmatpush1.bf16.msra.mxu0 %v1787
  %1797 = vmatprep.subr.bf16.mxu0 0
  %1798 = vmatpush1.bf16.msra.mxu0 %v1789
  %1799 = vmatprep.subr.bf16.mxu0 0
  %1800 = vmatpush1.bf16.msra.mxu0 0
  %1801 = vmatprep.subr.bf16.mxu0 0
  %1802 = vmatpush1.bf16.msra.mxu0 0
  %1803 = vmatprep.subr.bf16.mxu0 0
  %1804 = vmatpush1.bf16.msra.mxu0 0
  %1805 = vmatprep.subr.bf16.mxu0 0
  %1806 = vmatpush1.bf16.msra.mxu0 0
  %1807 = vmatprep.subr.bf16.mxu0 0
  %1808 = vmatpush1.bf16.msra.mxu0 0
  %1809 = vmatprep.subr.bf16.mxu0 0
  %1810 = vmatpush1.bf16.msra.mxu0 0
  %1811 = vmatprep.subr.bf16.mxu0 0
  %1812 = vmatpush1.bf16.msra.mxu0 0
  %1813 = vmatprep.subr.bf16.mxu0 0
  %1814 = vmatpush1.bf16.msra.mxu0 0
  %1815 = vmatprep.subr.bf16.mxu0 0
  %1816 = vmatpush1.bf16.msra.mxu0 0
  %1817 = vmatprep.subr.bf16.mxu0 0
  %1818 = vmatpush1.bf16.msra.mxu0 0
  %1819 = vmatprep.subr.bf16.mxu0 0
  %1820 = vmatpush1.bf16.msra.mxu0 0
  %1821 = vmatprep.subr.bf16.mxu0 0
  %1822 = vmatpush1.bf16.msra.mxu0 0
  %1823 = vmatprep.subr.bf16.mxu0 0
  %1824 = vmatpush1.bf16.msra.mxu0 0
  %1825 = vmatprep.subr.bf16.mxu0 0
  %1826 = vmatpush1.bf16.msra.mxu0 0
  %1827 = vmatprep.mubr.bf16.mxu0 0
  %1828 = vmatmul.mubr.bf16.gmra.mrb[0].mxu0 %v1793
  %v1829 = vpop.f32.mrb[0].mxu0
  %v1830 = vadd.f32 %v1785, %v1829
  %v1831 = vpop.f32.mrb[0].mxu0
  %v1832 = vpop.f32.mrb[0].mxu0
  %v1833 = vadd.f32 %v1785, %v1832
  %v1834 = vpop.f32.mrb[0].mxu0
  %1835 = vdwg.mxu0
  %1838 = vrot.lane.b32.xlu0 %v1830, 32
  %v1839 = vpop.permute.xlu0 %1838
  %1840 = vrot.lane.b32.xlu0 %v1833, 32
  %v1841 = vpop.permute.xlu0 %1840
  %v1844 = vadd.f32 %v1495, %v1839
  %v1845 = vadd.f32 %v1496, %v1841
  %v1846 = vld [vmem:[%s2 + $0x17] sm:$0x1]
  %v1847 = vld [vmem:[%s2 + $0x18] sm:$0x1]
  %1850 = vrot.lane.b32.xlu0 %v1844, 96
  %v1851 = vpop.permute.xlu0 %1850
  %1852 = vrot.lane.b32.xlu0 %v1845, 96
  %v1853 = vpop.permute.xlu0 %1852
  %v1856 = vsel %vm82, %v1851, 0.0
  %1857 = vadd.xlane.f32.xlu0 %v1856
  %v1858 = vpop.xlane.xlu0 %1857
  %v1859 = vsel %vm82, %v1853, 0.0
  %1860 = vadd.xlane.f32.xlu0 %v1859
  %v1861 = vpop.xlane.xlu0 %1860
  %v1862 = vmul.f32 %v1858, %v387
  %v1863 = vmul.f32 %v1861, %v387
  %v1864 = vsub.f32 %v1844, %v1862
  %v1865 = vsub.f32 %v1845, %v1863
  %v1866 = vmul.f32 %v1864, %v1864
  %v1867 = vmul.f32 %v1865, %v1865
  %1870 = vrot.lane.b32.xlu0 %v1866, 96
  %v1871 = vpop.permute.xlu0 %1870
  %1872 = vrot.lane.b32.xlu0 %v1867, 96
  %v1873 = vpop.permute.xlu0 %1872
  %v1876 = vsel %vm82, %v1871, 0.0
  %1877 = vadd.xlane.f32.xlu0 %v1876
  %v1878 = vpop.xlane.xlu0 %1877
  %v1879 = vsel %vm82, %v1873, 0.0
  %1880 = vadd.xlane.f32.xlu0 %v1879
  %v1881 = vpop.xlane.xlu0 %1880
  %v1882 = vmul.f32 %v1878, %v387
  %v1883 = vmul.f32 %v1881, %v387
  %v1884 = vadd.f32 %v1882, 1e-05
  %v1885 = vadd.f32 %v1883, 1e-05
  %v1886 = vrsqrt.pop %v1884
  %v1887 = vrsqrt.pop %v1885
  %v1888 = vmul.f32 %v1864, %v1886
  %v1889 = vmul.f32 %v1865, %v1887
  %v1890 = vlaneseq
  %v1891 = vshrl.u32 %v1890, 7
  %v1892 = vsub.s32 0, %v1891
  %v1893 = vrot.slane %v1846, %v1892
  %1895 = vrot.lane.b32.xlu0 %v1893, 32
  %v1896 = vpop.permute.xlu0 %1895
  %v1898 = vmul.f32 %v1888, %v1896
  %v1899 = vmul.f32 %v1889, %v1896
  %v1900 = vlaneseq
  %v1901 = vshrl.u32 %v1900, 7
  %v1902 = vsub.s32 0, %v1901
  %v1903 = vrot.slane %v1847, %v1902
  %1905 = vrot.lane.b32.xlu0 %v1903, 32
  %v1906 = vpop.permute.xlu0 %1905
  %v1908 = vadd.f32 %v1898, %v1906
  %v1909 = vadd.f32 %v1899, %v1906
  %v1910 = vld [vmem:[%s5 + $0x8] sm:$0xf]
  %v1911 = vld [vmem:[%s5 + $0x14] sm:$0xf]
  %v1912 = vld [vmem:[%s5 + $0x20] sm:$0xf]
  %v1913 = vld [vmem:[%s5 + $0x2c] sm:$0xf]
  %v1914 = vpack.c.bf16 %v1909, %v1908
  %v1915 = vld [vmem:[%s2 + $0x19] sm:$0x1]
  %v1916 = vlaneseq
  %v1917 = vshrl.u32 %v1916, 7
  %v1918 = vsub.s32 0, %v1917
  %v1919 = vrot.slane %v1915, %v1918
  %1921 = vrot.lane.b32.xlu0 %v1914, 96
  %v1922 = vpop.permute.xlu0 %1921
  %v1927 = vunpack.c.l.b16 %v1910
  %v1928 = vunpack.c.l.b16 %v1911
  %v1929 = vunpack.c.l.b16 %v1912
  %v1930 = vunpack.c.l.b16 %v1913
  %v1931 = vpack.c.b16 %v1928, %v1927
  %v1932 = vpack.c.b16 %v1930, %v1929
  %v1936 = vsel %vm82, %v1922, 0
  %1938 = vmatprep.subr.bf16.mxu0 0
  %1939 = vmatpush1.bf16.msra.mxu0 %v1931
  %1940 = vmatprep.subr.bf16.mxu0 0
  %1941 = vmatpush1.bf16.msra.mxu0 %v1932
  %1942 = vmatprep.subr.bf16.mxu0 0
  %1943 = vmatpush1.bf16.msra.mxu0 0
  %1944 = vmatprep.subr.bf16.mxu0 0
  %1945 = vmatpush1.bf16.msra.mxu0 0
  %1946 = vmatprep.subr.bf16.mxu0 0
  %1947 = vmatpush1.bf16.msra.mxu0 0
  %1948 = vmatprep.subr.bf16.mxu0 0
  %1949 = vmatpush1.bf16.msra.mxu0 0
  %1950 = vmatprep.subr.bf16.mxu0 0
  %1951 = vmatpush1.bf16.msra.mxu0 0
  %1952 = vmatprep.subr.bf16.mxu0 0
  %1953 = vmatpush1.bf16.msra.mxu0 0
  %1954 = vmatprep.subr.bf16.mxu0 0
  %1955 = vmatpush1.bf16.msra.mxu0 0
  %1956 = vmatprep.subr.bf16.mxu0 0
  %1957 = vmatpush1.bf16.msra.mxu0 0
  %1958 = vmatprep.subr.bf16.mxu0 0
  %1959 = vmatpush1.bf16.msra.mxu0 0
  %1960 = vmatprep.subr.bf16.mxu0 0
  %1961 = vmatpush1.bf16.msra.mxu0 0
  %1962 = vmatprep.subr.bf16.mxu0 0
  %1963 = vmatpush1.bf16.msra.mxu0 0
  %1964 = vmatprep.subr.bf16.mxu0 0
  %1965 = vmatpush1.bf16.msra.mxu0 0
  %1966 = vmatprep.subr.bf16.mxu0 0
  %1967 = vmatpush1.bf16.msra.mxu0 0
  %1968 = vmatprep.subr.bf16.mxu0 0
  %1969 = vmatpush1.bf16.msra.mxu0 0
  %1970 = vmatprep.mubr.bf16.mxu0 0
  %1971 = vmatmul.mubr.bf16.gmra.mrb[0].mxu0 %v1936
  %v1972 = vpop.f32.mrb[0].mxu0
  %v1973 = vadd.f32 %v1919, %v1972
  %v1974 = vpop.f32.mrb[0].mxu0
  %v1975 = vpop.f32.mrb[0].mxu0
  %v1976 = vadd.f32 %v1919, %v1975
  %v1977 = vpop.f32.mrb[0].mxu0
  %1978 = vdwg.mxu0
  %v1979 = vmax.f32 %v1973, 0.0
  %v1980 = vmax.f32 %v1976, 0.0
  %v1981 = vld [vmem:[%s6] sm:$0xf]
  %v1982 = vld [vmem:[%s6 + $0x4] sm:$0xf]
  %v1983 = vld [vmem:[%s6 + $0x8] sm:$0xf]
  %v1984 = vld [vmem:[%s6 + $0xc] sm:$0xf]
  %v1985 = vld [vmem:[%s6 + $0x10] sm:$0xf]
  %v1986 = vld [vmem:[%s6 + $0x14] sm:$0xf]
  %v1987 = vld [vmem:[%s6 + $0x18] sm:$0xf]
  %v1988 = vld [vmem:[%s6 + $0x1c] sm:$0xf]
  %v1989 = vpack.c.bf16 %v1980, %v1979
  %v1990 = vld [vmem:[%s2 + $0x1a] sm:$0x1]
  %v1991 = vlaneseq
  %v1992 = vshrl.u32 %v1991, 7
  %v1993 = vsub.s32 0, %v1992
  %v1994 = vrot.slane %v1990, %v1993
  %v2003 = vunpack.c.l.b16 %v1981
  %v2004 = vunpack.c.l.b16 %v1982
  %v2005 = vunpack.c.l.b16 %v1983
  %v2006 = vunpack.c.l.b16 %v1984
  %v2007 = vunpack.c.l.b16 %v1985
  %v2008 = vunpack.c.l.b16 %v1986
  %v2009 = vunpack.c.l.b16 %v1987
  %v2010 = vunpack.c.l.b16 %v1988
  %v2011 = vpack.c.b16 %v2004, %v2003
  %v2012 = vpack.c.b16 %v2006, %v2005
  %v2013 = vpack.c.b16 %v2008, %v2007
  %v2014 = vpack.c.b16 %v2010, %v2009
  %v2020 = vsel %vm526, %v1989, 0
  %2022 = vmatprep.subr.bf16.mxu0 0
  %2023 = vmatpush1.bf16.msra.mxu0 %v2011
  %2024 = vmatprep.subr.bf16.mxu0 0
  %2025 = vmatpush1.bf16.msra.mxu0 %v2012
  %2026 = vmatprep.subr.bf16.mxu0 0
  %2027 = vmatpush1.bf16.msra.mxu0 %v2013
  %2028 = vmatprep.subr.bf16.mxu0 0
  %2029 = vmatpush1.bf16.msra.mxu0 %v2014
  %2030 = vmatprep.subr.bf16.mxu0 0
  %2031 = vmatpush1.bf16.msra.mxu0 0
  %2032 = vmatprep.subr.bf16.mxu0 0
  %2033 = vmatpush1.bf16.msra.mxu0 0
  %2034 = vmatprep.subr.bf16.mxu0 0
  %2035 = vmatpush1.bf16.msra.mxu0 0
  %2036 = vmatprep.subr.bf16.mxu0 0
  %2037 = vmatpush1.bf16.msra.mxu0 0
  %2038 = vmatprep.subr.bf16.mxu0 0
  %2039 = vmatpush1.bf16.msra.mxu0 0
  %2040 = vmatprep.subr.bf16.mxu0 0
  %2041 = vmatpush1.bf16.msra.mxu0 0
  %2042 = vmatprep.subr.bf16.mxu0 0
  %2043 = vmatpush1.bf16.msra.mxu0 0
  %2044 = vmatprep.subr.bf16.mxu0 0
  %2045 = vmatpush1.bf16.msra.mxu0 0
  %2046 = vmatprep.subr.bf16.mxu0 0
  %2047 = vmatpush1.bf16.msra.mxu0 0
  %2048 = vmatprep.subr.bf16.mxu0 0
  %2049 = vmatpush1.bf16.msra.mxu0 0
  %2050 = vmatprep.subr.bf16.mxu0 0
  %2051 = vmatpush1.bf16.msra.mxu0 0
  %2052 = vmatprep.subr.bf16.mxu0 0
  %2053 = vmatpush1.bf16.msra.mxu0 0
  %2054 = vmatprep.mubr.bf16.mxu0 0
  %2055 = vmatmul.mubr.bf16.gmra.mrb[0].mxu0 %v2020
  %v2056 = vpop.f32.mrb[0].mxu0
  %v2057 = vadd.f32 %v1994, %v2056
  %v2058 = vpop.f32.mrb[0].mxu0
  %v2059 = vpop.f32.mrb[0].mxu0
  %v2060 = vadd.f32 %v1994, %v2059
  %v2061 = vpop.f32.mrb[0].mxu0
  %2062 = vdwg.mxu0
  %2065 = vrot.lane.b32.xlu0 %v2057, 32
  %v2066 = vpop.permute.xlu0 %2065
  %2067 = vrot.lane.b32.xlu0 %v2060, 32
  %v2068 = vpop.permute.xlu0 %2067
  %v2071 = vadd.f32 %v1908, %v2066
  %v2072 = vadd.f32 %v1909, %v2068
  %v2073 = vld [vmem:[%s2 + $0x1b] sm:$0x1]
  %v2074 = vld [vmem:[%s2 + $0x1c] sm:$0x1]
  %2077 = vrot.lane.b32.xlu0 %v2071, 96
  %v2078 = vpop.permute.xlu0 %2077
  %2079 = vrot.lane.b32.xlu0 %v2072, 96
  %v2080 = vpop.permute.xlu0 %2079
  %v2083 = vsel %vm82, %v2078, 0.0
  %2084 = vadd.xlane.f32.xlu0 %v2083
  %v2085 = vpop.xlane.xlu0 %2084
  %v2086 = vsel %vm82, %v2080, 0.0
  %2087 = vadd.xlane.f32.xlu0 %v2086
  %v2088 = vpop.xlane.xlu0 %2087
  %v2089 = vmul.f32 %v2085, %v387
  %v2090 = vmul.f32 %v2088, %v387
  %v2091 = vsub.f32 %v2071, %v2089
  %v2092 = vsub.f32 %v2072, %v2090
  %v2093 = vmul.f32 %v2091, %v2091
  %v2094 = vmul.f32 %v2092, %v2092
  %2097 = vrot.lane.b32.xlu0 %v2093, 96
  %v2098 = vpop.permute.xlu0 %2097
  %2099 = vrot.lane.b32.xlu0 %v2094, 96
  %v2100 = vpop.permute.xlu0 %2099
  %v2103 = vsel %vm82, %v2098, 0.0
  %2104 = vadd.xlane.f32.xlu0 %v2103
  %v2105 = vpop.xlane.xlu0 %2104
  %v2106 = vsel %vm82, %v2100, 0.0
  %2107 = vadd.xlane.f32.xlu0 %v2106
  %v2108 = vpop.xlane.xlu0 %2107
  %v2109 = vmul.f32 %v2105, %v387
  %v2110 = vmul.f32 %v2108, %v387
  %v2111 = vadd.f32 %v2109, 1e-05
  %v2112 = vadd.f32 %v2110, 1e-05
  %v2113 = vrsqrt.pop %v2111
  %v2114 = vrsqrt.pop %v2112
  %v2115 = vmul.f32 %v2091, %v2113
  %v2116 = vmul.f32 %v2092, %v2114
  %v2117 = vlaneseq
  %v2118 = vshrl.u32 %v2117, 7
  %v2119 = vsub.s32 0, %v2118
  %v2120 = vrot.slane %v2073, %v2119
  %2122 = vrot.lane.b32.xlu0 %v2120, 32
  %v2123 = vpop.permute.xlu0 %2122
  %v2125 = vmul.f32 %v2115, %v2123
  %v2126 = vmul.f32 %v2116, %v2123
  %v2127 = vlaneseq
  %v2128 = vshrl.u32 %v2127, 7
  %v2129 = vsub.s32 0, %v2128
  %v2130 = vrot.slane %v2074, %v2129
  %2132 = vrot.lane.b32.xlu0 %v2130, 32
  %v2133 = vpop.permute.xlu0 %2132
  %v2135 = vadd.f32 %v2125, %v2133
  %v2136 = vadd.f32 %v2126, %v2133
  %s2137 = scalar_lea.vmem %s5, 48
  %v2138 = vld [vmem:[%s2137] sm:$0xf]
  %v2139 = vld [vmem:[%s2137 + $0xc] sm:$0xf]
  %v2140 = vld [vmem:[%s2137 + $0x18] sm:$0xf]
  %v2141 = vld [vmem:[%s2137 + $0x24] sm:$0xf]
  %v2142 = vpack.c.bf16 %v2136, %v2135
  %v2143 = vld [vmem:[%s2 + $0x1d] sm:$0x1]
  %v2144 = vlaneseq
  %v2145 = vshrl.u32 %v2144, 7
  %v2146 = vsub.s32 0, %v2145
  %v2147 = vrot.slane %v2143, %v2146
  %2149 = vrot.lane.b32.xlu0 %v2142, 96
  %v2150 = vpop.permute.xlu0 %2149
  %v2155 = vunpack.c.l.b16 %v2138
  %v2156 = vunpack.c.l.b16 %v2139
  %v2157 = vunpack.c.l.b16 %v2140
  %v2158 = vunpack.c.l.b16 %v2141
  %v2159 = vpack.c.b16 %v2156, %v2155
  %v2160 = vpack.c.b16 %v2158, %v2157
  %v2164 = vsel %vm82, %v2150, 0
  %2166 = vmatprep.subr.bf16.mxu0 0
  %2167 = vmatpush1.bf16.msra.mxu0 %v2159
  %2168 = vmatprep.subr.bf16.mxu0 0
  %2169 = vmatpush1.bf16.msra.mxu0 %v2160
  %2170 = vmatprep.subr.bf16.mxu0 0
  %2171 = vmatpush1.bf16.msra.mxu0 0
  %2172 = vmatprep.subr.bf16.mxu0 0
  %2173 = vmatpush1.bf16.msra.mxu0 0
  %2174 = vmatprep.subr.bf16.mxu0 0
  %2175 = vmatpush1.bf16.msra.mxu0 0
  %2176 = vmatprep.subr.bf16.mxu0 0
  %2177 = vmatpush1.bf16.msra.mxu0 0
  %2178 = vmatprep.subr.bf16.mxu0 0
  %2179 = vmatpush1.bf16.msra.mxu0 0
  %2180 = vmatprep.subr.bf16.mxu0 0
  %2181 = vmatpush1.bf16.msra.mxu0 0
  %2182 = vmatprep.subr.bf16.mxu0 0
  %2183 = vmatpush1.bf16.msra.mxu0 0
  %2184 = vmatprep.subr.bf16.mxu0 0
  %2185 = vmatpush1.bf16.msra.mxu0 0
  %2186 = vmatprep.subr.bf16.mxu0 0
  %2187 = vmatpush1.bf16.msra.mxu0 0
  %2188 = vmatprep.subr.bf16.mxu0 0
  %2189 = vmatpush1.bf16.msra.mxu0 0
  %2190 = vmatprep.subr.bf16.mxu0 0
  %2191 = vmatpush1.bf16.msra.mxu0 0
  %2192 = vmatprep.subr.bf16.mxu0 0
  %2193 = vmatpush1.bf16.msra.mxu0 0
  %2194 = vmatprep.subr.bf16.mxu0 0
  %2195 = vmatpush1.bf16.msra.mxu0 0
  %2196 = vmatprep.subr.bf16.mxu0 0
  %2197 = vmatpush1.bf16.msra.mxu0 0
  %2198 = vmatprep.mubr.bf16.mxu0 0
  %2199 = vmatmul.mubr.bf16.gmra.mrb[0].mxu0 %v2164
  %v2200 = vpop.f32.mrb[0].mxu0
  %v2201 = vadd.f32 %v2147, %v2200
  %v2202 = vpop.f32.mrb[0].mxu0
  %v2203 = vpop.f32.mrb[0].mxu0
  %v2204 = vadd.f32 %v2147, %v2203
  %v2205 = vpop.f32.mrb[0].mxu0
  %2206 = vdwg.mxu0
  %v2207 = vmul.f32 %v2201, %v134
  %v2208 = vmul.f32 %v2204, %v136
  %v2209 = vmul.f32 %v2201, %v138
  %v2210 = vmul.f32 %v2204, %v140
  %v2211 = vmul.f32 %v2201, %v150
  %v2212 = vmul.f32 %v2204, %v152
  %v2213 = vmul.f32 %v2201, %v154
  %v2214 = vmul.f32 %v2204, %v156
  %v2215 = vpack.c.bf16 %v2204, %v2201
  %v2216 = vpack.c.bf16 %v2208, %v2207
  %v2217 = vpack.c.bf16 %v2210, %v2209
  %2220 = vrot.lane.b32.xlu0 %v2216, 96
  %v2221 = vpop.permute.xlu0 %2220
  %2222 = vrot.lane.b32.xlu0 %v2217, 96
  %v2223 = vpop.permute.xlu0 %2222
  %v2225 = vsel %vm82, %v2215, 0
  %v2228 = vsel %vm82, %v2221, 0
  %v2231 = vsel %vm82, %v2223, 0
  %2233 = vmatprep.subr.bf16.mxu0 0
  %2234 = vmatpush1.bf16.xpose.msra.mxu0 %v2228
  %2235 = vmatprep.subr.bf16.mxu0 0
  %2236 = vmatpush1.bf16.xpose.msra.mxu0 %v2231
  %2237 = vmatprep.subr.bf16.mxu0 0
  %2238 = vmatpush1.bf16.xpose.msra.mxu0 0
  %2239 = vmatprep.subr.bf16.mxu0 0
  %2240 = vmatpush1.bf16.xpose.msra.mxu0 0
  %2241 = vmatprep.subr.bf16.mxu0 0
  %2242 = vmatpush1.bf16.xpose.msra.mxu0 0
  %2243 = vmatprep.subr.bf16.mxu0 0
  %2244 = vmatpush1.bf16.xpose.msra.mxu0 0
  %2245 = vmatprep.subr.bf16.mxu0 0
  %2246 = vmatpush1.bf16.xpose.msra.mxu0 0
  %2247 = vmatprep.subr.bf16.mxu0 0
  %2248 = vmatpush1.bf16.xpose.msra.mxu0 0
  %2249 = vmatprep.subr.bf16.mxu0 0
  %2250 = vmatpush1.bf16.xpose.msra.mxu0 0
  %2251 = vmatprep.subr.bf16.mxu0 0
  %2252 = vmatpush1.bf16.xpose.msra.mxu0 0
  %2253 = vmatprep.subr.bf16.mxu0 0
  %2254 = vmatpush1.bf16.xpose.msra.mxu0 0
  %2255 = vmatprep.subr.bf16.mxu0 0
  %2256 = vmatpush1.bf16.xpose.msra.mxu0 0
  %2257 = vmatprep.subr.bf16.mxu0 0
  %2258 = vmatpush1.bf16.xpose.msra.mxu0 0
  %2259 = vmatprep.subr.bf16.mxu0 0
  %2260 = vmatpush1.bf16.xpose.msra.mxu0 0
  %2261 = vmatprep.subr.bf16.mxu0 0
  %2262 = vmatpush1.bf16.xpose.msra.mxu0 0
  %2263 = vmatprep.subr.bf16.mxu0 0
  %2264 = vmatpush1.bf16.xpose.msra.mxu0 0
  %2265 = vmatprep.mubr.bf16.mxu0 0
  %2266 = vmatmul.mubr.bf16.gmra.mrb[0].mxu0 %v2225
  %v2267 = vpop.f32.mrb[0].mxu0
  %v2268 = vadd.f32 0.0, %v2267
  %v2269 = vpop.f32.mrb[0].mxu0
  %v2270 = vpop.f32.mrb[0].mxu0
  %v2271 = vadd.f32 0.0, %v2270
  %v2272 = vpop.f32.mrb[0].mxu0
  %2273 = vdwg.mxu0
  %v2274 = vmul.f32 %v2268, 0.25
  %v2275 = vmul.f32 %v2271, 0.25
  %v2276 = vadd.f32 %v2274, %v1203
  %v2277 = vadd.f32 %v2275, %v1204
  %v2278 = vsel %vm82, %v2276, -inf
  %2279 = vmax.xlane.f32.xlu0 %v2278
  %v2280 = vpop.xlane.xlu0 %2279
  %v2281 = vsel %vm82, %v2277, -inf
  %2282 = vmax.xlane.f32.xlu0 %v2281
  %v2283 = vpop.xlane.xlu0 %2282
  %v2284 = vsub.f32 %v2276, %v2280
  %v2285 = vsub.f32 %v2277, %v2283
  %v2286 = vmul.f32 %v2284, 1.442695
  %v2287 = vpow.pop %v2286
  %v2288 = vmul.f32 %v2285, 1.442695
  %v2289 = vpow.pop %v2288
  %v2290 = vsel %vm241, %v2287, 0.0
  %v2291 = vsel %vm241, %v2289, 0.0
  %v2292 = vsel %vm82, %v2290, 0.0
  %2293 = vadd.xlane.f32.xlu0 %v2292
  %v2294 = vpop.xlane.xlu0 %2293
  %v2295 = vsel %vm82, %v2291, 0.0
  %2296 = vadd.xlane.f32.xlu0 %v2295
  %v2297 = vpop.xlane.xlu0 %2296
  %v2298 = vsel %vm82, %v2287, 0.0
  %2299 = vadd.xlane.f32.xlu0 %v2298
  %v2300 = vpop.xlane.xlu0 %2299
  %v2301 = vsel %vm82, %v2289, 0.0
  %2302 = vadd.xlane.f32.xlu0 %v2301
  %v2303 = vpop.xlane.xlu0 %2302
  %v2304 = vsub.f32 %v2300, %v2294
  %v2305 = vsub.f32 %v2303, %v2297
  %v2306 = vpack.c.bf16 %v2289, %v2287
  %v2307 = vpack.c.bf16 %v2212, %v2211
  %v2308 = vpack.c.bf16 %v2214, %v2213
  %2311 = vrot.lane.b32.xlu0 %v2307, 64
  %v2312 = vpop.permute.xlu0 %2311
  %2313 = vrot.lane.b32.xlu0 %v2308, 64
  %v2314 = vpop.permute.xlu0 %2313
  %v2318 = vsel %vm82, %v2306, 0
  %2320 = vmatprep.subr.bf16.mxu0 0
  %2321 = vmatpush1.bf16.msra.mxu0 %v2312
  %2322 = vmatprep.subr.bf16.mxu0 0
  %2323 = vmatpush1.bf16.msra.mxu0 %v2314
  %2324 = vmatprep.subr.bf16.mxu0 0
  %2325 = vmatpush1.bf16.msra.mxu0 0
  %2326 = vmatprep.subr.bf16.mxu0 0
  %2327 = vmatpush1.bf16.msra.mxu0 0
  %2328 = vmatprep.subr.bf16.mxu0 0
  %2329 = vmatpush1.bf16.msra.mxu0 0
  %2330 = vmatprep.subr.bf16.mxu0 0
  %2331 = vmatpush1.bf16.msra.mxu0 0
  %2332 = vmatprep.subr.bf16.mxu0 0
  %2333 = vmatpush1.bf16.msra.mxu0 0
  %2334 = vmatprep.subr.bf16.mxu0 0
  %2335 = vmatpush1.bf16.msra.mxu0 0
  %2336 = vmatprep.subr.bf16.mxu0 0
  %2337 = vmatpush1.bf16.msra.mxu0 0
  %2338 = vmatprep.subr.bf16.mxu0 0
  %2339 = vmatpush1.bf16.msra.mxu0 0
  %2340 = vmatprep.subr.bf16.mxu0 0
  %2341 = vmatpush1.bf16.msra.mxu0 0
  %2342 = vmatprep.subr.bf16.mxu0 0
  %2343 = vmatpush1.bf16.msra.mxu0 0
  %2344 = vmatprep.subr.bf16.mxu0 0
  %2345 = vmatpush1.bf16.msra.mxu0 0
  %2346 = vmatprep.subr.bf16.mxu0 0
  %2347 = vmatpush1.bf16.msra.mxu0 0
  %2348 = vmatprep.subr.bf16.mxu0 0
  %2349 = vmatpush1.bf16.msra.mxu0 0
  %2350 = vmatprep.subr.bf16.mxu0 0
  %2351 = vmatpush1.bf16.msra.mxu0 0
  %2352 = vmatprep.mubr.bf16.mxu0 0
  %2353 = vmatmul.mubr.bf16.gmra.mrb[0].mxu0 %v2318
  %v2354 = vpop.f32.mrb[0].mxu0
  %v2355 = vadd.f32 0.0, %v2354
  %v2356 = vpop.f32.mrb[0].mxu0
  %v2357 = vpop.f32.mrb[0].mxu0
  %v2358 = vadd.f32 0.0, %v2357
  %v2359 = vpop.f32.mrb[0].mxu0
  %2360 = vdwg.mxu0
  %v2361 = vrcp.pop %v2294
  %v2362 = vrcp.pop %v2297
  %v2363 = vrcp.pop %v2304
  %v2364 = vrcp.pop %v2305
  %v2365 = vsel %vm241, %v2361, %v2363
  %v2366 = vsel %vm241, %v2362, %v2364
  %v2367 = vmul.f32 %v2355, %v2365
  %v2368 = vmul.f32 %v2358, %v2366
  %v2369 = vpack.c.bf16 %v2368, %v2367
  %v2370 = vld [vmem:[%s2 + $0x1e] sm:$0x1]
  %v2371 = vlaneseq
  %v2372 = vshrl.u32 %v2371, 7
  %v2373 = vsub.s32 0, %v2372
  %v2374 = vrot.slane %v2370, %v2373
  %2375 = vrot.lane.b32.xlu0 %v2159, 32
  %v2376 = vpop.permute.xlu0 %2375
  %2377 = vrot.lane.b32.xlu0 %v2160, 32
  %v2378 = vpop.permute.xlu0 %2377
  %v2382 = vsel %vm82, %v2369, 0
  %2384 = vmatprep.subr.bf16.mxu0 0
  %2385 = vmatpush1.bf16.msra.mxu0 %v2376
  %2386 = vmatprep.subr.bf16.mxu0 0
  %2387 = vmatpush1.bf16.msra.mxu0 %v2378
  %2388 = vmatprep.subr.bf16.mxu0 0
  %2389 = vmatpush1.bf16.msra.mxu0 0
  %2390 = vmatprep.subr.bf16.mxu0 0
  %2391 = vmatpush1.bf16.msra.mxu0 0
  %2392 = vmatprep.subr.bf16.mxu0 0
  %2393 = vmatpush1.bf16.msra.mxu0 0
  %2394 = vmatprep.subr.bf16.mxu0 0
  %2395 = vmatpush1.bf16.msra.mxu0 0
  %2396 = vmatprep.subr.bf16.mxu0 0
  %2397 = vmatpush1.bf16.msra.mxu0 0
  %2398 = vmatprep.subr.bf16.mxu0 0
  %2399 = vmatpush1.bf16.msra.mxu0 0
  %2400 = vmatprep.subr.bf16.mxu0 0
  %2401 = vmatpush1.bf16.msra.mxu0 0
  %2402 = vmatprep.subr.bf16.mxu0 0
  %2403 = vmatpush1.bf16.msra.mxu0 0
  %2404 = vmatprep.subr.bf16.mxu0 0
  %2405 = vmatpush1.bf16.msra.mxu0 0
  %2406 = vmatprep.subr.bf16.mxu0 0
  %2407 = vmatpush1.bf16.msra.mxu0 0
  %2408 = vmatprep.subr.bf16.mxu0 0
  %2409 = vmatpush1.bf16.msra.mxu0 0
  %2410 = vmatprep.subr.bf16.mxu0 0
  %2411 = vmatpush1.bf16.msra.mxu0 0
  %2412 = vmatprep.subr.bf16.mxu0 0
  %2413 = vmatpush1.bf16.msra.mxu0 0
  %2414 = vmatprep.subr.bf16.mxu0 0
  %2415 = vmatpush1.bf16.msra.mxu0 0
  %2416 = vmatprep.mubr.bf16.mxu0 0
  %2417 = vmatmul.mubr.bf16.gmra.mrb[0].mxu0 %v2382
  %v2418 = vpop.f32.mrb[0].mxu0
  %v2419 = vadd.f32 %v2374, %v2418
  %v2420 = vpop.f32.mrb[0].mxu0
  %v2421 = vpop.f32.mrb[0].mxu0
  %v2422 = vadd.f32 %v2374, %v2421
  %v2423 = vpop.f32.mrb[0].mxu0
  %2424 = vdwg.mxu0
  %2427 = vrot.lane.b32.xlu0 %v2419, 32
  %v2428 = vpop.permute.xlu0 %2427
  %2429 = vrot.lane.b32.xlu0 %v2422, 32
  %v2430 = vpop.permute.xlu0 %2429
  %v2433 = vadd.f32 %v2135, %v2428
  %v2434 = vadd.f32 %v2136, %v2430
  %v2435 = vld [vmem:[%s2 + $0x1f] sm:$0x1]
  %v2436 = vld [vmem:[%s2 + $0x20] sm:$0x1]
  %2439 = vrot.lane.b32.xlu0 %v2433, 96
  %v2440 = vpop.permute.xlu0 %2439
  %2441 = vrot.lane.b32.xlu0 %v2434, 96
  %v2442 = vpop.permute.xlu0 %2441
  %v2445 = vsel %vm82, %v2440, 0.0
  %2446 = vadd.xlane.f32.xlu0 %v2445
  %v2447 = vpop.xlane.xlu0 %2446
  %v2448 = vsel %vm82, %v2442, 0.0
  %2449 = vadd.xlane.f32.xlu0 %v2448
  %v2450 = vpop.xlane.xlu0 %2449
  %v2451 = vmul.f32 %v2447, %v387
  %v2452 = vmul.f32 %v2450, %v387
  %v2453 = vsub.f32 %v2433, %v2451
  %v2454 = vsub.f32 %v2434, %v2452
  %v2455 = vmul.f32 %v2453, %v2453
  %v2456 = vmul.f32 %v2454, %v2454
  %2459 = vrot.lane.b32.xlu0 %v2455, 96
  %v2460 = vpop.permute.xlu0 %2459
  %2461 = vrot.lane.b32.xlu0 %v2456, 96
  %v2462 = vpop.permute.xlu0 %2461
  %v2465 = vsel %vm82, %v2460, 0.0
  %2466 = vadd.xlane.f32.xlu0 %v2465
  %v2467 = vpop.xlane.xlu0 %2466
  %v2468 = vsel %vm82, %v2462, 0.0
  %2469 = vadd.xlane.f32.xlu0 %v2468
  %v2470 = vpop.xlane.xlu0 %2469
  %v2471 = vmul.f32 %v2467, %v387
  %v2472 = vmul.f32 %v2470, %v387
  %v2473 = vadd.f32 %v2471, 1e-05
  %v2474 = vadd.f32 %v2472, 1e-05
  %v2475 = vrsqrt.pop %v2473
  %v2476 = vrsqrt.pop %v2474
  %v2477 = vmul.f32 %v2453, %v2475
  %v2478 = vmul.f32 %v2454, %v2476
  %v2479 = vlaneseq
  %v2480 = vshrl.u32 %v2479, 7
  %v2481 = vsub.s32 0, %v2480
  %v2482 = vrot.slane %v2435, %v2481
  %2484 = vrot.lane.b32.xlu0 %v2482, 32
  %v2485 = vpop.permute.xlu0 %2484
  %v2487 = vmul.f32 %v2477, %v2485
  %v2488 = vmul.f32 %v2478, %v2485
  %v2489 = vlaneseq
  %v2490 = vshrl.u32 %v2489, 7
  %v2491 = vsub.s32 0, %v2490
  %v2492 = vrot.slane %v2436, %v2491
  %2494 = vrot.lane.b32.xlu0 %v2492, 32
  %v2495 = vpop.permute.xlu0 %2494
  %v2497 = vadd.f32 %v2487, %v2495
  %v2498 = vadd.f32 %v2488, %v2495
  %v2499 = vld [vmem:[%s2137 + $0x4] sm:$0xf]
  %v2500 = vld [vmem:[%s2137 + $0x10] sm:$0xf]
  %v2501 = vld [vmem:[%s2137 + $0x1c] sm:$0xf]
  %v2502 = vld [vmem:[%s2137 + $0x28] sm:$0xf]
  %v2503 = vpack.c.bf16 %v2498, %v2497
  %v2504 = vld [vmem:[%s2 + $0x21] sm:$0x1]
  %v2505 = vlaneseq
  %v2506 = vshrl.u32 %v2505, 7
  %v2507 = vsub.s32 0, %v2506
  %v2508 = vrot.slane %v2504, %v2507
  %2510 = vrot.lane.b32.xlu0 %v2503, 96
  %v2511 = vpop.permute.xlu0 %2510
  %v2516 = vunpack.c.l.b16 %v2499
  %v2517 = vunpack.c.l.b16 %v2500
  %v2518 = vunpack.c.l.b16 %v2501
  %v2519 = vunpack.c.l.b16 %v2502
  %v2520 = vpack.c.b16 %v2517, %v2516
  %v2521 = vpack.c.b16 %v2519, %v2518
  %v2525 = vsel %vm82, %v2511, 0
  %2527 = vmatprep.subr.bf16.mxu0 0
  %2528 = vmatpush1.bf16.msra.mxu0 %v2520
  %2529 = vmatprep.subr.bf16.mxu0 0
  %2530 = vmatpush1.bf16.msra.mxu0 %v2521
  %2531 = vmatprep.subr.bf16.mxu0 0
  %2532 = vmatpush1.bf16.msra.mxu0 0
  %2533 = vmatprep.subr.bf16.mxu0 0
  %2534 = vmatpush1.bf16.msra.mxu0 0
  %2535 = vmatprep.subr.bf16.mxu0 0
  %2536 = vmatpush1.bf16.msra.mxu0 0
  %2537 = vmatprep.subr.bf16.mxu0 0
  %2538 = vmatpush1.bf16.msra.mxu0 0
  %2539 = vmatprep.subr.bf16.mxu0 0
  %2540 = vmatpush1.bf16.msra.mxu0 0
  %2541 = vmatprep.subr.bf16.mxu0 0
  %2542 = vmatpush1.bf16.msra.mxu0 0
  %2543 = vmatprep.subr.bf16.mxu0 0
  %2544 = vmatpush1.bf16.msra.mxu0 0
  %2545 = vmatprep.subr.bf16.mxu0 0
  %2546 = vmatpush1.bf16.msra.mxu0 0
  %2547 = vmatprep.subr.bf16.mxu0 0
  %2548 = vmatpush1.bf16.msra.mxu0 0
  %2549 = vmatprep.subr.bf16.mxu0 0
  %2550 = vmatpush1.bf16.msra.mxu0 0
  %2551 = vmatprep.subr.bf16.mxu0 0
  %2552 = vmatpush1.bf16.msra.mxu0 0
  %2553 = vmatprep.subr.bf16.mxu0 0
  %2554 = vmatpush1.bf16.msra.mxu0 0
  %2555 = vmatprep.subr.bf16.mxu0 0
  %2556 = vmatpush1.bf16.msra.mxu0 0
  %2557 = vmatprep.subr.bf16.mxu0 0
  %2558 = vmatpush1.bf16.msra.mxu0 0
  %2559 = vmatprep.mubr.bf16.mxu0 0
  %2560 = vmatmul.mubr.bf16.gmra.mrb[0].mxu0 %v2525
  %v2561 = vpop.f32.mrb[0].mxu0
  %v2562 = vadd.f32 %v2508, %v2561
  %v2563 = vpop.f32.mrb[0].mxu0
  %v2564 = vpop.f32.mrb[0].mxu0
  %v2565 = vadd.f32 %v2508, %v2564
  %v2566 = vpop.f32.mrb[0].mxu0
  %2567 = vdwg.mxu0
  %v2568 = vld [vmem:[%s2 + $0x22] sm:$0x1]
  %v2569 = vlaneseq
  %v2570 = vshrl.u32 %v2569, 7
  %v2571 = vsub.s32 0, %v2570
  %v2572 = vrot.slane %v2568, %v2571
  %2573 = vrot.lane.b32.xlu0 %v2520, 96
  %v2574 = vpop.permute.xlu0 %2573
  %2575 = vrot.lane.b32.xlu0 %v2521, 96
  %v2576 = vpop.permute.xlu0 %2575
  %2579 = vmatprep.subr.bf16.mxu0 0
  %2580 = vmatpush1.bf16.msra.mxu0 %v2574
  %2581 = vmatprep.subr.bf16.mxu0 0
  %2582 = vmatpush1.bf16.msra.mxu0 %v2576
  %2583 = vmatprep.subr.bf16.mxu0 0
  %2584 = vmatpush1.bf16.msra.mxu0 0
  %2585 = vmatprep.subr.bf16.mxu0 0
  %2586 = vmatpush1.bf16.msra.mxu0 0
  %2587 = vmatprep.subr.bf16.mxu0 0
  %2588 = vmatpush1.bf16.msra.mxu0 0
  %2589 = vmatprep.subr.bf16.mxu0 0
  %2590 = vmatpush1.bf16.msra.mxu0 0
  %2591 = vmatprep.subr.bf16.mxu0 0
  %2592 = vmatpush1.bf16.msra.mxu0 0
  %2593 = vmatprep.subr.bf16.mxu0 0
  %2594 = vmatpush1.bf16.msra.mxu0 0
  %2595 = vmatprep.subr.bf16.mxu0 0
  %2596 = vmatpush1.bf16.msra.mxu0 0
  %2597 = vmatprep.subr.bf16.mxu0 0
  %2598 = vmatpush1.bf16.msra.mxu0 0
  %2599 = vmatprep.subr.bf16.mxu0 0
  %2600 = vmatpush1.bf16.msra.mxu0 0
  %2601 = vmatprep.subr.bf16.mxu0 0
  %2602 = vmatpush1.bf16.msra.mxu0 0
  %2603 = vmatprep.subr.bf16.mxu0 0
  %2604 = vmatpush1.bf16.msra.mxu0 0
  %2605 = vmatprep.subr.bf16.mxu0 0
  %2606 = vmatpush1.bf16.msra.mxu0 0
  %2607 = vmatprep.subr.bf16.mxu0 0
  %2608 = vmatpush1.bf16.msra.mxu0 0
  %2609 = vmatprep.subr.bf16.mxu0 0
  %2610 = vmatpush1.bf16.msra.mxu0 0
  %2611 = vmatprep.mubr.bf16.mxu0 0
  %2612 = vmatmul.mubr.bf16.gmra.mrb[0].mxu0 %v1578
  %v2613 = vpop.f32.mrb[0].mxu0
  %v2614 = vadd.f32 %v2572, %v2613
  %v2615 = vpop.f32.mrb[0].mxu0
  %v2616 = vpop.f32.mrb[0].mxu0
  %v2617 = vadd.f32 %v2572, %v2616
  %v2618 = vpop.f32.mrb[0].mxu0
  %2619 = vdwg.mxu0
  %v2620 = vmul.f32 %v2614, %v54
  %v2621 = vmul.f32 %v2617, %v55
  %v2622 = vmul.f32 %v2614, %v56
  %v2623 = vmul.f32 %v2617, %v57
  %v2624 = vmul.f32 %v2614, %v134
  %v2625 = vmul.f32 %v2617, %v136
  %v2626 = vmul.f32 %v2614, %v138
  %v2627 = vmul.f32 %v2617, %v140
  %v2628 = vpack.c.bf16 %v2565, %v2562
  %v2629 = vpack.c.bf16 %v2621, %v2620
  %v2630 = vpack.c.bf16 %v2623, %v2622
  %v2632 = vsel %vm82, %v2628, 0
  %v2635 = vsel %vm82, %v2629, 0
  %v2638 = vsel %vm82, %v2630, 0
  %2640 = vmatprep.subr.bf16.mxu0 0
  %2641 = vmatpush1.bf16.xpose.msra.mxu0 %v2635
  %2642 = vmatprep.subr.bf16.mxu0 0
  %2643 = vmatpush1.bf16.xpose.msra.mxu0 %v2638
  %2644 = vmatprep.subr.bf16.mxu0 0
  %2645 = vmatpush1.bf16.xpose.msra.mxu0 0
  %2646 = vmatprep.subr.bf16.mxu0 0
  %2647 = vmatpush1.bf16.xpose.msra.mxu0 0
  %2648 = vmatprep.subr.bf16.mxu0 0
  %2649 = vmatpush1.bf16.xpose.msra.mxu0 0
  %2650 = vmatprep.subr.bf16.mxu0 0
  %2651 = vmatpush1.bf16.xpose.msra.mxu0 0
  %2652 = vmatprep.subr.bf16.mxu0 0
  %2653 = vmatpush1.bf16.xpose.msra.mxu0 0
  %2654 = vmatprep.subr.bf16.mxu0 0
  %2655 = vmatpush1.bf16.xpose.msra.mxu0 0
  %2656 = vmatprep.subr.bf16.mxu0 0
  %2657 = vmatpush1.bf16.xpose.msra.mxu0 0
  %2658 = vmatprep.subr.bf16.mxu0 0
  %2659 = vmatpush1.bf16.xpose.msra.mxu0 0
  %2660 = vmatprep.subr.bf16.mxu0 0
  %2661 = vmatpush1.bf16.xpose.msra.mxu0 0
  %2662 = vmatprep.subr.bf16.mxu0 0
  %2663 = vmatpush1.bf16.xpose.msra.mxu0 0
  %2664 = vmatprep.subr.bf16.mxu0 0
  %2665 = vmatpush1.bf16.xpose.msra.mxu0 0
  %2666 = vmatprep.subr.bf16.mxu0 0
  %2667 = vmatpush1.bf16.xpose.msra.mxu0 0
  %2668 = vmatprep.subr.bf16.mxu0 0
  %2669 = vmatpush1.bf16.xpose.msra.mxu0 0
  %2670 = vmatprep.subr.bf16.mxu0 0
  %2671 = vmatpush1.bf16.xpose.msra.mxu0 0
  %2672 = vmatprep.mubr.bf16.mxu0 0
  %2673 = vmatmul.mubr.bf16.gmra.mrb[0].mxu0 %v2632
  %v2674 = vpop.f32.mrb[0].mxu0
  %v2675 = vadd.f32 0.0, %v2674
  %v2676 = vpop.f32.mrb[0].mxu0
  %v2677 = vpop.f32.mrb[0].mxu0
  %v2678 = vadd.f32 0.0, %v2677
  %v2679 = vpop.f32.mrb[0].mxu0
  %2680 = vdwg.mxu0
  %v2681 = vmul.f32 %v2675, 0.25
  %v2682 = vmul.f32 %v2678, 0.25
  %v2683 = vadd.f32 %v2681, %v1622
  %v2684 = vadd.f32 %v2682, %v1623
  %v2685 = vsel %vm82, %v2683, -inf
  %2686 = vmax.xlane.f32.xlu0 %v2685
  %v2687 = vpop.xlane.xlu0 %2686
  %v2688 = vsel %vm82, %v2684, -inf
  %2689 = vmax.xlane.f32.xlu0 %v2688
  %v2690 = vpop.xlane.xlu0 %2689
  %v2691 = vsub.f32 %v2683, %v2687
  %v2692 = vsub.f32 %v2684, %v2690
  %v2693 = vmul.f32 %v2691, 1.442695
  %v2694 = vpow.pop %v2693
  %v2695 = vmul.f32 %v2692, 1.442695
  %v2696 = vpow.pop %v2695
  %v2697 = vsel %vm241, %v2694, 0.0
  %v2698 = vsel %vm241, %v2696, 0.0
  %v2699 = vsel %vm82, %v2697, 0.0
  %2700 = vadd.xlane.f32.xlu0 %v2699
  %v2701 = vpop.xlane.xlu0 %2700
  %v2702 = vsel %vm82, %v2698, 0.0
  %2703 = vadd.xlane.f32.xlu0 %v2702
  %v2704 = vpop.xlane.xlu0 %2703
  %v2705 = vsel %vm82, %v2694, 0.0
  %2706 = vadd.xlane.f32.xlu0 %v2705
  %v2707 = vpop.xlane.xlu0 %2706
  %v2708 = vsel %vm82, %v2696, 0.0
  %2709 = vadd.xlane.f32.xlu0 %v2708
  %v2710 = vpop.xlane.xlu0 %2709
  %v2711 = vsub.f32 %v2707, %v2701
  %v2712 = vsub.f32 %v2710, %v2704
  %v2713 = vpack.c.bf16 %v2696, %v2694
  %v2714 = vpack.c.bf16 %v2625, %v2624
  %v2715 = vpack.c.bf16 %v2627, %v2626
  %2718 = vrot.lane.b32.xlu0 %v2714, 96
  %v2719 = vpop.permute.xlu0 %2718
  %2720 = vrot.lane.b32.xlu0 %v2715, 96
  %v2721 = vpop.permute.xlu0 %2720
  %v2725 = vsel %vm82, %v2713, 0
  %2727 = vmatprep.subr.bf16.mxu0 0
  %2728 = vmatpush1.bf16.msra.mxu0 %v2719
  %2729 = vmatprep.subr.bf16.mxu0 0
  %2730 = vmatpush1.bf16.msra.mxu0 %v2721
  %2731 = vmatprep.subr.bf16.mxu0 0
  %2732 = vmatpush1.bf16.msra.mxu0 0
  %2733 = vmatprep.subr.bf16.mxu0 0
  %2734 = vmatpush1.bf16.msra.mxu0 0
  %2735 = vmatprep.subr.bf16.mxu0 0
  %2736 = vmatpush1.bf16.msra.mxu0 0
  %2737 = vmatprep.subr.bf16.mxu0 0
  %2738 = vmatpush1.bf16.msra.mxu0 0
  %2739 = vmatprep.subr.bf16.mxu0 0
  %2740 = vmatpush1.bf16.msra.mxu0 0
  %2741 = vmatprep.subr.bf16.mxu0 0
  %2742 = vmatpush1.bf16.msra.mxu0 0
  %2743 = vmatprep.subr.bf16.mxu0 0
  %2744 = vmatpush1.bf16.msra.mxu0 0
  %2745 = vmatprep.subr.bf16.mxu0 0
  %2746 = vmatpush1.bf16.msra.mxu0 0
  %2747 = vmatprep.subr.bf16.mxu0 0
  %2748 = vmatpush1.bf16.msra.mxu0 0
  %2749 = vmatprep.subr.bf16.mxu0 0
  %2750 = vmatpush1.bf16.msra.mxu0 0
  %2751 = vmatprep.subr.bf16.mxu0 0
  %2752 = vmatpush1.bf16.msra.mxu0 0
  %2753 = vmatprep.subr.bf16.mxu0 0
  %2754 = vmatpush1.bf16.msra.mxu0 0
  %2755 = vmatprep.subr.bf16.mxu0 0
  %2756 = vmatpush1.bf16.msra.mxu0 0
  %2757 = vmatprep.subr.bf16.mxu0 0
  %2758 = vmatpush1.bf16.msra.mxu0 0
  %2759 = vmatprep.mubr.bf16.mxu0 0
  %2760 = vmatmul.mubr.bf16.gmra.mrb[0].mxu0 %v2725
  %v2761 = vpop.f32.mrb[0].mxu0
  %v2762 = vadd.f32 0.0, %v2761
  %v2763 = vpop.f32.mrb[0].mxu0
  %v2764 = vpop.f32.mrb[0].mxu0
  %v2765 = vadd.f32 0.0, %v2764
  %v2766 = vpop.f32.mrb[0].mxu0
  %2767 = vdwg.mxu0
  %v2768 = vrcp.pop %v2701
  %v2769 = vrcp.pop %v2704
  %v2770 = vrcp.pop %v2711
  %v2771 = vrcp.pop %v2712
  %v2772 = vsel %vm241, %v2768, %v2770
  %v2773 = vsel %vm241, %v2769, %v2771
  %v2774 = vmul.f32 %v2762, %v2772
  %v2775 = vmul.f32 %v2765, %v2773
  %v2776 = vpack.c.bf16 %v2775, %v2774
  %v2777 = vld [vmem:[%s2 + $0x23] sm:$0x1]
  %v2778 = vlaneseq
  %v2779 = vshrl.u32 %v2778, 7
  %v2780 = vsub.s32 0, %v2779
  %v2781 = vrot.slane %v2777, %v2780
  %2782 = vrot.lane.b32.xlu0 %v2520, 32
  %v2783 = vpop.permute.xlu0 %2782
  %2784 = vrot.lane.b32.xlu0 %v2521, 32
  %v2785 = vpop.permute.xlu0 %2784
  %v2789 = vsel %vm82, %v2776, 0
  %2791 = vmatprep.subr.bf16.mxu0 0
  %2792 = vmatpush1.bf16.msra.mxu0 %v2783
  %2793 = vmatprep.subr.bf16.mxu0 0
  %2794 = vmatpush1.bf16.msra.mxu0 %v2785
  %2795 = vmatprep.subr.bf16.mxu0 0
  %2796 = vmatpush1.bf16.msra.mxu0 0
  %2797 = vmatprep.subr.bf16.mxu0 0
  %2798 = vmatpush1.bf16.msra.mxu0 0
  %2799 = vmatprep.subr.bf16.mxu0 0
  %2800 = vmatpush1.bf16.msra.mxu0 0
  %2801 = vmatprep.subr.bf16.mxu0 0
  %2802 = vmatpush1.bf16.msra.mxu0 0
  %2803 = vmatprep.subr.bf16.mxu0 0
  %2804 = vmatpush1.bf16.msra.mxu0 0
  %2805 = vmatprep.subr.bf16.mxu0 0
  %2806 = vmatpush1.bf16.msra.mxu0 0
  %2807 = vmatprep.subr.bf16.mxu0 0
  %2808 = vmatpush1.bf16.msra.mxu0 0
  %2809 = vmatprep.subr.bf16.mxu0 0
  %2810 = vmatpush1.bf16.msra.mxu0 0
  %2811 = vmatprep.subr.bf16.mxu0 0
  %2812 = vmatpush1.bf16.msra.mxu0 0
  %2813 = vmatprep.subr.bf16.mxu0 0
  %2814 = vmatpush1.bf16.msra.mxu0 0
  %2815 = vmatprep.subr.bf16.mxu0 0
  %2816 = vmatpush1.bf16.msra.mxu0 0
  %2817 = vmatprep.subr.bf16.mxu0 0
  %2818 = vmatpush1.bf16.msra.mxu0 0
  %2819 = vmatprep.subr.bf16.mxu0 0
  %2820 = vmatpush1.bf16.msra.mxu0 0
  %2821 = vmatprep.subr.bf16.mxu0 0
  %2822 = vmatpush1.bf16.msra.mxu0 0
  %2823 = vmatprep.mubr.bf16.mxu0 0
  %2824 = vmatmul.mubr.bf16.gmra.mrb[0].mxu0 %v2789
  %v2825 = vpop.f32.mrb[0].mxu0
  %v2826 = vadd.f32 %v2781, %v2825
  %v2827 = vpop.f32.mrb[0].mxu0
  %v2828 = vpop.f32.mrb[0].mxu0
  %v2829 = vadd.f32 %v2781, %v2828
  %v2830 = vpop.f32.mrb[0].mxu0
  %2831 = vdwg.mxu0
  %2834 = vrot.lane.b32.xlu0 %v2826, 32
  %v2835 = vpop.permute.xlu0 %2834
  %2836 = vrot.lane.b32.xlu0 %v2829, 32
  %v2837 = vpop.permute.xlu0 %2836
  %v2840 = vadd.f32 %v2497, %v2835
  %v2841 = vadd.f32 %v2498, %v2837
  %v2842 = vld [vmem:[%s2 + $0x24] sm:$0x1]
  %v2843 = vld [vmem:[%s2 + $0x25] sm:$0x1]
  %2846 = vrot.lane.b32.xlu0 %v2840, 96
  %v2847 = vpop.permute.xlu0 %2846
  %2848 = vrot.lane.b32.xlu0 %v2841, 96
  %v2849 = vpop.permute.xlu0 %2848
  %v2852 = vsel %vm82, %v2847, 0.0
  %2853 = vadd.xlane.f32.xlu0 %v2852
  %v2854 = vpop.xlane.xlu0 %2853
  %v2855 = vsel %vm82, %v2849, 0.0
  %2856 = vadd.xlane.f32.xlu0 %v2855
  %v2857 = vpop.xlane.xlu0 %2856
  %v2858 = vmul.f32 %v2854, %v387
  %v2859 = vmul.f32 %v2857, %v387
  %v2860 = vsub.f32 %v2840, %v2858
  %v2861 = vsub.f32 %v2841, %v2859
  %v2862 = vmul.f32 %v2860, %v2860
  %v2863 = vmul.f32 %v2861, %v2861
  %2866 = vrot.lane.b32.xlu0 %v2862, 96
  %v2867 = vpop.permute.xlu0 %2866
  %2868 = vrot.lane.b32.xlu0 %v2863, 96
  %v2869 = vpop.permute.xlu0 %2868
  %v2872 = vsel %vm82, %v2867, 0.0
  %2873 = vadd.xlane.f32.xlu0 %v2872
  %v2874 = vpop.xlane.xlu0 %2873
  %v2875 = vsel %vm82, %v2869, 0.0
  %2876 = vadd.xlane.f32.xlu0 %v2875
  %v2877 = vpop.xlane.xlu0 %2876
  %v2878 = vmul.f32 %v2874, %v387
  %v2879 = vmul.f32 %v2877, %v387
  %v2880 = vadd.f32 %v2878, 1e-05
  %v2881 = vadd.f32 %v2879, 1e-05
  %v2882 = vrsqrt.pop %v2880
  %v2883 = vrsqrt.pop %v2881
  %v2884 = vmul.f32 %v2860, %v2882
  %v2885 = vmul.f32 %v2861, %v2883
  %v2886 = vlaneseq
  %v2887 = vshrl.u32 %v2886, 7
  %v2888 = vsub.s32 0, %v2887
  %v2889 = vrot.slane %v2842, %v2888
  %2891 = vrot.lane.b32.xlu0 %v2889, 32
  %v2892 = vpop.permute.xlu0 %2891
  %v2894 = vmul.f32 %v2884, %v2892
  %v2895 = vmul.f32 %v2885, %v2892
  %v2896 = vlaneseq
  %v2897 = vshrl.u32 %v2896, 7
  %v2898 = vsub.s32 0, %v2897
  %v2899 = vrot.slane %v2843, %v2898
  %2901 = vrot.lane.b32.xlu0 %v2899, 32
  %v2902 = vpop.permute.xlu0 %2901
  %v2904 = vadd.f32 %v2894, %v2902
  %v2905 = vadd.f32 %v2895, %v2902
  %v2906 = vld [vmem:[%s2137 + $0x8] sm:$0xf]
  %v2907 = vld [vmem:[%s2137 + $0x14] sm:$0xf]
  %v2908 = vld [vmem:[%s2137 + $0x20] sm:$0xf]
  %v2909 = vld [vmem:[%s2137 + $0x2c] sm:$0xf]
  %v2910 = vpack.c.bf16 %v2905, %v2904
  %v2911 = vld [vmem:[%s2 + $0x26] sm:$0x1]
  %v2912 = vlaneseq
  %v2913 = vshrl.u32 %v2912, 7
  %v2914 = vsub.s32 0, %v2913
  %v2915 = vrot.slane %v2911, %v2914
  %2917 = vrot.lane.b32.xlu0 %v2910, 96
  %v2918 = vpop.permute.xlu0 %2917
  %v2923 = vunpack.c.l.b16 %v2906
  %v2924 = vunpack.c.l.b16 %v2907
  %v2925 = vunpack.c.l.b16 %v2908
  %v2926 = vunpack.c.l.b16 %v2909
  %v2927 = vpack.c.b16 %v2924, %v2923
  %v2928 = vpack.c.b16 %v2926, %v2925
  %v2932 = vsel %vm82, %v2918, 0
  %2934 = vmatprep.subr.bf16.mxu0 0
  %2935 = vmatpush1.bf16.msra.mxu0 %v2927
  %2936 = vmatprep.subr.bf16.mxu0 0
  %2937 = vmatpush1.bf16.msra.mxu0 %v2928
  %2938 = vmatprep.subr.bf16.mxu0 0
  %2939 = vmatpush1.bf16.msra.mxu0 0
  %2940 = vmatprep.subr.bf16.mxu0 0
  %2941 = vmatpush1.bf16.msra.mxu0 0
  %2942 = vmatprep.subr.bf16.mxu0 0
  %2943 = vmatpush1.bf16.msra.mxu0 0
  %2944 = vmatprep.subr.bf16.mxu0 0
  %2945 = vmatpush1.bf16.msra.mxu0 0
  %2946 = vmatprep.subr.bf16.mxu0 0
  %2947 = vmatpush1.bf16.msra.mxu0 0
  %2948 = vmatprep.subr.bf16.mxu0 0
  %2949 = vmatpush1.bf16.msra.mxu0 0
  %2950 = vmatprep.subr.bf16.mxu0 0
  %2951 = vmatpush1.bf16.msra.mxu0 0
  %2952 = vmatprep.subr.bf16.mxu0 0
  %2953 = vmatpush1.bf16.msra.mxu0 0
  %2954 = vmatprep.subr.bf16.mxu0 0
  %2955 = vmatpush1.bf16.msra.mxu0 0
  %2956 = vmatprep.subr.bf16.mxu0 0
  %2957 = vmatpush1.bf16.msra.mxu0 0
  %2958 = vmatprep.subr.bf16.mxu0 0
  %2959 = vmatpush1.bf16.msra.mxu0 0
  %2960 = vmatprep.subr.bf16.mxu0 0
  %2961 = vmatpush1.bf16.msra.mxu0 0
  %2962 = vmatprep.subr.bf16.mxu0 0
  %2963 = vmatpush1.bf16.msra.mxu0 0
  %2964 = vmatprep.subr.bf16.mxu0 0
  %2965 = vmatpush1.bf16.msra.mxu0 0
  %2966 = vmatprep.mubr.bf16.mxu0 0
  %2967 = vmatmul.mubr.bf16.gmra.mrb[0].mxu0 %v2932
  %v2968 = vpop.f32.mrb[0].mxu0
  %v2969 = vadd.f32 %v2915, %v2968
  %v2970 = vpop.f32.mrb[0].mxu0
  %v2971 = vpop.f32.mrb[0].mxu0
  %v2972 = vadd.f32 %v2915, %v2971
  %v2973 = vpop.f32.mrb[0].mxu0
  %2974 = vdwg.mxu0
  %v2975 = vmax.f32 %v2969, 0.0
  %v2976 = vmax.f32 %v2972, 0.0
  %s2977 = scalar_lea.vmem %s6, 32
  %v2978 = vld [vmem:[%s2977] sm:$0xf]
  %v2979 = vld [vmem:[%s2977 + $0x4] sm:$0xf]
  %v2980 = vld [vmem:[%s2977 + $0x8] sm:$0xf]
  %v2981 = vld [vmem:[%s2977 + $0xc] sm:$0xf]
  %v2982 = vld [vmem:[%s2977 + $0x10] sm:$0xf]
  %v2983 = vld [vmem:[%s2977 + $0x14] sm:$0xf]
  %v2984 = vld [vmem:[%s2977 + $0x18] sm:$0xf]
  %v2985 = vld [vmem:[%s2977 + $0x1c] sm:$0xf]
  %v2986 = vpack.c.bf16 %v2976, %v2975
  %v2987 = vld [vmem:[%s2 + $0x27] sm:$0x1]
  %v2988 = vlaneseq
  %v2989 = vshrl.u32 %v2988, 7
  %v2990 = vsub.s32 0, %v2989
  %v2991 = vrot.slane %v2987, %v2990
  %v3000 = vunpack.c.l.b16 %v2978
  %v3001 = vunpack.c.l.b16 %v2979
  %v3002 = vunpack.c.l.b16 %v2980
  %v3003 = vunpack.c.l.b16 %v2981
  %v3004 = vunpack.c.l.b16 %v2982
  %v3005 = vunpack.c.l.b16 %v2983
  %v3006 = vunpack.c.l.b16 %v2984
  %v3007 = vunpack.c.l.b16 %v2985
  %v3008 = vpack.c.b16 %v3001, %v3000
  %v3009 = vpack.c.b16 %v3003, %v3002
  %v3010 = vpack.c.b16 %v3005, %v3004
  %v3011 = vpack.c.b16 %v3007, %v3006
  %v3017 = vsel %vm526, %v2986, 0
  %3019 = vmatprep.subr.bf16.mxu0 0
  %3020 = vmatpush1.bf16.msra.mxu0 %v3008
  %3021 = vmatprep.subr.bf16.mxu0 0
  %3022 = vmatpush1.bf16.msra.mxu0 %v3009
  %3023 = vmatprep.subr.bf16.mxu0 0
  %3024 = vmatpush1.bf16.msra.mxu0 %v3010
  %3025 = vmatprep.subr.bf16.mxu0 0
  %3026 = vmatpush1.bf16.msra.mxu0 %v3011
  %3027 = vmatprep.subr.bf16.mxu0 0
  %3028 = vmatpush1.bf16.msra.mxu0 0
  %3029 = vmatprep.subr.bf16.mxu0 0
  %3030 = vmatpush1.bf16.msra.mxu0 0
  %3031 = vmatprep.subr.bf16.mxu0 0
  %3032 = vmatpush1.bf16.msra.mxu0 0
  %3033 = vmatprep.subr.bf16.mxu0 0
  %3034 = vmatpush1.bf16.msra.mxu0 0
  %3035 = vmatprep.subr.bf16.mxu0 0
  %3036 = vmatpush1.bf16.msra.mxu0 0
  %3037 = vmatprep.subr.bf16.mxu0 0
  %3038 = vmatpush1.bf16.msra.mxu0 0
  %3039 = vmatprep.subr.bf16.mxu0 0
  %3040 = vmatpush1.bf16.msra.mxu0 0
  %3041 = vmatprep.subr.bf16.mxu0 0
  %3042 = vmatpush1.bf16.msra.mxu0 0
  %3043 = vmatprep.subr.bf16.mxu0 0
  %3044 = vmatpush1.bf16.msra.mxu0 0
  %3045 = vmatprep.subr.bf16.mxu0 0
  %3046 = vmatpush1.bf16.msra.mxu0 0
  %3047 = vmatprep.subr.bf16.mxu0 0
  %3048 = vmatpush1.bf16.msra.mxu0 0
  %3049 = vmatprep.subr.bf16.mxu0 0
  %3050 = vmatpush1.bf16.msra.mxu0 0
  %3051 = vmatprep.mubr.bf16.mxu0 0
  %3052 = vmatmul.mubr.bf16.gmra.mrb[0].mxu0 %v3017
  %v3053 = vpop.f32.mrb[0].mxu0
  %v3054 = vadd.f32 %v2991, %v3053
  %v3055 = vpop.f32.mrb[0].mxu0
  %v3056 = vpop.f32.mrb[0].mxu0
  %v3057 = vadd.f32 %v2991, %v3056
  %v3058 = vpop.f32.mrb[0].mxu0
  %3059 = vdwg.mxu0
  %3062 = vrot.lane.b32.xlu0 %v3054, 32
  %v3063 = vpop.permute.xlu0 %3062
  %3064 = vrot.lane.b32.xlu0 %v3057, 32
  %v3065 = vpop.permute.xlu0 %3064
  %v3068 = vadd.f32 %v2904, %v3063
  %v3069 = vadd.f32 %v2905, %v3065
  %v3070 = vld [vmem:[%s2 + $0x28] sm:$0x1]
  %v3071 = vld [vmem:[%s2 + $0x29] sm:$0x1]
  %3074 = vrot.lane.b32.xlu0 %v3068, 96
  %v3075 = vpop.permute.xlu0 %3074
  %3076 = vrot.lane.b32.xlu0 %v3069, 96
  %v3077 = vpop.permute.xlu0 %3076
  %v3080 = vsel %vm82, %v3075, 0.0
  %3081 = vadd.xlane.f32.xlu0 %v3080
  %v3082 = vpop.xlane.xlu0 %3081
  %v3083 = vsel %vm82, %v3077, 0.0
  %3084 = vadd.xlane.f32.xlu0 %v3083
  %v3085 = vpop.xlane.xlu0 %3084
  %v3086 = vmul.f32 %v3082, %v387
  %v3087 = vmul.f32 %v3085, %v387
  %v3088 = vsub.f32 %v3068, %v3086
  %v3089 = vsub.f32 %v3069, %v3087
  %v3090 = vmul.f32 %v3088, %v3088
  %v3091 = vmul.f32 %v3089, %v3089
  %3094 = vrot.lane.b32.xlu0 %v3090, 96
  %v3095 = vpop.permute.xlu0 %3094
  %3096 = vrot.lane.b32.xlu0 %v3091, 96
  %v3097 = vpop.permute.xlu0 %3096
  %v3100 = vsel %vm82, %v3095, 0.0
  %3101 = vadd.xlane.f32.xlu0 %v3100
  %v3102 = vpop.xlane.xlu0 %3101
  %v3103 = vsel %vm82, %v3097, 0.0
  %3104 = vadd.xlane.f32.xlu0 %v3103
  %v3105 = vpop.xlane.xlu0 %3104
  %v3106 = vmul.f32 %v3102, %v387
  %v3107 = vmul.f32 %v3105, %v387
  %v3108 = vadd.f32 %v3106, 1e-05
  %v3109 = vadd.f32 %v3107, 1e-05
  %v3110 = vrsqrt.pop %v3108
  %v3111 = vrsqrt.pop %v3109
  %v3112 = vmul.f32 %v3088, %v3110
  %v3113 = vmul.f32 %v3089, %v3111
  %v3114 = vlaneseq
  %v3115 = vshrl.u32 %v3114, 7
  %v3116 = vsub.s32 0, %v3115
  %v3117 = vrot.slane %v3070, %v3116
  %3119 = vrot.lane.b32.xlu0 %v3117, 32
  %v3120 = vpop.permute.xlu0 %3119
  %v3122 = vmul.f32 %v3112, %v3120
  %v3123 = vmul.f32 %v3113, %v3120
  %v3124 = vlaneseq
  %v3125 = vshrl.u32 %v3124, 7
  %v3126 = vsub.s32 0, %v3125
  %v3127 = vrot.slane %v3071, %v3126
  %3129 = vrot.lane.b32.xlu0 %v3127, 32
  %v3130 = vpop.permute.xlu0 %3129
  %v3132 = vadd.f32 %v3122, %v3130
  %v3133 = vadd.f32 %v3123, %v3130
  %s3134 = scalar_lea.vmem %s5, 96
  %v3135 = vld [vmem:[%s3134] sm:$0xf]
  %v3136 = vld [vmem:[%s3134 + $0xc] sm:$0xf]
  %v3137 = vld [vmem:[%s3134 + $0x18] sm:$0xf]
  %v3138 = vld [vmem:[%s3134 + $0x24] sm:$0xf]
  %v3139 = vld [vmem:[%s2 + $0x2a] sm:$0x1]
  %v3140 = vlaneseq
  %v3141 = vshrl.u32 %v3140, 7
  %v3142 = vsub.s32 0, %v3141
  %v3143 = vrot.slane %v3139, %v3142
  %3144 = vrot.lane.b32.xlu0 %v64, 64
  %v3145 = vpop.permute.xlu0 %3144
  %v3150 = vunpack.c.l.b16 %v3135
  %v3151 = vunpack.c.l.b16 %v3136
  %v3152 = vunpack.c.l.b16 %v3137
  %v3153 = vunpack.c.l.b16 %v3138
  %v3154 = vpack.c.b16 %v3151, %v3150
  %v3155 = vpack.c.b16 %v3153, %v3152
  %v3159 = vsel %vm82, %v3145, 0
  %3161 = vmatprep.subr.bf16.mxu0 0
  %3162 = vmatpush1.bf16.msra.mxu0 %v3154
  %3163 = vmatprep.subr.bf16.mxu0 0
  %3164 = vmatpush1.bf16.msra.mxu0 %v3155
  %3165 = vmatprep.subr.bf16.mxu0 0
  %3166 = vmatpush1.bf16.msra.mxu0 0
  %3167 = vmatprep.subr.bf16.mxu0 0
  %3168 = vmatpush1.bf16.msra.mxu0 0
  %3169 = vmatprep.subr.bf16.mxu0 0
  %3170 = vmatpush1.bf16.msra.mxu0 0
  %3171 = vmatprep.subr.bf16.mxu0 0
  %3172 = vmatpush1.bf16.msra.mxu0 0
  %3173 = vmatprep.subr.bf16.mxu0 0
  %3174 = vmatpush1.bf16.msra.mxu0 0
  %3175 = vmatprep.subr.bf16.mxu0 0
  %3176 = vmatpush1.bf16.msra.mxu0 0
  %3177 = vmatprep.subr.bf16.mxu0 0
  %3178 = vmatpush1.bf16.msra.mxu0 0
  %3179 = vmatprep.subr.bf16.mxu0 0
  %3180 = vmatpush1.bf16.msra.mxu0 0
  %3181 = vmatprep.subr.bf16.mxu0 0
  %3182 = vmatpush1.bf16.msra.mxu0 0
  %3183 = vmatprep.subr.bf16.mxu0 0
  %3184 = vmatpush1.bf16.msra.mxu0 0
  %3185 = vmatprep.subr.bf16.mxu0 0
  %3186 = vmatpush1.bf16.msra.mxu0 0
  %3187 = vmatprep.subr.bf16.mxu0 0
  %3188 = vmatpush1.bf16.msra.mxu0 0
  %3189 = vmatprep.subr.bf16.mxu0 0
  %3190 = vmatpush1.bf16.msra.mxu0 0
  %3191 = vmatprep.subr.bf16.mxu0 0
  %3192 = vmatpush1.bf16.msra.mxu0 0
  %3193 = vmatprep.mubr.bf16.mxu0 0
  %3194 = vmatmul.mubr.bf16.gmra.mrb[0].mxu0 %v3159
  %v3195 = vpop.f32.mrb[0].mxu0
  %v3196 = vadd.f32 %v3143, %v3195
  %v3197 = vpop.f32.mrb[0].mxu0
  %v3198 = vpop.f32.mrb[0].mxu0
  %v3199 = vadd.f32 %v3143, %v3198
  %v3200 = vpop.f32.mrb[0].mxu0
  %3201 = vdwg.mxu0
  %v3202 = vmul.f32 %v3196, %v134
  %v3203 = vmul.f32 %v3199, %v136
  %v3204 = vmul.f32 %v3196, %v138
  %v3205 = vmul.f32 %v3199, %v140
  %v3206 = vmul.f32 %v3196, %v150
  %v3207 = vmul.f32 %v3199, %v152
  %v3208 = vmul.f32 %v3196, %v154
  %v3209 = vmul.f32 %v3199, %v156
  %v3210 = vpack.c.bf16 %v3199, %v3196
  %v3211 = vpack.c.bf16 %v3203, %v3202
  %v3212 = vpack.c.bf16 %v3205, %v3204
  %3215 = vrot.lane.b32.xlu0 %v3211, 96
  %v3216 = vpop.permute.xlu0 %3215
  %3217 = vrot.lane.b32.xlu0 %v3212, 96
  %v3218 = vpop.permute.xlu0 %3217
  %v3220 = vsel %vm82, %v3210, 0
  %v3223 = vsel %vm82, %v3216, 0
  %v3226 = vsel %vm82, %v3218, 0
  %3228 = vmatprep.subr.bf16.mxu0 0
  %3229 = vmatpush1.bf16.xpose.msra.mxu0 %v3223
  %3230 = vmatprep.subr.bf16.mxu0 0
  %3231 = vmatpush1.bf16.xpose.msra.mxu0 %v3226
  %3232 = vmatprep.subr.bf16.mxu0 0
  %3233 = vmatpush1.bf16.xpose.msra.mxu0 0
  %3234 = vmatprep.subr.bf16.mxu0 0
  %3235 = vmatpush1.bf16.xpose.msra.mxu0 0
  %3236 = vmatprep.subr.bf16.mxu0 0
  %3237 = vmatpush1.bf16.xpose.msra.mxu0 0
  %3238 = vmatprep.subr.bf16.mxu0 0
  %3239 = vmatpush1.bf16.xpose.msra.mxu0 0
  %3240 = vmatprep.subr.bf16.mxu0 0
  %3241 = vmatpush1.bf16.xpose.msra.mxu0 0
  %3242 = vmatprep.subr.bf16.mxu0 0
  %3243 = vmatpush1.bf16.xpose.msra.mxu0 0
  %3244 = vmatprep.subr.bf16.mxu0 0
  %3245 = vmatpush1.bf16.xpose.msra.mxu0 0
  %3246 = vmatprep.subr.bf16.mxu0 0
  %3247 = vmatpush1.bf16.xpose.msra.mxu0 0
  %3248 = vmatprep.subr.bf16.mxu0 0
  %3249 = vmatpush1.bf16.xpose.msra.mxu0 0
  %3250 = vmatprep.subr.bf16.mxu0 0
  %3251 = vmatpush1.bf16.xpose.msra.mxu0 0
  %3252 = vmatprep.subr.bf16.mxu0 0
  %3253 = vmatpush1.bf16.xpose.msra.mxu0 0
  %3254 = vmatprep.subr.bf16.mxu0 0
  %3255 = vmatpush1.bf16.xpose.msra.mxu0 0
  %3256 = vmatprep.subr.bf16.mxu0 0
  %3257 = vmatpush1.bf16.xpose.msra.mxu0 0
  %3258 = vmatprep.subr.bf16.mxu0 0
  %3259 = vmatpush1.bf16.xpose.msra.mxu0 0
  %3260 = vmatprep.mubr.bf16.mxu0 0
  %3261 = vmatmul.mubr.bf16.gmra.mrb[0].mxu0 %v3220
  %v3262 = vpop.f32.mrb[0].mxu0
  %v3263 = vadd.f32 0.0, %v3262
  %v3264 = vpop.f32.mrb[0].mxu0
  %v3265 = vpop.f32.mrb[0].mxu0
  %v3266 = vadd.f32 0.0, %v3265
  %v3267 = vpop.f32.mrb[0].mxu0
  %3268 = vdwg.mxu0
  %v3269 = vmul.f32 %v3263, 0.25
  %v3270 = vmul.f32 %v3266, 0.25
  %v3271 = vadd.f32 %v3269, %v1203
  %v3272 = vadd.f32 %v3270, %v1204
  %v3273 = vsel %vm82, %v3271, -inf
  %3274 = vmax.xlane.f32.xlu0 %v3273
  %v3275 = vpop.xlane.xlu0 %3274
  %v3276 = vsel %vm82, %v3272, -inf
  %3277 = vmax.xlane.f32.xlu0 %v3276
  %v3278 = vpop.xlane.xlu0 %3277
  %v3279 = vsub.f32 %v3271, %v3275
  %v3280 = vsub.f32 %v3272, %v3278
  %v3281 = vmul.f32 %v3279, 1.442695
  %v3282 = vpow.pop %v3281
  %v3283 = vmul.f32 %v3280, 1.442695
  %v3284 = vpow.pop %v3283
  %v3285 = vsel %vm241, %v3282, 0.0
  %v3286 = vsel %vm241, %v3284, 0.0
  %v3287 = vsel %vm82, %v3285, 0.0
  %3288 = vadd.xlane.f32.xlu0 %v3287
  %v3289 = vpop.xlane.xlu0 %3288
  %v3290 = vsel %vm82, %v3286, 0.0
  %3291 = vadd.xlane.f32.xlu0 %v3290
  %v3292 = vpop.xlane.xlu0 %3291
  %v3293 = vsel %vm82, %v3282, 0.0
  %3294 = vadd.xlane.f32.xlu0 %v3293
  %v3295 = vpop.xlane.xlu0 %3294
  %v3296 = vsel %vm82, %v3284, 0.0
  %3297 = vadd.xlane.f32.xlu0 %v3296
  %v3298 = vpop.xlane.xlu0 %3297
  %v3299 = vsub.f32 %v3295, %v3289
  %v3300 = vsub.f32 %v3298, %v3292
  %v3301 = vpack.c.bf16 %v3284, %v3282
  %v3302 = vpack.c.bf16 %v3207, %v3206
  %v3303 = vpack.c.bf16 %v3209, %v3208
  %3306 = vrot.lane.b32.xlu0 %v3302, 64
  %v3307 = vpop.permute.xlu0 %3306
  %3308 = vrot.lane.b32.xlu0 %v3303, 64
  %v3309 = vpop.permute.xlu0 %3308
  %v3313 = vsel %vm82, %v3301, 0
  %3315 = vmatprep.subr.bf16.mxu0 0
  %3316 = vmatpush1.bf16.msra.mxu0 %v3307
  %3317 = vmatprep.subr.bf16.mxu0 0
  %3318 = vmatpush1.bf16.msra.mxu0 %v3309
  %3319 = vmatprep.subr.bf16.mxu0 0
  %3320 = vmatpush1.bf16.msra.mxu0 0
  %3321 = vmatprep.subr.bf16.mxu0 0
  %3322 = vmatpush1.bf16.msra.mxu0 0
  %3323 = vmatprep.subr.bf16.mxu0 0
  %3324 = vmatpush1.bf16.msra.mxu0 0
  %3325 = vmatprep.subr.bf16.mxu0 0
  %3326 = vmatpush1.bf16.msra.mxu0 0
  %3327 = vmatprep.subr.bf16.mxu0 0
  %3328 = vmatpush1.bf16.msra.mxu0 0
  %3329 = vmatprep.subr.bf16.mxu0 0
  %3330 = vmatpush1.bf16.msra.mxu0 0
  %3331 = vmatprep.subr.bf16.mxu0 0
  %3332 = vmatpush1.bf16.msra.mxu0 0
  %3333 = vmatprep.subr.bf16.mxu0 0
  %3334 = vmatpush1.bf16.msra.mxu0 0
  %3335 = vmatprep.subr.bf16.mxu0 0
  %3336 = vmatpush1.bf16.msra.mxu0 0
  %3337 = vmatprep.subr.bf16.mxu0 0
  %3338 = vmatpush1.bf16.msra.mxu0 0
  %3339 = vmatprep.subr.bf16.mxu0 0
  %3340 = vmatpush1.bf16.msra.mxu0 0
  %3341 = vmatprep.subr.bf16.mxu0 0
  %3342 = vmatpush1.bf16.msra.mxu0 0
  %3343 = vmatprep.subr.bf16.mxu0 0
  %3344 = vmatpush1.bf16.msra.mxu0 0
  %3345 = vmatprep.subr.bf16.mxu0 0
  %3346 = vmatpush1.bf16.msra.mxu0 0
  %3347 = vmatprep.mubr.bf16.mxu0 0
  %3348 = vmatmul.mubr.bf16.gmra.mrb[0].mxu0 %v3313
  %v3349 = vpop.f32.mrb[0].mxu0
  %v3350 = vadd.f32 0.0, %v3349
  %v3351 = vpop.f32.mrb[0].mxu0
  %v3352 = vpop.f32.mrb[0].mxu0
  %v3353 = vadd.f32 0.0, %v3352
  %v3354 = vpop.f32.mrb[0].mxu0
  %3355 = vdwg.mxu0
  %v3356 = vrcp.pop %v3289
  %v3357 = vrcp.pop %v3292
  %v3358 = vrcp.pop %v3299
  %v3359 = vrcp.pop %v3300
  %v3360 = vsel %vm241, %v3356, %v3358
  %v3361 = vsel %vm241, %v3357, %v3359
  %v3362 = vmul.f32 %v3350, %v3360
  %v3363 = vmul.f32 %v3353, %v3361
  %v3364 = vpack.c.bf16 %v3363, %v3362
  %v3365 = vld [vmem:[%s2 + $0x2b] sm:$0x1]
  %v3366 = vlaneseq
  %v3367 = vshrl.u32 %v3366, 7
  %v3368 = vsub.s32 0, %v3367
  %v3369 = vrot.slane %v3365, %v3368
  %3370 = vrot.lane.b32.xlu0 %v3154, 32
  %v3371 = vpop.permute.xlu0 %3370
  %3372 = vrot.lane.b32.xlu0 %v3155, 32
  %v3373 = vpop.permute.xlu0 %3372
  %v3377 = vsel %vm82, %v3364, 0
  %3379 = vmatprep.subr.bf16.mxu0 0
  %3380 = vmatpush1.bf16.msra.mxu0 %v3371
  %3381 = vmatprep.subr.bf16.mxu0 0
  %3382 = vmatpush1.bf16.msra.mxu0 %v3373
  %3383 = vmatprep.subr.bf16.mxu0 0
  %3384 = vmatpush1.bf16.msra.mxu0 0
  %3385 = vmatprep.subr.bf16.mxu0 0
  %3386 = vmatpush1.bf16.msra.mxu0 0
  %3387 = vmatprep.subr.bf16.mxu0 0
  %3388 = vmatpush1.bf16.msra.mxu0 0
  %3389 = vmatprep.subr.bf16.mxu0 0
  %3390 = vmatpush1.bf16.msra.mxu0 0
  %3391 = vmatprep.subr.bf16.mxu0 0
  %3392 = vmatpush1.bf16.msra.mxu0 0
  %3393 = vmatprep.subr.bf16.mxu0 0
  %3394 = vmatpush1.bf16.msra.mxu0 0
  %3395 = vmatprep.subr.bf16.mxu0 0
  %3396 = vmatpush1.bf16.msra.mxu0 0
  %3397 = vmatprep.subr.bf16.mxu0 0
  %3398 = vmatpush1.bf16.msra.mxu0 0
  %3399 = vmatprep.subr.bf16.mxu0 0
  %3400 = vmatpush1.bf16.msra.mxu0 0
  %3401 = vmatprep.subr.bf16.mxu0 0
  %3402 = vmatpush1.bf16.msra.mxu0 0
  %3403 = vmatprep.subr.bf16.mxu0 0
  %3404 = vmatpush1.bf16.msra.mxu0 0
  %3405 = vmatprep.subr.bf16.mxu0 0
  %3406 = vmatpush1.bf16.msra.mxu0 0
  %3407 = vmatprep.subr.bf16.mxu0 0
  %3408 = vmatpush1.bf16.msra.mxu0 0
  %3409 = vmatprep.subr.bf16.mxu0 0
  %3410 = vmatpush1.bf16.msra.mxu0 0
  %3411 = vmatprep.mubr.bf16.mxu0 0
  %3412 = vmatmul.mubr.bf16.gmra.mrb[0].mxu0 %v3377
  %v3413 = vpop.f32.mrb[0].mxu0
  %v3414 = vadd.f32 %v3369, %v3413
  %v3415 = vpop.f32.mrb[0].mxu0
  %v3416 = vpop.f32.mrb[0].mxu0
  %v3417 = vadd.f32 %v3369, %v3416
  %v3418 = vpop.f32.mrb[0].mxu0
  %3419 = vdwg.mxu0
  %3422 = vrot.lane.b32.xlu0 %v3414, 64
  %v3423 = vpop.permute.xlu0 %3422
  %3424 = vrot.lane.b32.xlu0 %v3417, 64
  %v3425 = vpop.permute.xlu0 %3424
  %v3428 = vadd.f32 %v58, %v3423
  %v3429 = vadd.f32 %v59, %v3425
  %v3430 = vld [vmem:[%s2 + $0x2c] sm:$0x1]
  %v3431 = vld [vmem:[%s2 + $0x2d] sm:$0x1]
  %3434 = vrot.lane.b32.xlu0 %v3428, 64
  %v3435 = vpop.permute.xlu0 %3434
  %3436 = vrot.lane.b32.xlu0 %v3429, 64
  %v3437 = vpop.permute.xlu0 %3436
  %v3440 = vsel %vm82, %v3435, 0.0
  %3441 = vadd.xlane.f32.xlu0 %v3440
  %v3442 = vpop.xlane.xlu0 %3441
  %v3443 = vsel %vm82, %v3437, 0.0
  %3444 = vadd.xlane.f32.xlu0 %v3443
  %v3445 = vpop.xlane.xlu0 %3444
  %v3446 = vmul.f32 %v3442, %v387
  %v3447 = vmul.f32 %v3445, %v387
  %v3448 = vsub.f32 %v3428, %v3446
  %v3449 = vsub.f32 %v3429, %v3447
  %v3450 = vmul.f32 %v3448, %v3448
  %v3451 = vmul.f32 %v3449, %v3449
  %3454 = vrot.lane.b32.xlu0 %v3450, 64
  %v3455 = vpop.permute.xlu0 %3454
  %3456 = vrot.lane.b32.xlu0 %v3451, 64
  %v3457 = vpop.permute.xlu0 %3456
  %v3460 = vsel %vm82, %v3455, 0.0
  %3461 = vadd.xlane.f32.xlu0 %v3460
  %v3462 = vpop.xlane.xlu0 %3461
  %v3463 = vsel %vm82, %v3457, 0.0
  %3464 = vadd.xlane.f32.xlu0 %v3463
  %v3465 = vpop.xlane.xlu0 %3464
  %v3466 = vmul.f32 %v3462, %v387
  %v3467 = vmul.f32 %v3465, %v387
  %v3468 = vadd.f32 %v3466, 1e-05
  %v3469 = vadd.f32 %v3467, 1e-05
  %v3470 = vrsqrt.pop %v3468
  %v3471 = vrsqrt.pop %v3469
  %v3472 = vmul.f32 %v3448, %v3470
  %v3473 = vmul.f32 %v3449, %v3471
  %v3474 = vlaneseq
  %v3475 = vshrl.u32 %v3474, 7
  %v3476 = vsub.s32 0, %v3475
  %v3477 = vrot.slane %v3430, %v3476
  %3479 = vrot.lane.b32.xlu0 %v3477, 64
  %v3480 = vpop.permute.xlu0 %3479
  %v3482 = vmul.f32 %v3472, %v3480
  %v3483 = vmul.f32 %v3473, %v3480
  %v3484 = vlaneseq
  %v3485 = vshrl.u32 %v3484, 7
  %v3486 = vsub.s32 0, %v3485
  %v3487 = vrot.slane %v3431, %v3486
  %3489 = vrot.lane.b32.xlu0 %v3487, 64
  %v3490 = vpop.permute.xlu0 %3489
  %v3492 = vadd.f32 %v3482, %v3490
  %v3493 = vadd.f32 %v3483, %v3490
  %v3494 = vld [vmem:[%s3134 + $0x4] sm:$0xf]
  %v3495 = vld [vmem:[%s3134 + $0x10] sm:$0xf]
  %v3496 = vld [vmem:[%s3134 + $0x1c] sm:$0xf]
  %v3497 = vld [vmem:[%s3134 + $0x28] sm:$0xf]
  %v3498 = vpack.c.bf16 %v3493, %v3492
  %v3499 = vld [vmem:[%s2 + $0x2e] sm:$0x1]
  %v3500 = vlaneseq
  %v3501 = vshrl.u32 %v3500, 7
  %v3502 = vsub.s32 0, %v3501
  %v3503 = vrot.slane %v3499, %v3502
  %3505 = vrot.lane.b32.xlu0 %v3498, 64
  %v3506 = vpop.permute.xlu0 %3505
  %v3511 = vunpack.c.l.b16 %v3494
  %v3512 = vunpack.c.l.b16 %v3495
  %v3513 = vunpack.c.l.b16 %v3496
  %v3514 = vunpack.c.l.b16 %v3497
  %v3515 = vpack.c.b16 %v3512, %v3511
  %v3516 = vpack.c.b16 %v3514, %v3513
  %v3520 = vsel %vm82, %v3506, 0
  %3522 = vmatprep.subr.bf16.mxu0 0
  %3523 = vmatpush1.bf16.msra.mxu0 %v3515
  %3524 = vmatprep.subr.bf16.mxu0 0
  %3525 = vmatpush1.bf16.msra.mxu0 %v3516
  %3526 = vmatprep.subr.bf16.mxu0 0
  %3527 = vmatpush1.bf16.msra.mxu0 0
  %3528 = vmatprep.subr.bf16.mxu0 0
  %3529 = vmatpush1.bf16.msra.mxu0 0
  %3530 = vmatprep.subr.bf16.mxu0 0
  %3531 = vmatpush1.bf16.msra.mxu0 0
  %3532 = vmatprep.subr.bf16.mxu0 0
  %3533 = vmatpush1.bf16.msra.mxu0 0
  %3534 = vmatprep.subr.bf16.mxu0 0
  %3535 = vmatpush1.bf16.msra.mxu0 0
  %3536 = vmatprep.subr.bf16.mxu0 0
  %3537 = vmatpush1.bf16.msra.mxu0 0
  %3538 = vmatprep.subr.bf16.mxu0 0
  %3539 = vmatpush1.bf16.msra.mxu0 0
  %3540 = vmatprep.subr.bf16.mxu0 0
  %3541 = vmatpush1.bf16.msra.mxu0 0
  %3542 = vmatprep.subr.bf16.mxu0 0
  %3543 = vmatpush1.bf16.msra.mxu0 0
  %3544 = vmatprep.subr.bf16.mxu0 0
  %3545 = vmatpush1.bf16.msra.mxu0 0
  %3546 = vmatprep.subr.bf16.mxu0 0
  %3547 = vmatpush1.bf16.msra.mxu0 0
  %3548 = vmatprep.subr.bf16.mxu0 0
  %3549 = vmatpush1.bf16.msra.mxu0 0
  %3550 = vmatprep.subr.bf16.mxu0 0
  %3551 = vmatpush1.bf16.msra.mxu0 0
  %3552 = vmatprep.subr.bf16.mxu0 0
  %3553 = vmatpush1.bf16.msra.mxu0 0
  %3554 = vmatprep.mubr.bf16.mxu0 0
  %3555 = vmatmul.mubr.bf16.gmra.mrb[0].mxu0 %v3520
  %v3556 = vpop.f32.mrb[0].mxu0
  %v3557 = vadd.f32 %v3503, %v3556
  %v3558 = vpop.f32.mrb[0].mxu0
  %v3559 = vpop.f32.mrb[0].mxu0
  %v3560 = vadd.f32 %v3503, %v3559
  %v3561 = vpop.f32.mrb[0].mxu0
  %3562 = vdwg.mxu0
  %v3563 = vld [vmem:[%s2 + $0x2f] sm:$0x1]
  %v3564 = vlaneseq
  %v3565 = vshrl.u32 %v3564, 7
  %v3566 = vsub.s32 0, %v3565
  %v3567 = vrot.slane %v3563, %v3566
  %3568 = vrot.lane.b32.xlu0 %v3515, 96
  %v3569 = vpop.permute.xlu0 %3568
  %3570 = vrot.lane.b32.xlu0 %v3516, 96
  %v3571 = vpop.permute.xlu0 %3570
  %3574 = vmatprep.subr.bf16.mxu0 0
  %3575 = vmatpush1.bf16.msra.mxu0 %v3569
  %3576 = vmatprep.subr.bf16.mxu0 0
  %3577 = vmatpush1.bf16.msra.mxu0 %v3571
  %3578 = vmatprep.subr.bf16.mxu0 0
  %3579 = vmatpush1.bf16.msra.mxu0 0
  %3580 = vmatprep.subr.bf16.mxu0 0
  %3581 = vmatpush1.bf16.msra.mxu0 0
  %3582 = vmatprep.subr.bf16.mxu0 0
  %3583 = vmatpush1.bf16.msra.mxu0 0
  %3584 = vmatprep.subr.bf16.mxu0 0
  %3585 = vmatpush1.bf16.msra.mxu0 0
  %3586 = vmatprep.subr.bf16.mxu0 0
  %3587 = vmatpush1.bf16.msra.mxu0 0
  %3588 = vmatprep.subr.bf16.mxu0 0
  %3589 = vmatpush1.bf16.msra.mxu0 0
  %3590 = vmatprep.subr.bf16.mxu0 0
  %3591 = vmatpush1.bf16.msra.mxu0 0
  %3592 = vmatprep.subr.bf16.mxu0 0
  %3593 = vmatpush1.bf16.msra.mxu0 0
  %3594 = vmatprep.subr.bf16.mxu0 0
  %3595 = vmatpush1.bf16.msra.mxu0 0
  %3596 = vmatprep.subr.bf16.mxu0 0
  %3597 = vmatpush1.bf16.msra.mxu0 0
  %3598 = vmatprep.subr.bf16.mxu0 0
  %3599 = vmatpush1.bf16.msra.mxu0 0
  %3600 = vmatprep.subr.bf16.mxu0 0
  %3601 = vmatpush1.bf16.msra.mxu0 0
  %3602 = vmatprep.subr.bf16.mxu0 0
  %3603 = vmatpush1.bf16.msra.mxu0 0
  %3604 = vmatprep.subr.bf16.mxu0 0
  %3605 = vmatpush1.bf16.msra.mxu0 0
  %3606 = vmatprep.mubr.bf16.mxu0 0
  %3607 = vmatmul.mubr.bf16.gmra.mrb[0].mxu0 %v1578
  %v3608 = vpop.f32.mrb[0].mxu0
  %v3609 = vadd.f32 %v3567, %v3608
  %v3610 = vpop.f32.mrb[0].mxu0
  %v3611 = vpop.f32.mrb[0].mxu0
  %v3612 = vadd.f32 %v3567, %v3611
  %v3613 = vpop.f32.mrb[0].mxu0
  %3614 = vdwg.mxu0
  %v3615 = vmul.f32 %v3609, %v54
  %v3616 = vmul.f32 %v3612, %v55
  %v3617 = vmul.f32 %v3609, %v56
  %v3618 = vmul.f32 %v3612, %v57
  %v3619 = vmul.f32 %v3609, %v134
  %v3620 = vmul.f32 %v3612, %v136
  %v3621 = vmul.f32 %v3609, %v138
  %v3622 = vmul.f32 %v3612, %v140
  %v3623 = vpack.c.bf16 %v3560, %v3557
  %v3624 = vpack.c.bf16 %v3616, %v3615
  %v3625 = vpack.c.bf16 %v3618, %v3617
  %v3627 = vsel %vm82, %v3623, 0
  %v3630 = vsel %vm82, %v3624, 0
  %v3633 = vsel %vm82, %v3625, 0
  %3635 = vmatprep.subr.bf16.mxu0 0
  %3636 = vmatpush1.bf16.xpose.msra.mxu0 %v3630
  %3637 = vmatprep.subr.bf16.mxu0 0
  %3638 = vmatpush1.bf16.xpose.msra.mxu0 %v3633
  %3639 = vmatprep.subr.bf16.mxu0 0
  %3640 = vmatpush1.bf16.xpose.msra.mxu0 0
  %3641 = vmatprep.subr.bf16.mxu0 0
  %3642 = vmatpush1.bf16.xpose.msra.mxu0 0
  %3643 = vmatprep.subr.bf16.mxu0 0
  %3644 = vmatpush1.bf16.xpose.msra.mxu0 0
  %3645 = vmatprep.subr.bf16.mxu0 0
  %3646 = vmatpush1.bf16.xpose.msra.mxu0 0
  %3647 = vmatprep.subr.bf16.mxu0 0
  %3648 = vmatpush1.bf16.xpose.msra.mxu0 0
  %3649 = vmatprep.subr.bf16.mxu0 0
  %3650 = vmatpush1.bf16.xpose.msra.mxu0 0
  %3651 = vmatprep.subr.bf16.mxu0 0
  %3652 = vmatpush1.bf16.xpose.msra.mxu0 0
  %3653 = vmatprep.subr.bf16.mxu0 0
  %3654 = vmatpush1.bf16.xpose.msra.mxu0 0
  %3655 = vmatprep.subr.bf16.mxu0 0
  %3656 = vmatpush1.bf16.xpose.msra.mxu0 0
  %3657 = vmatprep.subr.bf16.mxu0 0
  %3658 = vmatpush1.bf16.xpose.msra.mxu0 0
  %3659 = vmatprep.subr.bf16.mxu0 0
  %3660 = vmatpush1.bf16.xpose.msra.mxu0 0
  %3661 = vmatprep.subr.bf16.mxu0 0
  %3662 = vmatpush1.bf16.xpose.msra.mxu0 0
  %3663 = vmatprep.subr.bf16.mxu0 0
  %3664 = vmatpush1.bf16.xpose.msra.mxu0 0
  %3665 = vmatprep.subr.bf16.mxu0 0
  %3666 = vmatpush1.bf16.xpose.msra.mxu0 0
  %3667 = vmatprep.mubr.bf16.mxu0 0
  %3668 = vmatmul.mubr.bf16.gmra.mrb[0].mxu0 %v3627
  %v3669 = vpop.f32.mrb[0].mxu0
  %v3670 = vadd.f32 0.0, %v3669
  %v3671 = vpop.f32.mrb[0].mxu0
  %v3672 = vpop.f32.mrb[0].mxu0
  %v3673 = vadd.f32 0.0, %v3672
  %v3674 = vpop.f32.mrb[0].mxu0
  %3675 = vdwg.mxu0
  %v3676 = vmul.f32 %v3670, 0.25
  %v3677 = vmul.f32 %v3673, 0.25
  %v3678 = vadd.f32 %v3676, %v1622
  %v3679 = vadd.f32 %v3677, %v1623
  %v3680 = vsel %vm82, %v3678, -inf
  %3681 = vmax.xlane.f32.xlu0 %v3680
  %v3682 = vpop.xlane.xlu0 %3681
  %v3683 = vsel %vm82, %v3679, -inf
  %3684 = vmax.xlane.f32.xlu0 %v3683
  %v3685 = vpop.xlane.xlu0 %3684
  %v3686 = vsub.f32 %v3678, %v3682
  %v3687 = vsub.f32 %v3679, %v3685
  %v3688 = vmul.f32 %v3686, 1.442695
  %v3689 = vpow.pop %v3688
  %v3690 = vmul.f32 %v3687, 1.442695
  %v3691 = vpow.pop %v3690
  %v3692 = vsel %vm241, %v3689, 0.0
  %v3693 = vsel %vm241, %v3691, 0.0
  %v3694 = vsel %vm82, %v3692, 0.0
  %3695 = vadd.xlane.f32.xlu0 %v3694
  %v3696 = vpop.xlane.xlu0 %3695
  %v3697 = vsel %vm82, %v3693, 0.0
  %3698 = vadd.xlane.f32.xlu0 %v3697
  %v3699 = vpop.xlane.xlu0 %3698
  %v3700 = vsel %vm82, %v3689, 0.0
  %3701 = vadd.xlane.f32.xlu0 %v3700
  %v3702 = vpop.xlane.xlu0 %3701
  %v3703 = vsel %vm82, %v3691, 0.0
  %3704 = vadd.xlane.f32.xlu0 %v3703
  %v3705 = vpop.xlane.xlu0 %3704
  %v3706 = vsub.f32 %v3702, %v3696
  %v3707 = vsub.f32 %v3705, %v3699
  %v3708 = vpack.c.bf16 %v3691, %v3689
  %v3709 = vpack.c.bf16 %v3620, %v3619
  %v3710 = vpack.c.bf16 %v3622, %v3621
  %3713 = vrot.lane.b32.xlu0 %v3709, 96
  %v3714 = vpop.permute.xlu0 %3713
  %3715 = vrot.lane.b32.xlu0 %v3710, 96
  %v3716 = vpop.permute.xlu0 %3715
  %v3720 = vsel %vm82, %v3708, 0
  %3722 = vmatprep.subr.bf16.mxu0 0
  %3723 = vmatpush1.bf16.msra.mxu0 %v3714
  %3724 = vmatprep.subr.bf16.mxu0 0
  %3725 = vmatpush1.bf16.msra.mxu0 %v3716
  %3726 = vmatprep.subr.bf16.mxu0 0
  %3727 = vmatpush1.bf16.msra.mxu0 0
  %3728 = vmatprep.subr.bf16.mxu0 0
  %3729 = vmatpush1.bf16.msra.mxu0 0
  %3730 = vmatprep.subr.bf16.mxu0 0
  %3731 = vmatpush1.bf16.msra.mxu0 0
  %3732 = vmatprep.subr.bf16.mxu0 0
  %3733 = vmatpush1.bf16.msra.mxu0 0
  %3734 = vmatprep.subr.bf16.mxu0 0
  %3735 = vmatpush1.bf16.msra.mxu0 0
  %3736 = vmatprep.subr.bf16.mxu0 0
  %3737 = vmatpush1.bf16.msra.mxu0 0
  %3738 = vmatprep.subr.bf16.mxu0 0
  %3739 = vmatpush1.bf16.msra.mxu0 0
  %3740 = vmatprep.subr.bf16.mxu0 0
  %3741 = vmatpush1.bf16.msra.mxu0 0
  %3742 = vmatprep.subr.bf16.mxu0 0
  %3743 = vmatpush1.bf16.msra.mxu0 0
  %3744 = vmatprep.subr.bf16.mxu0 0
  %3745 = vmatpush1.bf16.msra.mxu0 0
  %3746 = vmatprep.subr.bf16.mxu0 0
  %3747 = vmatpush1.bf16.msra.mxu0 0
  %3748 = vmatprep.subr.bf16.mxu0 0
  %3749 = vmatpush1.bf16.msra.mxu0 0
  %3750 = vmatprep.subr.bf16.mxu0 0
  %3751 = vmatpush1.bf16.msra.mxu0 0
  %3752 = vmatprep.subr.bf16.mxu0 0
  %3753 = vmatpush1.bf16.msra.mxu0 0
  %3754 = vmatprep.mubr.bf16.mxu0 0
  %3755 = vmatmul.mubr.bf16.gmra.mrb[0].mxu0 %v3720
  %v3756 = vpop.f32.mrb[0].mxu0
  %v3757 = vadd.f32 0.0, %v3756
  %v3758 = vpop.f32.mrb[0].mxu0
  %v3759 = vpop.f32.mrb[0].mxu0
  %v3760 = vadd.f32 0.0, %v3759
  %v3761 = vpop.f32.mrb[0].mxu0
  %3762 = vdwg.mxu0
  %v3763 = vrcp.pop %v3696
  %v3764 = vrcp.pop %v3699
  %v3765 = vrcp.pop %v3706
  %v3766 = vrcp.pop %v3707
  %v3767 = vsel %vm241, %v3763, %v3765
  %v3768 = vsel %vm241, %v3764, %v3766
  %v3769 = vmul.f32 %v3757, %v3767
  %v3770 = vmul.f32 %v3760, %v3768
  %v3771 = vpack.c.bf16 %v3770, %v3769
  %v3772 = vld [vmem:[%s2 + $0x30] sm:$0x1]
  %v3773 = vlaneseq
  %v3774 = vshrl.u32 %v3773, 7
  %v3775 = vsub.s32 0, %v3774
  %v3776 = vrot.slane %v3772, %v3775
  %3777 = vrot.lane.b32.xlu0 %v3515, 32
  %v3778 = vpop.permute.xlu0 %3777
  %3779 = vrot.lane.b32.xlu0 %v3516, 32
  %v3780 = vpop.permute.xlu0 %3779
  %v3784 = vsel %vm82, %v3771, 0
  %3786 = vmatprep.subr.bf16.mxu0 0
  %3787 = vmatpush1.bf16.msra.mxu0 %v3778
  %3788 = vmatprep.subr.bf16.mxu0 0
  %3789 = vmatpush1.bf16.msra.mxu0 %v3780
  %3790 = vmatprep.subr.bf16.mxu0 0
  %3791 = vmatpush1.bf16.msra.mxu0 0
  %3792 = vmatprep.subr.bf16.mxu0 0
  %3793 = vmatpush1.bf16.msra.mxu0 0
  %3794 = vmatprep.subr.bf16.mxu0 0
  %3795 = vmatpush1.bf16.msra.mxu0 0
  %3796 = vmatprep.subr.bf16.mxu0 0
  %3797 = vmatpush1.bf16.msra.mxu0 0
  %3798 = vmatprep.subr.bf16.mxu0 0
  %3799 = vmatpush1.bf16.msra.mxu0 0
  %3800 = vmatprep.subr.bf16.mxu0 0
  %3801 = vmatpush1.bf16.msra.mxu0 0
  %3802 = vmatprep.subr.bf16.mxu0 0
  %3803 = vmatpush1.bf16.msra.mxu0 0
  %3804 = vmatprep.subr.bf16.mxu0 0
  %3805 = vmatpush1.bf16.msra.mxu0 0
  %3806 = vmatprep.subr.bf16.mxu0 0
  %3807 = vmatpush1.bf16.msra.mxu0 0
  %3808 = vmatprep.subr.bf16.mxu0 0
  %3809 = vmatpush1.bf16.msra.mxu0 0
  %3810 = vmatprep.subr.bf16.mxu0 0
  %3811 = vmatpush1.bf16.msra.mxu0 0
  %3812 = vmatprep.subr.bf16.mxu0 0
  %3813 = vmatpush1.bf16.msra.mxu0 0
  %3814 = vmatprep.subr.bf16.mxu0 0
  %3815 = vmatpush1.bf16.msra.mxu0 0
  %3816 = vmatprep.subr.bf16.mxu0 0
  %3817 = vmatpush1.bf16.msra.mxu0 0
  %3818 = vmatprep.mubr.bf16.mxu0 0
  %3819 = vmatmul.mubr.bf16.gmra.mrb[0].mxu0 %v3784
  %v3820 = vpop.f32.mrb[0].mxu0
  %v3821 = vadd.f32 %v3776, %v3820
  %v3822 = vpop.f32.mrb[0].mxu0
  %v3823 = vpop.f32.mrb[0].mxu0
  %v3824 = vadd.f32 %v3776, %v3823
  %v3825 = vpop.f32.mrb[0].mxu0
  %3826 = vdwg.mxu0
  %3829 = vrot.lane.b32.xlu0 %v3821, 64
  %v3830 = vpop.permute.xlu0 %3829
  %3831 = vrot.lane.b32.xlu0 %v3824, 64
  %v3832 = vpop.permute.xlu0 %3831
  %v3835 = vadd.f32 %v3492, %v3830
  %v3836 = vadd.f32 %v3493, %v3832
  %v3837 = vld [vmem:[%s2 + $0x31] sm:$0x1]
  %v3838 = vld [vmem:[%s2 + $0x32] sm:$0x1]
  %3841 = vrot.lane.b32.xlu0 %v3835, 64
  %v3842 = vpop.permute.xlu0 %3841
  %3843 = vrot.lane.b32.xlu0 %v3836, 64
  %v3844 = vpop.permute.xlu0 %3843
  %v3847 = vsel %vm82, %v3842, 0.0
  %3848 = vadd.xlane.f32.xlu0 %v3847
  %v3849 = vpop.xlane.xlu0 %3848
  %v3850 = vsel %vm82, %v3844, 0.0
  %3851 = vadd.xlane.f32.xlu0 %v3850
  %v3852 = vpop.xlane.xlu0 %3851
  %v3853 = vmul.f32 %v3849, %v387
  %v3854 = vmul.f32 %v3852, %v387
  %v3855 = vsub.f32 %v3835, %v3853
  %v3856 = vsub.f32 %v3836, %v3854
  %v3857 = vmul.f32 %v3855, %v3855
  %v3858 = vmul.f32 %v3856, %v3856
  %3861 = vrot.lane.b32.xlu0 %v3857, 64
  %v3862 = vpop.permute.xlu0 %3861
  %3863 = vrot.lane.b32.xlu0 %v3858, 64
  %v3864 = vpop.permute.xlu0 %3863
  %v3867 = vsel %vm82, %v3862, 0.0
  %3868 = vadd.xlane.f32.xlu0 %v3867
  %v3869 = vpop.xlane.xlu0 %3868
  %v3870 = vsel %vm82, %v3864, 0.0
  %3871 = vadd.xlane.f32.xlu0 %v3870
  %v3872 = vpop.xlane.xlu0 %3871
  %v3873 = vmul.f32 %v3869, %v387
  %v3874 = vmul.f32 %v3872, %v387
  %v3875 = vadd.f32 %v3873, 1e-05
  %v3876 = vadd.f32 %v3874, 1e-05
  %v3877 = vrsqrt.pop %v3875
  %v3878 = vrsqrt.pop %v3876
  %v3879 = vmul.f32 %v3855, %v3877
  %v3880 = vmul.f32 %v3856, %v3878
  %v3881 = vlaneseq
  %v3882 = vshrl.u32 %v3881, 7
  %v3883 = vsub.s32 0, %v3882
  %v3884 = vrot.slane %v3837, %v3883
  %3886 = vrot.lane.b32.xlu0 %v3884, 64
  %v3887 = vpop.permute.xlu0 %3886
  %v3889 = vmul.f32 %v3879, %v3887
  %v3890 = vmul.f32 %v3880, %v3887
  %v3891 = vlaneseq
  %v3892 = vshrl.u32 %v3891, 7
  %v3893 = vsub.s32 0, %v3892
  %v3894 = vrot.slane %v3838, %v3893
  %3896 = vrot.lane.b32.xlu0 %v3894, 64
  %v3897 = vpop.permute.xlu0 %3896
  %v3899 = vadd.f32 %v3889, %v3897
  %v3900 = vadd.f32 %v3890, %v3897
  %v3901 = vld [vmem:[%s3134 + $0x8] sm:$0xf]
  %v3902 = vld [vmem:[%s3134 + $0x14] sm:$0xf]
  %v3903 = vld [vmem:[%s3134 + $0x20] sm:$0xf]
  %v3904 = vld [vmem:[%s3134 + $0x2c] sm:$0xf]
  %v3905 = vpack.c.bf16 %v3900, %v3899
  %v3906 = vld [vmem:[%s2 + $0x33] sm:$0x1]
  %v3907 = vlaneseq
  %v3908 = vshrl.u32 %v3907, 7
  %v3909 = vsub.s32 0, %v3908
  %v3910 = vrot.slane %v3906, %v3909
  %3912 = vrot.lane.b32.xlu0 %v3905, 64
  %v3913 = vpop.permute.xlu0 %3912
  %v3918 = vunpack.c.l.b16 %v3901
  %v3919 = vunpack.c.l.b16 %v3902
  %v3920 = vunpack.c.l.b16 %v3903
  %v3921 = vunpack.c.l.b16 %v3904
  %v3922 = vpack.c.b16 %v3919, %v3918
  %v3923 = vpack.c.b16 %v3921, %v3920
  %v3927 = vsel %vm82, %v3913, 0
  %3929 = vmatprep.subr.bf16.mxu0 0
  %3930 = vmatpush1.bf16.msra.mxu0 %v3922
  %3931 = vmatprep.subr.bf16.mxu0 0
  %3932 = vmatpush1.bf16.msra.mxu0 %v3923
  %3933 = vmatprep.subr.bf16.mxu0 0
  %3934 = vmatpush1.bf16.msra.mxu0 0
  %3935 = vmatprep.subr.bf16.mxu0 0
  %3936 = vmatpush1.bf16.msra.mxu0 0
  %3937 = vmatprep.subr.bf16.mxu0 0
  %3938 = vmatpush1.bf16.msra.mxu0 0
  %3939 = vmatprep.subr.bf16.mxu0 0
  %3940 = vmatpush1.bf16.msra.mxu0 0
  %3941 = vmatprep.subr.bf16.mxu0 0
  %3942 = vmatpush1.bf16.msra.mxu0 0
  %3943 = vmatprep.subr.bf16.mxu0 0
  %3944 = vmatpush1.bf16.msra.mxu0 0
  %3945 = vmatprep.subr.bf16.mxu0 0
  %3946 = vmatpush1.bf16.msra.mxu0 0
  %3947 = vmatprep.subr.bf16.mxu0 0
  %3948 = vmatpush1.bf16.msra.mxu0 0
  %3949 = vmatprep.subr.bf16.mxu0 0
  %3950 = vmatpush1.bf16.msra.mxu0 0
  %3951 = vmatprep.subr.bf16.mxu0 0
  %3952 = vmatpush1.bf16.msra.mxu0 0
  %3953 = vmatprep.subr.bf16.mxu0 0
  %3954 = vmatpush1.bf16.msra.mxu0 0
  %3955 = vmatprep.subr.bf16.mxu0 0
  %3956 = vmatpush1.bf16.msra.mxu0 0
  %3957 = vmatprep.subr.bf16.mxu0 0
  %3958 = vmatpush1.bf16.msra.mxu0 0
  %3959 = vmatprep.subr.bf16.mxu0 0
  %3960 = vmatpush1.bf16.msra.mxu0 0
  %3961 = vmatprep.mubr.bf16.mxu0 0
  %3962 = vmatmul.mubr.bf16.gmra.mrb[0].mxu0 %v3927
  %v3963 = vpop.f32.mrb[0].mxu0
  %v3964 = vadd.f32 %v3910, %v3963
  %v3965 = vpop.f32.mrb[0].mxu0
  %v3966 = vpop.f32.mrb[0].mxu0
  %v3967 = vadd.f32 %v3910, %v3966
  %v3968 = vpop.f32.mrb[0].mxu0
  %3969 = vdwg.mxu0
  %v3970 = vmax.f32 %v3964, 0.0
  %v3971 = vmax.f32 %v3967, 0.0
  %s3972 = scalar_lea.vmem %s6, 64
  %v3973 = vld [vmem:[%s3972] sm:$0xf]
  %v3974 = vld [vmem:[%s3972 + $0x4] sm:$0xf]
  %v3975 = vld [vmem:[%s3972 + $0x8] sm:$0xf]
  %v3976 = vld [vmem:[%s3972 + $0xc] sm:$0xf]
  %v3977 = vld [vmem:[%s3972 + $0x10] sm:$0xf]
  %v3978 = vld [vmem:[%s3972 + $0x14] sm:$0xf]
  %v3979 = vld [vmem:[%s3972 + $0x18] sm:$0xf]
  %v3980 = vld [vmem:[%s3972 + $0x1c] sm:$0xf]
  %v3981 = vpack.c.bf16 %v3971, %v3970
  %v3982 = vld [vmem:[%s2 + $0x34] sm:$0x1]
  %v3983 = vlaneseq
  %v3984 = vshrl.u32 %v3983, 7
  %v3985 = vsub.s32 0, %v3984
  %v3986 = vrot.slane %v3982, %v3985
  %v3995 = vunpack.c.l.b16 %v3973
  %v3996 = vunpack.c.l.b16 %v3974
  %v3997 = vunpack.c.l.b16 %v3975
  %v3998 = vunpack.c.l.b16 %v3976
  %v3999 = vunpack.c.l.b16 %v3977
  %v4000 = vunpack.c.l.b16 %v3978
  %v4001 = vunpack.c.l.b16 %v3979
  %v4002 = vunpack.c.l.b16 %v3980
  %v4003 = vpack.c.b16 %v3996, %v3995
  %v4004 = vpack.c.b16 %v3998, %v3997
  %v4005 = vpack.c.b16 %v4000, %v3999
  %v4006 = vpack.c.b16 %v4002, %v4001
  %v4012 = vsel %vm526, %v3981, 0
  %4014 = vmatprep.subr.bf16.mxu0 0
  %4015 = vmatpush1.bf16.msra.mxu0 %v4003
  %4016 = vmatprep.subr.bf16.mxu0 0
  %4017 = vmatpush1.bf16.msra.mxu0 %v4004
  %4018 = vmatprep.subr.bf16.mxu0 0
  %4019 = vmatpush1.bf16.msra.mxu0 %v4005
  %4020 = vmatprep.subr.bf16.mxu0 0
  %4021 = vmatpush1.bf16.msra.mxu0 %v4006
  %4022 = vmatprep.subr.bf16.mxu0 0
  %4023 = vmatpush1.bf16.msra.mxu0 0
  %4024 = vmatprep.subr.bf16.mxu0 0
  %4025 = vmatpush1.bf16.msra.mxu0 0
  %4026 = vmatprep.subr.bf16.mxu0 0
  %4027 = vmatpush1.bf16.msra.mxu0 0
  %4028 = vmatprep.subr.bf16.mxu0 0
  %4029 = vmatpush1.bf16.msra.mxu0 0
  %4030 = vmatprep.subr.bf16.mxu0 0
  %4031 = vmatpush1.bf16.msra.mxu0 0
  %4032 = vmatprep.subr.bf16.mxu0 0
  %4033 = vmatpush1.bf16.msra.mxu0 0
  %4034 = vmatprep.subr.bf16.mxu0 0
  %4035 = vmatpush1.bf16.msra.mxu0 0
  %4036 = vmatprep.subr.bf16.mxu0 0
  %4037 = vmatpush1.bf16.msra.mxu0 0
  %4038 = vmatprep.subr.bf16.mxu0 0
  %4039 = vmatpush1.bf16.msra.mxu0 0
  %4040 = vmatprep.subr.bf16.mxu0 0
  %4041 = vmatpush1.bf16.msra.mxu0 0
  %4042 = vmatprep.subr.bf16.mxu0 0
  %4043 = vmatpush1.bf16.msra.mxu0 0
  %4044 = vmatprep.subr.bf16.mxu0 0
  %4045 = vmatpush1.bf16.msra.mxu0 0
  %4046 = vmatprep.mubr.bf16.mxu0 0
  %4047 = vmatmul.mubr.bf16.gmra.mrb[0].mxu0 %v4012
  %v4048 = vpop.f32.mrb[0].mxu0
  %v4049 = vadd.f32 %v3986, %v4048
  %v4050 = vpop.f32.mrb[0].mxu0
  %v4051 = vpop.f32.mrb[0].mxu0
  %v4052 = vadd.f32 %v3986, %v4051
  %v4053 = vpop.f32.mrb[0].mxu0
  %4054 = vdwg.mxu0
  %4057 = vrot.lane.b32.xlu0 %v4049, 64
  %v4058 = vpop.permute.xlu0 %4057
  %4059 = vrot.lane.b32.xlu0 %v4052, 64
  %v4060 = vpop.permute.xlu0 %4059
  %v4063 = vadd.f32 %v3899, %v4058
  %v4064 = vadd.f32 %v3900, %v4060
  %v4065 = vld [vmem:[%s2 + $0x35] sm:$0x1]
  %v4066 = vld [vmem:[%s2 + $0x36] sm:$0x1]
  %4069 = vrot.lane.b32.xlu0 %v4063, 64
  %v4070 = vpop.permute.xlu0 %4069
  %4071 = vrot.lane.b32.xlu0 %v4064, 64
  %v4072 = vpop.permute.xlu0 %4071
  %v4075 = vsel %vm82, %v4070, 0.0
  %4076 = vadd.xlane.f32.xlu0 %v4075
  %v4077 = vpop.xlane.xlu0 %4076
  %v4078 = vsel %vm82, %v4072, 0.0
  %4079 = vadd.xlane.f32.xlu0 %v4078
  %v4080 = vpop.xlane.xlu0 %4079
  %v4081 = vmul.f32 %v4077, %v387
  %v4082 = vmul.f32 %v4080, %v387
  %v4083 = vsub.f32 %v4063, %v4081
  %v4084 = vsub.f32 %v4064, %v4082
  %v4085 = vmul.f32 %v4083, %v4083
  %v4086 = vmul.f32 %v4084, %v4084
  %4089 = vrot.lane.b32.xlu0 %v4085, 64
  %v4090 = vpop.permute.xlu0 %4089
  %4091 = vrot.lane.b32.xlu0 %v4086, 64
  %v4092 = vpop.permute.xlu0 %4091
  %v4095 = vsel %vm82, %v4090, 0.0
  %4096 = vadd.xlane.f32.xlu0 %v4095
  %v4097 = vpop.xlane.xlu0 %4096
  %v4098 = vsel %vm82, %v4092, 0.0
  %4099 = vadd.xlane.f32.xlu0 %v4098
  %v4100 = vpop.xlane.xlu0 %4099
  %v4101 = vmul.f32 %v4097, %v387
  %v4102 = vmul.f32 %v4100, %v387
  %v4103 = vadd.f32 %v4101, 1e-05
  %v4104 = vadd.f32 %v4102, 1e-05
  %v4105 = vrsqrt.pop %v4103
  %v4106 = vrsqrt.pop %v4104
  %v4107 = vmul.f32 %v4083, %v4105
  %v4108 = vmul.f32 %v4084, %v4106
  %v4109 = vlaneseq
  %v4110 = vshrl.u32 %v4109, 7
  %v4111 = vsub.s32 0, %v4110
  %v4112 = vrot.slane %v4065, %v4111
  %4114 = vrot.lane.b32.xlu0 %v4112, 64
  %v4115 = vpop.permute.xlu0 %4114
  %v4117 = vmul.f32 %v4107, %v4115
  %v4118 = vmul.f32 %v4108, %v4115
  %v4119 = vlaneseq
  %v4120 = vshrl.u32 %v4119, 7
  %v4121 = vsub.s32 0, %v4120
  %v4122 = vrot.slane %v4066, %v4121
  %4124 = vrot.lane.b32.xlu0 %v4122, 64
  %v4125 = vpop.permute.xlu0 %4124
  %v4127 = vadd.f32 %v4117, %v4125
  %v4128 = vadd.f32 %v4118, %v4125
  %s4129 = scalar_lea.vmem %s5, 144
  %v4130 = vld [vmem:[%s4129] sm:$0xf]
  %v4131 = vld [vmem:[%s4129 + $0xc] sm:$0xf]
  %v4132 = vld [vmem:[%s4129 + $0x18] sm:$0xf]
  %v4133 = vld [vmem:[%s4129 + $0x24] sm:$0xf]
  %v4134 = vpack.c.bf16 %v4128, %v4127
  %v4135 = vld [vmem:[%s2 + $0x37] sm:$0x1]
  %v4136 = vlaneseq
  %v4137 = vshrl.u32 %v4136, 7
  %v4138 = vsub.s32 0, %v4137
  %v4139 = vrot.slane %v4135, %v4138
  %4141 = vrot.lane.b32.xlu0 %v4134, 64
  %v4142 = vpop.permute.xlu0 %4141
  %v4147 = vunpack.c.l.b16 %v4130
  %v4148 = vunpack.c.l.b16 %v4131
  %v4149 = vunpack.c.l.b16 %v4132
  %v4150 = vunpack.c.l.b16 %v4133
  %v4151 = vpack.c.b16 %v4148, %v4147
  %v4152 = vpack.c.b16 %v4150, %v4149
  %v4156 = vsel %vm82, %v4142, 0
  %4158 = vmatprep.subr.bf16.mxu0 0
  %4159 = vmatpush1.bf16.msra.mxu0 %v4151
  %4160 = vmatprep.subr.bf16.mxu0 0
  %4161 = vmatpush1.bf16.msra.mxu0 %v4152
  %4162 = vmatprep.subr.bf16.mxu0 0
  %4163 = vmatpush1.bf16.msra.mxu0 0
  %4164 = vmatprep.subr.bf16.mxu0 0
  %4165 = vmatpush1.bf16.msra.mxu0 0
  %4166 = vmatprep.subr.bf16.mxu0 0
  %4167 = vmatpush1.bf16.msra.mxu0 0
  %4168 = vmatprep.subr.bf16.mxu0 0
  %4169 = vmatpush1.bf16.msra.mxu0 0
  %4170 = vmatprep.subr.bf16.mxu0 0
  %4171 = vmatpush1.bf16.msra.mxu0 0
  %4172 = vmatprep.subr.bf16.mxu0 0
  %4173 = vmatpush1.bf16.msra.mxu0 0
  %4174 = vmatprep.subr.bf16.mxu0 0
  %4175 = vmatpush1.bf16.msra.mxu0 0
  %4176 = vmatprep.subr.bf16.mxu0 0
  %4177 = vmatpush1.bf16.msra.mxu0 0
  %4178 = vmatprep.subr.bf16.mxu0 0
  %4179 = vmatpush1.bf16.msra.mxu0 0
  %4180 = vmatprep.subr.bf16.mxu0 0
  %4181 = vmatpush1.bf16.msra.mxu0 0
  %4182 = vmatprep.subr.bf16.mxu0 0
  %4183 = vmatpush1.bf16.msra.mxu0 0
  %4184 = vmatprep.subr.bf16.mxu0 0
  %4185 = vmatpush1.bf16.msra.mxu0 0
  %4186 = vmatprep.subr.bf16.mxu0 0
  %4187 = vmatpush1.bf16.msra.mxu0 0
  %4188 = vmatprep.subr.bf16.mxu0 0
  %4189 = vmatpush1.bf16.msra.mxu0 0
  %4190 = vmatprep.mubr.bf16.mxu0 0
  %4191 = vmatmul.mubr.bf16.gmra.mrb[0].mxu0 %v4156
  %v4192 = vpop.f32.mrb[0].mxu0
  %v4193 = vadd.f32 %v4139, %v4192
  %v4194 = vpop.f32.mrb[0].mxu0
  %v4195 = vpop.f32.mrb[0].mxu0
  %v4196 = vadd.f32 %v4139, %v4195
  %v4197 = vpop.f32.mrb[0].mxu0
  %4198 = vdwg.mxu0
  %v4199 = vmul.f32 %v4193, %v134
  %v4200 = vmul.f32 %v4196, %v136
  %v4201 = vmul.f32 %v4193, %v138
  %v4202 = vmul.f32 %v4196, %v140
  %v4203 = vmul.f32 %v4193, %v150
  %v4204 = vmul.f32 %v4196, %v152
  %v4205 = vmul.f32 %v4193, %v154
  %v4206 = vmul.f32 %v4196, %v156
  %v4207 = vpack.c.bf16 %v4196, %v4193
  %v4208 = vpack.c.bf16 %v4200, %v4199
  %v4209 = vpack.c.bf16 %v4202, %v4201
  %4212 = vrot.lane.b32.xlu0 %v4208, 96
  %v4213 = vpop.permute.xlu0 %4212
  %4214 = vrot.lane.b32.xlu0 %v4209, 96
  %v4215 = vpop.permute.xlu0 %4214
  %v4217 = vsel %vm82, %v4207, 0
  %v4220 = vsel %vm82, %v4213, 0
  %v4223 = vsel %vm82, %v4215, 0
  %4225 = vmatprep.subr.bf16.mxu0 0
  %4226 = vmatpush1.bf16.xpose.msra.mxu0 %v4220
  %4227 = vmatprep.subr.bf16.mxu0 0
  %4228 = vmatpush1.bf16.xpose.msra.mxu0 %v4223
  %4229 = vmatprep.subr.bf16.mxu0 0
  %4230 = vmatpush1.bf16.xpose.msra.mxu0 0
  %4231 = vmatprep.subr.bf16.mxu0 0
  %4232 = vmatpush1.bf16.xpose.msra.mxu0 0
  %4233 = vmatprep.subr.bf16.mxu0 0
  %4234 = vmatpush1.bf16.xpose.msra.mxu0 0
  %4235 = vmatprep.subr.bf16.mxu0 0
  %4236 = vmatpush1.bf16.xpose.msra.mxu0 0
  %4237 = vmatprep.subr.bf16.mxu0 0
  %4238 = vmatpush1.bf16.xpose.msra.mxu0 0
  %4239 = vmatprep.subr.bf16.mxu0 0
  %4240 = vmatpush1.bf16.xpose.msra.mxu0 0
  %4241 = vmatprep.subr.bf16.mxu0 0
  %4242 = vmatpush1.bf16.xpose.msra.mxu0 0
  %4243 = vmatprep.subr.bf16.mxu0 0
  %4244 = vmatpush1.bf16.xpose.msra.mxu0 0
  %4245 = vmatprep.subr.bf16.mxu0 0
  %4246 = vmatpush1.bf16.xpose.msra.mxu0 0
  %4247 = vmatprep.subr.bf16.mxu0 0
  %4248 = vmatpush1.bf16.xpose.msra.mxu0 0
  %4249 = vmatprep.subr.bf16.mxu0 0
  %4250 = vmatpush1.bf16.xpose.msra.mxu0 0
  %4251 = vmatprep.subr.bf16.mxu0 0
  %4252 = vmatpush1.bf16.xpose.msra.mxu0 0
  %4253 = vmatprep.subr.bf16.mxu0 0
  %4254 = vmatpush1.bf16.xpose.msra.mxu0 0
  %4255 = vmatprep.subr.bf16.mxu0 0
  %4256 = vmatpush1.bf16.xpose.msra.mxu0 0
  %4257 = vmatprep.mubr.bf16.mxu0 0
  %4258 = vmatmul.mubr.bf16.gmra.mrb[0].mxu0 %v4217
  %v4259 = vpop.f32.mrb[0].mxu0
  %v4260 = vadd.f32 0.0, %v4259
  %v4261 = vpop.f32.mrb[0].mxu0
  %v4262 = vpop.f32.mrb[0].mxu0
  %v4263 = vadd.f32 0.0, %v4262
  %v4264 = vpop.f32.mrb[0].mxu0
  %4265 = vdwg.mxu0
  %v4266 = vmul.f32 %v4260, 0.25
  %v4267 = vmul.f32 %v4263, 0.25
  %v4268 = vadd.f32 %v4266, %v1203
  %v4269 = vadd.f32 %v4267, %v1204
  %v4270 = vsel %vm82, %v4268, -inf
  %4271 = vmax.xlane.f32.xlu0 %v4270
  %v4272 = vpop.xlane.xlu0 %4271
  %v4273 = vsel %vm82, %v4269, -inf
  %4274 = vmax.xlane.f32.xlu0 %v4273
  %v4275 = vpop.xlane.xlu0 %4274
  %v4276 = vsub.f32 %v4268, %v4272
  %v4277 = vsub.f32 %v4269, %v4275
  %v4278 = vmul.f32 %v4276, 1.442695
  %v4279 = vpow.pop %v4278
  %v4280 = vmul.f32 %v4277, 1.442695
  %v4281 = vpow.pop %v4280
  %v4282 = vsel %vm241, %v4279, 0.0
  %v4283 = vsel %vm241, %v4281, 0.0
  %v4284 = vsel %vm82, %v4282, 0.0
  %4285 = vadd.xlane.f32.xlu0 %v4284
  %v4286 = vpop.xlane.xlu0 %4285
  %v4287 = vsel %vm82, %v4283, 0.0
  %4288 = vadd.xlane.f32.xlu0 %v4287
  %v4289 = vpop.xlane.xlu0 %4288
  %v4290 = vsel %vm82, %v4279, 0.0
  %4291 = vadd.xlane.f32.xlu0 %v4290
  %v4292 = vpop.xlane.xlu0 %4291
  %v4293 = vsel %vm82, %v4281, 0.0
  %4294 = vadd.xlane.f32.xlu0 %v4293
  %v4295 = vpop.xlane.xlu0 %4294
  %v4296 = vsub.f32 %v4292, %v4286
  %v4297 = vsub.f32 %v4295, %v4289
  %v4298 = vpack.c.bf16 %v4281, %v4279
  %v4299 = vpack.c.bf16 %v4204, %v4203
  %v4300 = vpack.c.bf16 %v4206, %v4205
  %4303 = vrot.lane.b32.xlu0 %v4299, 64
  %v4304 = vpop.permute.xlu0 %4303
  %4305 = vrot.lane.b32.xlu0 %v4300, 64
  %v4306 = vpop.permute.xlu0 %4305
  %v4310 = vsel %vm82, %v4298, 0
  %4312 = vmatprep.subr.bf16.mxu0 0
  %4313 = vmatpush1.bf16.msra.mxu0 %v4304
  %4314 = vmatprep.subr.bf16.mxu0 0
  %4315 = vmatpush1.bf16.msra.mxu0 %v4306
  %4316 = vmatprep.subr.bf16.mxu0 0
  %4317 = vmatpush1.bf16.msra.mxu0 0
  %4318 = vmatprep.subr.bf16.mxu0 0
  %4319 = vmatpush1.bf16.msra.mxu0 0
  %4320 = vmatprep.subr.bf16.mxu0 0
  %4321 = vmatpush1.bf16.msra.mxu0 0
  %4322 = vmatprep.subr.bf16.mxu0 0
  %4323 = vmatpush1.bf16.msra.mxu0 0
  %4324 = vmatprep.subr.bf16.mxu0 0
  %4325 = vmatpush1.bf16.msra.mxu0 0
  %4326 = vmatprep.subr.bf16.mxu0 0
  %4327 = vmatpush1.bf16.msra.mxu0 0
  %4328 = vmatprep.subr.bf16.mxu0 0
  %4329 = vmatpush1.bf16.msra.mxu0 0
  %4330 = vmatprep.subr.bf16.mxu0 0
  %4331 = vmatpush1.bf16.msra.mxu0 0
  %4332 = vmatprep.subr.bf16.mxu0 0
  %4333 = vmatpush1.bf16.msra.mxu0 0
  %4334 = vmatprep.subr.bf16.mxu0 0
  %4335 = vmatpush1.bf16.msra.mxu0 0
  %4336 = vmatprep.subr.bf16.mxu0 0
  %4337 = vmatpush1.bf16.msra.mxu0 0
  %4338 = vmatprep.subr.bf16.mxu0 0
  %4339 = vmatpush1.bf16.msra.mxu0 0
  %4340 = vmatprep.subr.bf16.mxu0 0
  %4341 = vmatpush1.bf16.msra.mxu0 0
  %4342 = vmatprep.subr.bf16.mxu0 0
  %4343 = vmatpush1.bf16.msra.mxu0 0
  %4344 = vmatprep.mubr.bf16.mxu0 0
  %4345 = vmatmul.mubr.bf16.gmra.mrb[0].mxu0 %v4310
  %v4346 = vpop.f32.mrb[0].mxu0
  %v4347 = vadd.f32 0.0, %v4346
  %v4348 = vpop.f32.mrb[0].mxu0
  %v4349 = vpop.f32.mrb[0].mxu0
  %v4350 = vadd.f32 0.0, %v4349
  %v4351 = vpop.f32.mrb[0].mxu0
  %4352 = vdwg.mxu0
  %v4353 = vrcp.pop %v4286
  %v4354 = vrcp.pop %v4289
  %v4355 = vrcp.pop %v4296
  %v4356 = vrcp.pop %v4297
  %v4357 = vsel %vm241, %v4353, %v4355
  %v4358 = vsel %vm241, %v4354, %v4356
  %v4359 = vmul.f32 %v4347, %v4357
  %v4360 = vmul.f32 %v4350, %v4358
  %v4361 = vpack.c.bf16 %v4360, %v4359
  %v4362 = vld [vmem:[%s2 + $0x38] sm:$0x1]
  %v4363 = vlaneseq
  %v4364 = vshrl.u32 %v4363, 7
  %v4365 = vsub.s32 0, %v4364
  %v4366 = vrot.slane %v4362, %v4365
  %4367 = vrot.lane.b32.xlu0 %v4151, 32
  %v4368 = vpop.permute.xlu0 %4367
  %4369 = vrot.lane.b32.xlu0 %v4152, 32
  %v4370 = vpop.permute.xlu0 %4369
  %v4374 = vsel %vm82, %v4361, 0
  %4376 = vmatprep.subr.bf16.mxu0 0
  %4377 = vmatpush1.bf16.msra.mxu0 %v4368
  %4378 = vmatprep.subr.bf16.mxu0 0
  %4379 = vmatpush1.bf16.msra.mxu0 %v4370
  %4380 = vmatprep.subr.bf16.mxu0 0
  %4381 = vmatpush1.bf16.msra.mxu0 0
  %4382 = vmatprep.subr.bf16.mxu0 0
  %4383 = vmatpush1.bf16.msra.mxu0 0
  %4384 = vmatprep.subr.bf16.mxu0 0
  %4385 = vmatpush1.bf16.msra.mxu0 0
  %4386 = vmatprep.subr.bf16.mxu0 0
  %4387 = vmatpush1.bf16.msra.mxu0 0
  %4388 = vmatprep.subr.bf16.mxu0 0
  %4389 = vmatpush1.bf16.msra.mxu0 0
  %4390 = vmatprep.subr.bf16.mxu0 0
  %4391 = vmatpush1.bf16.msra.mxu0 0
  %4392 = vmatprep.subr.bf16.mxu0 0
  %4393 = vmatpush1.bf16.msra.mxu0 0
  %4394 = vmatprep.subr.bf16.mxu0 0
  %4395 = vmatpush1.bf16.msra.mxu0 0
  %4396 = vmatprep.subr.bf16.mxu0 0
  %4397 = vmatpush1.bf16.msra.mxu0 0
  %4398 = vmatprep.subr.bf16.mxu0 0
  %4399 = vmatpush1.bf16.msra.mxu0 0
  %4400 = vmatprep.subr.bf16.mxu0 0
  %4401 = vmatpush1.bf16.msra.mxu0 0
  %4402 = vmatprep.subr.bf16.mxu0 0
  %4403 = vmatpush1.bf16.msra.mxu0 0
  %4404 = vmatprep.subr.bf16.mxu0 0
  %4405 = vmatpush1.bf16.msra.mxu0 0
  %4406 = vmatprep.subr.bf16.mxu0 0
  %4407 = vmatpush1.bf16.msra.mxu0 0
  %4408 = vmatprep.mubr.bf16.mxu0 0
  %4409 = vmatmul.mubr.bf16.gmra.mrb[0].mxu0 %v4374
  %v4410 = vpop.f32.mrb[0].mxu0
  %v4411 = vadd.f32 %v4366, %v4410
  %v4412 = vpop.f32.mrb[0].mxu0
  %v4413 = vpop.f32.mrb[0].mxu0
  %v4414 = vadd.f32 %v4366, %v4413
  %v4415 = vpop.f32.mrb[0].mxu0
  %4416 = vdwg.mxu0
  %4419 = vrot.lane.b32.xlu0 %v4411, 64
  %v4420 = vpop.permute.xlu0 %4419
  %4421 = vrot.lane.b32.xlu0 %v4414, 64
  %v4422 = vpop.permute.xlu0 %4421
  %v4425 = vadd.f32 %v4127, %v4420
  %v4426 = vadd.f32 %v4128, %v4422
  %v4427 = vld [vmem:[%s2 + $0x39] sm:$0x1]
  %v4428 = vld [vmem:[%s2 + $0x3a] sm:$0x1]
  %4431 = vrot.lane.b32.xlu0 %v4425, 64
  %v4432 = vpop.permute.xlu0 %4431
  %4433 = vrot.lane.b32.xlu0 %v4426, 64
  %v4434 = vpop.permute.xlu0 %4433
  %v4437 = vsel %vm82, %v4432, 0.0
  %4438 = vadd.xlane.f32.xlu0 %v4437
  %v4439 = vpop.xlane.xlu0 %4438
  %v4440 = vsel %vm82, %v4434, 0.0
  %4441 = vadd.xlane.f32.xlu0 %v4440
  %v4442 = vpop.xlane.xlu0 %4441
  %v4443 = vmul.f32 %v4439, %v387
  %v4444 = vmul.f32 %v4442, %v387
  %v4445 = vsub.f32 %v4425, %v4443
  %v4446 = vsub.f32 %v4426, %v4444
  %v4447 = vmul.f32 %v4445, %v4445
  %v4448 = vmul.f32 %v4446, %v4446
  %4451 = vrot.lane.b32.xlu0 %v4447, 64
  %v4452 = vpop.permute.xlu0 %4451
  %4453 = vrot.lane.b32.xlu0 %v4448, 64
  %v4454 = vpop.permute.xlu0 %4453
  %v4457 = vsel %vm82, %v4452, 0.0
  %4458 = vadd.xlane.f32.xlu0 %v4457
  %v4459 = vpop.xlane.xlu0 %4458
  %v4460 = vsel %vm82, %v4454, 0.0
  %4461 = vadd.xlane.f32.xlu0 %v4460
  %v4462 = vpop.xlane.xlu0 %4461
  %v4463 = vmul.f32 %v4459, %v387
  %v4464 = vmul.f32 %v4462, %v387
  %v4465 = vadd.f32 %v4463, 1e-05
  %v4466 = vadd.f32 %v4464, 1e-05
  %v4467 = vrsqrt.pop %v4465
  %v4468 = vrsqrt.pop %v4466
  %v4469 = vmul.f32 %v4445, %v4467
  %v4470 = vmul.f32 %v4446, %v4468
  %v4471 = vlaneseq
  %v4472 = vshrl.u32 %v4471, 7
  %v4473 = vsub.s32 0, %v4472
  %v4474 = vrot.slane %v4427, %v4473
  %4476 = vrot.lane.b32.xlu0 %v4474, 64
  %v4477 = vpop.permute.xlu0 %4476
  %v4479 = vmul.f32 %v4469, %v4477
  %v4480 = vmul.f32 %v4470, %v4477
  %v4481 = vlaneseq
  %v4482 = vshrl.u32 %v4481, 7
  %v4483 = vsub.s32 0, %v4482
  %v4484 = vrot.slane %v4428, %v4483
  %4486 = vrot.lane.b32.xlu0 %v4484, 64
  %v4487 = vpop.permute.xlu0 %4486
  %v4489 = vadd.f32 %v4479, %v4487
  %v4490 = vadd.f32 %v4480, %v4487
  %v4491 = vld [vmem:[%s4129 + $0x4] sm:$0xf]
  %v4492 = vld [vmem:[%s4129 + $0x10] sm:$0xf]
  %v4493 = vld [vmem:[%s4129 + $0x1c] sm:$0xf]
  %v4494 = vld [vmem:[%s4129 + $0x28] sm:$0xf]
  %v4495 = vpack.c.bf16 %v4490, %v4489
  %v4496 = vld [vmem:[%s2 + $0x3b] sm:$0x1]
  %v4497 = vlaneseq
  %v4498 = vshrl.u32 %v4497, 7
  %v4499 = vsub.s32 0, %v4498
  %v4500 = vrot.slane %v4496, %v4499
  %4502 = vrot.lane.b32.xlu0 %v4495, 64
  %v4503 = vpop.permute.xlu0 %4502
  %v4508 = vunpack.c.l.b16 %v4491
  %v4509 = vunpack.c.l.b16 %v4492
  %v4510 = vunpack.c.l.b16 %v4493
  %v4511 = vunpack.c.l.b16 %v4494
  %v4512 = vpack.c.b16 %v4509, %v4508
  %v4513 = vpack.c.b16 %v4511, %v4510
  %v4517 = vsel %vm82, %v4503, 0
  %4519 = vmatprep.subr.bf16.mxu0 0
  %4520 = vmatpush1.bf16.msra.mxu0 %v4512
  %4521 = vmatprep.subr.bf16.mxu0 0
  %4522 = vmatpush1.bf16.msra.mxu0 %v4513
  %4523 = vmatprep.subr.bf16.mxu0 0
  %4524 = vmatpush1.bf16.msra.mxu0 0
  %4525 = vmatprep.subr.bf16.mxu0 0
  %4526 = vmatpush1.bf16.msra.mxu0 0
  %4527 = vmatprep.subr.bf16.mxu0 0
  %4528 = vmatpush1.bf16.msra.mxu0 0
  %4529 = vmatprep.subr.bf16.mxu0 0
  %4530 = vmatpush1.bf16.msra.mxu0 0
  %4531 = vmatprep.subr.bf16.mxu0 0
  %4532 = vmatpush1.bf16.msra.mxu0 0
  %4533 = vmatprep.subr.bf16.mxu0 0
  %4534 = vmatpush1.bf16.msra.mxu0 0
  %4535 = vmatprep.subr.bf16.mxu0 0
  %4536 = vmatpush1.bf16.msra.mxu0 0
  %4537 = vmatprep.subr.bf16.mxu0 0
  %4538 = vmatpush1.bf16.msra.mxu0 0
  %4539 = vmatprep.subr.bf16.mxu0 0
  %4540 = vmatpush1.bf16.msra.mxu0 0
  %4541 = vmatprep.subr.bf16.mxu0 0
  %4542 = vmatpush1.bf16.msra.mxu0 0
  %4543 = vmatprep.subr.bf16.mxu0 0
  %4544 = vmatpush1.bf16.msra.mxu0 0
  %4545 = vmatprep.subr.bf16.mxu0 0
  %4546 = vmatpush1.bf16.msra.mxu0 0
  %4547 = vmatprep.subr.bf16.mxu0 0
  %4548 = vmatpush1.bf16.msra.mxu0 0
  %4549 = vmatprep.subr.bf16.mxu0 0
  %4550 = vmatpush1.bf16.msra.mxu0 0
  %4551 = vmatprep.mubr.bf16.mxu0 0
  %4552 = vmatmul.mubr.bf16.gmra.mrb[0].mxu0 %v4517
  %v4553 = vpop.f32.mrb[0].mxu0
  %v4554 = vadd.f32 %v4500, %v4553
  %v4555 = vpop.f32.mrb[0].mxu0
  %v4556 = vpop.f32.mrb[0].mxu0
  %v4557 = vadd.f32 %v4500, %v4556
  %v4558 = vpop.f32.mrb[0].mxu0
  %4559 = vdwg.mxu0
  %v4560 = vld [vmem:[%s2 + $0x3c] sm:$0x1]
  %v4561 = vlaneseq
  %v4562 = vshrl.u32 %v4561, 7
  %v4563 = vsub.s32 0, %v4562
  %v4564 = vrot.slane %v4560, %v4563
  %4565 = vrot.lane.b32.xlu0 %v4512, 96
  %v4566 = vpop.permute.xlu0 %4565
  %4567 = vrot.lane.b32.xlu0 %v4513, 96
  %v4568 = vpop.permute.xlu0 %4567
  %4571 = vmatprep.subr.bf16.mxu0 0
  %4572 = vmatpush1.bf16.msra.mxu0 %v4566
  %4573 = vmatprep.subr.bf16.mxu0 0
  %4574 = vmatpush1.bf16.msra.mxu0 %v4568
  %4575 = vmatprep.subr.bf16.mxu0 0
  %4576 = vmatpush1.bf16.msra.mxu0 0
  %4577 = vmatprep.subr.bf16.mxu0 0
  %4578 = vmatpush1.bf16.msra.mxu0 0
  %4579 = vmatprep.subr.bf16.mxu0 0
  %4580 = vmatpush1.bf16.msra.mxu0 0
  %4581 = vmatprep.subr.bf16.mxu0 0
  %4582 = vmatpush1.bf16.msra.mxu0 0
  %4583 = vmatprep.subr.bf16.mxu0 0
  %4584 = vmatpush1.bf16.msra.mxu0 0
  %4585 = vmatprep.subr.bf16.mxu0 0
  %4586 = vmatpush1.bf16.msra.mxu0 0
  %4587 = vmatprep.subr.bf16.mxu0 0
  %4588 = vmatpush1.bf16.msra.mxu0 0
  %4589 = vmatprep.subr.bf16.mxu0 0
  %4590 = vmatpush1.bf16.msra.mxu0 0
  %4591 = vmatprep.subr.bf16.mxu0 0
  %4592 = vmatpush1.bf16.msra.mxu0 0
  %4593 = vmatprep.subr.bf16.mxu0 0
  %4594 = vmatpush1.bf16.msra.mxu0 0
  %4595 = vmatprep.subr.bf16.mxu0 0
  %4596 = vmatpush1.bf16.msra.mxu0 0
  %4597 = vmatprep.subr.bf16.mxu0 0
  %4598 = vmatpush1.bf16.msra.mxu0 0
  %4599 = vmatprep.subr.bf16.mxu0 0
  %4600 = vmatpush1.bf16.msra.mxu0 0
  %4601 = vmatprep.subr.bf16.mxu0 0
  %4602 = vmatpush1.bf16.msra.mxu0 0
  %4603 = vmatprep.mubr.bf16.mxu0 0
  %4604 = vmatmul.mubr.bf16.gmra.mrb[0].mxu0 %v1578
  %v4605 = vpop.f32.mrb[0].mxu0
  %v4606 = vadd.f32 %v4564, %v4605
  %v4607 = vpop.f32.mrb[0].mxu0
  %v4608 = vpop.f32.mrb[0].mxu0
  %v4609 = vadd.f32 %v4564, %v4608
  %v4610 = vpop.f32.mrb[0].mxu0
  %4611 = vdwg.mxu0
  %v4612 = vmul.f32 %v4606, %v54
  %v4613 = vmul.f32 %v4609, %v55
  %v4614 = vmul.f32 %v4606, %v56
  %v4615 = vmul.f32 %v4609, %v57
  %v4616 = vmul.f32 %v4606, %v134
  %v4617 = vmul.f32 %v4609, %v136
  %v4618 = vmul.f32 %v4606, %v138
  %v4619 = vmul.f32 %v4609, %v140
  %v4620 = vpack.c.bf16 %v4557, %v4554
  %v4621 = vpack.c.bf16 %v4613, %v4612
  %v4622 = vpack.c.bf16 %v4615, %v4614
  %v4624 = vsel %vm82, %v4620, 0
  %v4627 = vsel %vm82, %v4621, 0
  %v4630 = vsel %vm82, %v4622, 0
  %4632 = vmatprep.subr.bf16.mxu0 0
  %4633 = vmatpush1.bf16.xpose.msra.mxu0 %v4627
  %4634 = vmatprep.subr.bf16.mxu0 0
  %4635 = vmatpush1.bf16.xpose.msra.mxu0 %v4630
  %4636 = vmatprep.subr.bf16.mxu0 0
  %4637 = vmatpush1.bf16.xpose.msra.mxu0 0
  %4638 = vmatprep.subr.bf16.mxu0 0
  %4639 = vmatpush1.bf16.xpose.msra.mxu0 0
  %4640 = vmatprep.subr.bf16.mxu0 0
  %4641 = vmatpush1.bf16.xpose.msra.mxu0 0
  %4642 = vmatprep.subr.bf16.mxu0 0
  %4643 = vmatpush1.bf16.xpose.msra.mxu0 0
  %4644 = vmatprep.subr.bf16.mxu0 0
  %4645 = vmatpush1.bf16.xpose.msra.mxu0 0
  %4646 = vmatprep.subr.bf16.mxu0 0
  %4647 = vmatpush1.bf16.xpose.msra.mxu0 0
  %4648 = vmatprep.subr.bf16.mxu0 0
  %4649 = vmatpush1.bf16.xpose.msra.mxu0 0
  %4650 = vmatprep.subr.bf16.mxu0 0
  %4651 = vmatpush1.bf16.xpose.msra.mxu0 0
  %4652 = vmatprep.subr.bf16.mxu0 0
  %4653 = vmatpush1.bf16.xpose.msra.mxu0 0
  %4654 = vmatprep.subr.bf16.mxu0 0
  %4655 = vmatpush1.bf16.xpose.msra.mxu0 0
  %4656 = vmatprep.subr.bf16.mxu0 0
  %4657 = vmatpush1.bf16.xpose.msra.mxu0 0
  %4658 = vmatprep.subr.bf16.mxu0 0
  %4659 = vmatpush1.bf16.xpose.msra.mxu0 0
  %4660 = vmatprep.subr.bf16.mxu0 0
  %4661 = vmatpush1.bf16.xpose.msra.mxu0 0
  %4662 = vmatprep.subr.bf16.mxu0 0
  %4663 = vmatpush1.bf16.xpose.msra.mxu0 0
  %4664 = vmatprep.mubr.bf16.mxu0 0
  %4665 = vmatmul.mubr.bf16.gmra.mrb[0].mxu0 %v4624
  %v4666 = vpop.f32.mrb[0].mxu0
  %v4667 = vadd.f32 0.0, %v4666
  %v4668 = vpop.f32.mrb[0].mxu0
  %v4669 = vpop.f32.mrb[0].mxu0
  %v4670 = vadd.f32 0.0, %v4669
  %v4671 = vpop.f32.mrb[0].mxu0
  %4672 = vdwg.mxu0
  %v4673 = vmul.f32 %v4667, 0.25
  %v4674 = vmul.f32 %v4670, 0.25
  %v4675 = vadd.f32 %v4673, %v1622
  %v4676 = vadd.f32 %v4674, %v1623
  %v4677 = vsel %vm82, %v4675, -inf
  %4678 = vmax.xlane.f32.xlu0 %v4677
  %v4679 = vpop.xlane.xlu0 %4678
  %v4680 = vsel %vm82, %v4676, -inf
  %4681 = vmax.xlane.f32.xlu0 %v4680
  %v4682 = vpop.xlane.xlu0 %4681
  %v4683 = vsub.f32 %v4675, %v4679
  %v4684 = vsub.f32 %v4676, %v4682
  %v4685 = vmul.f32 %v4683, 1.442695
  %v4686 = vpow.pop %v4685
  %v4687 = vmul.f32 %v4684, 1.442695
  %v4688 = vpow.pop %v4687
  %v4689 = vsel %vm241, %v4686, 0.0
  %v4690 = vsel %vm241, %v4688, 0.0
  %v4691 = vsel %vm82, %v4689, 0.0
  %4692 = vadd.xlane.f32.xlu0 %v4691
  %v4693 = vpop.xlane.xlu0 %4692
  %v4694 = vsel %vm82, %v4690, 0.0
  %4695 = vadd.xlane.f32.xlu0 %v4694
  %v4696 = vpop.xlane.xlu0 %4695
  %v4697 = vsel %vm82, %v4686, 0.0
  %4698 = vadd.xlane.f32.xlu0 %v4697
  %v4699 = vpop.xlane.xlu0 %4698
  %v4700 = vsel %vm82, %v4688, 0.0
  %4701 = vadd.xlane.f32.xlu0 %v4700
  %v4702 = vpop.xlane.xlu0 %4701
  %v4703 = vsub.f32 %v4699, %v4693
  %v4704 = vsub.f32 %v4702, %v4696
  %v4705 = vpack.c.bf16 %v4688, %v4686
  %v4706 = vpack.c.bf16 %v4617, %v4616
  %v4707 = vpack.c.bf16 %v4619, %v4618
  %4710 = vrot.lane.b32.xlu0 %v4706, 96
  %v4711 = vpop.permute.xlu0 %4710
  %4712 = vrot.lane.b32.xlu0 %v4707, 96
  %v4713 = vpop.permute.xlu0 %4712
  %v4717 = vsel %vm82, %v4705, 0
  %4719 = vmatprep.subr.bf16.mxu0 0
  %4720 = vmatpush1.bf16.msra.mxu0 %v4711
  %4721 = vmatprep.subr.bf16.mxu0 0
  %4722 = vmatpush1.bf16.msra.mxu0 %v4713
  %4723 = vmatprep.subr.bf16.mxu0 0
  %4724 = vmatpush1.bf16.msra.mxu0 0
  %4725 = vmatprep.subr.bf16.mxu0 0
  %4726 = vmatpush1.bf16.msra.mxu0 0
  %4727 = vmatprep.subr.bf16.mxu0 0
  %4728 = vmatpush1.bf16.msra.mxu0 0
  %4729 = vmatprep.subr.bf16.mxu0 0
  %4730 = vmatpush1.bf16.msra.mxu0 0
  %4731 = vmatprep.subr.bf16.mxu0 0
  %4732 = vmatpush1.bf16.msra.mxu0 0
  %4733 = vmatprep.subr.bf16.mxu0 0
  %4734 = vmatpush1.bf16.msra.mxu0 0
  %4735 = vmatprep.subr.bf16.mxu0 0
  %4736 = vmatpush1.bf16.msra.mxu0 0
  %4737 = vmatprep.subr.bf16.mxu0 0
  %4738 = vmatpush1.bf16.msra.mxu0 0
  %4739 = vmatprep.subr.bf16.mxu0 0
  %4740 = vmatpush1.bf16.msra.mxu0 0
  %4741 = vmatprep.subr.bf16.mxu0 0
  %4742 = vmatpush1.bf16.msra.mxu0 0
  %4743 = vmatprep.subr.bf16.mxu0 0
  %4744 = vmatpush1.bf16.msra.mxu0 0
  %4745 = vmatprep.subr.bf16.mxu0 0
  %4746 = vmatpush1.bf16.msra.mxu0 0
  %4747 = vmatprep.subr.bf16.mxu0 0
  %4748 = vmatpush1.bf16.msra.mxu0 0
  %4749 = vmatprep.subr.bf16.mxu0 0
  %4750 = vmatpush1.bf16.msra.mxu0 0
  %4751 = vmatprep.mubr.bf16.mxu0 0
  %4752 = vmatmul.mubr.bf16.gmra.mrb[0].mxu0 %v4717
  %v4753 = vpop.f32.mrb[0].mxu0
  %v4754 = vadd.f32 0.0, %v4753
  %v4755 = vpop.f32.mrb[0].mxu0
  %v4756 = vpop.f32.mrb[0].mxu0
  %v4757 = vadd.f32 0.0, %v4756
  %v4758 = vpop.f32.mrb[0].mxu0
  %4759 = vdwg.mxu0
  %v4760 = vrcp.pop %v4693
  %v4761 = vrcp.pop %v4696
  %v4762 = vrcp.pop %v4703
  %v4763 = vrcp.pop %v4704
  %v4764 = vsel %vm241, %v4760, %v4762
  %v4765 = vsel %vm241, %v4761, %v4763
  %v4766 = vmul.f32 %v4754, %v4764
  %v4767 = vmul.f32 %v4757, %v4765
  %v4768 = vpack.c.bf16 %v4767, %v4766
  %v4769 = vld [vmem:[%s2 + $0x3d] sm:$0x1]
  %v4770 = vlaneseq
  %v4771 = vshrl.u32 %v4770, 7
  %v4772 = vsub.s32 0, %v4771
  %v4773 = vrot.slane %v4769, %v4772
  %4774 = vrot.lane.b32.xlu0 %v4512, 32
  %v4775 = vpop.permute.xlu0 %4774
  %4776 = vrot.lane.b32.xlu0 %v4513, 32
  %v4777 = vpop.permute.xlu0 %4776
  %v4781 = vsel %vm82, %v4768, 0
  %4783 = vmatprep.subr.bf16.mxu0 0
  %4784 = vmatpush1.bf16.msra.mxu0 %v4775
  %4785 = vmatprep.subr.bf16.mxu0 0
  %4786 = vmatpush1.bf16.msra.mxu0 %v4777
  %4787 = vmatprep.subr.bf16.mxu0 0
  %4788 = vmatpush1.bf16.msra.mxu0 0
  %4789 = vmatprep.subr.bf16.mxu0 0
  %4790 = vmatpush1.bf16.msra.mxu0 0
  %4791 = vmatprep.subr.bf16.mxu0 0
  %4792 = vmatpush1.bf16.msra.mxu0 0
  %4793 = vmatprep.subr.bf16.mxu0 0
  %4794 = vmatpush1.bf16.msra.mxu0 0
  %4795 = vmatprep.subr.bf16.mxu0 0
  %4796 = vmatpush1.bf16.msra.mxu0 0
  %4797 = vmatprep.subr.bf16.mxu0 0
  %4798 = vmatpush1.bf16.msra.mxu0 0
  %4799 = vmatprep.subr.bf16.mxu0 0
  %4800 = vmatpush1.bf16.msra.mxu0 0
  %4801 = vmatprep.subr.bf16.mxu0 0
  %4802 = vmatpush1.bf16.msra.mxu0 0
  %4803 = vmatprep.subr.bf16.mxu0 0
  %4804 = vmatpush1.bf16.msra.mxu0 0
  %4805 = vmatprep.subr.bf16.mxu0 0
  %4806 = vmatpush1.bf16.msra.mxu0 0
  %4807 = vmatprep.subr.bf16.mxu0 0
  %4808 = vmatpush1.bf16.msra.mxu0 0
  %4809 = vmatprep.subr.bf16.mxu0 0
  %4810 = vmatpush1.bf16.msra.mxu0 0
  %4811 = vmatprep.subr.bf16.mxu0 0
  %4812 = vmatpush1.bf16.msra.mxu0 0
  %4813 = vmatprep.subr.bf16.mxu0 0
  %4814 = vmatpush1.bf16.msra.mxu0 0
  %4815 = vmatprep.mubr.bf16.mxu0 0
  %4816 = vmatmul.mubr.bf16.gmra.mrb[0].mxu0 %v4781
  %v4817 = vpop.f32.mrb[0].mxu0
  %v4818 = vadd.f32 %v4773, %v4817
  %v4819 = vpop.f32.mrb[0].mxu0
  %v4820 = vpop.f32.mrb[0].mxu0
  %v4821 = vadd.f32 %v4773, %v4820
  %v4822 = vpop.f32.mrb[0].mxu0
  %4823 = vdwg.mxu0
  %4826 = vrot.lane.b32.xlu0 %v4818, 64
  %v4827 = vpop.permute.xlu0 %4826
  %4828 = vrot.lane.b32.xlu0 %v4821, 64
  %v4829 = vpop.permute.xlu0 %4828
  %v4832 = vadd.f32 %v4489, %v4827
  %v4833 = vadd.f32 %v4490, %v4829
  %v4834 = vld [vmem:[%s2 + $0x3e] sm:$0x1]
  %v4835 = vld [vmem:[%s2 + $0x3f] sm:$0x1]
  %4838 = vrot.lane.b32.xlu0 %v4832, 64
  %v4839 = vpop.permute.xlu0 %4838
  %4840 = vrot.lane.b32.xlu0 %v4833, 64
  %v4841 = vpop.permute.xlu0 %4840
  %v4844 = vsel %vm82, %v4839, 0.0
  %4845 = vadd.xlane.f32.xlu0 %v4844
  %v4846 = vpop.xlane.xlu0 %4845
  %v4847 = vsel %vm82, %v4841, 0.0
  %4848 = vadd.xlane.f32.xlu0 %v4847
  %v4849 = vpop.xlane.xlu0 %4848
  %v4850 = vmul.f32 %v4846, %v387
  %v4851 = vmul.f32 %v4849, %v387
  %v4852 = vsub.f32 %v4832, %v4850
  %v4853 = vsub.f32 %v4833, %v4851
  %v4854 = vmul.f32 %v4852, %v4852
  %v4855 = vmul.f32 %v4853, %v4853
  %4858 = vrot.lane.b32.xlu0 %v4854, 64
  %v4859 = vpop.permute.xlu0 %4858
  %4860 = vrot.lane.b32.xlu0 %v4855, 64
  %v4861 = vpop.permute.xlu0 %4860
  %v4864 = vsel %vm82, %v4859, 0.0
  %4865 = vadd.xlane.f32.xlu0 %v4864
  %v4866 = vpop.xlane.xlu0 %4865
  %v4867 = vsel %vm82, %v4861, 0.0
  %4868 = vadd.xlane.f32.xlu0 %v4867
  %v4869 = vpop.xlane.xlu0 %4868
  %v4870 = vmul.f32 %v4866, %v387
  %v4871 = vmul.f32 %v4869, %v387
  %v4872 = vadd.f32 %v4870, 1e-05
  %v4873 = vadd.f32 %v4871, 1e-05
  %v4874 = vrsqrt.pop %v4872
  %v4875 = vrsqrt.pop %v4873
  %v4876 = vmul.f32 %v4852, %v4874
  %v4877 = vmul.f32 %v4853, %v4875
  %v4878 = vlaneseq
  %v4879 = vshrl.u32 %v4878, 7
  %v4880 = vsub.s32 0, %v4879
  %v4881 = vrot.slane %v4834, %v4880
  %4883 = vrot.lane.b32.xlu0 %v4881, 64
  %v4884 = vpop.permute.xlu0 %4883
  %v4886 = vmul.f32 %v4876, %v4884
  %v4887 = vmul.f32 %v4877, %v4884
  %v4888 = vlaneseq
  %v4889 = vshrl.u32 %v4888, 7
  %v4890 = vsub.s32 0, %v4889
  %v4891 = vrot.slane %v4835, %v4890
  %4893 = vrot.lane.b32.xlu0 %v4891, 64
  %v4894 = vpop.permute.xlu0 %4893
  %v4896 = vadd.f32 %v4886, %v4894
  %v4897 = vadd.f32 %v4887, %v4894
  %v4898 = vld [vmem:[%s4129 + $0x8] sm:$0xf]
  %v4899 = vld [vmem:[%s4129 + $0x14] sm:$0xf]
  %v4900 = vld [vmem:[%s4129 + $0x20] sm:$0xf]
  %v4901 = vld [vmem:[%s4129 + $0x2c] sm:$0xf]
  %v4902 = vpack.c.bf16 %v4897, %v4896
  %v4903 = vld [vmem:[%s2 + $0x40] sm:$0x1]
  %v4904 = vlaneseq
  %v4905 = vshrl.u32 %v4904, 7
  %v4906 = vsub.s32 0, %v4905
  %v4907 = vrot.slane %v4903, %v4906
  %4909 = vrot.lane.b32.xlu0 %v4902, 64
  %v4910 = vpop.permute.xlu0 %4909
  %v4915 = vunpack.c.l.b16 %v4898
  %v4916 = vunpack.c.l.b16 %v4899
  %v4917 = vunpack.c.l.b16 %v4900
  %v4918 = vunpack.c.l.b16 %v4901
  %v4919 = vpack.c.b16 %v4916, %v4915
  %v4920 = vpack.c.b16 %v4918, %v4917
  %v4924 = vsel %vm82, %v4910, 0
  %4926 = vmatprep.subr.bf16.mxu0 0
  %4927 = vmatpush1.bf16.msra.mxu0 %v4919
  %4928 = vmatprep.subr.bf16.mxu0 0
  %4929 = vmatpush1.bf16.msra.mxu0 %v4920
  %4930 = vmatprep.subr.bf16.mxu0 0
  %4931 = vmatpush1.bf16.msra.mxu0 0
  %4932 = vmatprep.subr.bf16.mxu0 0
  %4933 = vmatpush1.bf16.msra.mxu0 0
  %4934 = vmatprep.subr.bf16.mxu0 0
  %4935 = vmatpush1.bf16.msra.mxu0 0
  %4936 = vmatprep.subr.bf16.mxu0 0
  %4937 = vmatpush1.bf16.msra.mxu0 0
  %4938 = vmatprep.subr.bf16.mxu0 0
  %4939 = vmatpush1.bf16.msra.mxu0 0
  %4940 = vmatprep.subr.bf16.mxu0 0
  %4941 = vmatpush1.bf16.msra.mxu0 0
  %4942 = vmatprep.subr.bf16.mxu0 0
  %4943 = vmatpush1.bf16.msra.mxu0 0
  %4944 = vmatprep.subr.bf16.mxu0 0
  %4945 = vmatpush1.bf16.msra.mxu0 0
  %4946 = vmatprep.subr.bf16.mxu0 0
  %4947 = vmatpush1.bf16.msra.mxu0 0
  %4948 = vmatprep.subr.bf16.mxu0 0
  %4949 = vmatpush1.bf16.msra.mxu0 0
  %4950 = vmatprep.subr.bf16.mxu0 0
  %4951 = vmatpush1.bf16.msra.mxu0 0
  %4952 = vmatprep.subr.bf16.mxu0 0
  %4953 = vmatpush1.bf16.msra.mxu0 0
  %4954 = vmatprep.subr.bf16.mxu0 0
  %4955 = vmatpush1.bf16.msra.mxu0 0
  %4956 = vmatprep.subr.bf16.mxu0 0
  %4957 = vmatpush1.bf16.msra.mxu0 0
  %4958 = vmatprep.mubr.bf16.mxu0 0
  %4959 = vmatmul.mubr.bf16.gmra.mrb[0].mxu0 %v4924
  %v4960 = vpop.f32.mrb[0].mxu0
  %v4961 = vadd.f32 %v4907, %v4960
  %v4962 = vpop.f32.mrb[0].mxu0
  %v4963 = vpop.f32.mrb[0].mxu0
  %v4964 = vadd.f32 %v4907, %v4963
  %v4965 = vpop.f32.mrb[0].mxu0
  %4966 = vdwg.mxu0
  %v4967 = vmax.f32 %v4961, 0.0
  %v4968 = vmax.f32 %v4964, 0.0
  %s4969 = scalar_lea.vmem %s6, 96
  %v4970 = vld [vmem:[%s4969] sm:$0xf]
  %v4971 = vld [vmem:[%s4969 + $0x4] sm:$0xf]
  %v4972 = vld [vmem:[%s4969 + $0x8] sm:$0xf]
  %v4973 = vld [vmem:[%s4969 + $0xc] sm:$0xf]
  %v4974 = vld [vmem:[%s4969 + $0x10] sm:$0xf]
  %v4975 = vld [vmem:[%s4969 + $0x14] sm:$0xf]
  %v4976 = vld [vmem:[%s4969 + $0x18] sm:$0xf]
  %v4977 = vld [vmem:[%s4969 + $0x1c] sm:$0xf]
  %v4978 = vpack.c.bf16 %v4968, %v4967
  %v4979 = vld [vmem:[%s2 + $0x41] sm:$0x1]
  %v4980 = vlaneseq
  %v4981 = vshrl.u32 %v4980, 7
  %v4982 = vsub.s32 0, %v4981
  %v4983 = vrot.slane %v4979, %v4982
  %v4992 = vunpack.c.l.b16 %v4970
  %v4993 = vunpack.c.l.b16 %v4971
  %v4994 = vunpack.c.l.b16 %v4972
  %v4995 = vunpack.c.l.b16 %v4973
  %v4996 = vunpack.c.l.b16 %v4974
  %v4997 = vunpack.c.l.b16 %v4975
  %v4998 = vunpack.c.l.b16 %v4976
  %v4999 = vunpack.c.l.b16 %v4977
  %v5000 = vpack.c.b16 %v4993, %v4992
  %v5001 = vpack.c.b16 %v4995, %v4994
  %v5002 = vpack.c.b16 %v4997, %v4996
  %v5003 = vpack.c.b16 %v4999, %v4998
  %v5009 = vsel %vm526, %v4978, 0
  %5011 = vmatprep.subr.bf16.mxu0 0
  %5012 = vmatpush1.bf16.msra.mxu0 %v5000
  %5013 = vmatprep.subr.bf16.mxu0 0
  %5014 = vmatpush1.bf16.msra.mxu0 %v5001
  %5015 = vmatprep.subr.bf16.mxu0 0
  %5016 = vmatpush1.bf16.msra.mxu0 %v5002
  %5017 = vmatprep.subr.bf16.mxu0 0
  %5018 = vmatpush1.bf16.msra.mxu0 %v5003
  %5019 = vmatprep.subr.bf16.mxu0 0
  %5020 = vmatpush1.bf16.msra.mxu0 0
  %5021 = vmatprep.subr.bf16.mxu0 0
  %5022 = vmatpush1.bf16.msra.mxu0 0
  %5023 = vmatprep.subr.bf16.mxu0 0
  %5024 = vmatpush1.bf16.msra.mxu0 0
  %5025 = vmatprep.subr.bf16.mxu0 0
  %5026 = vmatpush1.bf16.msra.mxu0 0
  %5027 = vmatprep.subr.bf16.mxu0 0
  %5028 = vmatpush1.bf16.msra.mxu0 0
  %5029 = vmatprep.subr.bf16.mxu0 0
  %5030 = vmatpush1.bf16.msra.mxu0 0
  %5031 = vmatprep.subr.bf16.mxu0 0
  %5032 = vmatpush1.bf16.msra.mxu0 0
  %5033 = vmatprep.subr.bf16.mxu0 0
  %5034 = vmatpush1.bf16.msra.mxu0 0
  %5035 = vmatprep.subr.bf16.mxu0 0
  %5036 = vmatpush1.bf16.msra.mxu0 0
  %5037 = vmatprep.subr.bf16.mxu0 0
  %5038 = vmatpush1.bf16.msra.mxu0 0
  %5039 = vmatprep.subr.bf16.mxu0 0
  %5040 = vmatpush1.bf16.msra.mxu0 0
  %5041 = vmatprep.subr.bf16.mxu0 0
  %5042 = vmatpush1.bf16.msra.mxu0 0
  %5043 = vmatprep.mubr.bf16.mxu0 0
  %5044 = vmatmul.mubr.bf16.gmra.mrb[0].mxu0 %v5009
  %v5045 = vpop.f32.mrb[0].mxu0
  %v5046 = vadd.f32 %v4983, %v5045
  %v5047 = vpop.f32.mrb[0].mxu0
  %v5048 = vpop.f32.mrb[0].mxu0
  %v5049 = vadd.f32 %v4983, %v5048
  %v5050 = vpop.f32.mrb[0].mxu0
  %5051 = vdwg.mxu0
  %5054 = vrot.lane.b32.xlu0 %v5046, 64
  %v5055 = vpop.permute.xlu0 %5054
  %5056 = vrot.lane.b32.xlu0 %v5049, 64
  %v5057 = vpop.permute.xlu0 %5056
  %v5060 = vadd.f32 %v4896, %v5055
  %v5061 = vadd.f32 %v4897, %v5057
  %v5062 = vld [vmem:[%s2 + $0x42] sm:$0x1]
  %v5063 = vld [vmem:[%s2 + $0x43] sm:$0x1]
  %5066 = vrot.lane.b32.xlu0 %v5060, 64
  %v5067 = vpop.permute.xlu0 %5066
  %5068 = vrot.lane.b32.xlu0 %v5061, 64
  %v5069 = vpop.permute.xlu0 %5068
  %v5072 = vsel %vm82, %v5067, 0.0
  %5073 = vadd.xlane.f32.xlu0 %v5072
  %v5074 = vpop.xlane.xlu0 %5073
  %v5075 = vsel %vm82, %v5069, 0.0
  %5076 = vadd.xlane.f32.xlu0 %v5075
  %v5077 = vpop.xlane.xlu0 %5076
  %v5078 = vmul.f32 %v5074, %v387
  %v5079 = vmul.f32 %v5077, %v387
  %v5080 = vsub.f32 %v5060, %v5078
  %v5081 = vsub.f32 %v5061, %v5079
  %v5082 = vmul.f32 %v5080, %v5080
  %v5083 = vmul.f32 %v5081, %v5081
  %5086 = vrot.lane.b32.xlu0 %v5082, 64
  %v5087 = vpop.permute.xlu0 %5086
  %5088 = vrot.lane.b32.xlu0 %v5083, 64
  %v5089 = vpop.permute.xlu0 %5088
  %v5092 = vsel %vm82, %v5087, 0.0
  %5093 = vadd.xlane.f32.xlu0 %v5092
  %v5094 = vpop.xlane.xlu0 %5093
  %v5095 = vsel %vm82, %v5089, 0.0
  %5096 = vadd.xlane.f32.xlu0 %v5095
  %v5097 = vpop.xlane.xlu0 %5096
  %v5098 = vmul.f32 %v5094, %v387
  %v5099 = vmul.f32 %v5097, %v387
  %v5100 = vadd.f32 %v5098, 1e-05
  %v5101 = vadd.f32 %v5099, 1e-05
  %v5102 = vrsqrt.pop %v5100
  %v5103 = vrsqrt.pop %v5101
  %v5104 = vmul.f32 %v5080, %v5102
  %v5105 = vmul.f32 %v5081, %v5103
  %v5106 = vlaneseq
  %v5107 = vshrl.u32 %v5106, 7
  %v5108 = vsub.s32 0, %v5107
  %v5109 = vrot.slane %v5062, %v5108
  %5111 = vrot.lane.b32.xlu0 %v5109, 64
  %v5112 = vpop.permute.xlu0 %5111
  %v5114 = vmul.f32 %v5104, %v5112
  %v5115 = vmul.f32 %v5105, %v5112
  %v5116 = vlaneseq
  %v5117 = vshrl.u32 %v5116, 7
  %v5118 = vsub.s32 0, %v5117
  %v5119 = vrot.slane %v5063, %v5118
  %5121 = vrot.lane.b32.xlu0 %v5119, 64
  %v5122 = vpop.permute.xlu0 %5121
  %v5124 = vadd.f32 %v5114, %v5122
  %v5125 = vadd.f32 %v5115, %v5122
  %v5126 = vld [vmem:[%s7] sm:$0xf]
  %v5127 = vld [vmem:[%s7 + $0x4] sm:$0xf]
  %v5128 = vld [vmem:[%s7 + $0x8] sm:$0xf]
  %v5129 = vld [vmem:[%s7 + $0xc] sm:$0xf]
  %v5130 = vpack.c.bf16 %v3133, %v3132
  %v5131 = vld [vmem:[%s2 + $0x44] sm:$0x1]
  %v5132 = vlaneseq
  %v5133 = vshrl.u32 %v5132, 7
  %v5134 = vsub.s32 0, %v5133
  %v5135 = vrot.slane %v5131, %v5134
  %5137 = vrot.lane.b32.xlu0 %v5130, 96
  %v5138 = vpop.permute.xlu0 %5137
  %v5143 = vunpack.c.l.b16 %v5126
  %v5144 = vunpack.c.l.b16 %v5127
  %v5145 = vunpack.c.l.b16 %v5128
  %v5146 = vunpack.c.l.b16 %v5129
  %v5147 = vpack.c.b16 %v5144, %v5143
  %v5148 = vpack.c.b16 %v5146, %v5145
  %v5152 = vsel %vm82, %v5138, 0
  %5154 = vmatprep.subr.bf16.mxu0 0
  %5155 = vmatpush1.bf16.msra.mxu0 %v5147
  %5156 = vmatprep.subr.bf16.mxu0 0
  %5157 = vmatpush1.bf16.msra.mxu0 %v5148
  %5158 = vmatprep.subr.bf16.mxu0 0
  %5159 = vmatpush1.bf16.msra.mxu0 0
  %5160 = vmatprep.subr.bf16.mxu0 0
  %5161 = vmatpush1.bf16.msra.mxu0 0
  %5162 = vmatprep.subr.bf16.mxu0 0
  %5163 = vmatpush1.bf16.msra.mxu0 0
  %5164 = vmatprep.subr.bf16.mxu0 0
  %5165 = vmatpush1.bf16.msra.mxu0 0
  %5166 = vmatprep.subr.bf16.mxu0 0
  %5167 = vmatpush1.bf16.msra.mxu0 0
  %5168 = vmatprep.subr.bf16.mxu0 0
  %5169 = vmatpush1.bf16.msra.mxu0 0
  %5170 = vmatprep.subr.bf16.mxu0 0
  %5171 = vmatpush1.bf16.msra.mxu0 0
  %5172 = vmatprep.subr.bf16.mxu0 0
  %5173 = vmatpush1.bf16.msra.mxu0 0
  %5174 = vmatprep.subr.bf16.mxu0 0
  %5175 = vmatpush1.bf16.msra.mxu0 0
  %5176 = vmatprep.subr.bf16.mxu0 0
  %5177 = vmatpush1.bf16.msra.mxu0 0
  %5178 = vmatprep.subr.bf16.mxu0 0
  %5179 = vmatpush1.bf16.msra.mxu0 0
  %5180 = vmatprep.subr.bf16.mxu0 0
  %5181 = vmatpush1.bf16.msra.mxu0 0
  %5182 = vmatprep.subr.bf16.mxu0 0
  %5183 = vmatpush1.bf16.msra.mxu0 0
  %5184 = vmatprep.subr.bf16.mxu0 0
  %5185 = vmatpush1.bf16.msra.mxu0 0
  %5186 = vmatprep.mubr.bf16.mxu0 0
  %5187 = vmatmul.mubr.bf16.gmra.mrb[0].mxu0 %v5152
  %v5188 = vpop.f32.mrb[0].mxu0
  %v5189 = vadd.f32 %v5135, %v5188
  %v5190 = vpop.f32.mrb[0].mxu0
  %v5191 = vpop.f32.mrb[0].mxu0
  %v5192 = vadd.f32 %v5135, %v5191
  %v5193 = vpop.f32.mrb[0].mxu0
  %5194 = vdwg.mxu0
  %vm5195 = vcmask 31744
  %v5196 = vsel %vm5195, %v5189, -inf
  %5197 = vmax.xlane.f32.xlu0 %v5196
  %v5198 = vpop.xlane.xlu0 %5197
  %v5199 = vsel %vm5195, %v5192, -inf
  %5200 = vmax.xlane.f32.xlu0 %v5199
  %v5201 = vpop.xlane.xlu0 %5200
  %v5202 = vsub.f32 %v5189, %v5198
  %v5203 = vsub.f32 %v5192, %v5201
  %v5204 = vmul.f32 %v5202, 1.442695
  %v5205 = vpow.pop %v5204
  %v5206 = vmul.f32 %v5203, 1.442695
  %v5207 = vpow.pop %v5206
  %v5208 = vsel %vm5195, %v5205, 0.0
  %5209 = vadd.xlane.f32.xlu0 %v5208
  %v5210 = vpop.xlane.xlu0 %5209
  %v5211 = vsel %vm5195, %v5207, 0.0
  %5212 = vadd.xlane.f32.xlu0 %v5211
  %v5213 = vpop.xlane.xlu0 %5212
  %v5214 = vlog2.pop %v5210
  %v5215 = vmul.f32 %v5214, 0.6931472
  %v5216 = vlog2.pop %v5213
  %v5217 = vmul.f32 %v5216, 0.6931472
  %v5218 = vadd.f32 %v5198, %v5215
  %v5219 = vadd.f32 %v5201, %v5217
  %5222 = vrot.lane.b32.xlu0 %v58, 32
  %v5223 = vpop.permute.xlu0 %5222
  %5224 = vrot.lane.b32.xlu0 %v59, 32
  %v5225 = vpop.permute.xlu0 %5224
  %v5228 = vmul.f32 %v5189, %v5223
  %v5229 = vmul.f32 %v5192, %v5225
  %v5230 = vsel %vm5195, %v5228, 0.0
  %5231 = vadd.xlane.f32.xlu0 %v5230
  %v5232 = vpop.xlane.xlu0 %5231
  %v5233 = vsel %vm5195, %v5229, 0.0
  %5234 = vadd.xlane.f32.xlu0 %v5233
  %v5235 = vpop.xlane.xlu0 %5234
  %v5236 = vsub.f32 %v5218, %v5232
  %v5237 = vsub.f32 %v5219, %v5235
  %v5238 = vld [vmem:[%s2 + $0x45] sm:$0x1]
  %v5239 = vld [vmem:[%s2 + $0x46] sm:$0x1]
  %v5240 = vlaneseq
  %v5241 = vshrl.u32 %v5240, 7
  %v5242 = vsub.s32 0, %v5241
  %v5243 = vrot.slane %v5238, %v5242
  %5245 = vrot.lane.b32.xlu0 %v5243, 64
  %v5246 = vpop.permute.xlu0 %5245
  %v5248 = vmul.f32 %v5124, %v5246
  %v5249 = vmul.f32 %v5125, %v5246
  %5252 = vrot.lane.b32.xlu0 %v5248, 64
  %v5253 = vpop.permute.xlu0 %5252
  %5254 = vrot.lane.b32.xlu0 %v5249, 64
  %v5255 = vpop.permute.xlu0 %5254
  %v5258 = vsel %vm82, %v5253, 0.0
  %5259 = vadd.xlane.f32.xlu0 %v5258
  %v5260 = vpop.xlane.xlu0 %5259
  %v5261 = vsel %vm82, %v5255, 0.0
  %5262 = vadd.xlane.f32.xlu0 %v5261
  %v5263 = vpop.xlane.xlu0 %5262
  %v5264 = vlaneseq
  %v5265 = vshrl.u32 %v5264, 7
  %v5266 = vsub.s32 0, %v5265
  %v5267 = vrot.slane %v5239, %v5266
  %v5268 = vadd.f32 %v5260, %v5267
  %v5269 = vadd.f32 %v5263, %v5267
  %5270 = vrot.lane.b32.xlu0 %v58, 28
  %v5271 = vpop.permute.xlu0 %5270
  %5272 = vrot.lane.b32.xlu0 %v59, 28
  %v5273 = vpop.permute.xlu0 %5272
  %v5276 = vsub.f32 %v5268, %v5271
  %v5277 = vsub.f32 %v5269, %v5273
  %v5278 = vmul.f32 %v5276, %v5276
  %v5279 = vmul.f32 %v5277, %v5277
  %vm5280 = vcmask 7168
  %v5281 = vsel %vm5280, %v5236, 0.0
  %v5282 = vsel %vm5280, %v5237, 0.0
  %v5283 = vadd.f32 %v5281, %v5282
  %5284 = vadd.xlane.f32.xlu0 %v5283
  %v5285 = vpop.xlane.xlu0 %5284
  %v5286 = vrot.slane %v5285, 4
  %v5287 = vadd.f32 %v5285, %v5286
  %v5288 = vrot.slane %v5287, 2
  %v5289 = vadd.f32 %v5287, %v5288
  %v5290 = vrot.slane %v5289, 1
  %v5291 = vadd.f32 %v5289, %v5290
  %s5292 = vtos %v5291
  %v5293 = vstv %s5292
  %v5294 = vmul.f32 %v5293, 0.5
  %v5295 = vsel %vm5280, %v5278, 0.0
  %v5296 = vsel %vm5280, %v5279, 0.0
  %v5297 = vadd.f32 %v5295, %v5296
  %5298 = vadd.xlane.f32.xlu0 %v5297
  %v5299 = vpop.xlane.xlu0 %5298
  %v5300 = vrot.slane %v5299, 4
  %v5301 = vadd.f32 %v5299, %v5300
  %v5302 = vrot.slane %v5301, 2
  %v5303 = vadd.f32 %v5301, %v5302
  %v5304 = vrot.slane %v5303, 1
  %v5305 = vadd.f32 %v5303, %v5304
  %s5306 = vtos %v5305
  %v5307 = vstv %s5306
  %v5308 = vmul.f32 %v5307, 0.5
  %v5309 = vadd.f32 %v5294, %v5308
  %v5310 = vsel %vm5280, %v5309, %v5308
  %vm5311 = vcmask 15360
  %v5312 = vsel %vm5311, %v5310, %v5294
  %vm5313 = vcmask 16384
  %5314 = vst.msk [vmem:[%s8] sm:$0x1] %vm5313, %v5312
  // Predicated region
  $region34: #{forward.1} parent=0 // pred_check
    _
  $region35: #{forward.1} parent=0 // pred_check_branch
    %5316 = sbr.rel (0) target = $region37
  $region36: #{forward.1} parent=0 // pred_region
    _
  $region37: #{forward.1} parent=0 // pred_fallthru
    _
  // Predicated region
  $region38: #{forward.1} parent=0 // pred_check
    _
  $region39: #{forward.1} parent=0 // pred_check_branch
    %5318 = sbr.rel (0) target = $region41
  $region40: #{forward.1} parent=0 // pred_region
    _
  $region41: #{forward.1} parent=0 // pred_fallthru
    _

</llo_original>
